<compile_context>
chip_gen: v5e
topology: v5e:2x2
jax: 0.10.0
libtpu: 0.0.40
codegen_flags: <defaults>
</compile_context>

<pallas_src>
import numpy as np
import jax
import jax.numpy as jnp
from jax.experimental import pallas as pl
from jax.experimental.pallas import tpu as pltpu


# ------------------------------------------------------------------ fused kernel
def _policy_kernel(p0_ref, w0_ref, b0_ref, w1_ref, b1_ref, w2_ref, b2_ref,
                   w3_ref, b3_ref, d1_ref, d2_ref, head_w_ref, head_b_ref,
                   wz_ref, wa_ref, wh_ref, lb_ref, cwz_ref, cwh_ref, cb_ref,
                   eps_ref, a_ref, h0_ref, c0_ref,
                   act_out_ref, h_out_ref, c_out_ref):
    """Whole Policy.forward: 4 convs + VAE heads + reparameterize + LSTM + controller."""

    def conv(patches, w_ref, b_ref):
        y = jnp.dot(patches, w_ref[...], preferred_element_type=jnp.float32) + b_ref[...]
        return jnp.maximum(y, 0.0).astype(jnp.bfloat16)

    def assemble(a4d, n_oh, slab, g_even, g_odd):
        """a4d[i, p, g, c] holds activation rows oh=2i+p with columns parity-grouped
        along g.  Tap (kh, kw) of the next 4x4/stride-2 conv is then a contiguous
        slice; 16 slices lane-concatenated give the patch matrix."""
        taps = []
        for kh in range(4):
            for kw in range(4):
                gs = (g_even if kw % 2 == 0 else g_odd) + kw // 2
                sl = a4d[kh // 2:kh // 2 + n_oh, kh % 2, gs:gs + slab, :]
                taps.append(sl.reshape(n_oh * slab, sl.shape[-1]))
        return jnp.concatenate(taps, axis=-1)

    # ---- conv0 (patches precomputed outside, columns already parity grouped) ----
    y0 = conv(p0_ref[...], w0_ref, b0_ref)                      # (1280, 32)
    a0 = y0.reshape(16, 2, 40, 32)                               # (i, p, g, c)

    # ---- conv1 / conv2 / conv3; parity-group each output via tiny 0/1 matmul ----
    y1 = conv(assemble(a0, 14, 16, 0, 20), w1_ref, b1_ref)       # (224, 64)
    a1 = jnp.dot(d1_ref[...], y1, preferred_element_type=jnp.float32
                 ).astype(jnp.bfloat16).reshape(7, 2, 24, 64)

    y2 = conv(assemble(a1, 6, 8, 0, 12), w2_ref, b2_ref)         # (48, 128)
    a2 = jnp.dot(d2_ref[...], y2, preferred_element_type=jnp.float32
                 ).astype(jnp.bfloat16).reshape(3, 2, 24, 128)

    y3 = conv(assemble(a2, 2, 8, 0, 12), w3_ref, b3_ref)         # (16, 256), real rows 0,1,8,9

    # ---- VAE heads (mu | logvar fused); flatten = sum of 4 per-position dots ----
    heads = head_b_ref[...]                                      # (1, 64) f32
    for p_idx, row in enumerate((0, 1, 8, 9)):                   # 2x2 spatial positions
        heads = heads + jnp.dot(y3[row:row + 1, :],
                                head_w_ref[p_idx * 256:(p_idx + 1) * 256, :],
                                preferred_element_type=jnp.float32)
    mu, logvar = heads[:, :32], heads[:, 32:64]
    z = mu + jnp.exp(0.5 * logvar) * eps_ref[...]                # reparameterize (f32)
    zb = z.astype(jnp.bfloat16)

    # ---- MDN-LSTM cell (PyTorch gate order i, f, g, o), no dead weight rows ----
    gates = (jnp.dot(zb, wz_ref[...], preferred_element_type=jnp.float32)
             + jnp.dot(a_ref[...], wa_ref[...], preferred_element_type=jnp.float32)
             + jnp.dot(h0_ref[...].astype(jnp.bfloat16), wh_ref[...],
                       preferred_element_type=jnp.float32)
             + lb_ref[...])
    i_g = jax.nn.sigmoid(gates[:, 0:256])
    f_g = jax.nn.sigmoid(gates[:, 256:512])
    g_g = jnp.tanh(gates[:, 512:768])
    o_g = jax.nn.sigmoid(gates[:, 768:1024])
    c_new = f_g * c0_ref[...] + i_g * g_g
    h_new = o_g * jnp.tanh(c_new)

    # ---- Controller: tanh(W [z, h_new] + b) ----
    act = jnp.tanh(jnp.dot(zb, cwz_ref[...], preferred_element_type=jnp.float32)
                   + jnp.dot(h_new.astype(jnp.bfloat16), cwh_ref[...],
                             preferred_element_type=jnp.float32)
                   + cb_ref[...])

    act_out_ref[...] = act
    h_out_ref[...] = h_new
    c_out_ref[...] = c_new


_FLOPS = 2 * (1280 * 128 * 32 + 224 * 512 * 64 + 336 * 224 * 64
              + 48 * 1024 * 128 + 144 * 48 * 128 + 16 * 2048 * 256
              + 4 * 256 * 64 + 32 * 1024 + 8 * 1024 + 256 * 1024 + (32 + 256) * 8)
_COST = pl.CostEstimate(flops=_FLOPS, transcendentals=2048, bytes_accessed=3 * 1024 * 1024)
_COMPILER_PARAMS = pltpu.CompilerParams(vmem_limit_bytes=32 * 1024 * 1024)


# ------------------------------------------------------------------ parameters
def init_params(key, input_channels=3, latent_dim=32, hidden_dim=256, action_dim=3):
    """Torch-layout parameters (as the nn.Module would hold them)."""
    keys = jax.random.split(key, 10)
    s = 0.05

    def w(k, shape):
        return (s * jax.random.normal(k, shape)).astype(jnp.float32)

    p = {}
    chans = [input_channels, 32, 64, 128, 256]
    for li in range(4):
        p[f"conv{li}_w"] = w(keys[li], (chans[li + 1], chans[li], 4, 4))
        p[f"conv{li}_b"] = jnp.zeros((chans[li + 1],), jnp.float32)
    flat = 256 * 2 * 2
    p["fc_mu_w"] = w(keys[4], (latent_dim, flat))
    p["fc_mu_b"] = jnp.zeros((latent_dim,), jnp.float32)
    p["fc_lv_w"] = w(keys[5], (latent_dim, flat))
    p["fc_lv_b"] = jnp.zeros((latent_dim,), jnp.float32)
    p["lstm_w_ih"] = w(keys[6], (4 * hidden_dim, latent_dim + action_dim))
    p["lstm_w_hh"] = w(keys[7], (4 * hidden_dim, hidden_dim))
    p["lstm_b"] = jnp.zeros((4 * hidden_dim,), jnp.float32)       # b_ih + b_hh combined
    p["ctrl_w"] = w(keys[8], (action_dim, latent_dim + hidden_dim))
    p["ctrl_b"] = jnp.zeros((action_dim,), jnp.float32)
    # NOTE: the MDN mixture head (pi/mu/sigma) is omitted: Policy.forward discards it.
    return p


def _deinterleave_matrix(n_h, w_src, e_dst, w_dst):
    """0/1 matrix mapping raster rows (oh, j) to parity-grouped rows (oh, [even|odd|pad])."""
    m = np.zeros((n_h * w_dst, n_h * w_src), np.float32)
    for h in range(n_h):
        for k in range(w_dst):
            j = 2 * k if k < e_dst else 2 * (k - e_dst) + 1
            if j < w_src:
                m[h * w_dst + k, h * w_src + j] = 1.0
    return jnp.asarray(m, dtype=jnp.bfloat16)


def prepare_params(p, latent_dim=32, hidden_dim=256, action_dim=3):
    """One-shot repack (outside jit): transpose/stack/pad weights, cast matmul operands
    to bf16, keep biases f32, build the tiny deinterleave selectors."""
    f32, bf16 = jnp.float32, jnp.bfloat16
    q = {}

    # conv weights: torch (Cout, Cin, 4, 4) -> (16*Cin_pad, Cout), feature order (kh, kw, c)
    for li in range(4):
        w = p[f"conv{li}_w"]
        cout, cin = w.shape[0], w.shape[1]
        cin_pad = 8 if li == 0 else cin
        wt = jnp.transpose(w, (2, 3, 1, 0))                      # (kh, kw, Cin, Cout)
        if cin_pad != cin:
            wt = jnp.pad(wt, ((0, 0), (0, 0), (0, cin_pad - cin), (0, 0)))
        q[f"w{li}"] = wt.reshape(16 * cin_pad, cout).astype(bf16)
        q[f"b{li}"] = p[f"conv{li}_b"].reshape(1, cout).astype(f32)

    # VAE fc heads: torch indexes a (C, 2, 2) flatten; kernel features are (h, w, C).
    def fc_to_hwc(w):                                            # (L, 1024) -> (1024, L)
        return jnp.transpose(w.reshape(-1, 256, 2, 2), (0, 2, 3, 1)).reshape(-1, 1024).T

    q["head_w"] = jnp.concatenate([fc_to_hwc(p["fc_mu_w"]), fc_to_hwc(p["fc_lv_w"])],
                                  axis=1).astype(bf16)           # (1024, 64)
    q["head_b"] = jnp.concatenate([p["fc_mu_b"], p["fc_lv_b"]]).reshape(1, -1).astype(f32)

    # MDN-LSTM cell: x = [z, action]; gate order (i, f, g, o)
    L, H, A = latent_dim, hidden_dim, action_dim
    q["lstm_wz"] = p["lstm_w_ih"][:, :L].T.astype(bf16)                        # (32, 4H)
    wa = jnp.zeros((8, 4 * H), f32).at[:A, :].set(p["lstm_w_ih"][:, L:L + A].T)
    q["lstm_wa"] = wa.astype(bf16)                                             # (8, 4H)
    q["lstm_wh"] = p["lstm_w_hh"].T.astype(bf16)                               # (256, 4H)
    q["lstm_b"] = p["lstm_b"].reshape(1, -1).astype(f32)

    # Controller: (A, L+H) split over [z | h], output lanes padded 3 -> 8
    q["ctrl_wz"] = jnp.zeros((L, 8), f32).at[:, :A].set(p["ctrl_w"][:, :L].T).astype(bf16)
    q["ctrl_wh"] = jnp.zeros((H, 8), f32).at[:, :A].set(p["ctrl_w"][:, L:].T).astype(bf16)
    q["ctrl_b"] = jnp.zeros((1, 8), f32).at[0, :A].set(p["ctrl_b"])

    # parity-grouping selectors for conv1 / conv2 outputs (conv0's is folded into the
    # XLA-side patch builder; conv3 needs none)
    q["deint1"] = _deinterleave_matrix(14, 16, 12, 24)            # (336, 224)
    q["deint2"] = _deinterleave_matrix(6, 8, 12, 24)              # (144, 48)
    return q


# ------------------------------------------------------------------ forward
def policy_forward(q, state, last_action, hidden_state, eps):
    """Mirrors Policy.forward: returns (action, new_hidden_state)."""
    hidden_dim = hidden_state[0].shape[-1]
    action_dim = last_action.shape[-1]

    # layout boundary: CHW -> HWC once, pad (H 64->66, W 64->82, C 3->8), cast bf16 once
    x = jnp.transpose(state, (1, 2, 0)).astype(jnp.bfloat16)
    x = jnp.pad(x, ((0, 66 - x.shape[0]), (0, 82 - x.shape[1]), (0, 8 - x.shape[2])))

    # conv0 im2col on the raw frame (pure XLA, runs once per step): 32 output rows x
    # 40 parity-grouped output columns (20 even | 20 odd), features (kh, kw, c)
    taps = []
    for kh in range(4):
        rows = x[kh::2][:32]                                      # (32, 82, 8)
        for kw in range(4):
            ev = rows[:, kw::4, :][:, :20]                        # image col = 2*(2g)   + kw
            od = rows[:, kw + 2::4, :][:, :20]                    # image col = 2*(2g+1) + kw
            taps.append(jnp.concatenate([ev, od], axis=1))        # (32, 40, 8)
    patches0 = jnp.concatenate(taps, axis=-1).reshape(32 * 40, 16 * 8)   # (1280, 128)

    # small per-step vectors (M = 1 rows, no padded garbage rows)
    eps_in = eps.reshape(1, -1).astype(jnp.float32)
    a_in = jnp.zeros((1, 8), jnp.bfloat16).at[:, :action_dim].set(
        last_action.reshape(1, -1).astype(jnp.bfloat16))
    h0 = hidden_state[0].reshape(1, hidden_dim).astype(jnp.float32)
    c0 = hidden_state[1].reshape(1, hidden_dim).astype(jnp.float32)

    out_shape = (jax.ShapeDtypeStruct((1, 8), jnp.float32),            # padded action
                 jax.ShapeDtypeStruct((1, hidden_dim), jnp.float32),   # h_new
                 jax.ShapeDtypeStruct((1, hidden_dim), jnp.float32))   # c_new

    vmem_spec = pl.BlockSpec(memory_space=pltpu.MemorySpace.VMEM)
    act_p, h_new, c_new = pl.pallas_call(
        _policy_kernel,
        out_shape=out_shape,
        in_specs=[vmem_spec] * 24,
        out_specs=(vmem_spec, vmem_spec, vmem_spec),
        compiler_params=_COMPILER_PARAMS,
        cost_estimate=_COST,
    )(patches0,
      q["w0"], q["b0"], q["w1"], q["b1"], q["w2"], q["b2"], q["w3"], q["b3"],
      q["deint1"], q["deint2"], q["head_w"], q["head_b"],
      q["lstm_wz"], q["lstm_wa"], q["lstm_wh"], q["lstm_b"],
      q["ctrl_wz"], q["ctrl_wh"], q["ctrl_b"],
      eps_in, a_in, h0, c0)

    action = act_p[:, :action_dim]
    new_hidden = (h_new.reshape(1, 1, hidden_dim), c_new.reshape(1, 1, hidden_dim))
    return action, new_hidden


# ------------------------------------------------------------------ main
if __name__ == "__main__":
    key = jax.random.PRNGKey(0)
    k_param, k_state, k_eps = jax.random.split(key, 3)

    input_channels, latent_dim, hidden_dim, action_dim = 3, 32, 256, 3

    raw_params = init_params(k_param, input_channels, latent_dim, hidden_dim, action_dim)
    params = prepare_params(raw_params, latent_dim, hidden_dim, action_dim)  # outside jit

    # state is a single CHW float32 frame (like the torch forward before unsqueeze(0))
    state = jax.random.uniform(k_state, (input_channels, 64, 64), dtype=jnp.float32)
    last_action = jnp.zeros((1, action_dim), jnp.float32)
    hidden_state = (jnp.zeros((1, 1, hidden_dim), jnp.float32),
                    jnp.zeros((1, 1, hidden_dim), jnp.float32))
    eps = jax.random.normal(k_eps, (1, latent_dim), dtype=jnp.float32)

    fwd = jax.jit(policy_forward)
    action, new_hidden = fwd(params, state, last_action, hidden_state, eps)
    jax.block_until_ready((action, new_hidden))

    assert action.shape == (1, action_dim)
    assert new_hidden[0].shape == (1, 1, hidden_dim)
    assert new_hidden[1].shape == (1, 1, hidden_dim)
    assert bool(jnp.all(jnp.isfinite(action)))
    assert bool(jnp.all(jnp.isfinite(new_hidden[0])))
    assert bool(jnp.all(jnp.isfinite(new_hidden[1])))
    print("KERNEL_OK")
</pallas_src>

<mosaic_0001>
module attributes {stable_mosaic.version = 11 : i64} {
  func.func @_policy_kernel(%arg0: memref<1280x128xbf16, #tpu.memory_space<vmem>>, %arg1: memref<128x32xbf16, #tpu.memory_space<vmem>>, %arg2: memref<1x32xf32, #tpu.memory_space<vmem>>, %arg3: memref<512x64xbf16, #tpu.memory_space<vmem>>, %arg4: memref<1x64xf32, #tpu.memory_space<vmem>>, %arg5: memref<1024x128xbf16, #tpu.memory_space<vmem>>, %arg6: memref<1x128xf32, #tpu.memory_space<vmem>>, %arg7: memref<2048x256xbf16, #tpu.memory_space<vmem>>, %arg8: memref<1x256xf32, #tpu.memory_space<vmem>>, %arg9: memref<336x224xbf16, #tpu.memory_space<vmem>>, %arg10: memref<144x48xbf16, #tpu.memory_space<vmem>>, %arg11: memref<1024x64xbf16, #tpu.memory_space<vmem>>, %arg12: memref<1x64xf32, #tpu.memory_space<vmem>>, %arg13: memref<32x1024xbf16, #tpu.memory_space<vmem>>, %arg14: memref<8x1024xbf16, #tpu.memory_space<vmem>>, %arg15: memref<256x1024xbf16, #tpu.memory_space<vmem>>, %arg16: memref<1x1024xf32, #tpu.memory_space<vmem>>, %arg17: memref<32x8xbf16, #tpu.memory_space<vmem>>, %arg18: memref<256x8xbf16, #tpu.memory_space<vmem>>, %arg19: memref<1x8xf32, #tpu.memory_space<vmem>>, %arg20: memref<1x32xf32, #tpu.memory_space<vmem>>, %arg21: memref<1x8xbf16, #tpu.memory_space<vmem>>, %arg22: memref<1x256xf32, #tpu.memory_space<vmem>>, %arg23: memref<1x256xf32, #tpu.memory_space<vmem>>, %arg24: memref<1x8xf32, #tpu.memory_space<vmem>>, %arg25: memref<1x256xf32, #tpu.memory_space<vmem>>, %arg26: memref<1x256xf32, #tpu.memory_space<vmem>>) attributes {dimension_semantics = [], scalar_prefetch = 0 : i64, scratch_operands = 0 : i64, tpu.core_type = #tpu.core_type<tc>} {
    %c0 = arith.constant 0 : index
    %c0_0 = arith.constant 0 : index
    %0 = vector.load %arg0[%c0, %c0_0] : memref<1280x128xbf16, #tpu.memory_space<vmem>>, vector<1280x128xbf16>
    %c0_1 = arith.constant 0 : index
    %c0_2 = arith.constant 0 : index
    %1 = vector.load %arg1[%c0_1, %c0_2] : memref<128x32xbf16, #tpu.memory_space<vmem>>, vector<128x32xbf16>
    %cst = arith.constant dense<0.000000e+00> : vector<1280x32xf32>
    %2 = tpu.matmul %0, %1, %cst {dimension_numbers = #tpu.dot_dimension_numbers<[1], [0], [0], [1], [0, 0, 1, 1], [], []>} : vector<1280x128xbf16>, vector<128x32xbf16>, vector<1280x32xf32> -> vector<1280x32xf32>
    %c0_3 = arith.constant 0 : index
    %c0_4 = arith.constant 0 : index
    %3 = vector.load %arg2[%c0_3, %c0_4] : memref<1x32xf32, #tpu.memory_space<vmem>>, vector<1x32xf32>
    %4 = vector.broadcast %3 : vector<1x32xf32> to vector<1280x32xf32>
    %5 = arith.addf %2, %4 : vector<1280x32xf32>
    %cst_5 = arith.constant 0.000000e+00 : f32
    %6 = vector.broadcast %cst_5 : f32 to vector<1280x32xf32>
    %7 = arith.maximumf %5, %6 : vector<1280x32xf32>
    %8 = arith.truncf %7 : vector<1280x32xf32> to vector<1280x32xbf16>
    %9 = vector.shape_cast %8 : vector<1280x32xbf16> to vector<16x2x40x32xbf16>
    %10 = vector.extract_strided_slice %9 {offsets = [0, 0, 0, 0], sizes = [14, 1, 16, 32], strides = [1, 1, 1, 1]} : vector<16x2x40x32xbf16> to vector<14x1x16x32xbf16>
    %11 = vector.shape_cast %10 : vector<14x1x16x32xbf16> to vector<14x16x32xbf16>
    %12 = vector.shape_cast %11 : vector<14x16x32xbf16> to vector<224x32xbf16>
    %13 = vector.extract_strided_slice %9 {offsets = [0, 0, 20, 0], sizes = [14, 1, 16, 32], strides = [1, 1, 1, 1]} : vector<16x2x40x32xbf16> to vector<14x1x16x32xbf16>
    %14 = vector.shape_cast %13 : vector<14x1x16x32xbf16> to vector<14x16x32xbf16>
    %15 = vector.shape_cast %14 : vector<14x16x32xbf16> to vector<224x32xbf16>
    %16 = vector.extract_strided_slice %9 {offsets = [0, 0, 1, 0], sizes = [14, 1, 16, 32], strides = [1, 1, 1, 1]} : vector<16x2x40x32xbf16> to vector<14x1x16x32xbf16>
    %17 = vector.shape_cast %16 : vector<14x1x16x32xbf16> to vector<14x16x32xbf16>
    %18 = vector.shape_cast %17 : vector<14x16x32xbf16> to vector<224x32xbf16>
    %19 = vector.extract_strided_slice %9 {offsets = [0, 0, 21, 0], sizes = [14, 1, 16, 32], strides = [1, 1, 1, 1]} : vector<16x2x40x32xbf16> to vector<14x1x16x32xbf16>
    %20 = vector.shape_cast %19 : vector<14x1x16x32xbf16> to vector<14x16x32xbf16>
    %21 = vector.shape_cast %20 : vector<14x16x32xbf16> to vector<224x32xbf16>
    %22 = vector.extract_strided_slice %9 {offsets = [0, 1, 0, 0], sizes = [14, 1, 16, 32], strides = [1, 1, 1, 1]} : vector<16x2x40x32xbf16> to vector<14x1x16x32xbf16>
    %23 = vector.shape_cast %22 : vector<14x1x16x32xbf16> to vector<14x16x32xbf16>
    %24 = vector.shape_cast %23 : vector<14x16x32xbf16> to vector<224x32xbf16>
    %25 = vector.extract_strided_slice %9 {offsets = [0, 1, 20, 0], sizes = [14, 1, 16, 32], strides = [1, 1, 1, 1]} : vector<16x2x40x32xbf16> to vector<14x1x16x32xbf16>
    %26 = vector.shape_cast %25 : vector<14x1x16x32xbf16> to vector<14x16x32xbf16>
    %27 = vector.shape_cast %26 : vector<14x16x32xbf16> to vector<224x32xbf16>
    %28 = vector.extract_strided_slice %9 {offsets = [0, 1, 1, 0], sizes = [14, 1, 16, 32], strides = [1, 1, 1, 1]} : vector<16x2x40x32xbf16> to vector<14x1x16x32xbf16>
    %29 = vector.shape_cast %28 : vector<14x1x16x32xbf16> to vector<14x16x32xbf16>
    %30 = vector.shape_cast %29 : vector<14x16x32xbf16> to vector<224x32xbf16>
    %31 = vector.extract_strided_slice %9 {offsets = [0, 1, 21, 0], sizes = [14, 1, 16, 32], strides = [1, 1, 1, 1]} : vector<16x2x40x32xbf16> to vector<14x1x16x32xbf16>
    %32 = vector.shape_cast %31 : vector<14x1x16x32xbf16> to vector<14x16x32xbf16>
    %33 = vector.shape_cast %32 : vector<14x16x32xbf16> to vector<224x32xbf16>
    %34 = vector.extract_strided_slice %9 {offsets = [1, 0, 0, 0], sizes = [14, 1, 16, 32], strides = [1, 1, 1, 1]} : vector<16x2x40x32xbf16> to vector<14x1x16x32xbf16>
    %35 = vector.shape_cast %34 : vector<14x1x16x32xbf16> to vector<14x16x32xbf16>
    %36 = vector.shape_cast %35 : vector<14x16x32xbf16> to vector<224x32xbf16>
    %37 = vector.extract_strided_slice %9 {offsets = [1, 0, 20, 0], sizes = [14, 1, 16, 32], strides = [1, 1, 1, 1]} : vector<16x2x40x32xbf16> to vector<14x1x16x32xbf16>
    %38 = vector.shape_cast %37 : vector<14x1x16x32xbf16> to vector<14x16x32xbf16>
    %39 = vector.shape_cast %38 : vector<14x16x32xbf16> to vector<224x32xbf16>
    %40 = vector.extract_strided_slice %9 {offsets = [1, 0, 1, 0], sizes = [14, 1, 16, 32], strides = [1, 1, 1, 1]} : vector<16x2x40x32xbf16> to vector<14x1x16x32xbf16>
    %41 = vector.shape_cast %40 : vector<14x1x16x32xbf16> to vector<14x16x32xbf16>
    %42 = vector.shape_cast %41 : vector<14x16x32xbf16> to vector<224x32xbf16>
    %43 = vector.extract_strided_slice %9 {offsets = [1, 0, 21, 0], sizes = [14, 1, 16, 32], strides = [1, 1, 1, 1]} : vector<16x2x40x32xbf16> to vector<14x1x16x32xbf16>
    %44 = vector.shape_cast %43 : vector<14x1x16x32xbf16> to vector<14x16x32xbf16>
    %45 = vector.shape_cast %44 : vector<14x16x32xbf16> to vector<224x32xbf16>
    %46 = vector.extract_strided_slice %9 {offsets = [1, 1, 0, 0], sizes = [14, 1, 16, 32], strides = [1, 1, 1, 1]} : vector<16x2x40x32xbf16> to vector<14x1x16x32xbf16>
    %47 = vector.shape_cast %46 : vector<14x1x16x32xbf16> to vector<14x16x32xbf16>
    %48 = vector.shape_cast %47 : vector<14x16x32xbf16> to vector<224x32xbf16>
    %49 = vector.extract_strided_slice %9 {offsets = [1, 1, 20, 0], sizes = [14, 1, 16, 32], strides = [1, 1, 1, 1]} : vector<16x2x40x32xbf16> to vector<14x1x16x32xbf16>
    %50 = vector.shape_cast %49 : vector<14x1x16x32xbf16> to vector<14x16x32xbf16>
    %51 = vector.shape_cast %50 : vector<14x16x32xbf16> to vector<224x32xbf16>
    %52 = vector.extract_strided_slice %9 {offsets = [1, 1, 1, 0], sizes = [14, 1, 16, 32], strides = [1, 1, 1, 1]} : vector<16x2x40x32xbf16> to vector<14x1x16x32xbf16>
    %53 = vector.shape_cast %52 : vector<14x1x16x32xbf16> to vector<14x16x32xbf16>
    %54 = vector.shape_cast %53 : vector<14x16x32xbf16> to vector<224x32xbf16>
    %55 = vector.extract_strided_slice %9 {offsets = [1, 1, 21, 0], sizes = [14, 1, 16, 32], strides = [1, 1, 1, 1]} : vector<16x2x40x32xbf16> to vector<14x1x16x32xbf16>
    %56 = vector.shape_cast %55 : vector<14x1x16x32xbf16> to vector<14x16x32xbf16>
    %57 = vector.shape_cast %56 : vector<14x16x32xbf16> to vector<224x32xbf16>
    %58 = tpu.concatenate %12, %15, %18, %21, %24, %27, %30, %33, %36, %39, %42, %45, %48, %51, %54, %57 in 1 : vector<224x32xbf16>, vector<224x32xbf16>, vector<224x32xbf16>, vector<224x32xbf16>, vector<224x32xbf16>, vector<224x32xbf16>, vector<224x32xbf16>, vector<224x32xbf16>, vector<224x32xbf16>, vector<224x32xbf16>, vector<224x32xbf16>, vector<224x32xbf16>, vector<224x32xbf16>, vector<224x32xbf16>, vector<224x32xbf16>, vector<224x32xbf16> -> vector<224x512xbf16>
    %c0_6 = arith.constant 0 : index
    %c0_7 = arith.constant 0 : index
    %59 = vector.load %arg3[%c0_6, %c0_7] : memref<512x64xbf16, #tpu.memory_space<vmem>>, vector<512x64xbf16>
    %cst_8 = arith.constant dense<0.000000e+00> : vector<224x64xf32>
    %60 = tpu.matmul %58, %59, %cst_8 {dimension_numbers = #tpu.dot_dimension_numbers<[1], [0], [0], [1], [0, 0, 1, 1], [], []>} : vector<224x512xbf16>, vector<512x64xbf16>, vector<224x64xf32> -> vector<224x64xf32>
    %c0_9 = arith.constant 0 : index
    %c0_10 = arith.constant 0 : index
    %61 = vector.load %arg4[%c0_9, %c0_10] : memref<1x64xf32, #tpu.memory_space<vmem>>, vector<1x64xf32>
    %62 = vector.broadcast %61 : vector<1x64xf32> to vector<224x64xf32>
    %63 = arith.addf %60, %62 : vector<224x64xf32>
    %cst_11 = arith.constant 0.000000e+00 : f32
    %64 = vector.broadcast %cst_11 : f32 to vector<224x64xf32>
    %65 = arith.maximumf %63, %64 : vector<224x64xf32>
    %66 = arith.truncf %65 : vector<224x64xf32> to vector<224x64xbf16>
    %c0_12 = arith.constant 0 : index
    %c0_13 = arith.constant 0 : index
    %67 = vector.load %arg9[%c0_12, %c0_13] : memref<336x224xbf16, #tpu.memory_space<vmem>>, vector<336x224xbf16>
    %cst_14 = arith.constant dense<0.000000e+00> : vector<336x64xf32>
    %68 = tpu.matmul %67, %66, %cst_14 {dimension_numbers = #tpu.dot_dimension_numbers<[1], [0], [0], [1], [0, 0, 1, 1], [], []>} : vector<336x224xbf16>, vector<224x64xbf16>, vector<336x64xf32> -> vector<336x64xf32>
    %69 = arith.truncf %68 : vector<336x64xf32> to vector<336x64xbf16>
    %70 = vector.shape_cast %69 : vector<336x64xbf16> to vector<7x2x24x64xbf16>
    %71 = vector.extract_strided_slice %70 {offsets = [0, 0, 0, 0], sizes = [6, 1, 8, 64], strides = [1, 1, 1, 1]} : vector<7x2x24x64xbf16> to vector<6x1x8x64xbf16>
    %72 = vector.shape_cast %71 : vector<6x1x8x64xbf16> to vector<6x8x64xbf16>
    %73 = vector.shape_cast %72 : vector<6x8x64xbf16> to vector<48x64xbf16>
    %74 = vector.extract_strided_slice %70 {offsets = [0, 0, 12, 0], sizes = [6, 1, 8, 64], strides = [1, 1, 1, 1]} : vector<7x2x24x64xbf16> to vector<6x1x8x64xbf16>
    %75 = vector.shape_cast %74 : vector<6x1x8x64xbf16> to vector<6x8x64xbf16>
    %76 = vector.shape_cast %75 : vector<6x8x64xbf16> to vector<48x64xbf16>
    %77 = vector.extract_strided_slice %70 {offsets = [0, 0, 1, 0], sizes = [6, 1, 8, 64], strides = [1, 1, 1, 1]} : vector<7x2x24x64xbf16> to vector<6x1x8x64xbf16>
    %78 = vector.shape_cast %77 : vector<6x1x8x64xbf16> to vector<6x8x64xbf16>
    %79 = vector.shape_cast %78 : vector<6x8x64xbf16> to vector<48x64xbf16>
    %80 = vector.extract_strided_slice %70 {offsets = [0, 0, 13, 0], sizes = [6, 1, 8, 64], strides = [1, 1, 1, 1]} : vector<7x2x24x64xbf16> to vector<6x1x8x64xbf16>
    %81 = vector.shape_cast %80 : vector<6x1x8x64xbf16> to vector<6x8x64xbf16>
    %82 = vector.shape_cast %81 : vector<6x8x64xbf16> to vector<48x64xbf16>
    %83 = vector.extract_strided_slice %70 {offsets = [0, 1, 0, 0], sizes = [6, 1, 8, 64], strides = [1, 1, 1, 1]} : vector<7x2x24x64xbf16> to vector<6x1x8x64xbf16>
    %84 = vector.shape_cast %83 : vector<6x1x8x64xbf16> to vector<6x8x64xbf16>
    %85 = vector.shape_cast %84 : vector<6x8x64xbf16> to vector<48x64xbf16>
    %86 = vector.extract_strided_slice %70 {offsets = [0, 1, 12, 0], sizes = [6, 1, 8, 64], strides = [1, 1, 1, 1]} : vector<7x2x24x64xbf16> to vector<6x1x8x64xbf16>
    %87 = vector.shape_cast %86 : vector<6x1x8x64xbf16> to vector<6x8x64xbf16>
    %88 = vector.shape_cast %87 : vector<6x8x64xbf16> to vector<48x64xbf16>
    %89 = vector.extract_strided_slice %70 {offsets = [0, 1, 1, 0], sizes = [6, 1, 8, 64], strides = [1, 1, 1, 1]} : vector<7x2x24x64xbf16> to vector<6x1x8x64xbf16>
    %90 = vector.shape_cast %89 : vector<6x1x8x64xbf16> to vector<6x8x64xbf16>
    %91 = vector.shape_cast %90 : vector<6x8x64xbf16> to vector<48x64xbf16>
    %92 = vector.extract_strided_slice %70 {offsets = [0, 1, 13, 0], sizes = [6, 1, 8, 64], strides = [1, 1, 1, 1]} : vector<7x2x24x64xbf16> to vector<6x1x8x64xbf16>
    %93 = vector.shape_cast %92 : vector<6x1x8x64xbf16> to vector<6x8x64xbf16>
    %94 = vector.shape_cast %93 : vector<6x8x64xbf16> to vector<48x64xbf16>
    %95 = vector.extract_strided_slice %70 {offsets = [1, 0, 0, 0], sizes = [6, 1, 8, 64], strides = [1, 1, 1, 1]} : vector<7x2x24x64xbf16> to vector<6x1x8x64xbf16>
    %96 = vector.shape_cast %95 : vector<6x1x8x64xbf16> to vector<6x8x64xbf16>
    %97 = vector.shape_cast %96 : vector<6x8x64xbf16> to vector<48x64xbf16>
    %98 = vector.extract_strided_slice %70 {offsets = [1, 0, 12, 0], sizes = [6, 1, 8, 64], strides = [1, 1, 1, 1]} : vector<7x2x24x64xbf16> to vector<6x1x8x64xbf16>
    %99 = vector.shape_cast %98 : vector<6x1x8x64xbf16> to vector<6x8x64xbf16>
    %100 = vector.shape_cast %99 : vector<6x8x64xbf16> to vector<48x64xbf16>
    %101 = vector.extract_strided_slice %70 {offsets = [1, 0, 1, 0], sizes = [6, 1, 8, 64], strides = [1, 1, 1, 1]} : vector<7x2x24x64xbf16> to vector<6x1x8x64xbf16>
    %102 = vector.shape_cast %101 : vector<6x1x8x64xbf16> to vector<6x8x64xbf16>
    %103 = vector.shape_cast %102 : vector<6x8x64xbf16> to vector<48x64xbf16>
    %104 = vector.extract_strided_slice %70 {offsets = [1, 0, 13, 0], sizes = [6, 1, 8, 64], strides = [1, 1, 1, 1]} : vector<7x2x24x64xbf16> to vector<6x1x8x64xbf16>
    %105 = vector.shape_cast %104 : vector<6x1x8x64xbf16> to vector<6x8x64xbf16>
    %106 = vector.shape_cast %105 : vector<6x8x64xbf16> to vector<48x64xbf16>
    %107 = vector.extract_strided_slice %70 {offsets = [1, 1, 0, 0], sizes = [6, 1, 8, 64], strides = [1, 1, 1, 1]} : vector<7x2x24x64xbf16> to vector<6x1x8x64xbf16>
    %108 = vector.shape_cast %107 : vector<6x1x8x64xbf16> to vector<6x8x64xbf16>
    %109 = vector.shape_cast %108 : vector<6x8x64xbf16> to vector<48x64xbf16>
    %110 = vector.extract_strided_slice %70 {offsets = [1, 1, 12, 0], sizes = [6, 1, 8, 64], strides = [1, 1, 1, 1]} : vector<7x2x24x64xbf16> to vector<6x1x8x64xbf16>
    %111 = vector.shape_cast %110 : vector<6x1x8x64xbf16> to vector<6x8x64xbf16>
    %112 = vector.shape_cast %111 : vector<6x8x64xbf16> to vector<48x64xbf16>
    %113 = vector.extract_strided_slice %70 {offsets = [1, 1, 1, 0], sizes = [6, 1, 8, 64], strides = [1, 1, 1, 1]} : vector<7x2x24x64xbf16> to vector<6x1x8x64xbf16>
    %114 = vector.shape_cast %113 : vector<6x1x8x64xbf16> to vector<6x8x64xbf16>
    %115 = vector.shape_cast %114 : vector<6x8x64xbf16> to vector<48x64xbf16>
    %116 = vector.extract_strided_slice %70 {offsets = [1, 1, 13, 0], sizes = [6, 1, 8, 64], strides = [1, 1, 1, 1]} : vector<7x2x24x64xbf16> to vector<6x1x8x64xbf16>
    %117 = vector.shape_cast %116 : vector<6x1x8x64xbf16> to vector<6x8x64xbf16>
    %118 = vector.shape_cast %117 : vector<6x8x64xbf16> to vector<48x64xbf16>
    %119 = tpu.concatenate %73, %76, %79, %82, %85, %88, %91, %94, %97, %100, %103, %106, %109, %112, %115, %118 in 1 : vector<48x64xbf16>, vector<48x64xbf16>, vector<48x64xbf16>, vector<48x64xbf16>, vector<48x64xbf16>, vector<48x64xbf16>, vector<48x64xbf16>, vector<48x64xbf16>, vector<48x64xbf16>, vector<48x64xbf16>, vector<48x64xbf16>, vector<48x64xbf16>, vector<48x64xbf16>, vector<48x64xbf16>, vector<48x64xbf16>, vector<48x64xbf16> -> vector<48x1024xbf16>
    %c0_15 = arith.constant 0 : index
    %c0_16 = arith.constant 0 : index
    %120 = vector.load %arg5[%c0_15, %c0_16] : memref<1024x128xbf16, #tpu.memory_space<vmem>>, vector<1024x128xbf16>
    %cst_17 = arith.constant dense<0.000000e+00> : vector<48x128xf32>
    %121 = tpu.matmul %119, %120, %cst_17 {dimension_numbers = #tpu.dot_dimension_numbers<[1], [0], [0], [1], [0, 0, 1, 1], [], []>} : vector<48x1024xbf16>, vector<1024x128xbf16>, vector<48x128xf32> -> vector<48x128xf32>
    %c0_18 = arith.constant 0 : index
    %c0_19 = arith.constant 0 : index
    %122 = vector.load %arg6[%c0_18, %c0_19] : memref<1x128xf32, #tpu.memory_space<vmem>>, vector<1x128xf32>
    %123 = vector.broadcast %122 : vector<1x128xf32> to vector<48x128xf32>
    %124 = arith.addf %121, %123 : vector<48x128xf32>
    %cst_20 = arith.constant 0.000000e+00 : f32
    %125 = vector.broadcast %cst_20 : f32 to vector<48x128xf32>
    %126 = arith.maximumf %124, %125 : vector<48x128xf32>
    %127 = arith.truncf %126 : vector<48x128xf32> to vector<48x128xbf16>
    %c0_21 = arith.constant 0 : index
    %c0_22 = arith.constant 0 : index
    %128 = vector.load %arg10[%c0_21, %c0_22] : memref<144x48xbf16, #tpu.memory_space<vmem>>, vector<144x48xbf16>
    %cst_23 = arith.constant dense<0.000000e+00> : vector<144x128xf32>
    %129 = tpu.matmul %128, %127, %cst_23 {dimension_numbers = #tpu.dot_dimension_numbers<[1], [0], [0], [1], [0, 0, 1, 1], [], []>} : vector<144x48xbf16>, vector<48x128xbf16>, vector<144x128xf32> -> vector<144x128xf32>
    %130 = arith.truncf %129 : vector<144x128xf32> to vector<144x128xbf16>
    %131 = vector.shape_cast %130 : vector<144x128xbf16> to vector<3x2x24x128xbf16>
    %132 = vector.extract_strided_slice %131 {offsets = [0, 0, 0, 0], sizes = [2, 1, 8, 128], strides = [1, 1, 1, 1]} : vector<3x2x24x128xbf16> to vector<2x1x8x128xbf16>
    %133 = vector.shape_cast %132 : vector<2x1x8x128xbf16> to vector<2x8x128xbf16>
    %134 = vector.shape_cast %133 : vector<2x8x128xbf16> to vector<16x128xbf16>
    %135 = vector.extract_strided_slice %131 {offsets = [0, 0, 12, 0], sizes = [2, 1, 8, 128], strides = [1, 1, 1, 1]} : vector<3x2x24x128xbf16> to vector<2x1x8x128xbf16>
    %136 = vector.shape_cast %135 : vector<2x1x8x128xbf16> to vector<2x8x128xbf16>
    %137 = vector.shape_cast %136 : vector<2x8x128xbf16> to vector<16x128xbf16>
    %138 = vector.extract_strided_slice %131 {offsets = [0, 0, 1, 0], sizes = [2, 1, 8, 128], strides = [1, 1, 1, 1]} : vector<3x2x24x128xbf16> to vector<2x1x8x128xbf16>
    %139 = vector.shape_cast %138 : vector<2x1x8x128xbf16> to vector<2x8x128xbf16>
    %140 = vector.shape_cast %139 : vector<2x8x128xbf16> to vector<16x128xbf16>
    %141 = vector.extract_strided_slice %131 {offsets = [0, 0, 13, 0], sizes = [2, 1, 8, 128], strides = [1, 1, 1, 1]} : vector<3x2x24x128xbf16> to vector<2x1x8x128xbf16>
    %142 = vector.shape_cast %141 : vector<2x1x8x128xbf16> to vector<2x8x128xbf16>
    %143 = vector.shape_cast %142 : vector<2x8x128xbf16> to vector<16x128xbf16>
    %144 = vector.extract_strided_slice %131 {offsets = [0, 1, 0, 0], sizes = [2, 1, 8, 128], strides = [1, 1, 1, 1]} : vector<3x2x24x128xbf16> to vector<2x1x8x128xbf16>
    %145 = vector.shape_cast %144 : vector<2x1x8x128xbf16> to vector<2x8x128xbf16>
    %146 = vector.shape_cast %145 : vector<2x8x128xbf16> to vector<16x128xbf16>
    %147 = vector.extract_strided_slice %131 {offsets = [0, 1, 12, 0], sizes = [2, 1, 8, 128], strides = [1, 1, 1, 1]} : vector<3x2x24x128xbf16> to vector<2x1x8x128xbf16>
    %148 = vector.shape_cast %147 : vector<2x1x8x128xbf16> to vector<2x8x128xbf16>
    %149 = vector.shape_cast %148 : vector<2x8x128xbf16> to vector<16x128xbf16>
    %150 = vector.extract_strided_slice %131 {offsets = [0, 1, 1, 0], sizes = [2, 1, 8, 128], strides = [1, 1, 1, 1]} : vector<3x2x24x128xbf16> to vector<2x1x8x128xbf16>
    %151 = vector.shape_cast %150 : vector<2x1x8x128xbf16> to vector<2x8x128xbf16>
    %152 = vector.shape_cast %151 : vector<2x8x128xbf16> to vector<16x128xbf16>
    %153 = vector.extract_strided_slice %131 {offsets = [0, 1, 13, 0], sizes = [2, 1, 8, 128], strides = [1, 1, 1, 1]} : vector<3x2x24x128xbf16> to vector<2x1x8x128xbf16>
    %154 = vector.shape_cast %153 : vector<2x1x8x128xbf16> to vector<2x8x128xbf16>
    %155 = vector.shape_cast %154 : vector<2x8x128xbf16> to vector<16x128xbf16>
    %156 = vector.extract_strided_slice %131 {offsets = [1, 0, 0, 0], sizes = [2, 1, 8, 128], strides = [1, 1, 1, 1]} : vector<3x2x24x128xbf16> to vector<2x1x8x128xbf16>
    %157 = vector.shape_cast %156 : vector<2x1x8x128xbf16> to vector<2x8x128xbf16>
    %158 = vector.shape_cast %157 : vector<2x8x128xbf16> to vector<16x128xbf16>
    %159 = vector.extract_strided_slice %131 {offsets = [1, 0, 12, 0], sizes = [2, 1, 8, 128], strides = [1, 1, 1, 1]} : vector<3x2x24x128xbf16> to vector<2x1x8x128xbf16>
    %160 = vector.shape_cast %159 : vector<2x1x8x128xbf16> to vector<2x8x128xbf16>
    %161 = vector.shape_cast %160 : vector<2x8x128xbf16> to vector<16x128xbf16>
    %162 = vector.extract_strided_slice %131 {offsets = [1, 0, 1, 0], sizes = [2, 1, 8, 128], strides = [1, 1, 1, 1]} : vector<3x2x24x128xbf16> to vector<2x1x8x128xbf16>
    %163 = vector.shape_cast %162 : vector<2x1x8x128xbf16> to vector<2x8x128xbf16>
    %164 = vector.shape_cast %163 : vector<2x8x128xbf16> to vector<16x128xbf16>
    %165 = vector.extract_strided_slice %131 {offsets = [1, 0, 13, 0], sizes = [2, 1, 8, 128], strides = [1, 1, 1, 1]} : vector<3x2x24x128xbf16> to vector<2x1x8x128xbf16>
    %166 = vector.shape_cast %165 : vector<2x1x8x128xbf16> to vector<2x8x128xbf16>
    %167 = vector.shape_cast %166 : vector<2x8x128xbf16> to vector<16x128xbf16>
    %168 = vector.extract_strided_slice %131 {offsets = [1, 1, 0, 0], sizes = [2, 1, 8, 128], strides = [1, 1, 1, 1]} : vector<3x2x24x128xbf16> to vector<2x1x8x128xbf16>
    %169 = vector.shape_cast %168 : vector<2x1x8x128xbf16> to vector<2x8x128xbf16>
    %170 = vector.shape_cast %169 : vector<2x8x128xbf16> to vector<16x128xbf16>
    %171 = vector.extract_strided_slice %131 {offsets = [1, 1, 12, 0], sizes = [2, 1, 8, 128], strides = [1, 1, 1, 1]} : vector<3x2x24x128xbf16> to vector<2x1x8x128xbf16>
    %172 = vector.shape_cast %171 : vector<2x1x8x128xbf16> to vector<2x8x128xbf16>
    %173 = vector.shape_cast %172 : vector<2x8x128xbf16> to vector<16x128xbf16>
    %174 = vector.extract_strided_slice %131 {offsets = [1, 1, 1, 0], sizes = [2, 1, 8, 128], strides = [1, 1, 1, 1]} : vector<3x2x24x128xbf16> to vector<2x1x8x128xbf16>
    %175 = vector.shape_cast %174 : vector<2x1x8x128xbf16> to vector<2x8x128xbf16>
    %176 = vector.shape_cast %175 : vector<2x8x128xbf16> to vector<16x128xbf16>
    %177 = vector.extract_strided_slice %131 {offsets = [1, 1, 13, 0], sizes = [2, 1, 8, 128], strides = [1, 1, 1, 1]} : vector<3x2x24x128xbf16> to vector<2x1x8x128xbf16>
    %178 = vector.shape_cast %177 : vector<2x1x8x128xbf16> to vector<2x8x128xbf16>
    %179 = vector.shape_cast %178 : vector<2x8x128xbf16> to vector<16x128xbf16>
    %180 = tpu.concatenate %134, %137, %140, %143, %146, %149, %152, %155, %158, %161, %164, %167, %170, %173, %176, %179 in 1 : vector<16x128xbf16>, vector<16x128xbf16>, vector<16x128xbf16>, vector<16x128xbf16>, vector<16x128xbf16>, vector<16x128xbf16>, vector<16x128xbf16>, vector<16x128xbf16>, vector<16x128xbf16>, vector<16x128xbf16>, vector<16x128xbf16>, vector<16x128xbf16>, vector<16x128xbf16>, vector<16x128xbf16>, vector<16x128xbf16>, vector<16x128xbf16> -> vector<16x2048xbf16>
    %c0_24 = arith.constant 0 : index
    %c0_25 = arith.constant 0 : index
    %181 = vector.load %arg7[%c0_24, %c0_25] : memref<2048x256xbf16, #tpu.memory_space<vmem>>, vector<2048x256xbf16>
    %cst_26 = arith.constant dense<0.000000e+00> : vector<16x256xf32>
    %182 = tpu.matmul %180, %181, %cst_26 {dimension_numbers = #tpu.dot_dimension_numbers<[1], [0], [0], [1], [0, 0, 1, 1], [], []>} : vector<16x2048xbf16>, vector<2048x256xbf16>, vector<16x256xf32> -> vector<16x256xf32>
    %c0_27 = arith.constant 0 : index
    %c0_28 = arith.constant 0 : index
    %183 = vector.load %arg8[%c0_27, %c0_28] : memref<1x256xf32, #tpu.memory_space<vmem>>, vector<1x256xf32>
    %184 = vector.broadcast %183 : vector<1x256xf32> to vector<16x256xf32>
    %185 = arith.addf %182, %184 : vector<16x256xf32>
    %cst_29 = arith.constant 0.000000e+00 : f32
    %186 = vector.broadcast %cst_29 : f32 to vector<16x256xf32>
    %187 = arith.maximumf %185, %186 : vector<16x256xf32>
    %188 = arith.truncf %187 : vector<16x256xf32> to vector<16x256xbf16>
    %c0_30 = arith.constant 0 : index
    %c0_31 = arith.constant 0 : index
    %189 = vector.load %arg12[%c0_30, %c0_31] : memref<1x64xf32, #tpu.memory_space<vmem>>, vector<1x64xf32>
    %190 = vector.extract_strided_slice %188 {offsets = [0, 0], sizes = [1, 256], strides = [1, 1]} : vector<16x256xbf16> to vector<1x256xbf16>
    %c0_32 = arith.constant 0 : index
    %c0_33 = arith.constant 0 : index
    %191 = vector.load %arg11[%c0_32, %c0_33] : memref<1024x64xbf16, #tpu.memory_space<vmem>>, vector<256x64xbf16>
    %cst_34 = arith.constant dense<0.000000e+00> : vector<1x64xf32>
    %192 = tpu.matmul %190, %191, %cst_34 {dimension_numbers = #tpu.dot_dimension_numbers<[1], [0], [0], [1], [0, 0, 1, 1], [], []>} : vector<1x256xbf16>, vector<256x64xbf16>, vector<1x64xf32> -> vector<1x64xf32>
    %193 = arith.addf %189, %192 : vector<1x64xf32>
    %194 = vector.extract_strided_slice %188 {offsets = [1, 0], sizes = [1, 256], strides = [1, 1]} : vector<16x256xbf16> to vector<1x256xbf16>
    %c256 = arith.constant 256 : index
    %c0_35 = arith.constant 0 : index
    %195 = vector.load %arg11[%c256, %c0_35] : memref<1024x64xbf16, #tpu.memory_space<vmem>>, vector<256x64xbf16>
    %cst_36 = arith.constant dense<0.000000e+00> : vector<1x64xf32>
    %196 = tpu.matmul %194, %195, %cst_36 {dimension_numbers = #tpu.dot_dimension_numbers<[1], [0], [0], [1], [0, 0, 1, 1], [], []>} : vector<1x256xbf16>, vector<256x64xbf16>, vector<1x64xf32> -> vector<1x64xf32>
    %197 = arith.addf %193, %196 : vector<1x64xf32>
    %198 = vector.extract_strided_slice %188 {offsets = [8, 0], sizes = [1, 256], strides = [1, 1]} : vector<16x256xbf16> to vector<1x256xbf16>
    %c512 = arith.constant 512 : index
    %c0_37 = arith.constant 0 : index
    %199 = vector.load %arg11[%c512, %c0_37] : memref<1024x64xbf16, #tpu.memory_space<vmem>>, vector<256x64xbf16>
    %cst_38 = arith.constant dense<0.000000e+00> : vector<1x64xf32>
    %200 = tpu.matmul %198, %199, %cst_38 {dimension_numbers = #tpu.dot_dimension_numbers<[1], [0], [0], [1], [0, 0, 1, 1], [], []>} : vector<1x256xbf16>, vector<256x64xbf16>, vector<1x64xf32> -> vector<1x64xf32>
    %201 = arith.addf %197, %200 : vector<1x64xf32>
    %202 = vector.extract_strided_slice %188 {offsets = [9, 0], sizes = [1, 256], strides = [1, 1]} : vector<16x256xbf16> to vector<1x256xbf16>
    %c768 = arith.constant 768 : index
    %c0_39 = arith.constant 0 : index
    %203 = vector.load %arg11[%c768, %c0_39] : memref<1024x64xbf16, #tpu.memory_space<vmem>>, vector<256x64xbf16>
    %cst_40 = arith.constant dense<0.000000e+00> : vector<1x64xf32>
    %204 = tpu.matmul %202, %203, %cst_40 {dimension_numbers = #tpu.dot_dimension_numbers<[1], [0], [0], [1], [0, 0, 1, 1], [], []>} : vector<1x256xbf16>, vector<256x64xbf16>, vector<1x64xf32> -> vector<1x64xf32>
    %205 = arith.addf %201, %204 : vector<1x64xf32>
    %206 = vector.extract_strided_slice %205 {offsets = [0, 0], sizes = [1, 32], strides = [1, 1]} : vector<1x64xf32> to vector<1x32xf32>
    %207 = vector.extract_strided_slice %205 {offsets = [0, 32], sizes = [1, 32], strides = [1, 1]} : vector<1x64xf32> to vector<1x32xf32>
    %cst_41 = arith.constant 5.000000e-01 : f32
    %208 = vector.broadcast %cst_41 : f32 to vector<1x32xf32>
    %209 = arith.mulf %208, %207 : vector<1x32xf32>
    %210 = math.exp %209 : vector<1x32xf32>
    %c0_42 = arith.constant 0 : index
    %c0_43 = arith.constant 0 : index
    %211 = vector.load %arg20[%c0_42, %c0_43] : memref<1x32xf32, #tpu.memory_space<vmem>>, vector<1x32xf32>
    %212 = arith.mulf %210, %211 : vector<1x32xf32>
    %213 = arith.addf %206, %212 : vector<1x32xf32>
    %214 = arith.truncf %213 : vector<1x32xf32> to vector<1x32xbf16>
    %c0_44 = arith.constant 0 : index
    %c0_45 = arith.constant 0 : index
    %215 = vector.load %arg13[%c0_44, %c0_45] : memref<32x1024xbf16, #tpu.memory_space<vmem>>, vector<32x1024xbf16>
    %cst_46 = arith.constant dense<0.000000e+00> : vector<1x1024xf32>
    %216 = tpu.matmul %214, %215, %cst_46 {dimension_numbers = #tpu.dot_dimension_numbers<[1], [0], [0], [1], [0, 0, 1, 1], [], []>} : vector<1x32xbf16>, vector<32x1024xbf16>, vector<1x1024xf32> -> vector<1x1024xf32>
    %c0_47 = arith.constant 0 : index
    %c0_48 = arith.constant 0 : index
    %217 = vector.load %arg21[%c0_47, %c0_48] : memref<1x8xbf16, #tpu.memory_space<vmem>>, vector<1x8xbf16>
    %c0_49 = arith.constant 0 : index
    %c0_50 = arith.constant 0 : index
    %218 = vector.load %arg14[%c0_49, %c0_50] : memref<8x1024xbf16, #tpu.memory_space<vmem>>, vector<8x1024xbf16>
    %cst_51 = arith.constant dense<0.000000e+00> : vector<1x1024xf32>
    %219 = tpu.matmul %217, %218, %cst_51 {dimension_numbers = #tpu.dot_dimension_numbers<[1], [0], [0], [1], [0, 0, 1, 1], [], []>} : vector<1x8xbf16>, vector<8x1024xbf16>, vector<1x1024xf32> -> vector<1x1024xf32>
    %220 = arith.addf %216, %219 : vector<1x1024xf32>
    %c0_52 = arith.constant 0 : index
    %c0_53 = arith.constant 0 : index
    %221 = vector.load %arg22[%c0_52, %c0_53] : memref<1x256xf32, #tpu.memory_space<vmem>>, vector<1x256xf32>
    %222 = arith.truncf %221 : vector<1x256xf32> to vector<1x256xbf16>
    %c0_54 = arith.constant 0 : index
    %c0_55 = arith.constant 0 : index
    %223 = vector.load %arg15[%c0_54, %c0_55] : memref<256x1024xbf16, #tpu.memory_space<vmem>>, vector<256x1024xbf16>
    %cst_56 = arith.constant dense<0.000000e+00> : vector<1x1024xf32>
    %224 = tpu.matmul %222, %223, %cst_56 {dimension_numbers = #tpu.dot_dimension_numbers<[1], [0], [0], [1], [0, 0, 1, 1], [], []>} : vector<1x256xbf16>, vector<256x1024xbf16>, vector<1x1024xf32> -> vector<1x1024xf32>
    %225 = arith.addf %220, %224 : vector<1x1024xf32>
    %c0_57 = arith.constant 0 : index
    %c0_58 = arith.constant 0 : index
    %226 = vector.load %arg16[%c0_57, %c0_58] : memref<1x1024xf32, #tpu.memory_space<vmem>>, vector<1x1024xf32>
    %227 = arith.addf %225, %226 : vector<1x1024xf32>
    %228 = vector.extract_strided_slice %227 {offsets = [0, 0], sizes = [1, 256], strides = [1, 1]} : vector<1x1024xf32> to vector<1x256xf32>
    %229 = arith.negf %228 : vector<1x256xf32>
    %230 = math.exp %229 : vector<1x256xf32>
    %cst_59 = arith.constant 1.000000e+00 : f32
    %231 = vector.broadcast %cst_59 : f32 to vector<1x256xf32>
    %232 = arith.addf %231, %230 : vector<1x256xf32>
    %233 = arith.divf %231, %232 : vector<1x256xf32>
    %234 = vector.extract_strided_slice %227 {offsets = [0, 256], sizes = [1, 256], strides = [1, 1]} : vector<1x1024xf32> to vector<1x256xf32>
    %235 = arith.negf %234 : vector<1x256xf32>
    %236 = math.exp %235 : vector<1x256xf32>
    %cst_60 = arith.constant 1.000000e+00 : f32
    %237 = vector.broadcast %cst_60 : f32 to vector<1x256xf32>
    %238 = arith.addf %237, %236 : vector<1x256xf32>
    %239 = arith.divf %237, %238 : vector<1x256xf32>
    %240 = vector.extract_strided_slice %227 {offsets = [0, 512], sizes = [1, 256], strides = [1, 1]} : vector<1x1024xf32> to vector<1x256xf32>
    %241 = math.tanh %240 : vector<1x256xf32>
    %242 = vector.extract_strided_slice %227 {offsets = [0, 768], sizes = [1, 256], strides = [1, 1]} : vector<1x1024xf32> to vector<1x256xf32>
    %243 = arith.negf %242 : vector<1x256xf32>
    %244 = math.exp %243 : vector<1x256xf32>
    %cst_61 = arith.constant 1.000000e+00 : f32
    %245 = vector.broadcast %cst_61 : f32 to vector<1x256xf32>
    %246 = arith.addf %245, %244 : vector<1x256xf32>
    %247 = arith.divf %245, %246 : vector<1x256xf32>
    %c0_62 = arith.constant 0 : index
    %c0_63 = arith.constant 0 : index
    %248 = vector.load %arg23[%c0_62, %c0_63] : memref<1x256xf32, #tpu.memory_space<vmem>>, vector<1x256xf32>
    %249 = arith.mulf %239, %248 : vector<1x256xf32>
    %250 = arith.mulf %233, %241 : vector<1x256xf32>
    %251 = arith.addf %249, %250 : vector<1x256xf32>
    %252 = math.tanh %251 : vector<1x256xf32>
    %253 = arith.mulf %247, %252 : vector<1x256xf32>
    %c0_64 = arith.constant 0 : index
    %c0_65 = arith.constant 0 : index
    %254 = vector.load %arg17[%c0_64, %c0_65] : memref<32x8xbf16, #tpu.memory_space<vmem>>, vector<32x8xbf16>
    %cst_66 = arith.constant dense<0.000000e+00> : vector<1x8xf32>
    %255 = tpu.matmul %214, %254, %cst_66 {dimension_numbers = #tpu.dot_dimension_numbers<[1], [0], [0], [1], [0, 0, 1, 1], [], []>} : vector<1x32xbf16>, vector<32x8xbf16>, vector<1x8xf32> -> vector<1x8xf32>
    %256 = arith.truncf %253 : vector<1x256xf32> to vector<1x256xbf16>
    %c0_67 = arith.constant 0 : index
    %c0_68 = arith.constant 0 : index
    %257 = vector.load %arg18[%c0_67, %c0_68] : memref<256x8xbf16, #tpu.memory_space<vmem>>, vector<256x8xbf16>
    %cst_69 = arith.constant dense<0.000000e+00> : vector<1x8xf32>
    %258 = tpu.matmul %256, %257, %cst_69 {dimension_numbers = #tpu.dot_dimension_numbers<[1], [0], [0], [1], [0, 0, 1, 1], [], []>} : vector<1x256xbf16>, vector<256x8xbf16>, vector<1x8xf32> -> vector<1x8xf32>
    %259 = arith.addf %255, %258 : vector<1x8xf32>
    %c0_70 = arith.constant 0 : index
    %c0_71 = arith.constant 0 : index
    %260 = vector.load %arg19[%c0_70, %c0_71] : memref<1x8xf32, #tpu.memory_space<vmem>>, vector<1x8xf32>
    %261 = arith.addf %259, %260 : vector<1x8xf32>
    %262 = math.tanh %261 : vector<1x8xf32>
    %c0_72 = arith.constant 0 : index
    %c0_73 = arith.constant 0 : index
    %263 = vector.load %arg24[%c0_72, %c0_73] : memref<1x8xf32, #tpu.memory_space<vmem>>, vector<1x8xf32>
    tpu.vector_store %arg24[%c0_72, %c0_73], %262 {strides = array<i32>} : memref<1x8xf32, #tpu.memory_space<vmem>>, vector<1x8xf32>,
    %c0_74 = arith.constant 0 : index
    %c0_75 = arith.constant 0 : index
    %264 = vector.load %arg25[%c0_74, %c0_75] : memref<1x256xf32, #tpu.memory_space<vmem>>, vector<1x256xf32>
    tpu.vector_store %arg25[%c0_74, %c0_75], %253 {strides = array<i32>} : memref<1x256xf32, #tpu.memory_space<vmem>>, vector<1x256xf32>,
    %c0_76 = arith.constant 0 : index
    %c0_77 = arith.constant 0 : index
    %265 = vector.load %arg26[%c0_76, %c0_77] : memref<1x256xf32, #tpu.memory_space<vmem>>, vector<1x256xf32>
    tpu.vector_store %arg26[%c0_76, %c0_77], %251 {strides = array<i32>} : memref<1x256xf32, #tpu.memory_space<vmem>>, vector<1x256xf32>,
    return
  }
}

</mosaic_0001>

<llo_original>
// kernel: policy_forward.1
$region0: #{policy_forward.1}
  #allocation0 [shape = 'u32[]', space=smem, size = 0x4, offset = 0x4, fixed_abs, tag = 'smem constant byte address 0x4 - core index']
  #allocation1 [shape = 'u32[72,128]{1,0:T(1,128)}', space=vmem, size = 0x9000, scoped, tag = 'internal scratch']
  %s0 = inlined_call_operand.vmem [shape: bf16[1280,128], index: 0, kind: input, shape index: {}]
  %s1 = inlined_call_operand.vmem [shape: bf16[128,32], index: 1, kind: input, shape index: {}]
  %s2 = inlined_call_operand.vmem [shape: f32[1,32], index: 2, kind: input, shape index: {}]
  %s3 = inlined_call_operand.vmem [shape: bf16[512,64], index: 3, kind: input, shape index: {}]
  %s4 = inlined_call_operand.vmem [shape: f32[1,64], index: 4, kind: input, shape index: {}]
  %s5 = inlined_call_operand.vmem [shape: bf16[1024,128], index: 5, kind: input, shape index: {}]
  %s6 = inlined_call_operand.vmem [shape: f32[1,128], index: 6, kind: input, shape index: {}]
  %s7 = inlined_call_operand.vmem [shape: bf16[2048,256], index: 7, kind: input, shape index: {}]
  %s8 = inlined_call_operand.vmem [shape: f32[1,256], index: 8, kind: input, shape index: {}]
  %s9 = inlined_call_operand.vmem [shape: bf16[336,224], index: 9, kind: input, shape index: {}]
  %s10 = inlined_call_operand.vmem [shape: bf16[144,48], index: 10, kind: input, shape index: {}]
  %s11 = inlined_call_operand.vmem [shape: bf16[1024,64], index: 11, kind: input, shape index: {}]
  %s12 = inlined_call_operand.vmem [shape: f32[1,64], index: 12, kind: input, shape index: {}]
  %s13 = inlined_call_operand.vmem [shape: bf16[32,1024], index: 13, kind: input, shape index: {}]
  %s14 = inlined_call_operand.vmem [shape: bf16[8,1024], index: 14, kind: input, shape index: {}]
  %s15 = inlined_call_operand.vmem [shape: bf16[256,1024], index: 15, kind: input, shape index: {}]
  %s16 = inlined_call_operand.vmem [shape: f32[1,1024], index: 16, kind: input, shape index: {}]
  %s17 = inlined_call_operand.vmem [shape: bf16[32,8], index: 17, kind: input, shape index: {}]
  %s18 = inlined_call_operand.vmem [shape: bf16[256,8], index: 18, kind: input, shape index: {}]
  %s19 = inlined_call_operand.vmem [shape: f32[1,8], index: 19, kind: input, shape index: {}]
  %s20 = inlined_call_operand.vmem [shape: f32[1,32], index: 20, kind: input, shape index: {}]
  %s21 = inlined_call_operand.vmem [shape: bf16[1,8], index: 21, kind: input, shape index: {}]
  %s22 = inlined_call_operand.vmem [shape: f32[1,256], index: 22, kind: input, shape index: {}]
  %s23 = inlined_call_operand.vmem [shape: f32[1,256], index: 23, kind: input, shape index: {}]
  %s24 = inlined_call_operand.hbm [shape: f32[1,8], index: 24, kind: output, shape index: {0}]
  %s25 = inlined_call_operand.hbm [shape: f32[1,256], index: 25, kind: output, shape index: {1}]
  %s26 = inlined_call_operand.hbm [shape: f32[1,256], index: 26, kind: output, shape index: {2}]
  %27 = xla_tuple %s24, %s25, %s26
  %s28 = sld [smem:[#allocation0]]
  $region122: #{policy_forward.1} parent=0
    _
  %s30 = ssub.s32 1, %s28
  %s31 = scalar_select 0, %s30, %s28
  $region1: #{policy_forward.1} parent=0
    #allocation2 [shape = 'u8[512]{0}', space=vmem, size = 0x400, scoped, tag = 'output window, operand 0, single buffered']
    #allocation3 [shape = 's32[1]{0}', space=sflag, size = 0x4, scoped, tag = 'scoped memory for policy_forward.1']
    #allocation4 [shape = 'u8[1024]{0}', space=vmem, size = 0x400, scoped, tag = 'output window, operand 1, single buffered']
    #allocation5 [shape = 's32[1]{0}', space=sflag, size = 0x4, scoped, tag = 'scoped memory for policy_forward.1']
    #allocation6 [shape = 'u8[1024]{0}', space=vmem, size = 0x400, scoped, tag = 'output window, operand 2, single buffered']
    %32 = vsyncpa [#allocation3], 0
    %33 = vsyncpa [#allocation5], 0
    // Predicated region
    $region2: #{policy_forward.1} parent=1 // pred_check
      _
    $region3: #{policy_forward.1} parent=1 // pred_check_branch
      %35 = sbr.rel (0) target = $region5
    $region4: #{policy_forward.1} parent=1 // pred_region
      _
    $region5: #{policy_forward.1} parent=1 // pred_fallthru
      _
    // Predicated region
    $region6: #{policy_forward.1} parent=1 // pred_check
      _
    $region7: #{policy_forward.1} parent=1 // pred_check_branch
      %37 = sbr.rel (0) target = $region9
    $region8: #{policy_forward.1} parent=1 // pred_region
      _
    $region9: #{policy_forward.1} parent=1 // pred_fallthru
      _
    // Predicated region
    $region10: #{policy_forward.1} parent=1 // pred_check
      _
    $region11: #{policy_forward.1} parent=1 // pred_check_branch
      %39 = sbr.rel (0) target = $region13
    $region12: #{policy_forward.1} parent=1 // pred_region
      _
    $region13: #{policy_forward.1} parent=1 // pred_fallthru
      _
    // Predicated region
    $region14: #{policy_forward.1} parent=1 // pred_check
      _
    $region15: #{policy_forward.1} parent=1 // pred_check_branch
      %41 = sbr.rel (0) target = $region17
    $region16: #{policy_forward.1} parent=1 // pred_region
      _
    $region17: #{policy_forward.1} parent=1 // pred_fallthru
      _
    // Predicated region
    $region18: #{policy_forward.1} parent=1 // pred_check
      _
    $region19: #{policy_forward.1} parent=1 // pred_check_branch
      %43 = sbr.rel (0) target = $region21
    $region20: #{policy_forward.1} parent=1 // pred_region
      _
    $region21: #{policy_forward.1} parent=1 // pred_fallthru
      _
    // Predicated region
    $region22: #{policy_forward.1} parent=1 // pred_check
      _
    $region23: #{policy_forward.1} parent=1 // pred_check_branch
      %45 = sbr.rel (0) target = $region25
    $region24: #{policy_forward.1} parent=1 // pred_region
      _
    $region25: #{policy_forward.1} parent=1 // pred_fallthru
      _
    // Predicated region
    $region26: #{policy_forward.1} parent=1 // pred_check
      _
    $region27: #{policy_forward.1} parent=1 // pred_check_branch
      %47 = sbr.rel (0) target = $region29
    $region28: #{policy_forward.1} parent=1 // pred_region
      _
    $region29: #{policy_forward.1} parent=1 // pred_fallthru
      _
    // Predicated region
    $region30: #{policy_forward.1} parent=1 // pred_check
      _
    $region31: #{policy_forward.1} parent=1 // pred_check_branch
      %49 = sbr.rel (0) target = $region33
    $region32: #{policy_forward.1} parent=1 // pred_region
      _
    $region33: #{policy_forward.1} parent=1 // pred_fallthru
      _
    // Predicated region
    $region34: #{policy_forward.1} parent=1 // pred_check
      _
    $region35: #{policy_forward.1} parent=1 // pred_check_branch
      %51 = sbr.rel (0) target = $region37
    $region36: #{policy_forward.1} parent=1 // pred_region
      _
    $region37: #{policy_forward.1} parent=1 // pred_fallthru
      _
    // Predicated region
    $region38: #{policy_forward.1} parent=1 // pred_check
      _
    $region39: #{policy_forward.1} parent=1 // pred_check_branch
      %53 = sbr.rel (0) target = $region41
    $region40: #{policy_forward.1} parent=1 // pred_region
      _
    $region41: #{policy_forward.1} parent=1 // pred_fallthru
      _
    // Predicated region
    $region42: #{policy_forward.1} parent=1 // pred_check
      _
    $region43: #{policy_forward.1} parent=1 // pred_check_branch
      %55 = sbr.rel (0) target = $region45
    $region44: #{policy_forward.1} parent=1 // pred_region
      _
    $region45: #{policy_forward.1} parent=1 // pred_fallthru
      _
    // Predicated region
    $region46: #{policy_forward.1} parent=1 // pred_check
      _
    $region47: #{policy_forward.1} parent=1 // pred_check_branch
      %57 = sbr.rel (0) target = $region49
    $region48: #{policy_forward.1} parent=1 // pred_region
      _
    $region49: #{policy_forward.1} parent=1 // pred_fallthru
      _
    // Predicated region
    $region50: #{policy_forward.1} parent=1 // pred_check
      _
    $region51: #{policy_forward.1} parent=1 // pred_check_branch
      %59 = sbr.rel (0) target = $region53
    $region52: #{policy_forward.1} parent=1 // pred_region
      _
    $region53: #{policy_forward.1} parent=1 // pred_fallthru
      _
    // Predicated region
    $region54: #{policy_forward.1} parent=1 // pred_check
      _
    $region55: #{policy_forward.1} parent=1 // pred_check_branch
      %61 = sbr.rel (0) target = $region57
    $region56: #{policy_forward.1} parent=1 // pred_region
      _
    $region57: #{policy_forward.1} parent=1 // pred_fallthru
      _
    // Predicated region
    $region58: #{policy_forward.1} parent=1 // pred_check
      _
    $region59: #{policy_forward.1} parent=1 // pred_check_branch
      %63 = sbr.rel (0) target = $region61
    $region60: #{policy_forward.1} parent=1 // pred_region
      _
    $region61: #{policy_forward.1} parent=1 // pred_fallthru
      _
    // Predicated region
    $region62: #{policy_forward.1} parent=1 // pred_check
      _
    $region63: #{policy_forward.1} parent=1 // pred_check_branch
      %65 = sbr.rel (0) target = $region65
    $region64: #{policy_forward.1} parent=1 // pred_region
      _
    $region65: #{policy_forward.1} parent=1 // pred_fallthru
      _
    // Predicated region
    $region66: #{policy_forward.1} parent=1 // pred_check
      _
    $region67: #{policy_forward.1} parent=1 // pred_check_branch
      %67 = sbr.rel (0) target = $region69
    $region68: #{policy_forward.1} parent=1 // pred_region
      _
    $region69: #{policy_forward.1} parent=1 // pred_fallthru
      _
    // Predicated region
    $region70: #{policy_forward.1} parent=1 // pred_check
      _
    $region71: #{policy_forward.1} parent=1 // pred_check_branch
      %69 = sbr.rel (0) target = $region73
    $region72: #{policy_forward.1} parent=1 // pred_region
      _
    $region73: #{policy_forward.1} parent=1 // pred_fallthru
      _
    // Predicated region
    $region74: #{policy_forward.1} parent=1 // pred_check
      _
    $region75: #{policy_forward.1} parent=1 // pred_check_branch
      %71 = sbr.rel (0) target = $region77
    $region76: #{policy_forward.1} parent=1 // pred_region
      _
    $region77: #{policy_forward.1} parent=1 // pred_fallthru
      _
    // Predicated region
    $region78: #{policy_forward.1} parent=1 // pred_check
      _
    $region79: #{policy_forward.1} parent=1 // pred_check_branch
      %73 = sbr.rel (0) target = $region81
    $region80: #{policy_forward.1} parent=1 // pred_region
      _
    $region81: #{policy_forward.1} parent=1 // pred_fallthru
      _
    // Predicated region
    $region82: #{policy_forward.1} parent=1 // pred_check
      _
    $region83: #{policy_forward.1} parent=1 // pred_check_branch
      %75 = sbr.rel (0) target = $region85
    $region84: #{policy_forward.1} parent=1 // pred_region
      _
    $region85: #{policy_forward.1} parent=1 // pred_fallthru
      _
    // Predicated region
    $region86: #{policy_forward.1} parent=1 // pred_check
      _
    $region87: #{policy_forward.1} parent=1 // pred_check_branch
      %77 = sbr.rel (0) target = $region89
    $region88: #{policy_forward.1} parent=1 // pred_region
      _
    $region89: #{policy_forward.1} parent=1 // pred_fallthru
      _
    // Predicated region
    $region90: #{policy_forward.1} parent=1 // pred_check
      _
    $region91: #{policy_forward.1} parent=1 // pred_check_branch
      %79 = sbr.rel (0) target = $region93
    $region92: #{policy_forward.1} parent=1 // pred_region
      _
    $region93: #{policy_forward.1} parent=1 // pred_fallthru
      _
    // Predicated region
    $region94: #{policy_forward.1} parent=1 // pred_check
      _
    $region95: #{policy_forward.1} parent=1 // pred_check_branch
      %81 = sbr.rel (0) target = $region97
    $region96: #{policy_forward.1} parent=1 // pred_region
      _
    $region97: #{policy_forward.1} parent=1 // pred_fallthru
      _
    %v83 = vld [vmem:[%s0] sm:$0xf]
    %v84 = vld [vmem:[%s0 + $0x4] sm:$0xf]
    %v85 = vld [vmem:[%s0 + $0x8] sm:$0xf]
    %v86 = vld [vmem:[%s0 + $0xc] sm:$0xf]
    %v87 = vld [vmem:[%s0 + $0x10] sm:$0xf]
    %v88 = vld [vmem:[%s0 + $0x14] sm:$0xf]
    %v89 = vld [vmem:[%s0 + $0x18] sm:$0xf]
    %v90 = vld [vmem:[%s0 + $0x1c] sm:$0xf]
    %v91 = vld [vmem:[%s0 + $0x20] sm:$0xf]
    %v92 = vld [vmem:[%s0 + $0x24] sm:$0xf]
    %v93 = vld [vmem:[%s0 + $0x28] sm:$0xf]
    %v94 = vld [vmem:[%s0 + $0x2c] sm:$0xf]
    %v95 = vld [vmem:[%s0 + $0x30] sm:$0xf]
    %v96 = vld [vmem:[%s0 + $0x34] sm:$0xf]
    %v97 = vld [vmem:[%s0 + $0x38] sm:$0xf]
    %v98 = vld [vmem:[%s0 + $0x3c] sm:$0xf]
    %v99 = vld [vmem:[%s0 + $0x40] sm:$0xf]
    %v100 = vld [vmem:[%s0 + $0x44] sm:$0xf]
    %v101 = vld [vmem:[%s0 + $0x48] sm:$0xf]
    %v102 = vld [vmem:[%s0 + $0x4c] sm:$0xf]
    %v103 = vld [vmem:[%s0 + $0x50] sm:$0xf]
    %v104 = vld [vmem:[%s0 + $0x54] sm:$0xf]
    %v105 = vld [vmem:[%s0 + $0x58] sm:$0xf]
    %v106 = vld [vmem:[%s0 + $0x5c] sm:$0xf]
    %v107 = vld [vmem:[%s0 + $0x60] sm:$0xf]
    %v108 = vld [vmem:[%s0 + $0x64] sm:$0xf]
    %v109 = vld [vmem:[%s0 + $0x68] sm:$0xf]
    %v110 = vld [vmem:[%s0 + $0x6c] sm:$0xf]
    %v111 = vld [vmem:[%s0 + $0x70] sm:$0xf]
    %v112 = vld [vmem:[%s0 + $0x74] sm:$0xf]
    %v113 = vld [vmem:[%s0 + $0x78] sm:$0xf]
    %v114 = vld [vmem:[%s0 + $0x7c] sm:$0xf]
    %v115 = vld [vmem:[%s0 + $0x80] sm:$0xf]
    %v116 = vld [vmem:[%s0 + $0x84] sm:$0xf]
    %v117 = vld [vmem:[%s0 + $0x88] sm:$0xf]
    %v118 = vld [vmem:[%s0 + $0x8c] sm:$0xf]
    %v119 = vld [vmem:[%s0 + $0x90] sm:$0xf]
    %v120 = vld [vmem:[%s0 + $0x94] sm:$0xf]
    %v121 = vld [vmem:[%s0 + $0x98] sm:$0xf]
    %v122 = vld [vmem:[%s0 + $0x9c] sm:$0xf]
    %v123 = vld [vmem:[%s0 + $0xa0] sm:$0xf]
    %v124 = vld [vmem:[%s0 + $0xa4] sm:$0xf]
    %v125 = vld [vmem:[%s0 + $0xa8] sm:$0xf]
    %v126 = vld [vmem:[%s0 + $0xac] sm:$0xf]
    %v127 = vld [vmem:[%s0 + $0xb0] sm:$0xf]
    %v128 = vld [vmem:[%s0 + $0xb4] sm:$0xf]
    %v129 = vld [vmem:[%s0 + $0xb8] sm:$0xf]
    %v130 = vld [vmem:[%s0 + $0xbc] sm:$0xf]
    %v131 = vld [vmem:[%s0 + $0xc0] sm:$0xf]
    %v132 = vld [vmem:[%s0 + $0xc4] sm:$0xf]
    %v133 = vld [vmem:[%s0 + $0xc8] sm:$0xf]
    %v134 = vld [vmem:[%s0 + $0xcc] sm:$0xf]
    %v135 = vld [vmem:[%s0 + $0xd0] sm:$0xf]
    %v136 = vld [vmem:[%s0 + $0xd4] sm:$0xf]
    %v137 = vld [vmem:[%s0 + $0xd8] sm:$0xf]
    %v138 = vld [vmem:[%s0 + $0xdc] sm:$0xf]
    %v139 = vld [vmem:[%s0 + $0xe0] sm:$0xf]
    %v140 = vld [vmem:[%s0 + $0xe4] sm:$0xf]
    %v141 = vld [vmem:[%s0 + $0xe8] sm:$0xf]
    %v142 = vld [vmem:[%s0 + $0xec] sm:$0xf]
    %v143 = vld [vmem:[%s0 + $0xf0] sm:$0xf]
    %v144 = vld [vmem:[%s0 + $0xf4] sm:$0xf]
    %v145 = vld [vmem:[%s0 + $0xf8] sm:$0xf]
    %v146 = vld [vmem:[%s0 + $0xfc] sm:$0xf]
    %v147 = vld [vmem:[%s0 + $0x100] sm:$0xf]
    %v148 = vld [vmem:[%s0 + $0x104] sm:$0xf]
    %v149 = vld [vmem:[%s0 + $0x108] sm:$0xf]
    %v150 = vld [vmem:[%s0 + $0x10c] sm:$0xf]
    %v151 = vld [vmem:[%s0 + $0x110] sm:$0xf]
    %v152 = vld [vmem:[%s0 + $0x114] sm:$0xf]
    %v153 = vld [vmem:[%s0 + $0x118] sm:$0xf]
    %v154 = vld [vmem:[%s0 + $0x11c] sm:$0xf]
    %v155 = vld [vmem:[%s0 + $0x120] sm:$0xf]
    %v156 = vld [vmem:[%s0 + $0x124] sm:$0xf]
    %v157 = vld [vmem:[%s0 + $0x128] sm:$0xf]
    %v158 = vld [vmem:[%s0 + $0x12c] sm:$0xf]
    %v159 = vld [vmem:[%s0 + $0x130] sm:$0xf]
    %v160 = vld [vmem:[%s0 + $0x134] sm:$0xf]
    %v161 = vld [vmem:[%s0 + $0x138] sm:$0xf]
    %v162 = vld [vmem:[%s0 + $0x13c] sm:$0xf]
    %v163 = vld [vmem:[%s0 + $0x140] sm:$0xf]
    %v164 = vld [vmem:[%s0 + $0x144] sm:$0xf]
    %v165 = vld [vmem:[%s0 + $0x148] sm:$0xf]
    %v166 = vld [vmem:[%s0 + $0x14c] sm:$0xf]
    %v167 = vld [vmem:[%s0 + $0x150] sm:$0xf]
    %v168 = vld [vmem:[%s0 + $0x154] sm:$0xf]
    %v169 = vld [vmem:[%s0 + $0x158] sm:$0xf]
    %v170 = vld [vmem:[%s0 + $0x15c] sm:$0xf]
    %v171 = vld [vmem:[%s0 + $0x160] sm:$0xf]
    %v172 = vld [vmem:[%s0 + $0x164] sm:$0xf]
    %v173 = vld [vmem:[%s0 + $0x168] sm:$0xf]
    %v174 = vld [vmem:[%s0 + $0x16c] sm:$0xf]
    %v175 = vld [vmem:[%s0 + $0x170] sm:$0xf]
    %v176 = vld [vmem:[%s0 + $0x174] sm:$0xf]
    %v177 = vld [vmem:[%s0 + $0x178] sm:$0xf]
    %v178 = vld [vmem:[%s0 + $0x17c] sm:$0xf]
    %v179 = vld [vmem:[%s0 + $0x180] sm:$0xf]
    %v180 = vld [vmem:[%s0 + $0x184] sm:$0xf]
    %v181 = vld [vmem:[%s0 + $0x188] sm:$0xf]
    %v182 = vld [vmem:[%s0 + $0x18c] sm:$0xf]
    %v183 = vld [vmem:[%s0 + $0x190] sm:$0xf]
    %v184 = vld [vmem:[%s0 + $0x194] sm:$0xf]
    %v185 = vld [vmem:[%s0 + $0x198] sm:$0xf]
    %v186 = vld [vmem:[%s0 + $0x19c] sm:$0xf]
    %v187 = vld [vmem:[%s0 + $0x1a0] sm:$0xf]
    %v188 = vld [vmem:[%s0 + $0x1a4] sm:$0xf]
    %v189 = vld [vmem:[%s0 + $0x1a8] sm:$0xf]
    %v190 = vld [vmem:[%s0 + $0x1ac] sm:$0xf]
    %v191 = vld [vmem:[%s0 + $0x1b0] sm:$0xf]
    %v192 = vld [vmem:[%s0 + $0x1b4] sm:$0xf]
    %v193 = vld [vmem:[%s0 + $0x1b8] sm:$0xf]
    %v194 = vld [vmem:[%s0 + $0x1bc] sm:$0xf]
    %v195 = vld [vmem:[%s0 + $0x1c0] sm:$0xf]
    %v196 = vld [vmem:[%s0 + $0x1c4] sm:$0xf]
    %v197 = vld [vmem:[%s0 + $0x1c8] sm:$0xf]
    %v198 = vld [vmem:[%s0 + $0x1cc] sm:$0xf]
    %v199 = vld [vmem:[%s0 + $0x1d0] sm:$0xf]
    %v200 = vld [vmem:[%s0 + $0x1d4] sm:$0xf]
    %v201 = vld [vmem:[%s0 + $0x1d8] sm:$0xf]
    %v202 = vld [vmem:[%s0 + $0x1dc] sm:$0xf]
    %v203 = vld [vmem:[%s0 + $0x1e0] sm:$0xf]
    %v204 = vld [vmem:[%s0 + $0x1e4] sm:$0xf]
    %v205 = vld [vmem:[%s0 + $0x1e8] sm:$0xf]
    %v206 = vld [vmem:[%s0 + $0x1ec] sm:$0xf]
    %v207 = vld [vmem:[%s0 + $0x1f0] sm:$0xf]
    %v208 = vld [vmem:[%s0 + $0x1f4] sm:$0xf]
    %v209 = vld [vmem:[%s0 + $0x1f8] sm:$0xf]
    %v210 = vld [vmem:[%s0 + $0x1fc] sm:$0xf]
    %v211 = vld [vmem:[%s0 + $0x200] sm:$0xf]
    %v212 = vld [vmem:[%s0 + $0x204] sm:$0xf]
    %v213 = vld [vmem:[%s0 + $0x208] sm:$0xf]
    %v214 = vld [vmem:[%s0 + $0x20c] sm:$0xf]
    %v215 = vld [vmem:[%s0 + $0x210] sm:$0xf]
    %v216 = vld [vmem:[%s0 + $0x214] sm:$0xf]
    %v217 = vld [vmem:[%s0 + $0x218] sm:$0xf]
    %v218 = vld [vmem:[%s0 + $0x21c] sm:$0xf]
    %v219 = vld [vmem:[%s0 + $0x220] sm:$0xf]
    %v220 = vld [vmem:[%s0 + $0x224] sm:$0xf]
    %v221 = vld [vmem:[%s0 + $0x228] sm:$0xf]
    %v222 = vld [vmem:[%s0 + $0x22c] sm:$0xf]
    %v223 = vld [vmem:[%s0 + $0x230] sm:$0xf]
    %v224 = vld [vmem:[%s0 + $0x234] sm:$0xf]
    %v225 = vld [vmem:[%s0 + $0x238] sm:$0xf]
    %v226 = vld [vmem:[%s0 + $0x23c] sm:$0xf]
    %v227 = vld [vmem:[%s0 + $0x240] sm:$0xf]
    %v228 = vld [vmem:[%s0 + $0x244] sm:$0xf]
    %v229 = vld [vmem:[%s0 + $0x248] sm:$0xf]
    %v230 = vld [vmem:[%s0 + $0x24c] sm:$0xf]
    %v231 = vld [vmem:[%s0 + $0x250] sm:$0xf]
    %v232 = vld [vmem:[%s0 + $0x254] sm:$0xf]
    %v233 = vld [vmem:[%s0 + $0x258] sm:$0xf]
    %v234 = vld [vmem:[%s0 + $0x25c] sm:$0xf]
    %v235 = vld [vmem:[%s0 + $0x260] sm:$0xf]
    %v236 = vld [vmem:[%s0 + $0x264] sm:$0xf]
    %v237 = vld [vmem:[%s0 + $0x268] sm:$0xf]
    %v238 = vld [vmem:[%s0 + $0x26c] sm:$0xf]
    %v239 = vld [vmem:[%s0 + $0x270] sm:$0xf]
    %v240 = vld [vmem:[%s0 + $0x274] sm:$0xf]
    %v241 = vld [vmem:[%s0 + $0x278] sm:$0xf]
    %v242 = vld [vmem:[%s0 + $0x27c] sm:$0xf]
    %v243 = vld [vmem:[%s1] sm:$0xf]
    %v244 = vld [vmem:[%s1 + $0x4] sm:$0xf]
    %v245 = vld [vmem:[%s1 + $0x8] sm:$0xf]
    %v246 = vld [vmem:[%s1 + $0xc] sm:$0xf]
    %v247 = vld [vmem:[%s1 + $0x10] sm:$0xf]
    %v248 = vld [vmem:[%s1 + $0x14] sm:$0xf]
    %v249 = vld [vmem:[%s1 + $0x18] sm:$0xf]
    %v250 = vld [vmem:[%s1 + $0x1c] sm:$0xf]
    %v251 = vld [vmem:[%s1 + $0x20] sm:$0xf]
    %v252 = vld [vmem:[%s1 + $0x24] sm:$0xf]
    %v253 = vld [vmem:[%s1 + $0x28] sm:$0xf]
    %v254 = vld [vmem:[%s1 + $0x2c] sm:$0xf]
    %v255 = vld [vmem:[%s1 + $0x30] sm:$0xf]
    %v256 = vld [vmem:[%s1 + $0x34] sm:$0xf]
    %v257 = vld [vmem:[%s1 + $0x38] sm:$0xf]
    %v258 = vld [vmem:[%s1 + $0x3c] sm:$0xf]
    %v259 = vld [vmem:[%s2] sm:$0x1]
    %v261 = vperm.slane %v259, 0
    %v423 = vunpack.c.l.b16 %v83
    %v424 = vunpack.c.l.b16 %v84
    %v425 = vunpack.c.l.b16 %v85
    %v426 = vunpack.c.l.b16 %v86
    %v427 = vunpack.c.l.b16 %v87
    %v428 = vunpack.c.l.b16 %v88
    %v429 = vunpack.c.l.b16 %v89
    %v430 = vunpack.c.l.b16 %v90
    %v431 = vunpack.c.l.b16 %v91
    %v432 = vunpack.c.l.b16 %v92
    %v433 = vunpack.c.l.b16 %v93
    %v434 = vunpack.c.l.b16 %v94
    %v435 = vunpack.c.l.b16 %v95
    %v436 = vunpack.c.l.b16 %v96
    %v437 = vunpack.c.l.b16 %v97
    %v438 = vunpack.c.l.b16 %v98
    %v439 = vunpack.c.l.b16 %v99
    %v440 = vunpack.c.l.b16 %v100
    %v441 = vunpack.c.l.b16 %v101
    %v442 = vunpack.c.l.b16 %v102
    %v443 = vunpack.c.l.b16 %v103
    %v444 = vunpack.c.l.b16 %v104
    %v445 = vunpack.c.l.b16 %v105
    %v446 = vunpack.c.l.b16 %v106
    %v447 = vunpack.c.l.b16 %v107
    %v448 = vunpack.c.l.b16 %v108
    %v449 = vunpack.c.l.b16 %v109
    %v450 = vunpack.c.l.b16 %v110
    %v451 = vunpack.c.l.b16 %v111
    %v452 = vunpack.c.l.b16 %v112
    %v453 = vunpack.c.l.b16 %v113
    %v454 = vunpack.c.l.b16 %v114
    %v455 = vunpack.c.l.b16 %v115
    %v456 = vunpack.c.l.b16 %v116
    %v457 = vunpack.c.l.b16 %v117
    %v458 = vunpack.c.l.b16 %v118
    %v459 = vunpack.c.l.b16 %v119
    %v460 = vunpack.c.l.b16 %v120
    %v461 = vunpack.c.l.b16 %v121
    %v462 = vunpack.c.l.b16 %v122
    %v463 = vunpack.c.l.b16 %v123
    %v464 = vunpack.c.l.b16 %v124
    %v465 = vunpack.c.l.b16 %v125
    %v466 = vunpack.c.l.b16 %v126
    %v467 = vunpack.c.l.b16 %v127
    %v468 = vunpack.c.l.b16 %v128
    %v469 = vunpack.c.l.b16 %v129
    %v470 = vunpack.c.l.b16 %v130
    %v471 = vunpack.c.l.b16 %v131
    %v472 = vunpack.c.l.b16 %v132
    %v473 = vunpack.c.l.b16 %v133
    %v474 = vunpack.c.l.b16 %v134
    %v475 = vunpack.c.l.b16 %v135
    %v476 = vunpack.c.l.b16 %v136
    %v477 = vunpack.c.l.b16 %v137
    %v478 = vunpack.c.l.b16 %v138
    %v479 = vunpack.c.l.b16 %v139
    %v480 = vunpack.c.l.b16 %v140
    %v481 = vunpack.c.l.b16 %v141
    %v482 = vunpack.c.l.b16 %v142
    %v483 = vunpack.c.l.b16 %v143
    %v484 = vunpack.c.l.b16 %v144
    %v485 = vunpack.c.l.b16 %v145
    %v486 = vunpack.c.l.b16 %v146
    %v487 = vunpack.c.l.b16 %v147
    %v488 = vunpack.c.l.b16 %v148
    %v489 = vunpack.c.l.b16 %v149
    %v490 = vunpack.c.l.b16 %v150
    %v491 = vunpack.c.l.b16 %v151
    %v492 = vunpack.c.l.b16 %v152
    %v493 = vunpack.c.l.b16 %v153
    %v494 = vunpack.c.l.b16 %v154
    %v495 = vunpack.c.l.b16 %v155
    %v496 = vunpack.c.l.b16 %v156
    %v497 = vunpack.c.l.b16 %v157
    %v498 = vunpack.c.l.b16 %v158
    %v499 = vunpack.c.l.b16 %v159
    %v500 = vunpack.c.l.b16 %v160
    %v501 = vunpack.c.l.b16 %v161
    %v502 = vunpack.c.l.b16 %v162
    %v503 = vunpack.c.l.b16 %v163
    %v504 = vunpack.c.l.b16 %v164
    %v505 = vunpack.c.l.b16 %v165
    %v506 = vunpack.c.l.b16 %v166
    %v507 = vunpack.c.l.b16 %v167
    %v508 = vunpack.c.l.b16 %v168
    %v509 = vunpack.c.l.b16 %v169
    %v510 = vunpack.c.l.b16 %v170
    %v511 = vunpack.c.l.b16 %v171
    %v512 = vunpack.c.l.b16 %v172
    %v513 = vunpack.c.l.b16 %v173
    %v514 = vunpack.c.l.b16 %v174
    %v515 = vunpack.c.l.b16 %v175
    %v516 = vunpack.c.l.b16 %v176
    %v517 = vunpack.c.l.b16 %v177
    %v518 = vunpack.c.l.b16 %v178
    %v519 = vunpack.c.l.b16 %v179
    %v520 = vunpack.c.l.b16 %v180
    %v521 = vunpack.c.l.b16 %v181
    %v522 = vunpack.c.l.b16 %v182
    %v523 = vunpack.c.l.b16 %v183
    %v524 = vunpack.c.l.b16 %v184
    %v525 = vunpack.c.l.b16 %v185
    %v526 = vunpack.c.l.b16 %v186
    %v527 = vunpack.c.l.b16 %v187
    %v528 = vunpack.c.l.b16 %v188
    %v529 = vunpack.c.l.b16 %v189
    %v530 = vunpack.c.l.b16 %v190
    %v531 = vunpack.c.l.b16 %v191
    %v532 = vunpack.c.l.b16 %v192
    %v533 = vunpack.c.l.b16 %v193
    %v534 = vunpack.c.l.b16 %v194
    %v535 = vunpack.c.l.b16 %v195
    %v536 = vunpack.c.l.b16 %v196
    %v537 = vunpack.c.l.b16 %v197
    %v538 = vunpack.c.l.b16 %v198
    %v539 = vunpack.c.l.b16 %v199
    %v540 = vunpack.c.l.b16 %v200
    %v541 = vunpack.c.l.b16 %v201
    %v542 = vunpack.c.l.b16 %v202
    %v543 = vunpack.c.l.b16 %v203
    %v544 = vunpack.c.l.b16 %v204
    %v545 = vunpack.c.l.b16 %v205
    %v546 = vunpack.c.l.b16 %v206
    %v547 = vunpack.c.l.b16 %v207
    %v548 = vunpack.c.l.b16 %v208
    %v549 = vunpack.c.l.b16 %v209
    %v550 = vunpack.c.l.b16 %v210
    %v551 = vunpack.c.l.b16 %v211
    %v552 = vunpack.c.l.b16 %v212
    %v553 = vunpack.c.l.b16 %v213
    %v554 = vunpack.c.l.b16 %v214
    %v555 = vunpack.c.l.b16 %v215
    %v556 = vunpack.c.l.b16 %v216
    %v557 = vunpack.c.l.b16 %v217
    %v558 = vunpack.c.l.b16 %v218
    %v559 = vunpack.c.l.b16 %v219
    %v560 = vunpack.c.l.b16 %v220
    %v561 = vunpack.c.l.b16 %v221
    %v562 = vunpack.c.l.b16 %v222
    %v563 = vunpack.c.l.b16 %v223
    %v564 = vunpack.c.l.b16 %v224
    %v565 = vunpack.c.l.b16 %v225
    %v566 = vunpack.c.l.b16 %v226
    %v567 = vunpack.c.l.b16 %v227
    %v568 = vunpack.c.l.b16 %v228
    %v569 = vunpack.c.l.b16 %v229
    %v570 = vunpack.c.l.b16 %v230
    %v571 = vunpack.c.l.b16 %v231
    %v572 = vunpack.c.l.b16 %v232
    %v573 = vunpack.c.l.b16 %v233
    %v574 = vunpack.c.l.b16 %v234
    %v575 = vunpack.c.l.b16 %v235
    %v576 = vunpack.c.l.b16 %v236
    %v577 = vunpack.c.l.b16 %v237
    %v578 = vunpack.c.l.b16 %v238
    %v579 = vunpack.c.l.b16 %v239
    %v580 = vunpack.c.l.b16 %v240
    %v581 = vunpack.c.l.b16 %v241
    %v582 = vunpack.c.l.b16 %v242
    %v583 = vpack.c.b16 %v424, %v423
    %v584 = vpack.c.b16 %v426, %v425
    %v585 = vpack.c.b16 %v428, %v427
    %v586 = vpack.c.b16 %v430, %v429
    %v587 = vpack.c.b16 %v432, %v431
    %v588 = vpack.c.b16 %v434, %v433
    %v589 = vpack.c.b16 %v436, %v435
    %v590 = vpack.c.b16 %v438, %v437
    %v591 = vpack.c.b16 %v440, %v439
    %v592 = vpack.c.b16 %v442, %v441
    %v593 = vpack.c.b16 %v444, %v443
    %v594 = vpack.c.b16 %v446, %v445
    %v595 = vpack.c.b16 %v448, %v447
    %v596 = vpack.c.b16 %v450, %v449
    %v597 = vpack.c.b16 %v452, %v451
    %v598 = vpack.c.b16 %v454, %v453
    %v599 = vpack.c.b16 %v456, %v455
    %v600 = vpack.c.b16 %v458, %v457
    %v601 = vpack.c.b16 %v460, %v459
    %v602 = vpack.c.b16 %v462, %v461
    %v603 = vpack.c.b16 %v464, %v463
    %v604 = vpack.c.b16 %v466, %v465
    %v605 = vpack.c.b16 %v468, %v467
    %v606 = vpack.c.b16 %v470, %v469
    %v607 = vpack.c.b16 %v472, %v471
    %v608 = vpack.c.b16 %v474, %v473
    %v609 = vpack.c.b16 %v476, %v475
    %v610 = vpack.c.b16 %v478, %v477
    %v611 = vpack.c.b16 %v480, %v479
    %v612 = vpack.c.b16 %v482, %v481
    %v613 = vpack.c.b16 %v484, %v483
    %v614 = vpack.c.b16 %v486, %v485
    %v615 = vpack.c.b16 %v488, %v487
    %v616 = vpack.c.b16 %v490, %v489
    %v617 = vpack.c.b16 %v492, %v491
    %v618 = vpack.c.b16 %v494, %v493
    %v619 = vpack.c.b16 %v496, %v495
    %v620 = vpack.c.b16 %v498, %v497
    %v621 = vpack.c.b16 %v500, %v499
    %v622 = vpack.c.b16 %v502, %v501
    %v623 = vpack.c.b16 %v504, %v503
    %v624 = vpack.c.b16 %v506, %v505
    %v625 = vpack.c.b16 %v508, %v507
    %v626 = vpack.c.b16 %v510, %v509
    %v627 = vpack.c.b16 %v512, %v511
    %v628 = vpack.c.b16 %v514, %v513
    %v629 = vpack.c.b16 %v516, %v515
    %v630 = vpack.c.b16 %v518, %v517
    %v631 = vpack.c.b16 %v520, %v519
    %v632 = vpack.c.b16 %v522, %v521
    %v633 = vpack.c.b16 %v524, %v523
    %v634 = vpack.c.b16 %v526, %v525
    %v635 = vpack.c.b16 %v528, %v527
    %v636 = vpack.c.b16 %v530, %v529
    %v637 = vpack.c.b16 %v532, %v531
    %v638 = vpack.c.b16 %v534, %v533
    %v639 = vpack.c.b16 %v536, %v535
    %v640 = vpack.c.b16 %v538, %v537
    %v641 = vpack.c.b16 %v540, %v539
    %v642 = vpack.c.b16 %v542, %v541
    %v643 = vpack.c.b16 %v544, %v543
    %v644 = vpack.c.b16 %v546, %v545
    %v645 = vpack.c.b16 %v548, %v547
    %v646 = vpack.c.b16 %v550, %v549
    %v647 = vpack.c.b16 %v552, %v551
    %v648 = vpack.c.b16 %v554, %v553
    %v649 = vpack.c.b16 %v556, %v555
    %v650 = vpack.c.b16 %v558, %v557
    %v651 = vpack.c.b16 %v560, %v559
    %v652 = vpack.c.b16 %v562, %v561
    %v653 = vpack.c.b16 %v564, %v563
    %v654 = vpack.c.b16 %v566, %v565
    %v655 = vpack.c.b16 %v568, %v567
    %v656 = vpack.c.b16 %v570, %v569
    %v657 = vpack.c.b16 %v572, %v571
    %v658 = vpack.c.b16 %v574, %v573
    %v659 = vpack.c.b16 %v576, %v575
    %v660 = vpack.c.b16 %v578, %v577
    %v661 = vpack.c.b16 %v580, %v579
    %v662 = vpack.c.b16 %v582, %v581
    %v759 = vunpack.c.l.b16 %v243
    %v760 = vunpack.c.l.b16 %v244
    %v761 = vunpack.c.l.b16 %v245
    %v762 = vunpack.c.l.b16 %v246
    %v763 = vunpack.c.l.b16 %v247
    %v764 = vunpack.c.l.b16 %v248
    %v765 = vunpack.c.l.b16 %v249
    %v766 = vunpack.c.l.b16 %v250
    %v767 = vunpack.c.l.b16 %v251
    %v768 = vunpack.c.l.b16 %v252
    %v769 = vunpack.c.l.b16 %v253
    %v770 = vunpack.c.l.b16 %v254
    %v771 = vunpack.c.l.b16 %v255
    %v772 = vunpack.c.l.b16 %v256
    %v773 = vunpack.c.l.b16 %v257
    %v774 = vunpack.c.l.b16 %v258
    %v775 = vpack.c.b16 %v760, %v759
    %v776 = vpack.c.b16 %v762, %v761
    %v777 = vpack.c.b16 %v764, %v763
    %v778 = vpack.c.b16 %v766, %v765
    %v779 = vpack.c.b16 %v768, %v767
    %v780 = vpack.c.b16 %v770, %v769
    %v781 = vpack.c.b16 %v772, %v771
    %v782 = vpack.c.b16 %v774, %v773
    %791 = vmatpush.bf16.msra.mxu0 %v782
    %792 = vmatpush.bf16.msra.mxu0 %v781
    %793 = vmatpush.bf16.msra.mxu0 %v780
    %794 = vmatpush.bf16.msra.mxu0 %v779
    %795 = vmatpush.bf16.msra.mxu0 %v778
    %796 = vmatpush.bf16.msra.mxu0 %v777
    %797 = vmatpush.bf16.msra.mxu0 %v776
    %798 = vmatpush.bf16.msra.mxu0 %v775
    %799 = vmatmul.bf16.gmra.mxu0 %v583
    %v800 = vpop.f32.mrf.mxu0
    %v801 = vadd.f32 %v261, %v800
    %v802 = vpop.f32.mrf.mxu0
    %v803 = vadd.f32 %v261, %v802
    %804 = vmatmul.bf16.gmra.mxu0 %v584
    %v805 = vpop.f32.mrf.mxu0
    %v806 = vadd.f32 %v261, %v805
    %v807 = vpop.f32.mrf.mxu0
    %v808 = vadd.f32 %v261, %v807
    %809 = vmatmul.bf16.gmra.mxu0 %v585
    %v810 = vpop.f32.mrf.mxu0
    %v811 = vadd.f32 %v261, %v810
    %v812 = vpop.f32.mrf.mxu0
    %v813 = vadd.f32 %v261, %v812
    %814 = vmatmul.bf16.gmra.mxu0 %v586
    %v815 = vpop.f32.mrf.mxu0
    %v816 = vadd.f32 %v261, %v815
    %v817 = vpop.f32.mrf.mxu0
    %v818 = vadd.f32 %v261, %v817
    %819 = vmatmul.bf16.gmra.mxu0 %v587
    %v820 = vpop.f32.mrf.mxu0
    %v821 = vadd.f32 %v261, %v820
    %v822 = vpop.f32.mrf.mxu0
    %v823 = vadd.f32 %v261, %v822
    %824 = vmatmul.bf16.gmra.mxu0 %v588
    %v825 = vpop.f32.mrf.mxu0
    %v826 = vadd.f32 %v261, %v825
    %v827 = vpop.f32.mrf.mxu0
    %v828 = vadd.f32 %v261, %v827
    %829 = vmatmul.bf16.gmra.mxu0 %v589
    %v830 = vpop.f32.mrf.mxu0
    %v831 = vadd.f32 %v261, %v830
    %v832 = vpop.f32.mrf.mxu0
    %v833 = vadd.f32 %v261, %v832
    %834 = vmatmul.bf16.gmra.mxu0 %v590
    %v835 = vpop.f32.mrf.mxu0
    %v836 = vadd.f32 %v261, %v835
    %v837 = vpop.f32.mrf.mxu0
    %v838 = vadd.f32 %v261, %v837
    %839 = vmatmul.bf16.gmra.mxu0 %v591
    %v840 = vpop.f32.mrf.mxu0
    %v841 = vadd.f32 %v261, %v840
    %v842 = vpop.f32.mrf.mxu0
    %v843 = vadd.f32 %v261, %v842
    %844 = vmatmul.bf16.gmra.mxu0 %v592
    %v845 = vpop.f32.mrf.mxu0
    %v846 = vadd.f32 %v261, %v845
    %v847 = vpop.f32.mrf.mxu0
    %v848 = vadd.f32 %v261, %v847
    %849 = vmatmul.bf16.gmra.mxu0 %v593
    %v850 = vpop.f32.mrf.mxu0
    %v851 = vadd.f32 %v261, %v850
    %v852 = vpop.f32.mrf.mxu0
    %v853 = vadd.f32 %v261, %v852
    %854 = vmatmul.bf16.gmra.mxu0 %v594
    %v855 = vpop.f32.mrf.mxu0
    %v856 = vadd.f32 %v261, %v855
    %v857 = vpop.f32.mrf.mxu0
    %v858 = vadd.f32 %v261, %v857
    %859 = vmatmul.bf16.gmra.mxu0 %v595
    %v860 = vpop.f32.mrf.mxu0
    %v861 = vadd.f32 %v261, %v860
    %v862 = vpop.f32.mrf.mxu0
    %v863 = vadd.f32 %v261, %v862
    %864 = vmatmul.bf16.gmra.mxu0 %v596
    %v865 = vpop.f32.mrf.mxu0
    %v866 = vadd.f32 %v261, %v865
    %v867 = vpop.f32.mrf.mxu0
    %v868 = vadd.f32 %v261, %v867
    %869 = vmatmul.bf16.gmra.mxu0 %v597
    %v870 = vpop.f32.mrf.mxu0
    %v871 = vadd.f32 %v261, %v870
    %v872 = vpop.f32.mrf.mxu0
    %v873 = vadd.f32 %v261, %v872
    %874 = vmatmul.bf16.gmra.mxu0 %v598
    %v875 = vpop.f32.mrf.mxu0
    %v876 = vadd.f32 %v261, %v875
    %v877 = vpop.f32.mrf.mxu0
    %v878 = vadd.f32 %v261, %v877
    %879 = vmatmul.bf16.gmra.mxu0 %v599
    %v880 = vpop.f32.mrf.mxu0
    %v881 = vadd.f32 %v261, %v880
    %v882 = vpop.f32.mrf.mxu0
    %v883 = vadd.f32 %v261, %v882
    %884 = vmatmul.bf16.gmra.mxu0 %v600
    %v885 = vpop.f32.mrf.mxu0
    %v886 = vadd.f32 %v261, %v885
    %v887 = vpop.f32.mrf.mxu0
    %v888 = vadd.f32 %v261, %v887
    %889 = vmatmul.bf16.gmra.mxu0 %v601
    %v890 = vpop.f32.mrf.mxu0
    %v891 = vadd.f32 %v261, %v890
    %v892 = vpop.f32.mrf.mxu0
    %v893 = vadd.f32 %v261, %v892
    %894 = vmatmul.bf16.gmra.mxu0 %v602
    %v895 = vpop.f32.mrf.mxu0
    %v896 = vadd.f32 %v261, %v895
    %v897 = vpop.f32.mrf.mxu0
    %v898 = vadd.f32 %v261, %v897
    %899 = vmatmul.bf16.gmra.mxu0 %v603
    %v900 = vpop.f32.mrf.mxu0
    %v901 = vadd.f32 %v261, %v900
    %v902 = vpop.f32.mrf.mxu0
    %v903 = vadd.f32 %v261, %v902
    %904 = vmatmul.bf16.gmra.mxu0 %v604
    %v905 = vpop.f32.mrf.mxu0
    %v906 = vadd.f32 %v261, %v905
    %v907 = vpop.f32.mrf.mxu0
    %v908 = vadd.f32 %v261, %v907
    %909 = vmatmul.bf16.gmra.mxu0 %v605
    %v910 = vpop.f32.mrf.mxu0
    %v911 = vadd.f32 %v261, %v910
    %v912 = vpop.f32.mrf.mxu0
    %v913 = vadd.f32 %v261, %v912
    %914 = vmatmul.bf16.gmra.mxu0 %v606
    %v915 = vpop.f32.mrf.mxu0
    %v916 = vadd.f32 %v261, %v915
    %v917 = vpop.f32.mrf.mxu0
    %v918 = vadd.f32 %v261, %v917
    %919 = vmatmul.bf16.gmra.mxu0 %v607
    %v920 = vpop.f32.mrf.mxu0
    %v921 = vadd.f32 %v261, %v920
    %v922 = vpop.f32.mrf.mxu0
    %v923 = vadd.f32 %v261, %v922
    %924 = vmatmul.bf16.gmra.mxu0 %v608
    %v925 = vpop.f32.mrf.mxu0
    %v926 = vadd.f32 %v261, %v925
    %v927 = vpop.f32.mrf.mxu0
    %v928 = vadd.f32 %v261, %v927
    %929 = vmatmul.bf16.gmra.mxu0 %v609
    %v930 = vpop.f32.mrf.mxu0
    %v931 = vadd.f32 %v261, %v930
    %v932 = vpop.f32.mrf.mxu0
    %v933 = vadd.f32 %v261, %v932
    %934 = vmatmul.bf16.gmra.mxu0 %v610
    %v935 = vpop.f32.mrf.mxu0
    %v936 = vadd.f32 %v261, %v935
    %v937 = vpop.f32.mrf.mxu0
    %v938 = vadd.f32 %v261, %v937
    %939 = vmatmul.bf16.gmra.mxu0 %v611
    %v940 = vpop.f32.mrf.mxu0
    %v941 = vadd.f32 %v261, %v940
    %v942 = vpop.f32.mrf.mxu0
    %v943 = vadd.f32 %v261, %v942
    %944 = vmatmul.bf16.gmra.mxu0 %v612
    %v945 = vpop.f32.mrf.mxu0
    %v946 = vadd.f32 %v261, %v945
    %v947 = vpop.f32.mrf.mxu0
    %v948 = vadd.f32 %v261, %v947
    %949 = vmatmul.bf16.gmra.mxu0 %v613
    %v950 = vpop.f32.mrf.mxu0
    %v951 = vadd.f32 %v261, %v950
    %v952 = vpop.f32.mrf.mxu0
    %v953 = vadd.f32 %v261, %v952
    %954 = vmatmul.bf16.gmra.mxu0 %v614
    %v955 = vpop.f32.mrf.mxu0
    %v956 = vadd.f32 %v261, %v955
    %v957 = vpop.f32.mrf.mxu0
    %v958 = vadd.f32 %v261, %v957
    %959 = vmatmul.bf16.gmra.mxu0 %v615
    %v960 = vpop.f32.mrf.mxu0
    %v961 = vadd.f32 %v261, %v960
    %v962 = vpop.f32.mrf.mxu0
    %v963 = vadd.f32 %v261, %v962
    %964 = vmatmul.bf16.gmra.mxu0 %v616
    %v965 = vpop.f32.mrf.mxu0
    %v966 = vadd.f32 %v261, %v965
    %v967 = vpop.f32.mrf.mxu0
    %v968 = vadd.f32 %v261, %v967
    %969 = vmatmul.bf16.gmra.mxu0 %v617
    %v970 = vpop.f32.mrf.mxu0
    %v971 = vadd.f32 %v261, %v970
    %v972 = vpop.f32.mrf.mxu0
    %v973 = vadd.f32 %v261, %v972
    %974 = vmatmul.bf16.gmra.mxu0 %v618
    %v975 = vpop.f32.mrf.mxu0
    %v976 = vadd.f32 %v261, %v975
    %v977 = vpop.f32.mrf.mxu0
    %v978 = vadd.f32 %v261, %v977
    %979 = vmatmul.bf16.gmra.mxu0 %v619
    %v980 = vpop.f32.mrf.mxu0
    %v981 = vadd.f32 %v261, %v980
    %v982 = vpop.f32.mrf.mxu0
    %v983 = vadd.f32 %v261, %v982
    %984 = vmatmul.bf16.gmra.mxu0 %v620
    %v985 = vpop.f32.mrf.mxu0
    %v986 = vadd.f32 %v261, %v985
    %v987 = vpop.f32.mrf.mxu0
    %v988 = vadd.f32 %v261, %v987
    %989 = vmatmul.bf16.gmra.mxu0 %v621
    %v990 = vpop.f32.mrf.mxu0
    %v991 = vadd.f32 %v261, %v990
    %v992 = vpop.f32.mrf.mxu0
    %v993 = vadd.f32 %v261, %v992
    %994 = vmatmul.bf16.gmra.mxu0 %v622
    %v995 = vpop.f32.mrf.mxu0
    %v996 = vadd.f32 %v261, %v995
    %v997 = vpop.f32.mrf.mxu0
    %v998 = vadd.f32 %v261, %v997
    %999 = vmatmul.bf16.gmra.mxu0 %v623
    %v1000 = vpop.f32.mrf.mxu0
    %v1001 = vadd.f32 %v261, %v1000
    %v1002 = vpop.f32.mrf.mxu0
    %v1003 = vadd.f32 %v261, %v1002
    %1004 = vmatmul.bf16.gmra.mxu0 %v624
    %v1005 = vpop.f32.mrf.mxu0
    %v1006 = vadd.f32 %v261, %v1005
    %v1007 = vpop.f32.mrf.mxu0
    %v1008 = vadd.f32 %v261, %v1007
    %1009 = vmatmul.bf16.gmra.mxu0 %v625
    %v1010 = vpop.f32.mrf.mxu0
    %v1011 = vadd.f32 %v261, %v1010
    %v1012 = vpop.f32.mrf.mxu0
    %v1013 = vadd.f32 %v261, %v1012
    %1014 = vmatmul.bf16.gmra.mxu0 %v626
    %v1015 = vpop.f32.mrf.mxu0
    %v1016 = vadd.f32 %v261, %v1015
    %v1017 = vpop.f32.mrf.mxu0
    %v1018 = vadd.f32 %v261, %v1017
    %1019 = vmatmul.bf16.gmra.mxu0 %v627
    %v1020 = vpop.f32.mrf.mxu0
    %v1021 = vadd.f32 %v261, %v1020
    %v1022 = vpop.f32.mrf.mxu0
    %v1023 = vadd.f32 %v261, %v1022
    %1024 = vmatmul.bf16.gmra.mxu0 %v628
    %v1025 = vpop.f32.mrf.mxu0
    %v1026 = vadd.f32 %v261, %v1025
    %v1027 = vpop.f32.mrf.mxu0
    %v1028 = vadd.f32 %v261, %v1027
    %1029 = vmatmul.bf16.gmra.mxu0 %v629
    %v1030 = vpop.f32.mrf.mxu0
    %v1031 = vadd.f32 %v261, %v1030
    %v1032 = vpop.f32.mrf.mxu0
    %v1033 = vadd.f32 %v261, %v1032
    %1034 = vmatmul.bf16.gmra.mxu0 %v630
    %v1035 = vpop.f32.mrf.mxu0
    %v1036 = vadd.f32 %v261, %v1035
    %v1037 = vpop.f32.mrf.mxu0
    %v1038 = vadd.f32 %v261, %v1037
    %1039 = vmatmul.bf16.gmra.mxu0 %v631
    %v1040 = vpop.f32.mrf.mxu0
    %v1041 = vadd.f32 %v261, %v1040
    %v1042 = vpop.f32.mrf.mxu0
    %v1043 = vadd.f32 %v261, %v1042
    %1044 = vmatmul.bf16.gmra.mxu0 %v632
    %v1045 = vpop.f32.mrf.mxu0
    %v1046 = vadd.f32 %v261, %v1045
    %v1047 = vpop.f32.mrf.mxu0
    %v1048 = vadd.f32 %v261, %v1047
    %1049 = vmatmul.bf16.gmra.mxu0 %v633
    %v1050 = vpop.f32.mrf.mxu0
    %v1051 = vadd.f32 %v261, %v1050
    %v1052 = vpop.f32.mrf.mxu0
    %v1053 = vadd.f32 %v261, %v1052
    %1054 = vmatmul.bf16.gmra.mxu0 %v634
    %v1055 = vpop.f32.mrf.mxu0
    %v1056 = vadd.f32 %v261, %v1055
    %v1057 = vpop.f32.mrf.mxu0
    %v1058 = vadd.f32 %v261, %v1057
    %1059 = vmatmul.bf16.gmra.mxu0 %v635
    %v1060 = vpop.f32.mrf.mxu0
    %v1061 = vadd.f32 %v261, %v1060
    %v1062 = vpop.f32.mrf.mxu0
    %v1063 = vadd.f32 %v261, %v1062
    %1064 = vmatmul.bf16.gmra.mxu0 %v636
    %v1065 = vpop.f32.mrf.mxu0
    %v1066 = vadd.f32 %v261, %v1065
    %v1067 = vpop.f32.mrf.mxu0
    %v1068 = vadd.f32 %v261, %v1067
    %1069 = vmatmul.bf16.gmra.mxu0 %v637
    %v1070 = vpop.f32.mrf.mxu0
    %v1071 = vadd.f32 %v261, %v1070
    %v1072 = vpop.f32.mrf.mxu0
    %v1073 = vadd.f32 %v261, %v1072
    %1074 = vmatmul.bf16.gmra.mxu0 %v638
    %v1075 = vpop.f32.mrf.mxu0
    %v1076 = vadd.f32 %v261, %v1075
    %v1077 = vpop.f32.mrf.mxu0
    %v1078 = vadd.f32 %v261, %v1077
    %1079 = vmatmul.bf16.gmra.mxu0 %v639
    %v1080 = vpop.f32.mrf.mxu0
    %v1081 = vadd.f32 %v261, %v1080
    %v1082 = vpop.f32.mrf.mxu0
    %v1083 = vadd.f32 %v261, %v1082
    %1084 = vmatmul.bf16.gmra.mxu0 %v640
    %v1085 = vpop.f32.mrf.mxu0
    %v1086 = vadd.f32 %v261, %v1085
    %v1087 = vpop.f32.mrf.mxu0
    %v1088 = vadd.f32 %v261, %v1087
    %1089 = vmatmul.bf16.gmra.mxu0 %v641
    %v1090 = vpop.f32.mrf.mxu0
    %v1091 = vadd.f32 %v261, %v1090
    %v1092 = vpop.f32.mrf.mxu0
    %v1093 = vadd.f32 %v261, %v1092
    %1094 = vmatmul.bf16.gmra.mxu0 %v642
    %v1095 = vpop.f32.mrf.mxu0
    %v1096 = vadd.f32 %v261, %v1095
    %v1097 = vpop.f32.mrf.mxu0
    %v1098 = vadd.f32 %v261, %v1097
    %1099 = vmatmul.bf16.gmra.mxu0 %v643
    %v1100 = vpop.f32.mrf.mxu0
    %v1101 = vadd.f32 %v261, %v1100
    %v1102 = vpop.f32.mrf.mxu0
    %v1103 = vadd.f32 %v261, %v1102
    %1104 = vmatmul.bf16.gmra.mxu0 %v644
    %v1105 = vpop.f32.mrf.mxu0
    %v1106 = vadd.f32 %v261, %v1105
    %v1107 = vpop.f32.mrf.mxu0
    %v1108 = vadd.f32 %v261, %v1107
    %1109 = vmatmul.bf16.gmra.mxu0 %v645
    %v1110 = vpop.f32.mrf.mxu0
    %v1111 = vadd.f32 %v261, %v1110
    %v1112 = vpop.f32.mrf.mxu0
    %v1113 = vadd.f32 %v261, %v1112
    %1114 = vmatmul.bf16.gmra.mxu0 %v646
    %v1115 = vpop.f32.mrf.mxu0
    %v1116 = vadd.f32 %v261, %v1115
    %v1117 = vpop.f32.mrf.mxu0
    %v1118 = vadd.f32 %v261, %v1117
    %1119 = vmatmul.bf16.gmra.mxu0 %v647
    %v1120 = vpop.f32.mrf.mxu0
    %v1121 = vadd.f32 %v261, %v1120
    %v1122 = vpop.f32.mrf.mxu0
    %v1123 = vadd.f32 %v261, %v1122
    %1124 = vmatmul.bf16.gmra.mxu0 %v648
    %v1125 = vpop.f32.mrf.mxu0
    %v1126 = vadd.f32 %v261, %v1125
    %v1127 = vpop.f32.mrf.mxu0
    %v1128 = vadd.f32 %v261, %v1127
    %1129 = vmatmul.bf16.gmra.mxu0 %v649
    %v1130 = vpop.f32.mrf.mxu0
    %v1131 = vadd.f32 %v261, %v1130
    %v1132 = vpop.f32.mrf.mxu0
    %v1133 = vadd.f32 %v261, %v1132
    %1134 = vmatmul.bf16.gmra.mxu0 %v650
    %v1135 = vpop.f32.mrf.mxu0
    %v1136 = vadd.f32 %v261, %v1135
    %v1137 = vpop.f32.mrf.mxu0
    %v1138 = vadd.f32 %v261, %v1137
    %1139 = vmatmul.bf16.gmra.mxu0 %v651
    %v1140 = vpop.f32.mrf.mxu0
    %v1141 = vadd.f32 %v261, %v1140
    %v1142 = vpop.f32.mrf.mxu0
    %v1143 = vadd.f32 %v261, %v1142
    %1144 = vmatmul.bf16.gmra.mxu0 %v652
    %v1145 = vpop.f32.mrf.mxu0
    %v1146 = vadd.f32 %v261, %v1145
    %v1147 = vpop.f32.mrf.mxu0
    %v1148 = vadd.f32 %v261, %v1147
    %1149 = vmatmul.bf16.gmra.mxu0 %v653
    %v1150 = vpop.f32.mrf.mxu0
    %v1151 = vadd.f32 %v261, %v1150
    %v1152 = vpop.f32.mrf.mxu0
    %v1153 = vadd.f32 %v261, %v1152
    %1154 = vmatmul.bf16.gmra.mxu0 %v654
    %v1155 = vpop.f32.mrf.mxu0
    %v1156 = vadd.f32 %v261, %v1155
    %v1157 = vpop.f32.mrf.mxu0
    %v1158 = vadd.f32 %v261, %v1157
    %1159 = vmatmul.bf16.gmra.mxu0 %v655
    %v1160 = vpop.f32.mrf.mxu0
    %v1161 = vadd.f32 %v261, %v1160
    %v1162 = vpop.f32.mrf.mxu0
    %v1163 = vadd.f32 %v261, %v1162
    %1164 = vmatmul.bf16.gmra.mxu0 %v656
    %v1165 = vpop.f32.mrf.mxu0
    %v1166 = vadd.f32 %v261, %v1165
    %v1167 = vpop.f32.mrf.mxu0
    %v1168 = vadd.f32 %v261, %v1167
    %1169 = vmatmul.bf16.gmra.mxu0 %v657
    %v1170 = vpop.f32.mrf.mxu0
    %v1171 = vadd.f32 %v261, %v1170
    %v1172 = vpop.f32.mrf.mxu0
    %v1173 = vadd.f32 %v261, %v1172
    %1174 = vmatmul.bf16.gmra.mxu0 %v658
    %v1175 = vpop.f32.mrf.mxu0
    %v1176 = vpop.f32.mrf.mxu0
    %1177 = vmatmul.bf16.gmra.mxu0 %v659
    %v1178 = vpop.f32.mrf.mxu0
    %v1179 = vpop.f32.mrf.mxu0
    %1180 = vmatmul.bf16.gmra.mxu0 %v660
    %v1181 = vpop.f32.mrf.mxu0
    %v1182 = vpop.f32.mrf.mxu0
    %1183 = vmatmul.bf16.gmra.mxu0 %v661
    %v1184 = vpop.f32.mrf.mxu0
    %v1185 = vpop.f32.mrf.mxu0
    %1186 = vmatmul.bf16.gmra.mxu0 %v662
    %v1187 = vpop.f32.mrf.mxu0
    %v1188 = vpop.f32.mrf.mxu0
    %1189 = vdwg.mxu0
    %v1190 = vmax.f32 %v801, 0.0
    %v1191 = vmax.f32 %v803, 0.0
    %v1192 = vmax.f32 %v806, 0.0
    %v1193 = vmax.f32 %v808, 0.0
    %v1194 = vmax.f32 %v811, 0.0
    %v1195 = vmax.f32 %v813, 0.0
    %v1196 = vmax.f32 %v816, 0.0
    %v1197 = vmax.f32 %v818, 0.0
    %v1198 = vmax.f32 %v821, 0.0
    %v1199 = vmax.f32 %v823, 0.0
    %v1200 = vmax.f32 %v826, 0.0
    %v1201 = vmax.f32 %v828, 0.0
    %v1202 = vmax.f32 %v831, 0.0
    %v1203 = vmax.f32 %v833, 0.0
    %v1204 = vmax.f32 %v836, 0.0
    %v1205 = vmax.f32 %v838, 0.0
    %v1206 = vmax.f32 %v841, 0.0
    %v1207 = vmax.f32 %v843, 0.0
    %v1208 = vmax.f32 %v846, 0.0
    %v1209 = vmax.f32 %v848, 0.0
    %v1210 = vmax.f32 %v851, 0.0
    %v1211 = vmax.f32 %v853, 0.0
    %v1212 = vmax.f32 %v856, 0.0
    %v1213 = vmax.f32 %v858, 0.0
    %v1214 = vmax.f32 %v861, 0.0
    %v1215 = vmax.f32 %v863, 0.0
    %v1216 = vmax.f32 %v866, 0.0
    %v1217 = vmax.f32 %v868, 0.0
    %v1218 = vmax.f32 %v871, 0.0
    %v1219 = vmax.f32 %v873, 0.0
    %v1220 = vmax.f32 %v876, 0.0
    %v1221 = vmax.f32 %v878, 0.0
    %v1222 = vmax.f32 %v881, 0.0
    %v1223 = vmax.f32 %v883, 0.0
    %v1224 = vmax.f32 %v886, 0.0
    %v1225 = vmax.f32 %v888, 0.0
    %v1226 = vmax.f32 %v891, 0.0
    %v1227 = vmax.f32 %v893, 0.0
    %v1228 = vmax.f32 %v896, 0.0
    %v1229 = vmax.f32 %v898, 0.0
    %v1230 = vmax.f32 %v901, 0.0
    %v1231 = vmax.f32 %v903, 0.0
    %v1232 = vmax.f32 %v906, 0.0
    %v1233 = vmax.f32 %v908, 0.0
    %v1234 = vmax.f32 %v911, 0.0
    %v1235 = vmax.f32 %v913, 0.0
    %v1236 = vmax.f32 %v916, 0.0
    %v1237 = vmax.f32 %v918, 0.0
    %v1238 = vmax.f32 %v921, 0.0
    %v1239 = vmax.f32 %v923, 0.0
    %v1240 = vmax.f32 %v926, 0.0
    %v1241 = vmax.f32 %v928, 0.0
    %v1242 = vmax.f32 %v931, 0.0
    %v1243 = vmax.f32 %v933, 0.0
    %v1244 = vmax.f32 %v936, 0.0
    %v1245 = vmax.f32 %v938, 0.0
    %v1246 = vmax.f32 %v941, 0.0
    %v1247 = vmax.f32 %v943, 0.0
    %v1248 = vmax.f32 %v946, 0.0
    %v1249 = vmax.f32 %v948, 0.0
    %v1250 = vmax.f32 %v951, 0.0
    %v1251 = vmax.f32 %v953, 0.0
    %v1252 = vmax.f32 %v956, 0.0
    %v1253 = vmax.f32 %v958, 0.0
    %v1254 = vmax.f32 %v961, 0.0
    %v1255 = vmax.f32 %v963, 0.0
    %v1256 = vmax.f32 %v966, 0.0
    %v1257 = vmax.f32 %v968, 0.0
    %v1258 = vmax.f32 %v971, 0.0
    %v1259 = vmax.f32 %v973, 0.0
    %v1260 = vmax.f32 %v976, 0.0
    %v1261 = vmax.f32 %v978, 0.0
    %v1262 = vmax.f32 %v981, 0.0
    %v1263 = vmax.f32 %v983, 0.0
    %v1264 = vmax.f32 %v986, 0.0
    %v1265 = vmax.f32 %v988, 0.0
    %v1266 = vmax.f32 %v991, 0.0
    %v1267 = vmax.f32 %v993, 0.0
    %v1268 = vmax.f32 %v996, 0.0
    %v1269 = vmax.f32 %v998, 0.0
    %v1270 = vmax.f32 %v1001, 0.0
    %v1271 = vmax.f32 %v1003, 0.0
    %v1272 = vmax.f32 %v1006, 0.0
    %v1273 = vmax.f32 %v1008, 0.0
    %v1274 = vmax.f32 %v1011, 0.0
    %v1275 = vmax.f32 %v1013, 0.0
    %v1276 = vmax.f32 %v1016, 0.0
    %v1277 = vmax.f32 %v1018, 0.0
    %v1278 = vmax.f32 %v1021, 0.0
    %v1279 = vmax.f32 %v1023, 0.0
    %v1280 = vmax.f32 %v1026, 0.0
    %v1281 = vmax.f32 %v1028, 0.0
    %v1282 = vmax.f32 %v1031, 0.0
    %v1283 = vmax.f32 %v1033, 0.0
    %v1284 = vmax.f32 %v1036, 0.0
    %v1285 = vmax.f32 %v1038, 0.0
    %v1286 = vmax.f32 %v1041, 0.0
    %v1287 = vmax.f32 %v1043, 0.0
    %v1288 = vmax.f32 %v1046, 0.0
    %v1289 = vmax.f32 %v1048, 0.0
    %v1290 = vmax.f32 %v1051, 0.0
    %v1291 = vmax.f32 %v1053, 0.0
    %v1292 = vmax.f32 %v1056, 0.0
    %v1293 = vmax.f32 %v1058, 0.0
    %v1294 = vmax.f32 %v1061, 0.0
    %v1295 = vmax.f32 %v1063, 0.0
    %v1296 = vmax.f32 %v1066, 0.0
    %v1297 = vmax.f32 %v1068, 0.0
    %v1298 = vmax.f32 %v1071, 0.0
    %v1299 = vmax.f32 %v1073, 0.0
    %v1300 = vmax.f32 %v1076, 0.0
    %v1301 = vmax.f32 %v1078, 0.0
    %v1302 = vmax.f32 %v1081, 0.0
    %v1303 = vmax.f32 %v1083, 0.0
    %v1304 = vmax.f32 %v1086, 0.0
    %v1305 = vmax.f32 %v1088, 0.0
    %v1306 = vmax.f32 %v1091, 0.0
    %v1307 = vmax.f32 %v1093, 0.0
    %v1308 = vmax.f32 %v1096, 0.0
    %v1309 = vmax.f32 %v1098, 0.0
    %v1310 = vmax.f32 %v1101, 0.0
    %v1311 = vmax.f32 %v1103, 0.0
    %v1312 = vmax.f32 %v1106, 0.0
    %v1313 = vmax.f32 %v1108, 0.0
    %v1314 = vmax.f32 %v1111, 0.0
    %v1315 = vmax.f32 %v1113, 0.0
    %v1316 = vmax.f32 %v1116, 0.0
    %v1317 = vmax.f32 %v1118, 0.0
    %v1318 = vmax.f32 %v1121, 0.0
    %v1319 = vmax.f32 %v1123, 0.0
    %v1320 = vmax.f32 %v1126, 0.0
    %v1321 = vmax.f32 %v1128, 0.0
    %v1322 = vmax.f32 %v1131, 0.0
    %v1323 = vmax.f32 %v1133, 0.0
    %v1324 = vmax.f32 %v1136, 0.0
    %v1325 = vmax.f32 %v1138, 0.0
    %v1326 = vmax.f32 %v1141, 0.0
    %v1327 = vmax.f32 %v1143, 0.0
    %v1328 = vmax.f32 %v1146, 0.0
    %v1329 = vmax.f32 %v1148, 0.0
    %v1330 = vmax.f32 %v1151, 0.0
    %v1331 = vmax.f32 %v1153, 0.0
    %v1332 = vmax.f32 %v1156, 0.0
    %v1333 = vmax.f32 %v1158, 0.0
    %v1334 = vmax.f32 %v1161, 0.0
    %v1335 = vmax.f32 %v1163, 0.0
    %v1336 = vmax.f32 %v1166, 0.0
    %v1337 = vmax.f32 %v1168, 0.0
    %v1338 = vmax.f32 %v1171, 0.0
    %v1339 = vmax.f32 %v1173, 0.0
    %v1340 = vpack.c.bf16 %v1190, %v1190
    %v1341 = vpack.c.bf16 %v1191, %v1191
    %v1342 = vpack.c.bf16 %v1192, %v1192
    %v1343 = vpack.c.bf16 %v1193, %v1193
    %v1344 = vpack.c.bf16 %v1194, %v1194
    %v1345 = vpack.c.bf16 %v1195, %v1195
    %v1346 = vpack.c.bf16 %v1196, %v1196
    %v1347 = vpack.c.bf16 %v1197, %v1197
    %v1348 = vpack.c.bf16 %v1198, %v1198
    %v1349 = vpack.c.bf16 %v1199, %v1199
    %v1350 = vpack.c.bf16 %v1200, %v1200
    %v1351 = vpack.c.bf16 %v1201, %v1201
    %v1352 = vpack.c.bf16 %v1202, %v1202
    %v1353 = vpack.c.bf16 %v1203, %v1203
    %v1354 = vpack.c.bf16 %v1204, %v1204
    %v1355 = vpack.c.bf16 %v1205, %v1205
    %v1356 = vpack.c.bf16 %v1206, %v1206
    %v1357 = vpack.c.bf16 %v1207, %v1207
    %v1358 = vpack.c.bf16 %v1208, %v1208
    %v1359 = vpack.c.bf16 %v1209, %v1209
    %v1360 = vpack.c.bf16 %v1210, %v1210
    %v1361 = vpack.c.bf16 %v1211, %v1211
    %v1362 = vpack.c.bf16 %v1212, %v1212
    %v1363 = vpack.c.bf16 %v1213, %v1213
    %v1364 = vpack.c.bf16 %v1214, %v1214
    %v1365 = vpack.c.bf16 %v1215, %v1215
    %v1366 = vpack.c.bf16 %v1216, %v1216
    %v1367 = vpack.c.bf16 %v1217, %v1217
    %v1368 = vpack.c.bf16 %v1218, %v1218
    %v1369 = vpack.c.bf16 %v1219, %v1219
    %v1370 = vpack.c.bf16 %v1220, %v1220
    %v1371 = vpack.c.bf16 %v1221, %v1221
    %v1372 = vpack.c.bf16 %v1222, %v1222
    %v1373 = vpack.c.bf16 %v1223, %v1223
    %v1374 = vpack.c.bf16 %v1224, %v1224
    %v1375 = vpack.c.bf16 %v1225, %v1225
    %v1376 = vpack.c.bf16 %v1226, %v1226
    %v1377 = vpack.c.bf16 %v1227, %v1227
    %v1378 = vpack.c.bf16 %v1228, %v1228
    %v1379 = vpack.c.bf16 %v1229, %v1229
    %v1380 = vpack.c.bf16 %v1230, %v1230
    %v1381 = vpack.c.bf16 %v1231, %v1231
    %v1382 = vpack.c.bf16 %v1232, %v1232
    %v1383 = vpack.c.bf16 %v1233, %v1233
    %v1384 = vpack.c.bf16 %v1234, %v1234
    %v1385 = vpack.c.bf16 %v1235, %v1235
    %v1386 = vpack.c.bf16 %v1236, %v1236
    %v1387 = vpack.c.bf16 %v1237, %v1237
    %v1388 = vpack.c.bf16 %v1238, %v1238
    %v1389 = vpack.c.bf16 %v1239, %v1239
    %v1390 = vpack.c.bf16 %v1240, %v1240
    %v1391 = vpack.c.bf16 %v1241, %v1241
    %v1392 = vpack.c.bf16 %v1242, %v1242
    %v1393 = vpack.c.bf16 %v1243, %v1243
    %v1394 = vpack.c.bf16 %v1244, %v1244
    %v1395 = vpack.c.bf16 %v1245, %v1245
    %v1396 = vpack.c.bf16 %v1246, %v1246
    %v1397 = vpack.c.bf16 %v1247, %v1247
    %v1398 = vpack.c.bf16 %v1248, %v1248
    %v1399 = vpack.c.bf16 %v1249, %v1249
    %v1400 = vpack.c.bf16 %v1250, %v1250
    %v1401 = vpack.c.bf16 %v1251, %v1251
    %v1402 = vpack.c.bf16 %v1252, %v1252
    %v1403 = vpack.c.bf16 %v1253, %v1253
    %v1404 = vpack.c.bf16 %v1254, %v1254
    %v1405 = vpack.c.bf16 %v1255, %v1255
    %v1406 = vpack.c.bf16 %v1256, %v1256
    %v1407 = vpack.c.bf16 %v1257, %v1257
    %v1408 = vpack.c.bf16 %v1258, %v1258
    %v1409 = vpack.c.bf16 %v1259, %v1259
    %v1410 = vpack.c.bf16 %v1260, %v1260
    %v1411 = vpack.c.bf16 %v1261, %v1261
    %v1412 = vpack.c.bf16 %v1262, %v1262
    %v1413 = vpack.c.bf16 %v1263, %v1263
    %v1414 = vpack.c.bf16 %v1264, %v1264
    %v1415 = vpack.c.bf16 %v1265, %v1265
    %v1416 = vpack.c.bf16 %v1266, %v1266
    %v1417 = vpack.c.bf16 %v1267, %v1267
    %v1418 = vpack.c.bf16 %v1268, %v1268
    %v1419 = vpack.c.bf16 %v1269, %v1269
    %v1420 = vpack.c.bf16 %v1270, %v1270
    %v1421 = vpack.c.bf16 %v1271, %v1271
    %v1422 = vpack.c.bf16 %v1272, %v1272
    %v1423 = vpack.c.bf16 %v1273, %v1273
    %v1424 = vpack.c.bf16 %v1274, %v1274
    %v1425 = vpack.c.bf16 %v1275, %v1275
    %v1426 = vpack.c.bf16 %v1276, %v1276
    %v1427 = vpack.c.bf16 %v1277, %v1277
    %v1428 = vpack.c.bf16 %v1278, %v1278
    %v1429 = vpack.c.bf16 %v1279, %v1279
    %v1430 = vpack.c.bf16 %v1280, %v1280
    %v1431 = vpack.c.bf16 %v1281, %v1281
    %v1432 = vpack.c.bf16 %v1282, %v1282
    %v1433 = vpack.c.bf16 %v1283, %v1283
    %v1434 = vpack.c.bf16 %v1284, %v1284
    %v1435 = vpack.c.bf16 %v1285, %v1285
    %v1436 = vpack.c.bf16 %v1286, %v1286
    %v1437 = vpack.c.bf16 %v1287, %v1287
    %v1438 = vpack.c.bf16 %v1288, %v1288
    %v1439 = vpack.c.bf16 %v1289, %v1289
    %v1440 = vpack.c.bf16 %v1290, %v1290
    %v1441 = vpack.c.bf16 %v1291, %v1291
    %v1442 = vpack.c.bf16 %v1292, %v1292
    %v1443 = vpack.c.bf16 %v1293, %v1293
    %v1444 = vpack.c.bf16 %v1294, %v1294
    %v1445 = vpack.c.bf16 %v1295, %v1295
    %v1446 = vpack.c.bf16 %v1296, %v1296
    %v1447 = vpack.c.bf16 %v1297, %v1297
    %v1448 = vpack.c.bf16 %v1298, %v1298
    %v1449 = vpack.c.bf16 %v1299, %v1299
    %v1450 = vpack.c.bf16 %v1300, %v1300
    %v1451 = vpack.c.bf16 %v1301, %v1301
    %v1452 = vpack.c.bf16 %v1302, %v1302
    %v1453 = vpack.c.bf16 %v1303, %v1303
    %v1454 = vpack.c.bf16 %v1304, %v1304
    %v1455 = vpack.c.bf16 %v1305, %v1305
    %v1456 = vpack.c.bf16 %v1306, %v1306
    %v1457 = vpack.c.bf16 %v1307, %v1307
    %v1458 = vpack.c.bf16 %v1308, %v1308
    %v1459 = vpack.c.bf16 %v1309, %v1309
    %v1460 = vpack.c.bf16 %v1310, %v1310
    %v1461 = vpack.c.bf16 %v1311, %v1311
    %v1462 = vpack.c.bf16 %v1312, %v1312
    %v1463 = vpack.c.bf16 %v1313, %v1313
    %v1464 = vpack.c.bf16 %v1314, %v1314
    %v1465 = vpack.c.bf16 %v1315, %v1315
    %v1466 = vpack.c.bf16 %v1316, %v1316
    %v1467 = vpack.c.bf16 %v1317, %v1317
    %v1468 = vpack.c.bf16 %v1318, %v1318
    %v1469 = vpack.c.bf16 %v1319, %v1319
    %v1470 = vpack.c.bf16 %v1320, %v1320
    %v1471 = vpack.c.bf16 %v1321, %v1321
    %v1472 = vpack.c.bf16 %v1322, %v1322
    %v1473 = vpack.c.bf16 %v1323, %v1323
    %v1474 = vpack.c.bf16 %v1324, %v1324
    %v1475 = vpack.c.bf16 %v1325, %v1325
    %v1476 = vpack.c.bf16 %v1326, %v1326
    %v1477 = vpack.c.bf16 %v1327, %v1327
    %v1478 = vpack.c.bf16 %v1328, %v1328
    %v1479 = vpack.c.bf16 %v1329, %v1329
    %v1480 = vpack.c.bf16 %v1330, %v1330
    %v1481 = vpack.c.bf16 %v1331, %v1331
    %v1482 = vpack.c.bf16 %v1332, %v1332
    %v1483 = vpack.c.bf16 %v1333, %v1333
    %v1484 = vpack.c.bf16 %v1334, %v1334
    %v1485 = vpack.c.bf16 %v1335, %v1335
    %v1486 = vpack.c.bf16 %v1336, %v1336
    %v1487 = vpack.c.bf16 %v1337, %v1337
    %v1488 = vpack.c.bf16 %v1338, %v1338
    %v1489 = vpack.c.bf16 %v1339, %v1339
    %vm1532 = vcmask 1041408
    %vm1533 = vcmask 1045508
    %vm1534 = vmor %vm1532, %vm1533
    %v1535 = vrot.slane %v1342, 6
    %v1536 = vrot.slane %v1535, 4
    %v1537 = vrot.slane %v1343, 6
    %v1538 = vsel %vm1534, %v1536, %v1537
    %v1539 = vrot.slane %v1537, 4
    %v1540 = vrot.slane %v1344, 6
    %v1541 = vsel %vm1534, %v1539, %v1540
    %v1542 = vrot.slane %v1352, 6
    %v1543 = vrot.slane %v1542, 4
    %v1544 = vrot.slane %v1353, 6
    %v1545 = vsel %vm1534, %v1543, %v1544
    %v1546 = vrot.slane %v1544, 4
    %v1547 = vrot.slane %v1354, 6
    %v1548 = vsel %vm1534, %v1546, %v1547
    %v1549 = vrot.slane %v1362, 6
    %v1550 = vrot.slane %v1549, 4
    %v1551 = vrot.slane %v1363, 6
    %v1552 = vsel %vm1534, %v1550, %v1551
    %v1553 = vrot.slane %v1551, 4
    %v1554 = vrot.slane %v1364, 6
    %v1555 = vsel %vm1534, %v1553, %v1554
    %v1556 = vrot.slane %v1372, 6
    %v1557 = vrot.slane %v1556, 4
    %v1558 = vrot.slane %v1373, 6
    %v1559 = vsel %vm1534, %v1557, %v1558
    %v1560 = vrot.slane %v1558, 4
    %v1561 = vrot.slane %v1374, 6
    %v1562 = vsel %vm1534, %v1560, %v1561
    %v1563 = vrot.slane %v1382, 6
    %v1564 = vrot.slane %v1563, 4
    %v1565 = vrot.slane %v1383, 6
    %v1566 = vsel %vm1534, %v1564, %v1565
    %v1567 = vrot.slane %v1565, 4
    %v1568 = vrot.slane %v1384, 6
    %v1569 = vsel %vm1534, %v1567, %v1568
    %v1570 = vrot.slane %v1392, 6
    %v1571 = vrot.slane %v1570, 4
    %v1572 = vrot.slane %v1393, 6
    %v1573 = vsel %vm1534, %v1571, %v1572
    %v1574 = vrot.slane %v1572, 4
    %v1575 = vrot.slane %v1394, 6
    %v1576 = vsel %vm1534, %v1574, %v1575
    %v1577 = vrot.slane %v1402, 6
    %v1578 = vrot.slane %v1577, 4
    %v1579 = vrot.slane %v1403, 6
    %v1580 = vsel %vm1534, %v1578, %v1579
    %v1581 = vrot.slane %v1579, 4
    %v1582 = vrot.slane %v1404, 6
    %v1583 = vsel %vm1534, %v1581, %v1582
    %v1584 = vrot.slane %v1412, 6
    %v1585 = vrot.slane %v1584, 4
    %v1586 = vrot.slane %v1413, 6
    %v1587 = vsel %vm1534, %v1585, %v1586
    %v1588 = vrot.slane %v1586, 4
    %v1589 = vrot.slane %v1414, 6
    %v1590 = vsel %vm1534, %v1588, %v1589
    %v1591 = vrot.slane %v1422, 6
    %v1592 = vrot.slane %v1591, 4
    %v1593 = vrot.slane %v1423, 6
    %v1594 = vsel %vm1534, %v1592, %v1593
    %v1595 = vrot.slane %v1593, 4
    %v1596 = vrot.slane %v1424, 6
    %v1597 = vsel %vm1534, %v1595, %v1596
    %v1598 = vrot.slane %v1432, 6
    %v1599 = vrot.slane %v1598, 4
    %v1600 = vrot.slane %v1433, 6
    %v1601 = vsel %vm1534, %v1599, %v1600
    %v1602 = vrot.slane %v1600, 4
    %v1603 = vrot.slane %v1434, 6
    %v1604 = vsel %vm1534, %v1602, %v1603
    %v1605 = vrot.slane %v1442, 6
    %v1606 = vrot.slane %v1605, 4
    %v1607 = vrot.slane %v1443, 6
    %v1608 = vsel %vm1534, %v1606, %v1607
    %v1609 = vrot.slane %v1607, 4
    %v1610 = vrot.slane %v1444, 6
    %v1611 = vsel %vm1534, %v1609, %v1610
    %v1612 = vrot.slane %v1452, 6
    %v1613 = vrot.slane %v1612, 4
    %v1614 = vrot.slane %v1453, 6
    %v1615 = vsel %vm1534, %v1613, %v1614
    %v1616 = vrot.slane %v1614, 4
    %v1617 = vrot.slane %v1454, 6
    %v1618 = vsel %vm1534, %v1616, %v1617
    %v1619 = vrot.slane %v1462, 6
    %v1620 = vrot.slane %v1619, 4
    %v1621 = vrot.slane %v1463, 6
    %v1622 = vsel %vm1534, %v1620, %v1621
    %v1623 = vrot.slane %v1621, 4
    %v1624 = vrot.slane %v1464, 6
    %v1625 = vsel %vm1534, %v1623, %v1624
    %v1626 = vrot.slane %v1472, 6
    %v1627 = vrot.slane %v1626, 4
    %v1628 = vrot.slane %v1473, 6
    %v1629 = vsel %vm1534, %v1627, %v1628
    %v1630 = vrot.slane %v1628, 4
    %v1631 = vrot.slane %v1474, 6
    %v1632 = vsel %vm1534, %v1630, %v1631
    %vm1633 = vsmask.f32 3328
    %vm1634 = vsmask.f32 7440
    %vm1635 = vmor %vm1633, %vm1634
    %v1637 = vshrl.u32 %v1340, 16
    %v1639 = vrot.slane %v1637, 4
    %v1640 = vshll.u32 %v1340, 16
    %v1642 = vrot.slane %v1640, 5
    %v1643 = vor.u32 %v1639, %v1642
    %v1644 = vrot.slane %v1643, 4
    %v1646 = vshll.u32 %v1341, 16
    %v1648 = vrot.slane %v1646, 5
    %v1649 = vsel %vm1635, %v1644, %v1648
    %v1650 = vshrl.u32 %v1341, 16
    %v1652 = vrot.slane %v1650, 4
    %v1653 = vor.u32 %v1652, %v1648
    %v1654 = vrot.slane %v1653, 4
    %v1656 = vshll.u32 %v1342, 16
    %v1658 = vrot.slane %v1656, 5
    %v1659 = vsel %vm1635, %v1654, %v1658
    %v1661 = vshrl.u32 %v1350, 16
    %v1663 = vrot.slane %v1661, 4
    %v1664 = vshll.u32 %v1350, 16
    %v1666 = vrot.slane %v1664, 5
    %v1667 = vor.u32 %v1663, %v1666
    %v1668 = vrot.slane %v1667, 4
    %v1670 = vshll.u32 %v1351, 16
    %v1672 = vrot.slane %v1670, 5
    %v1673 = vsel %vm1635, %v1668, %v1672
    %v1674 = vshrl.u32 %v1351, 16
    %v1676 = vrot.slane %v1674, 4
    %v1677 = vor.u32 %v1676, %v1672
    %v1678 = vrot.slane %v1677, 4
    %v1680 = vshll.u32 %v1352, 16
    %v1682 = vrot.slane %v1680, 5
    %v1683 = vsel %vm1635, %v1678, %v1682
    %v1685 = vshrl.u32 %v1360, 16
    %v1687 = vrot.slane %v1685, 4
    %v1688 = vshll.u32 %v1360, 16
    %v1690 = vrot.slane %v1688, 5
    %v1691 = vor.u32 %v1687, %v1690
    %v1692 = vrot.slane %v1691, 4
    %v1694 = vshll.u32 %v1361, 16
    %v1696 = vrot.slane %v1694, 5
    %v1697 = vsel %vm1635, %v1692, %v1696
    %v1698 = vshrl.u32 %v1361, 16
    %v1700 = vrot.slane %v1698, 4
    %v1701 = vor.u32 %v1700, %v1696
    %v1702 = vrot.slane %v1701, 4
    %v1704 = vshll.u32 %v1362, 16
    %v1706 = vrot.slane %v1704, 5
    %v1707 = vsel %vm1635, %v1702, %v1706
    %v1709 = vshrl.u32 %v1370, 16
    %v1711 = vrot.slane %v1709, 4
    %v1712 = vshll.u32 %v1370, 16
    %v1714 = vrot.slane %v1712, 5
    %v1715 = vor.u32 %v1711, %v1714
    %v1716 = vrot.slane %v1715, 4
    %v1718 = vshll.u32 %v1371, 16
    %v1720 = vrot.slane %v1718, 5
    %v1721 = vsel %vm1635, %v1716, %v1720
    %v1722 = vshrl.u32 %v1371, 16
    %v1724 = vrot.slane %v1722, 4
    %v1725 = vor.u32 %v1724, %v1720
    %v1726 = vrot.slane %v1725, 4
    %v1728 = vshll.u32 %v1372, 16
    %v1730 = vrot.slane %v1728, 5
    %v1731 = vsel %vm1635, %v1726, %v1730
    %v1733 = vshrl.u32 %v1380, 16
    %v1735 = vrot.slane %v1733, 4
    %v1736 = vshll.u32 %v1380, 16
    %v1738 = vrot.slane %v1736, 5
    %v1739 = vor.u32 %v1735, %v1738
    %v1740 = vrot.slane %v1739, 4
    %v1742 = vshll.u32 %v1381, 16
    %v1744 = vrot.slane %v1742, 5
    %v1745 = vsel %vm1635, %v1740, %v1744
    %v1746 = vshrl.u32 %v1381, 16
    %v1748 = vrot.slane %v1746, 4
    %v1749 = vor.u32 %v1748, %v1744
    %v1750 = vrot.slane %v1749, 4
    %v1752 = vshll.u32 %v1382, 16
    %v1754 = vrot.slane %v1752, 5
    %v1755 = vsel %vm1635, %v1750, %v1754
    %v1757 = vshrl.u32 %v1390, 16
    %v1759 = vrot.slane %v1757, 4
    %v1760 = vshll.u32 %v1390, 16
    %v1762 = vrot.slane %v1760, 5
    %v1763 = vor.u32 %v1759, %v1762
    %v1764 = vrot.slane %v1763, 4
    %v1766 = vshll.u32 %v1391, 16
    %v1768 = vrot.slane %v1766, 5
    %v1769 = vsel %vm1635, %v1764, %v1768
    %v1770 = vshrl.u32 %v1391, 16
    %v1772 = vrot.slane %v1770, 4
    %v1773 = vor.u32 %v1772, %v1768
    %v1774 = vrot.slane %v1773, 4
    %v1776 = vshll.u32 %v1392, 16
    %v1778 = vrot.slane %v1776, 5
    %v1779 = vsel %vm1635, %v1774, %v1778
    %v1781 = vshrl.u32 %v1400, 16
    %v1783 = vrot.slane %v1781, 4
    %v1784 = vshll.u32 %v1400, 16
    %v1786 = vrot.slane %v1784, 5
    %v1787 = vor.u32 %v1783, %v1786
    %v1788 = vrot.slane %v1787, 4
    %v1790 = vshll.u32 %v1401, 16
    %v1792 = vrot.slane %v1790, 5
    %v1793 = vsel %vm1635, %v1788, %v1792
    %v1794 = vshrl.u32 %v1401, 16
    %v1796 = vrot.slane %v1794, 4
    %v1797 = vor.u32 %v1796, %v1792
    %v1798 = vrot.slane %v1797, 4
    %v1800 = vshll.u32 %v1402, 16
    %v1802 = vrot.slane %v1800, 5
    %v1803 = vsel %vm1635, %v1798, %v1802
    %v1805 = vshrl.u32 %v1410, 16
    %v1807 = vrot.slane %v1805, 4
    %v1808 = vshll.u32 %v1410, 16
    %v1810 = vrot.slane %v1808, 5
    %v1811 = vor.u32 %v1807, %v1810
    %v1812 = vrot.slane %v1811, 4
    %v1814 = vshll.u32 %v1411, 16
    %v1816 = vrot.slane %v1814, 5
    %v1817 = vsel %vm1635, %v1812, %v1816
    %v1818 = vshrl.u32 %v1411, 16
    %v1820 = vrot.slane %v1818, 4
    %v1821 = vor.u32 %v1820, %v1816
    %v1822 = vrot.slane %v1821, 4
    %v1824 = vshll.u32 %v1412, 16
    %v1826 = vrot.slane %v1824, 5
    %v1827 = vsel %vm1635, %v1822, %v1826
    %v1829 = vshrl.u32 %v1420, 16
    %v1831 = vrot.slane %v1829, 4
    %v1832 = vshll.u32 %v1420, 16
    %v1834 = vrot.slane %v1832, 5
    %v1835 = vor.u32 %v1831, %v1834
    %v1836 = vrot.slane %v1835, 4
    %v1838 = vshll.u32 %v1421, 16
    %v1840 = vrot.slane %v1838, 5
    %v1841 = vsel %vm1635, %v1836, %v1840
    %v1842 = vshrl.u32 %v1421, 16
    %v1844 = vrot.slane %v1842, 4
    %v1845 = vor.u32 %v1844, %v1840
    %v1846 = vrot.slane %v1845, 4
    %v1848 = vshll.u32 %v1422, 16
    %v1850 = vrot.slane %v1848, 5
    %v1851 = vsel %vm1635, %v1846, %v1850
    %v1853 = vshrl.u32 %v1430, 16
    %v1855 = vrot.slane %v1853, 4
    %v1856 = vshll.u32 %v1430, 16
    %v1858 = vrot.slane %v1856, 5
    %v1859 = vor.u32 %v1855, %v1858
    %v1860 = vrot.slane %v1859, 4
    %v1862 = vshll.u32 %v1431, 16
    %v1864 = vrot.slane %v1862, 5
    %v1865 = vsel %vm1635, %v1860, %v1864
    %v1866 = vshrl.u32 %v1431, 16
    %v1868 = vrot.slane %v1866, 4
    %v1869 = vor.u32 %v1868, %v1864
    %v1870 = vrot.slane %v1869, 4
    %v1872 = vshll.u32 %v1432, 16
    %v1874 = vrot.slane %v1872, 5
    %v1875 = vsel %vm1635, %v1870, %v1874
    %v1877 = vshrl.u32 %v1440, 16
    %v1879 = vrot.slane %v1877, 4
    %v1880 = vshll.u32 %v1440, 16
    %v1882 = vrot.slane %v1880, 5
    %v1883 = vor.u32 %v1879, %v1882
    %v1884 = vrot.slane %v1883, 4
    %v1886 = vshll.u32 %v1441, 16
    %v1888 = vrot.slane %v1886, 5
    %v1889 = vsel %vm1635, %v1884, %v1888
    %v1890 = vshrl.u32 %v1441, 16
    %v1892 = vrot.slane %v1890, 4
    %v1893 = vor.u32 %v1892, %v1888
    %v1894 = vrot.slane %v1893, 4
    %v1896 = vshll.u32 %v1442, 16
    %v1898 = vrot.slane %v1896, 5
    %v1899 = vsel %vm1635, %v1894, %v1898
    %v1901 = vshrl.u32 %v1450, 16
    %v1903 = vrot.slane %v1901, 4
    %v1904 = vshll.u32 %v1450, 16
    %v1906 = vrot.slane %v1904, 5
    %v1907 = vor.u32 %v1903, %v1906
    %v1908 = vrot.slane %v1907, 4
    %v1910 = vshll.u32 %v1451, 16
    %v1912 = vrot.slane %v1910, 5
    %v1913 = vsel %vm1635, %v1908, %v1912
    %v1914 = vshrl.u32 %v1451, 16
    %v1916 = vrot.slane %v1914, 4
    %v1917 = vor.u32 %v1916, %v1912
    %v1918 = vrot.slane %v1917, 4
    %v1920 = vshll.u32 %v1452, 16
    %v1922 = vrot.slane %v1920, 5
    %v1923 = vsel %vm1635, %v1918, %v1922
    %v1925 = vshrl.u32 %v1460, 16
    %v1927 = vrot.slane %v1925, 4
    %v1928 = vshll.u32 %v1460, 16
    %v1930 = vrot.slane %v1928, 5
    %v1931 = vor.u32 %v1927, %v1930
    %v1932 = vrot.slane %v1931, 4
    %v1934 = vshll.u32 %v1461, 16
    %v1936 = vrot.slane %v1934, 5
    %v1937 = vsel %vm1635, %v1932, %v1936
    %v1938 = vshrl.u32 %v1461, 16
    %v1940 = vrot.slane %v1938, 4
    %v1941 = vor.u32 %v1940, %v1936
    %v1942 = vrot.slane %v1941, 4
    %v1944 = vshll.u32 %v1462, 16
    %v1946 = vrot.slane %v1944, 5
    %v1947 = vsel %vm1635, %v1942, %v1946
    %v1949 = vshrl.u32 %v1470, 16
    %v1951 = vrot.slane %v1949, 4
    %v1952 = vshll.u32 %v1470, 16
    %v1954 = vrot.slane %v1952, 5
    %v1955 = vor.u32 %v1951, %v1954
    %v1956 = vrot.slane %v1955, 4
    %v1958 = vshll.u32 %v1471, 16
    %v1960 = vrot.slane %v1958, 5
    %v1961 = vsel %vm1635, %v1956, %v1960
    %v1962 = vshrl.u32 %v1471, 16
    %v1964 = vrot.slane %v1962, 4
    %v1965 = vor.u32 %v1964, %v1960
    %v1966 = vrot.slane %v1965, 4
    %v1968 = vshll.u32 %v1472, 16
    %v1970 = vrot.slane %v1968, 5
    %v1971 = vsel %vm1635, %v1966, %v1970
    %vm1972 = vsmask.f32 1280
    %vm1973 = vsmask.f32 5392
    %vm1974 = vmor %vm1972, %vm1973
    %v1975 = vshrl.u32 %v1342, 16
    %v1977 = vrot.slane %v1975, 6
    %v1978 = vrot.slane %v1656, 7
    %v1979 = vor.u32 %v1977, %v1978
    %v1980 = vrot.slane %v1979, 4
    %v1982 = vshrl.u32 %v1343, 16
    %v1984 = vrot.slane %v1982, 6
    %v1985 = vshll.u32 %v1343, 16
    %v1987 = vrot.slane %v1985, 7
    %v1988 = vor.u32 %v1984, %v1987
    %v1989 = vsel %vm1974, %v1980, %v1988
    %v1990 = vrot.slane %v1988, 4
    %v1992 = vshrl.u32 %v1344, 16
    %v1994 = vrot.slane %v1992, 6
    %v1995 = vshll.u32 %v1344, 16
    %v1997 = vrot.slane %v1995, 7
    %v1998 = vor.u32 %v1994, %v1997
    %v1999 = vsel %vm1974, %v1990, %v1998
    %v2000 = vshrl.u32 %v1352, 16
    %v2002 = vrot.slane %v2000, 6
    %v2003 = vrot.slane %v1680, 7
    %v2004 = vor.u32 %v2002, %v2003
    %v2005 = vrot.slane %v2004, 4
    %v2007 = vshrl.u32 %v1353, 16
    %v2009 = vrot.slane %v2007, 6
    %v2010 = vshll.u32 %v1353, 16
    %v2012 = vrot.slane %v2010, 7
    %v2013 = vor.u32 %v2009, %v2012
    %v2014 = vsel %vm1974, %v2005, %v2013
    %v2015 = vrot.slane %v2013, 4
    %v2017 = vshrl.u32 %v1354, 16
    %v2019 = vrot.slane %v2017, 6
    %v2020 = vshll.u32 %v1354, 16
    %v2022 = vrot.slane %v2020, 7
    %v2023 = vor.u32 %v2019, %v2022
    %v2024 = vsel %vm1974, %v2015, %v2023
    %v2025 = vshrl.u32 %v1362, 16
    %v2027 = vrot.slane %v2025, 6
    %v2028 = vrot.slane %v1704, 7
    %v2029 = vor.u32 %v2027, %v2028
    %v2030 = vrot.slane %v2029, 4
    %v2032 = vshrl.u32 %v1363, 16
    %v2034 = vrot.slane %v2032, 6
    %v2035 = vshll.u32 %v1363, 16
    %v2037 = vrot.slane %v2035, 7
    %v2038 = vor.u32 %v2034, %v2037
    %v2039 = vsel %vm1974, %v2030, %v2038
    %v2040 = vrot.slane %v2038, 4
    %v2042 = vshrl.u32 %v1364, 16
    %v2044 = vrot.slane %v2042, 6
    %v2045 = vshll.u32 %v1364, 16
    %v2047 = vrot.slane %v2045, 7
    %v2048 = vor.u32 %v2044, %v2047
    %v2049 = vsel %vm1974, %v2040, %v2048
    %v2050 = vshrl.u32 %v1372, 16
    %v2052 = vrot.slane %v2050, 6
    %v2053 = vrot.slane %v1728, 7
    %v2054 = vor.u32 %v2052, %v2053
    %v2055 = vrot.slane %v2054, 4
    %v2057 = vshrl.u32 %v1373, 16
    %v2059 = vrot.slane %v2057, 6
    %v2060 = vshll.u32 %v1373, 16
    %v2062 = vrot.slane %v2060, 7
    %v2063 = vor.u32 %v2059, %v2062
    %v2064 = vsel %vm1974, %v2055, %v2063
    %v2065 = vrot.slane %v2063, 4
    %v2067 = vshrl.u32 %v1374, 16
    %v2069 = vrot.slane %v2067, 6
    %v2070 = vshll.u32 %v1374, 16
    %v2072 = vrot.slane %v2070, 7
    %v2073 = vor.u32 %v2069, %v2072
    %v2074 = vsel %vm1974, %v2065, %v2073
    %v2075 = vshrl.u32 %v1382, 16
    %v2077 = vrot.slane %v2075, 6
    %v2078 = vrot.slane %v1752, 7
    %v2079 = vor.u32 %v2077, %v2078
    %v2080 = vrot.slane %v2079, 4
    %v2082 = vshrl.u32 %v1383, 16
    %v2084 = vrot.slane %v2082, 6
    %v2085 = vshll.u32 %v1383, 16
    %v2087 = vrot.slane %v2085, 7
    %v2088 = vor.u32 %v2084, %v2087
    %v2089 = vsel %vm1974, %v2080, %v2088
    %v2090 = vrot.slane %v2088, 4
    %v2092 = vshrl.u32 %v1384, 16
    %v2094 = vrot.slane %v2092, 6
    %v2095 = vshll.u32 %v1384, 16
    %v2097 = vrot.slane %v2095, 7
    %v2098 = vor.u32 %v2094, %v2097
    %v2099 = vsel %vm1974, %v2090, %v2098
    %v2100 = vshrl.u32 %v1392, 16
    %v2102 = vrot.slane %v2100, 6
    %v2103 = vrot.slane %v1776, 7
    %v2104 = vor.u32 %v2102, %v2103
    %v2105 = vrot.slane %v2104, 4
    %v2107 = vshrl.u32 %v1393, 16
    %v2109 = vrot.slane %v2107, 6
    %v2110 = vshll.u32 %v1393, 16
    %v2112 = vrot.slane %v2110, 7
    %v2113 = vor.u32 %v2109, %v2112
    %v2114 = vsel %vm1974, %v2105, %v2113
    %v2115 = vrot.slane %v2113, 4
    %v2117 = vshrl.u32 %v1394, 16
    %v2119 = vrot.slane %v2117, 6
    %v2120 = vshll.u32 %v1394, 16
    %v2122 = vrot.slane %v2120, 7
    %v2123 = vor.u32 %v2119, %v2122
    %v2124 = vsel %vm1974, %v2115, %v2123
    %v2125 = vshrl.u32 %v1402, 16
    %v2127 = vrot.slane %v2125, 6
    %v2128 = vrot.slane %v1800, 7
    %v2129 = vor.u32 %v2127, %v2128
    %v2130 = vrot.slane %v2129, 4
    %v2132 = vshrl.u32 %v1403, 16
    %v2134 = vrot.slane %v2132, 6
    %v2135 = vshll.u32 %v1403, 16
    %v2137 = vrot.slane %v2135, 7
    %v2138 = vor.u32 %v2134, %v2137
    %v2139 = vsel %vm1974, %v2130, %v2138
    %v2140 = vrot.slane %v2138, 4
    %v2142 = vshrl.u32 %v1404, 16
    %v2144 = vrot.slane %v2142, 6
    %v2145 = vshll.u32 %v1404, 16
    %v2147 = vrot.slane %v2145, 7
    %v2148 = vor.u32 %v2144, %v2147
    %v2149 = vsel %vm1974, %v2140, %v2148
    %v2150 = vshrl.u32 %v1412, 16
    %v2152 = vrot.slane %v2150, 6
    %v2153 = vrot.slane %v1824, 7
    %v2154 = vor.u32 %v2152, %v2153
    %v2155 = vrot.slane %v2154, 4
    %v2157 = vshrl.u32 %v1413, 16
    %v2159 = vrot.slane %v2157, 6
    %v2160 = vshll.u32 %v1413, 16
    %v2162 = vrot.slane %v2160, 7
    %v2163 = vor.u32 %v2159, %v2162
    %v2164 = vsel %vm1974, %v2155, %v2163
    %v2165 = vrot.slane %v2163, 4
    %v2167 = vshrl.u32 %v1414, 16
    %v2169 = vrot.slane %v2167, 6
    %v2170 = vshll.u32 %v1414, 16
    %v2172 = vrot.slane %v2170, 7
    %v2173 = vor.u32 %v2169, %v2172
    %v2174 = vsel %vm1974, %v2165, %v2173
    %v2175 = vshrl.u32 %v1422, 16
    %v2177 = vrot.slane %v2175, 6
    %v2178 = vrot.slane %v1848, 7
    %v2179 = vor.u32 %v2177, %v2178
    %v2180 = vrot.slane %v2179, 4
    %v2182 = vshrl.u32 %v1423, 16
    %v2184 = vrot.slane %v2182, 6
    %v2185 = vshll.u32 %v1423, 16
    %v2187 = vrot.slane %v2185, 7
    %v2188 = vor.u32 %v2184, %v2187
    %v2189 = vsel %vm1974, %v2180, %v2188
    %v2190 = vrot.slane %v2188, 4
    %v2192 = vshrl.u32 %v1424, 16
    %v2194 = vrot.slane %v2192, 6
    %v2195 = vshll.u32 %v1424, 16
    %v2197 = vrot.slane %v2195, 7
    %v2198 = vor.u32 %v2194, %v2197
    %v2199 = vsel %vm1974, %v2190, %v2198
    %v2200 = vshrl.u32 %v1432, 16
    %v2202 = vrot.slane %v2200, 6
    %v2203 = vrot.slane %v1872, 7
    %v2204 = vor.u32 %v2202, %v2203
    %v2205 = vrot.slane %v2204, 4
    %v2207 = vshrl.u32 %v1433, 16
    %v2209 = vrot.slane %v2207, 6
    %v2210 = vshll.u32 %v1433, 16
    %v2212 = vrot.slane %v2210, 7
    %v2213 = vor.u32 %v2209, %v2212
    %v2214 = vsel %vm1974, %v2205, %v2213
    %v2215 = vrot.slane %v2213, 4
    %v2217 = vshrl.u32 %v1434, 16
    %v2219 = vrot.slane %v2217, 6
    %v2220 = vshll.u32 %v1434, 16
    %v2222 = vrot.slane %v2220, 7
    %v2223 = vor.u32 %v2219, %v2222
    %v2224 = vsel %vm1974, %v2215, %v2223
    %v2225 = vshrl.u32 %v1442, 16
    %v2227 = vrot.slane %v2225, 6
    %v2228 = vrot.slane %v1896, 7
    %v2229 = vor.u32 %v2227, %v2228
    %v2230 = vrot.slane %v2229, 4
    %v2232 = vshrl.u32 %v1443, 16
    %v2234 = vrot.slane %v2232, 6
    %v2235 = vshll.u32 %v1443, 16
    %v2237 = vrot.slane %v2235, 7
    %v2238 = vor.u32 %v2234, %v2237
    %v2239 = vsel %vm1974, %v2230, %v2238
    %v2240 = vrot.slane %v2238, 4
    %v2242 = vshrl.u32 %v1444, 16
    %v2244 = vrot.slane %v2242, 6
    %v2245 = vshll.u32 %v1444, 16
    %v2247 = vrot.slane %v2245, 7
    %v2248 = vor.u32 %v2244, %v2247
    %v2249 = vsel %vm1974, %v2240, %v2248
    %v2250 = vshrl.u32 %v1452, 16
    %v2252 = vrot.slane %v2250, 6
    %v2253 = vrot.slane %v1920, 7
    %v2254 = vor.u32 %v2252, %v2253
    %v2255 = vrot.slane %v2254, 4
    %v2257 = vshrl.u32 %v1453, 16
    %v2259 = vrot.slane %v2257, 6
    %v2260 = vshll.u32 %v1453, 16
    %v2262 = vrot.slane %v2260, 7
    %v2263 = vor.u32 %v2259, %v2262
    %v2264 = vsel %vm1974, %v2255, %v2263
    %v2265 = vrot.slane %v2263, 4
    %v2267 = vshrl.u32 %v1454, 16
    %v2269 = vrot.slane %v2267, 6
    %v2270 = vshll.u32 %v1454, 16
    %v2272 = vrot.slane %v2270, 7
    %v2273 = vor.u32 %v2269, %v2272
    %v2274 = vsel %vm1974, %v2265, %v2273
    %v2275 = vshrl.u32 %v1462, 16
    %v2277 = vrot.slane %v2275, 6
    %v2278 = vrot.slane %v1944, 7
    %v2279 = vor.u32 %v2277, %v2278
    %v2280 = vrot.slane %v2279, 4
    %v2282 = vshrl.u32 %v1463, 16
    %v2284 = vrot.slane %v2282, 6
    %v2285 = vshll.u32 %v1463, 16
    %v2287 = vrot.slane %v2285, 7
    %v2288 = vor.u32 %v2284, %v2287
    %v2289 = vsel %vm1974, %v2280, %v2288
    %v2290 = vrot.slane %v2288, 4
    %v2292 = vshrl.u32 %v1464, 16
    %v2294 = vrot.slane %v2292, 6
    %v2295 = vshll.u32 %v1464, 16
    %v2297 = vrot.slane %v2295, 7
    %v2298 = vor.u32 %v2294, %v2297
    %v2299 = vsel %vm1974, %v2290, %v2298
    %v2300 = vshrl.u32 %v1472, 16
    %v2302 = vrot.slane %v2300, 6
    %v2303 = vrot.slane %v1968, 7
    %v2304 = vor.u32 %v2302, %v2303
    %v2305 = vrot.slane %v2304, 4
    %v2307 = vshrl.u32 %v1473, 16
    %v2309 = vrot.slane %v2307, 6
    %v2310 = vshll.u32 %v1473, 16
    %v2312 = vrot.slane %v2310, 7
    %v2313 = vor.u32 %v2309, %v2312
    %v2314 = vsel %vm1974, %v2305, %v2313
    %v2315 = vrot.slane %v2313, 4
    %v2317 = vshrl.u32 %v1474, 16
    %v2319 = vrot.slane %v2317, 6
    %v2320 = vshll.u32 %v1474, 16
    %v2322 = vrot.slane %v2320, 7
    %v2323 = vor.u32 %v2319, %v2322
    %v2324 = vsel %vm1974, %v2315, %v2323
    %v2367 = vrot.slane %v1347, 6
    %v2368 = vrot.slane %v2367, 4
    %v2369 = vrot.slane %v1348, 6
    %v2370 = vsel %vm1534, %v2368, %v2369
    %v2371 = vrot.slane %v2369, 4
    %v2372 = vrot.slane %v1349, 6
    %v2373 = vsel %vm1534, %v2371, %v2372
    %v2374 = vrot.slane %v1357, 6
    %v2375 = vrot.slane %v2374, 4
    %v2376 = vrot.slane %v1358, 6
    %v2377 = vsel %vm1534, %v2375, %v2376
    %v2378 = vrot.slane %v2376, 4
    %v2379 = vrot.slane %v1359, 6
    %v2380 = vsel %vm1534, %v2378, %v2379
    %v2381 = vrot.slane %v1367, 6
    %v2382 = vrot.slane %v2381, 4
    %v2383 = vrot.slane %v1368, 6
    %v2384 = vsel %vm1534, %v2382, %v2383
    %v2385 = vrot.slane %v2383, 4
    %v2386 = vrot.slane %v1369, 6
    %v2387 = vsel %vm1534, %v2385, %v2386
    %v2388 = vrot.slane %v1377, 6
    %v2389 = vrot.slane %v2388, 4
    %v2390 = vrot.slane %v1378, 6
    %v2391 = vsel %vm1534, %v2389, %v2390
    %v2392 = vrot.slane %v2390, 4
    %v2393 = vrot.slane %v1379, 6
    %v2394 = vsel %vm1534, %v2392, %v2393
    %v2395 = vrot.slane %v1387, 6
    %v2396 = vrot.slane %v2395, 4
    %v2397 = vrot.slane %v1388, 6
    %v2398 = vsel %vm1534, %v2396, %v2397
    %v2399 = vrot.slane %v2397, 4
    %v2400 = vrot.slane %v1389, 6
    %v2401 = vsel %vm1534, %v2399, %v2400
    %v2402 = vrot.slane %v1397, 6
    %v2403 = vrot.slane %v2402, 4
    %v2404 = vrot.slane %v1398, 6
    %v2405 = vsel %vm1534, %v2403, %v2404
    %v2406 = vrot.slane %v2404, 4
    %v2407 = vrot.slane %v1399, 6
    %v2408 = vsel %vm1534, %v2406, %v2407
    %v2409 = vrot.slane %v1407, 6
    %v2410 = vrot.slane %v2409, 4
    %v2411 = vrot.slane %v1408, 6
    %v2412 = vsel %vm1534, %v2410, %v2411
    %v2413 = vrot.slane %v2411, 4
    %v2414 = vrot.slane %v1409, 6
    %v2415 = vsel %vm1534, %v2413, %v2414
    %v2416 = vrot.slane %v1417, 6
    %v2417 = vrot.slane %v2416, 4
    %v2418 = vrot.slane %v1418, 6
    %v2419 = vsel %vm1534, %v2417, %v2418
    %v2420 = vrot.slane %v2418, 4
    %v2421 = vrot.slane %v1419, 6
    %v2422 = vsel %vm1534, %v2420, %v2421
    %v2423 = vrot.slane %v1427, 6
    %v2424 = vrot.slane %v2423, 4
    %v2425 = vrot.slane %v1428, 6
    %v2426 = vsel %vm1534, %v2424, %v2425
    %v2427 = vrot.slane %v2425, 4
    %v2428 = vrot.slane %v1429, 6
    %v2429 = vsel %vm1534, %v2427, %v2428
    %v2430 = vrot.slane %v1437, 6
    %v2431 = vrot.slane %v2430, 4
    %v2432 = vrot.slane %v1438, 6
    %v2433 = vsel %vm1534, %v2431, %v2432
    %v2434 = vrot.slane %v2432, 4
    %v2435 = vrot.slane %v1439, 6
    %v2436 = vsel %vm1534, %v2434, %v2435
    %v2437 = vrot.slane %v1447, 6
    %v2438 = vrot.slane %v2437, 4
    %v2439 = vrot.slane %v1448, 6
    %v2440 = vsel %vm1534, %v2438, %v2439
    %v2441 = vrot.slane %v2439, 4
    %v2442 = vrot.slane %v1449, 6
    %v2443 = vsel %vm1534, %v2441, %v2442
    %v2444 = vrot.slane %v1457, 6
    %v2445 = vrot.slane %v2444, 4
    %v2446 = vrot.slane %v1458, 6
    %v2447 = vsel %vm1534, %v2445, %v2446
    %v2448 = vrot.slane %v2446, 4
    %v2449 = vrot.slane %v1459, 6
    %v2450 = vsel %vm1534, %v2448, %v2449
    %v2451 = vrot.slane %v1467, 6
    %v2452 = vrot.slane %v2451, 4
    %v2453 = vrot.slane %v1468, 6
    %v2454 = vsel %vm1534, %v2452, %v2453
    %v2455 = vrot.slane %v2453, 4
    %v2456 = vrot.slane %v1469, 6
    %v2457 = vsel %vm1534, %v2455, %v2456
    %v2458 = vrot.slane %v1477, 6
    %v2459 = vrot.slane %v2458, 4
    %v2460 = vrot.slane %v1478, 6
    %v2461 = vsel %vm1534, %v2459, %v2460
    %v2462 = vrot.slane %v2460, 4
    %v2463 = vrot.slane %v1479, 6
    %v2464 = vsel %vm1534, %v2462, %v2463
    %v2466 = vshrl.u32 %v1345, 16
    %v2468 = vrot.slane %v2466, 4
    %v2469 = vshll.u32 %v1345, 16
    %v2471 = vrot.slane %v2469, 5
    %v2472 = vor.u32 %v2468, %v2471
    %v2473 = vrot.slane %v2472, 4
    %v2475 = vshll.u32 %v1346, 16
    %v2477 = vrot.slane %v2475, 5
    %v2478 = vsel %vm1635, %v2473, %v2477
    %v2479 = vshrl.u32 %v1346, 16
    %v2481 = vrot.slane %v2479, 4
    %v2482 = vor.u32 %v2481, %v2477
    %v2483 = vrot.slane %v2482, 4
    %v2485 = vshll.u32 %v1347, 16
    %v2487 = vrot.slane %v2485, 5
    %v2488 = vsel %vm1635, %v2483, %v2487
    %v2490 = vshrl.u32 %v1355, 16
    %v2492 = vrot.slane %v2490, 4
    %v2493 = vshll.u32 %v1355, 16
    %v2495 = vrot.slane %v2493, 5
    %v2496 = vor.u32 %v2492, %v2495
    %v2497 = vrot.slane %v2496, 4
    %v2499 = vshll.u32 %v1356, 16
    %v2501 = vrot.slane %v2499, 5
    %v2502 = vsel %vm1635, %v2497, %v2501
    %v2503 = vshrl.u32 %v1356, 16
    %v2505 = vrot.slane %v2503, 4
    %v2506 = vor.u32 %v2505, %v2501
    %v2507 = vrot.slane %v2506, 4
    %v2509 = vshll.u32 %v1357, 16
    %v2511 = vrot.slane %v2509, 5
    %v2512 = vsel %vm1635, %v2507, %v2511
    %v2514 = vshrl.u32 %v1365, 16
    %v2516 = vrot.slane %v2514, 4
    %v2517 = vshll.u32 %v1365, 16
    %v2519 = vrot.slane %v2517, 5
    %v2520 = vor.u32 %v2516, %v2519
    %v2521 = vrot.slane %v2520, 4
    %v2523 = vshll.u32 %v1366, 16
    %v2525 = vrot.slane %v2523, 5
    %v2526 = vsel %vm1635, %v2521, %v2525
    %v2527 = vshrl.u32 %v1366, 16
    %v2529 = vrot.slane %v2527, 4
    %v2530 = vor.u32 %v2529, %v2525
    %v2531 = vrot.slane %v2530, 4
    %v2533 = vshll.u32 %v1367, 16
    %v2535 = vrot.slane %v2533, 5
    %v2536 = vsel %vm1635, %v2531, %v2535
    %v2538 = vshrl.u32 %v1375, 16
    %v2540 = vrot.slane %v2538, 4
    %v2541 = vshll.u32 %v1375, 16
    %v2543 = vrot.slane %v2541, 5
    %v2544 = vor.u32 %v2540, %v2543
    %v2545 = vrot.slane %v2544, 4
    %v2547 = vshll.u32 %v1376, 16
    %v2549 = vrot.slane %v2547, 5
    %v2550 = vsel %vm1635, %v2545, %v2549
    %v2551 = vshrl.u32 %v1376, 16
    %v2553 = vrot.slane %v2551, 4
    %v2554 = vor.u32 %v2553, %v2549
    %v2555 = vrot.slane %v2554, 4
    %v2557 = vshll.u32 %v1377, 16
    %v2559 = vrot.slane %v2557, 5
    %v2560 = vsel %vm1635, %v2555, %v2559
    %v2562 = vshrl.u32 %v1385, 16
    %v2564 = vrot.slane %v2562, 4
    %v2565 = vshll.u32 %v1385, 16
    %v2567 = vrot.slane %v2565, 5
    %v2568 = vor.u32 %v2564, %v2567
    %v2569 = vrot.slane %v2568, 4
    %v2571 = vshll.u32 %v1386, 16
    %v2573 = vrot.slane %v2571, 5
    %v2574 = vsel %vm1635, %v2569, %v2573
    %v2575 = vshrl.u32 %v1386, 16
    %v2577 = vrot.slane %v2575, 4
    %v2578 = vor.u32 %v2577, %v2573
    %v2579 = vrot.slane %v2578, 4
    %v2581 = vshll.u32 %v1387, 16
    %v2583 = vrot.slane %v2581, 5
    %v2584 = vsel %vm1635, %v2579, %v2583
    %v2586 = vshrl.u32 %v1395, 16
    %v2588 = vrot.slane %v2586, 4
    %v2589 = vshll.u32 %v1395, 16
    %v2591 = vrot.slane %v2589, 5
    %v2592 = vor.u32 %v2588, %v2591
    %v2593 = vrot.slane %v2592, 4
    %v2595 = vshll.u32 %v1396, 16
    %v2597 = vrot.slane %v2595, 5
    %v2598 = vsel %vm1635, %v2593, %v2597
    %v2599 = vshrl.u32 %v1396, 16
    %v2601 = vrot.slane %v2599, 4
    %v2602 = vor.u32 %v2601, %v2597
    %v2603 = vrot.slane %v2602, 4
    %v2605 = vshll.u32 %v1397, 16
    %v2607 = vrot.slane %v2605, 5
    %v2608 = vsel %vm1635, %v2603, %v2607
    %v2610 = vshrl.u32 %v1405, 16
    %v2612 = vrot.slane %v2610, 4
    %v2613 = vshll.u32 %v1405, 16
    %v2615 = vrot.slane %v2613, 5
    %v2616 = vor.u32 %v2612, %v2615
    %v2617 = vrot.slane %v2616, 4
    %v2619 = vshll.u32 %v1406, 16
    %v2621 = vrot.slane %v2619, 5
    %v2622 = vsel %vm1635, %v2617, %v2621
    %v2623 = vshrl.u32 %v1406, 16
    %v2625 = vrot.slane %v2623, 4
    %v2626 = vor.u32 %v2625, %v2621
    %v2627 = vrot.slane %v2626, 4
    %v2629 = vshll.u32 %v1407, 16
    %v2631 = vrot.slane %v2629, 5
    %v2632 = vsel %vm1635, %v2627, %v2631
    %v2634 = vshrl.u32 %v1415, 16
    %v2636 = vrot.slane %v2634, 4
    %v2637 = vshll.u32 %v1415, 16
    %v2639 = vrot.slane %v2637, 5
    %v2640 = vor.u32 %v2636, %v2639
    %v2641 = vrot.slane %v2640, 4
    %v2643 = vshll.u32 %v1416, 16
    %v2645 = vrot.slane %v2643, 5
    %v2646 = vsel %vm1635, %v2641, %v2645
    %v2647 = vshrl.u32 %v1416, 16
    %v2649 = vrot.slane %v2647, 4
    %v2650 = vor.u32 %v2649, %v2645
    %v2651 = vrot.slane %v2650, 4
    %v2653 = vshll.u32 %v1417, 16
    %v2655 = vrot.slane %v2653, 5
    %v2656 = vsel %vm1635, %v2651, %v2655
    %v2658 = vshrl.u32 %v1425, 16
    %v2660 = vrot.slane %v2658, 4
    %v2661 = vshll.u32 %v1425, 16
    %v2663 = vrot.slane %v2661, 5
    %v2664 = vor.u32 %v2660, %v2663
    %v2665 = vrot.slane %v2664, 4
    %v2667 = vshll.u32 %v1426, 16
    %v2669 = vrot.slane %v2667, 5
    %v2670 = vsel %vm1635, %v2665, %v2669
    %v2671 = vshrl.u32 %v1426, 16
    %v2673 = vrot.slane %v2671, 4
    %v2674 = vor.u32 %v2673, %v2669
    %v2675 = vrot.slane %v2674, 4
    %v2677 = vshll.u32 %v1427, 16
    %v2679 = vrot.slane %v2677, 5
    %v2680 = vsel %vm1635, %v2675, %v2679
    %v2682 = vshrl.u32 %v1435, 16
    %v2684 = vrot.slane %v2682, 4
    %v2685 = vshll.u32 %v1435, 16
    %v2687 = vrot.slane %v2685, 5
    %v2688 = vor.u32 %v2684, %v2687
    %v2689 = vrot.slane %v2688, 4
    %v2691 = vshll.u32 %v1436, 16
    %v2693 = vrot.slane %v2691, 5
    %v2694 = vsel %vm1635, %v2689, %v2693
    %v2695 = vshrl.u32 %v1436, 16
    %v2697 = vrot.slane %v2695, 4
    %v2698 = vor.u32 %v2697, %v2693
    %v2699 = vrot.slane %v2698, 4
    %v2701 = vshll.u32 %v1437, 16
    %v2703 = vrot.slane %v2701, 5
    %v2704 = vsel %vm1635, %v2699, %v2703
    %v2706 = vshrl.u32 %v1445, 16
    %v2708 = vrot.slane %v2706, 4
    %v2709 = vshll.u32 %v1445, 16
    %v2711 = vrot.slane %v2709, 5
    %v2712 = vor.u32 %v2708, %v2711
    %v2713 = vrot.slane %v2712, 4
    %v2715 = vshll.u32 %v1446, 16
    %v2717 = vrot.slane %v2715, 5
    %v2718 = vsel %vm1635, %v2713, %v2717
    %v2719 = vshrl.u32 %v1446, 16
    %v2721 = vrot.slane %v2719, 4
    %v2722 = vor.u32 %v2721, %v2717
    %v2723 = vrot.slane %v2722, 4
    %v2725 = vshll.u32 %v1447, 16
    %v2727 = vrot.slane %v2725, 5
    %v2728 = vsel %vm1635, %v2723, %v2727
    %v2730 = vshrl.u32 %v1455, 16
    %v2732 = vrot.slane %v2730, 4
    %v2733 = vshll.u32 %v1455, 16
    %v2735 = vrot.slane %v2733, 5
    %v2736 = vor.u32 %v2732, %v2735
    %v2737 = vrot.slane %v2736, 4
    %v2739 = vshll.u32 %v1456, 16
    %v2741 = vrot.slane %v2739, 5
    %v2742 = vsel %vm1635, %v2737, %v2741
    %v2743 = vshrl.u32 %v1456, 16
    %v2745 = vrot.slane %v2743, 4
    %v2746 = vor.u32 %v2745, %v2741
    %v2747 = vrot.slane %v2746, 4
    %v2749 = vshll.u32 %v1457, 16
    %v2751 = vrot.slane %v2749, 5
    %v2752 = vsel %vm1635, %v2747, %v2751
    %v2754 = vshrl.u32 %v1465, 16
    %v2756 = vrot.slane %v2754, 4
    %v2757 = vshll.u32 %v1465, 16
    %v2759 = vrot.slane %v2757, 5
    %v2760 = vor.u32 %v2756, %v2759
    %v2761 = vrot.slane %v2760, 4
    %v2763 = vshll.u32 %v1466, 16
    %v2765 = vrot.slane %v2763, 5
    %v2766 = vsel %vm1635, %v2761, %v2765
    %v2767 = vshrl.u32 %v1466, 16
    %v2769 = vrot.slane %v2767, 4
    %v2770 = vor.u32 %v2769, %v2765
    %v2771 = vrot.slane %v2770, 4
    %v2773 = vshll.u32 %v1467, 16
    %v2775 = vrot.slane %v2773, 5
    %v2776 = vsel %vm1635, %v2771, %v2775
    %v2778 = vshrl.u32 %v1475, 16
    %v2780 = vrot.slane %v2778, 4
    %v2781 = vshll.u32 %v1475, 16
    %v2783 = vrot.slane %v2781, 5
    %v2784 = vor.u32 %v2780, %v2783
    %v2785 = vrot.slane %v2784, 4
    %v2787 = vshll.u32 %v1476, 16
    %v2789 = vrot.slane %v2787, 5
    %v2790 = vsel %vm1635, %v2785, %v2789
    %v2791 = vshrl.u32 %v1476, 16
    %v2793 = vrot.slane %v2791, 4
    %v2794 = vor.u32 %v2793, %v2789
    %v2795 = vrot.slane %v2794, 4
    %v2797 = vshll.u32 %v1477, 16
    %v2799 = vrot.slane %v2797, 5
    %v2800 = vsel %vm1635, %v2795, %v2799
    %v2801 = vshrl.u32 %v1347, 16
    %v2803 = vrot.slane %v2801, 6
    %v2804 = vrot.slane %v2485, 7
    %v2805 = vor.u32 %v2803, %v2804
    %v2806 = vrot.slane %v2805, 4
    %v2808 = vshrl.u32 %v1348, 16
    %v2810 = vrot.slane %v2808, 6
    %v2811 = vshll.u32 %v1348, 16
    %v2813 = vrot.slane %v2811, 7
    %v2814 = vor.u32 %v2810, %v2813
    %v2815 = vsel %vm1974, %v2806, %v2814
    %v2816 = vrot.slane %v2814, 4
    %v2818 = vshrl.u32 %v1349, 16
    %v2820 = vrot.slane %v2818, 6
    %v2821 = vshll.u32 %v1349, 16
    %v2823 = vrot.slane %v2821, 7
    %v2824 = vor.u32 %v2820, %v2823
    %v2825 = vsel %vm1974, %v2816, %v2824
    %v2826 = vshrl.u32 %v1357, 16
    %v2828 = vrot.slane %v2826, 6
    %v2829 = vrot.slane %v2509, 7
    %v2830 = vor.u32 %v2828, %v2829
    %v2831 = vrot.slane %v2830, 4
    %v2833 = vshrl.u32 %v1358, 16
    %v2835 = vrot.slane %v2833, 6
    %v2836 = vshll.u32 %v1358, 16
    %v2838 = vrot.slane %v2836, 7
    %v2839 = vor.u32 %v2835, %v2838
    %v2840 = vsel %vm1974, %v2831, %v2839
    %v2841 = vrot.slane %v2839, 4
    %v2843 = vshrl.u32 %v1359, 16
    %v2845 = vrot.slane %v2843, 6
    %v2846 = vshll.u32 %v1359, 16
    %v2848 = vrot.slane %v2846, 7
    %v2849 = vor.u32 %v2845, %v2848
    %v2850 = vsel %vm1974, %v2841, %v2849
    %v2851 = vshrl.u32 %v1367, 16
    %v2853 = vrot.slane %v2851, 6
    %v2854 = vrot.slane %v2533, 7
    %v2855 = vor.u32 %v2853, %v2854
    %v2856 = vrot.slane %v2855, 4
    %v2858 = vshrl.u32 %v1368, 16
    %v2860 = vrot.slane %v2858, 6
    %v2861 = vshll.u32 %v1368, 16
    %v2863 = vrot.slane %v2861, 7
    %v2864 = vor.u32 %v2860, %v2863
    %v2865 = vsel %vm1974, %v2856, %v2864
    %v2866 = vrot.slane %v2864, 4
    %v2868 = vshrl.u32 %v1369, 16
    %v2870 = vrot.slane %v2868, 6
    %v2871 = vshll.u32 %v1369, 16
    %v2873 = vrot.slane %v2871, 7
    %v2874 = vor.u32 %v2870, %v2873
    %v2875 = vsel %vm1974, %v2866, %v2874
    %v2876 = vshrl.u32 %v1377, 16
    %v2878 = vrot.slane %v2876, 6
    %v2879 = vrot.slane %v2557, 7
    %v2880 = vor.u32 %v2878, %v2879
    %v2881 = vrot.slane %v2880, 4
    %v2883 = vshrl.u32 %v1378, 16
    %v2885 = vrot.slane %v2883, 6
    %v2886 = vshll.u32 %v1378, 16
    %v2888 = vrot.slane %v2886, 7
    %v2889 = vor.u32 %v2885, %v2888
    %v2890 = vsel %vm1974, %v2881, %v2889
    %v2891 = vrot.slane %v2889, 4
    %v2893 = vshrl.u32 %v1379, 16
    %v2895 = vrot.slane %v2893, 6
    %v2896 = vshll.u32 %v1379, 16
    %v2898 = vrot.slane %v2896, 7
    %v2899 = vor.u32 %v2895, %v2898
    %v2900 = vsel %vm1974, %v2891, %v2899
    %v2901 = vshrl.u32 %v1387, 16
    %v2903 = vrot.slane %v2901, 6
    %v2904 = vrot.slane %v2581, 7
    %v2905 = vor.u32 %v2903, %v2904
    %v2906 = vrot.slane %v2905, 4
    %v2908 = vshrl.u32 %v1388, 16
    %v2910 = vrot.slane %v2908, 6
    %v2911 = vshll.u32 %v1388, 16
    %v2913 = vrot.slane %v2911, 7
    %v2914 = vor.u32 %v2910, %v2913
    %v2915 = vsel %vm1974, %v2906, %v2914
    %v2916 = vrot.slane %v2914, 4
    %v2918 = vshrl.u32 %v1389, 16
    %v2920 = vrot.slane %v2918, 6
    %v2921 = vshll.u32 %v1389, 16
    %v2923 = vrot.slane %v2921, 7
    %v2924 = vor.u32 %v2920, %v2923
    %v2925 = vsel %vm1974, %v2916, %v2924
    %v2926 = vshrl.u32 %v1397, 16
    %v2928 = vrot.slane %v2926, 6
    %v2929 = vrot.slane %v2605, 7
    %v2930 = vor.u32 %v2928, %v2929
    %v2931 = vrot.slane %v2930, 4
    %v2933 = vshrl.u32 %v1398, 16
    %v2935 = vrot.slane %v2933, 6
    %v2936 = vshll.u32 %v1398, 16
    %v2938 = vrot.slane %v2936, 7
    %v2939 = vor.u32 %v2935, %v2938
    %v2940 = vsel %vm1974, %v2931, %v2939
    %v2941 = vrot.slane %v2939, 4
    %v2943 = vshrl.u32 %v1399, 16
    %v2945 = vrot.slane %v2943, 6
    %v2946 = vshll.u32 %v1399, 16
    %v2948 = vrot.slane %v2946, 7
    %v2949 = vor.u32 %v2945, %v2948
    %v2950 = vsel %vm1974, %v2941, %v2949
    %v2951 = vshrl.u32 %v1407, 16
    %v2953 = vrot.slane %v2951, 6
    %v2954 = vrot.slane %v2629, 7
    %v2955 = vor.u32 %v2953, %v2954
    %v2956 = vrot.slane %v2955, 4
    %v2958 = vshrl.u32 %v1408, 16
    %v2960 = vrot.slane %v2958, 6
    %v2961 = vshll.u32 %v1408, 16
    %v2963 = vrot.slane %v2961, 7
    %v2964 = vor.u32 %v2960, %v2963
    %v2965 = vsel %vm1974, %v2956, %v2964
    %v2966 = vrot.slane %v2964, 4
    %v2968 = vshrl.u32 %v1409, 16
    %v2970 = vrot.slane %v2968, 6
    %v2971 = vshll.u32 %v1409, 16
    %v2973 = vrot.slane %v2971, 7
    %v2974 = vor.u32 %v2970, %v2973
    %v2975 = vsel %vm1974, %v2966, %v2974
    %v2976 = vshrl.u32 %v1417, 16
    %v2978 = vrot.slane %v2976, 6
    %v2979 = vrot.slane %v2653, 7
    %v2980 = vor.u32 %v2978, %v2979
    %v2981 = vrot.slane %v2980, 4
    %v2983 = vshrl.u32 %v1418, 16
    %v2985 = vrot.slane %v2983, 6
    %v2986 = vshll.u32 %v1418, 16
    %v2988 = vrot.slane %v2986, 7
    %v2989 = vor.u32 %v2985, %v2988
    %v2990 = vsel %vm1974, %v2981, %v2989
    %v2991 = vrot.slane %v2989, 4
    %v2993 = vshrl.u32 %v1419, 16
    %v2995 = vrot.slane %v2993, 6
    %v2996 = vshll.u32 %v1419, 16
    %v2998 = vrot.slane %v2996, 7
    %v2999 = vor.u32 %v2995, %v2998
    %v3000 = vsel %vm1974, %v2991, %v2999
    %v3001 = vshrl.u32 %v1427, 16
    %v3003 = vrot.slane %v3001, 6
    %v3004 = vrot.slane %v2677, 7
    %v3005 = vor.u32 %v3003, %v3004
    %v3006 = vrot.slane %v3005, 4
    %v3008 = vshrl.u32 %v1428, 16
    %v3010 = vrot.slane %v3008, 6
    %v3011 = vshll.u32 %v1428, 16
    %v3013 = vrot.slane %v3011, 7
    %v3014 = vor.u32 %v3010, %v3013
    %v3015 = vsel %vm1974, %v3006, %v3014
    %v3016 = vrot.slane %v3014, 4
    %v3018 = vshrl.u32 %v1429, 16
    %v3020 = vrot.slane %v3018, 6
    %v3021 = vshll.u32 %v1429, 16
    %v3023 = vrot.slane %v3021, 7
    %v3024 = vor.u32 %v3020, %v3023
    %v3025 = vsel %vm1974, %v3016, %v3024
    %v3026 = vshrl.u32 %v1437, 16
    %v3028 = vrot.slane %v3026, 6
    %v3029 = vrot.slane %v2701, 7
    %v3030 = vor.u32 %v3028, %v3029
    %v3031 = vrot.slane %v3030, 4
    %v3033 = vshrl.u32 %v1438, 16
    %v3035 = vrot.slane %v3033, 6
    %v3036 = vshll.u32 %v1438, 16
    %v3038 = vrot.slane %v3036, 7
    %v3039 = vor.u32 %v3035, %v3038
    %v3040 = vsel %vm1974, %v3031, %v3039
    %v3041 = vrot.slane %v3039, 4
    %v3043 = vshrl.u32 %v1439, 16
    %v3045 = vrot.slane %v3043, 6
    %v3046 = vshll.u32 %v1439, 16
    %v3048 = vrot.slane %v3046, 7
    %v3049 = vor.u32 %v3045, %v3048
    %v3050 = vsel %vm1974, %v3041, %v3049
    %v3051 = vshrl.u32 %v1447, 16
    %v3053 = vrot.slane %v3051, 6
    %v3054 = vrot.slane %v2725, 7
    %v3055 = vor.u32 %v3053, %v3054
    %v3056 = vrot.slane %v3055, 4
    %v3058 = vshrl.u32 %v1448, 16
    %v3060 = vrot.slane %v3058, 6
    %v3061 = vshll.u32 %v1448, 16
    %v3063 = vrot.slane %v3061, 7
    %v3064 = vor.u32 %v3060, %v3063
    %v3065 = vsel %vm1974, %v3056, %v3064
    %v3066 = vrot.slane %v3064, 4
    %v3068 = vshrl.u32 %v1449, 16
    %v3070 = vrot.slane %v3068, 6
    %v3071 = vshll.u32 %v1449, 16
    %v3073 = vrot.slane %v3071, 7
    %v3074 = vor.u32 %v3070, %v3073
    %v3075 = vsel %vm1974, %v3066, %v3074
    %v3076 = vshrl.u32 %v1457, 16
    %v3078 = vrot.slane %v3076, 6
    %v3079 = vrot.slane %v2749, 7
    %v3080 = vor.u32 %v3078, %v3079
    %v3081 = vrot.slane %v3080, 4
    %v3083 = vshrl.u32 %v1458, 16
    %v3085 = vrot.slane %v3083, 6
    %v3086 = vshll.u32 %v1458, 16
    %v3088 = vrot.slane %v3086, 7
    %v3089 = vor.u32 %v3085, %v3088
    %v3090 = vsel %vm1974, %v3081, %v3089
    %v3091 = vrot.slane %v3089, 4
    %v3093 = vshrl.u32 %v1459, 16
    %v3095 = vrot.slane %v3093, 6
    %v3096 = vshll.u32 %v1459, 16
    %v3098 = vrot.slane %v3096, 7
    %v3099 = vor.u32 %v3095, %v3098
    %v3100 = vsel %vm1974, %v3091, %v3099
    %v3101 = vshrl.u32 %v1467, 16
    %v3103 = vrot.slane %v3101, 6
    %v3104 = vrot.slane %v2773, 7
    %v3105 = vor.u32 %v3103, %v3104
    %v3106 = vrot.slane %v3105, 4
    %v3108 = vshrl.u32 %v1468, 16
    %v3110 = vrot.slane %v3108, 6
    %v3111 = vshll.u32 %v1468, 16
    %v3113 = vrot.slane %v3111, 7
    %v3114 = vor.u32 %v3110, %v3113
    %v3115 = vsel %vm1974, %v3106, %v3114
    %v3116 = vrot.slane %v3114, 4
    %v3118 = vshrl.u32 %v1469, 16
    %v3120 = vrot.slane %v3118, 6
    %v3121 = vshll.u32 %v1469, 16
    %v3123 = vrot.slane %v3121, 7
    %v3124 = vor.u32 %v3120, %v3123
    %v3125 = vsel %vm1974, %v3116, %v3124
    %v3126 = vshrl.u32 %v1477, 16
    %v3128 = vrot.slane %v3126, 6
    %v3129 = vrot.slane %v2797, 7
    %v3130 = vor.u32 %v3128, %v3129
    %v3131 = vrot.slane %v3130, 4
    %v3133 = vshrl.u32 %v1478, 16
    %v3135 = vrot.slane %v3133, 6
    %v3136 = vshll.u32 %v1478, 16
    %v3138 = vrot.slane %v3136, 7
    %v3139 = vor.u32 %v3135, %v3138
    %v3140 = vsel %vm1974, %v3131, %v3139
    %v3141 = vrot.slane %v3139, 4
    %v3143 = vshrl.u32 %v1479, 16
    %v3145 = vrot.slane %v3143, 6
    %v3146 = vshll.u32 %v1479, 16
    %v3148 = vrot.slane %v3146, 7
    %v3149 = vor.u32 %v3145, %v3148
    %v3150 = vsel %vm1974, %v3141, %v3149
    %v3154 = vrot.slane %v1482, 6
    %v3155 = vrot.slane %v3154, 4
    %v3156 = vrot.slane %v1483, 6
    %v3157 = vsel %vm1534, %v3155, %v3156
    %v3158 = vrot.slane %v3156, 4
    %v3159 = vrot.slane %v1484, 6
    %v3160 = vsel %vm1534, %v3158, %v3159
    %v3162 = vshrl.u32 %v1480, 16
    %v3164 = vrot.slane %v3162, 4
    %v3165 = vshll.u32 %v1480, 16
    %v3167 = vrot.slane %v3165, 5
    %v3168 = vor.u32 %v3164, %v3167
    %v3169 = vrot.slane %v3168, 4
    %v3171 = vshll.u32 %v1481, 16
    %v3173 = vrot.slane %v3171, 5
    %v3174 = vsel %vm1635, %v3169, %v3173
    %v3175 = vshrl.u32 %v1481, 16
    %v3177 = vrot.slane %v3175, 4
    %v3178 = vor.u32 %v3177, %v3173
    %v3179 = vrot.slane %v3178, 4
    %v3181 = vshll.u32 %v1482, 16
    %v3183 = vrot.slane %v3181, 5
    %v3184 = vsel %vm1635, %v3179, %v3183
    %v3185 = vshrl.u32 %v1482, 16
    %v3187 = vrot.slane %v3185, 6
    %v3188 = vrot.slane %v3181, 7
    %v3189 = vor.u32 %v3187, %v3188
    %v3190 = vrot.slane %v3189, 4
    %v3192 = vshrl.u32 %v1483, 16
    %v3194 = vrot.slane %v3192, 6
    %v3195 = vshll.u32 %v1483, 16
    %v3197 = vrot.slane %v3195, 7
    %v3198 = vor.u32 %v3194, %v3197
    %v3199 = vsel %vm1974, %v3190, %v3198
    %v3200 = vrot.slane %v3198, 4
    %v3202 = vshrl.u32 %v1484, 16
    %v3204 = vrot.slane %v3202, 6
    %v3205 = vshll.u32 %v1484, 16
    %v3207 = vrot.slane %v3205, 7
    %v3208 = vor.u32 %v3204, %v3207
    %v3209 = vsel %vm1974, %v3200, %v3208
    %v3213 = vrot.slane %v1487, 6
    %v3214 = vrot.slane %v3213, 4
    %v3215 = vrot.slane %v1488, 6
    %v3216 = vsel %vm1534, %v3214, %v3215
    %v3217 = vrot.slane %v3215, 4
    %v3218 = vrot.slane %v1489, 6
    %v3219 = vsel %vm1534, %v3217, %v3218
    %v3221 = vshrl.u32 %v1485, 16
    %v3223 = vrot.slane %v3221, 4
    %v3224 = vshll.u32 %v1485, 16
    %v3226 = vrot.slane %v3224, 5
    %v3227 = vor.u32 %v3223, %v3226
    %v3228 = vrot.slane %v3227, 4
    %v3230 = vshll.u32 %v1486, 16
    %v3232 = vrot.slane %v3230, 5
    %v3233 = vsel %vm1635, %v3228, %v3232
    %v3234 = vshrl.u32 %v1486, 16
    %v3236 = vrot.slane %v3234, 4
    %v3237 = vor.u32 %v3236, %v3232
    %v3238 = vrot.slane %v3237, 4
    %v3240 = vshll.u32 %v1487, 16
    %v3242 = vrot.slane %v3240, 5
    %v3243 = vsel %vm1635, %v3238, %v3242
    %v3244 = vshrl.u32 %v1487, 16
    %v3246 = vrot.slane %v3244, 6
    %v3247 = vrot.slane %v3240, 7
    %v3248 = vor.u32 %v3246, %v3247
    %v3249 = vrot.slane %v3248, 4
    %v3251 = vshrl.u32 %v1488, 16
    %v3253 = vrot.slane %v3251, 6
    %v3254 = vshll.u32 %v1488, 16
    %v3256 = vrot.slane %v3254, 7
    %v3257 = vor.u32 %v3253, %v3256
    %v3258 = vsel %vm1974, %v3249, %v3257
    %v3259 = vrot.slane %v3257, 4
    %v3261 = vshrl.u32 %v1489, 16
    %v3263 = vrot.slane %v3261, 6
    %v3264 = vshll.u32 %v1489, 16
    %v3266 = vrot.slane %v3264, 7
    %v3267 = vor.u32 %v3263, %v3266
    %v3268 = vsel %vm1974, %v3259, %v3267
    %v3297 = vunpack.c.l.b16 %v1340
    %v3298 = vunpack.c.l.b16 %v1341
    %v3299 = vunpack.c.l.b16 %v1350
    %v3300 = vunpack.c.l.b16 %v1351
    %v3301 = vunpack.c.l.b16 %v1360
    %v3302 = vunpack.c.l.b16 %v1361
    %v3303 = vunpack.c.l.b16 %v1370
    %v3304 = vunpack.c.l.b16 %v1371
    %v3305 = vunpack.c.l.b16 %v1380
    %v3306 = vunpack.c.l.b16 %v1381
    %v3307 = vunpack.c.l.b16 %v1390
    %v3308 = vunpack.c.l.b16 %v1391
    %v3309 = vunpack.c.l.b16 %v1400
    %v3310 = vunpack.c.l.b16 %v1401
    %v3311 = vunpack.c.l.b16 %v1410
    %v3312 = vunpack.c.l.b16 %v1411
    %v3313 = vunpack.c.l.b16 %v1420
    %v3314 = vunpack.c.l.b16 %v1421
    %v3315 = vunpack.c.l.b16 %v1430
    %v3316 = vunpack.c.l.b16 %v1431
    %v3317 = vunpack.c.l.b16 %v1440
    %v3318 = vunpack.c.l.b16 %v1441
    %v3319 = vunpack.c.l.b16 %v1450
    %v3320 = vunpack.c.l.b16 %v1451
    %v3321 = vunpack.c.l.b16 %v1460
    %v3322 = vunpack.c.l.b16 %v1461
    %v3323 = vunpack.c.l.b16 %v1470
    %v3324 = vunpack.c.l.b16 %v1471
    %v3325 = vpack.c.b16 %v3298, %v3297
    %v3326 = vpack.c.b16 %v3300, %v3299
    %v3327 = vpack.c.b16 %v3302, %v3301
    %v3328 = vpack.c.b16 %v3304, %v3303
    %v3329 = vpack.c.b16 %v3306, %v3305
    %v3330 = vpack.c.b16 %v3308, %v3307
    %v3331 = vpack.c.b16 %v3310, %v3309
    %v3332 = vpack.c.b16 %v3312, %v3311
    %v3333 = vpack.c.b16 %v3314, %v3313
    %v3334 = vpack.c.b16 %v3316, %v3315
    %v3335 = vpack.c.b16 %v3318, %v3317
    %v3336 = vpack.c.b16 %v3320, %v3319
    %v3337 = vpack.c.b16 %v3322, %v3321
    %v3338 = vpack.c.b16 %v3324, %v3323
    %v3339 = vunpack.c.l.b16 %v1538
    %v3340 = vunpack.c.l.b16 %v1541
    %v3341 = vunpack.c.l.b16 %v1545
    %v3342 = vunpack.c.l.b16 %v1548
    %v3343 = vunpack.c.l.b16 %v1552
    %v3344 = vunpack.c.l.b16 %v1555
    %v3345 = vunpack.c.l.b16 %v1559
    %v3346 = vunpack.c.l.b16 %v1562
    %v3347 = vunpack.c.l.b16 %v1566
    %v3348 = vunpack.c.l.b16 %v1569
    %v3349 = vunpack.c.l.b16 %v1573
    %v3350 = vunpack.c.l.b16 %v1576
    %v3351 = vunpack.c.l.b16 %v1580
    %v3352 = vunpack.c.l.b16 %v1583
    %v3353 = vunpack.c.l.b16 %v1587
    %v3354 = vunpack.c.l.b16 %v1590
    %v3355 = vunpack.c.l.b16 %v1594
    %v3356 = vunpack.c.l.b16 %v1597
    %v3357 = vunpack.c.l.b16 %v1601
    %v3358 = vunpack.c.l.b16 %v1604
    %v3359 = vunpack.c.l.b16 %v1608
    %v3360 = vunpack.c.l.b16 %v1611
    %v3361 = vunpack.c.l.b16 %v1615
    %v3362 = vunpack.c.l.b16 %v1618
    %v3363 = vunpack.c.l.b16 %v1622
    %v3364 = vunpack.c.l.b16 %v1625
    %v3365 = vunpack.c.l.b16 %v1629
    %v3366 = vunpack.c.l.b16 %v1632
    %v3367 = vpack.c.b16 %v3340, %v3339
    %v3368 = vpack.c.b16 %v3342, %v3341
    %v3369 = vpack.c.b16 %v3344, %v3343
    %v3370 = vpack.c.b16 %v3346, %v3345
    %v3371 = vpack.c.b16 %v3348, %v3347
    %v3372 = vpack.c.b16 %v3350, %v3349
    %v3373 = vpack.c.b16 %v3352, %v3351
    %v3374 = vpack.c.b16 %v3354, %v3353
    %v3375 = vpack.c.b16 %v3356, %v3355
    %v3376 = vpack.c.b16 %v3358, %v3357
    %v3377 = vpack.c.b16 %v3360, %v3359
    %v3378 = vpack.c.b16 %v3362, %v3361
    %v3379 = vpack.c.b16 %v3364, %v3363
    %v3380 = vpack.c.b16 %v3366, %v3365
    %3381 = vrot.lane.b32.xlu0 %v3367, 32
    %v3382 = vpop.permute.xlu0 %3381
    %3383 = vrot.lane.b32.xlu0 %v3368, 32
    %v3384 = vpop.permute.xlu0 %3383
    %3385 = vrot.lane.b32.xlu0 %v3369, 32
    %v3386 = vpop.permute.xlu0 %3385
    %3387 = vrot.lane.b32.xlu0 %v3370, 32
    %v3388 = vpop.permute.xlu0 %3387
    %3389 = vrot.lane.b32.xlu0 %v3371, 32
    %v3390 = vpop.permute.xlu0 %3389
    %3391 = vrot.lane.b32.xlu0 %v3372, 32
    %v3392 = vpop.permute.xlu0 %3391
    %3393 = vrot.lane.b32.xlu0 %v3373, 32
    %v3394 = vpop.permute.xlu0 %3393
    %3395 = vrot.lane.b32.xlu0 %v3374, 32
    %v3396 = vpop.permute.xlu0 %3395
    %3397 = vrot.lane.b32.xlu0 %v3375, 32
    %v3398 = vpop.permute.xlu0 %3397
    %3399 = vrot.lane.b32.xlu0 %v3376, 32
    %v3400 = vpop.permute.xlu0 %3399
    %3401 = vrot.lane.b32.xlu0 %v3377, 32
    %v3402 = vpop.permute.xlu0 %3401
    %3403 = vrot.lane.b32.xlu0 %v3378, 32
    %v3404 = vpop.permute.xlu0 %3403
    %3405 = vrot.lane.b32.xlu0 %v3379, 32
    %v3406 = vpop.permute.xlu0 %3405
    %3407 = vrot.lane.b32.xlu0 %v3380, 32
    %v3408 = vpop.permute.xlu0 %3407
    %v3409 = vunpack.c.l.b16 %v1649
    %v3410 = vunpack.c.l.b16 %v1659
    %v3411 = vunpack.c.l.b16 %v1673
    %v3412 = vunpack.c.l.b16 %v1683
    %v3413 = vunpack.c.l.b16 %v1697
    %v3414 = vunpack.c.l.b16 %v1707
    %v3415 = vunpack.c.l.b16 %v1721
    %v3416 = vunpack.c.l.b16 %v1731
    %v3417 = vunpack.c.l.b16 %v1745
    %v3418 = vunpack.c.l.b16 %v1755
    %v3419 = vunpack.c.l.b16 %v1769
    %v3420 = vunpack.c.l.b16 %v1779
    %v3421 = vunpack.c.l.b16 %v1793
    %v3422 = vunpack.c.l.b16 %v1803
    %v3423 = vunpack.c.l.b16 %v1817
    %v3424 = vunpack.c.l.b16 %v1827
    %v3425 = vunpack.c.l.b16 %v1841
    %v3426 = vunpack.c.l.b16 %v1851
    %v3427 = vunpack.c.l.b16 %v1865
    %v3428 = vunpack.c.l.b16 %v1875
    %v3429 = vunpack.c.l.b16 %v1889
    %v3430 = vunpack.c.l.b16 %v1899
    %v3431 = vunpack.c.l.b16 %v1913
    %v3432 = vunpack.c.l.b16 %v1923
    %v3433 = vunpack.c.l.b16 %v1937
    %v3434 = vunpack.c.l.b16 %v1947
    %v3435 = vunpack.c.l.b16 %v1961
    %v3436 = vunpack.c.l.b16 %v1971
    %v3437 = vpack.c.b16 %v3410, %v3409
    %v3438 = vpack.c.b16 %v3412, %v3411
    %v3439 = vpack.c.b16 %v3414, %v3413
    %v3440 = vpack.c.b16 %v3416, %v3415
    %v3441 = vpack.c.b16 %v3418, %v3417
    %v3442 = vpack.c.b16 %v3420, %v3419
    %v3443 = vpack.c.b16 %v3422, %v3421
    %v3444 = vpack.c.b16 %v3424, %v3423
    %v3445 = vpack.c.b16 %v3426, %v3425
    %v3446 = vpack.c.b16 %v3428, %v3427
    %v3447 = vpack.c.b16 %v3430, %v3429
    %v3448 = vpack.c.b16 %v3432, %v3431
    %v3449 = vpack.c.b16 %v3434, %v3433
    %v3450 = vpack.c.b16 %v3436, %v3435
    %3451 = vrot.lane.b32.xlu0 %v3437, 64
    %v3452 = vpop.permute.xlu0 %3451
    %3453 = vrot.lane.b32.xlu0 %v3438, 64
    %v3454 = vpop.permute.xlu0 %3453
    %3455 = vrot.lane.b32.xlu0 %v3439, 64
    %v3456 = vpop.permute.xlu0 %3455
    %3457 = vrot.lane.b32.xlu0 %v3440, 64
    %v3458 = vpop.permute.xlu0 %3457
    %3459 = vrot.lane.b32.xlu0 %v3441, 64
    %v3460 = vpop.permute.xlu0 %3459
    %3461 = vrot.lane.b32.xlu0 %v3442, 64
    %v3462 = vpop.permute.xlu0 %3461
    %3463 = vrot.lane.b32.xlu0 %v3443, 64
    %v3464 = vpop.permute.xlu0 %3463
    %3465 = vrot.lane.b32.xlu0 %v3444, 64
    %v3466 = vpop.permute.xlu0 %3465
    %3467 = vrot.lane.b32.xlu0 %v3445, 64
    %v3468 = vpop.permute.xlu0 %3467
    %3469 = vrot.lane.b32.xlu0 %v3446, 64
    %v3470 = vpop.permute.xlu0 %3469
    %3471 = vrot.lane.b32.xlu0 %v3447, 64
    %v3472 = vpop.permute.xlu0 %3471
    %3473 = vrot.lane.b32.xlu0 %v3448, 64
    %v3474 = vpop.permute.xlu0 %3473
    %3475 = vrot.lane.b32.xlu0 %v3449, 64
    %v3476 = vpop.permute.xlu0 %3475
    %3477 = vrot.lane.b32.xlu0 %v3450, 64
    %v3478 = vpop.permute.xlu0 %3477
    %v3479 = vunpack.c.l.b16 %v1989
    %v3480 = vunpack.c.l.b16 %v1999
    %v3481 = vunpack.c.l.b16 %v2014
    %v3482 = vunpack.c.l.b16 %v2024
    %v3483 = vunpack.c.l.b16 %v2039
    %v3484 = vunpack.c.l.b16 %v2049
    %v3485 = vunpack.c.l.b16 %v2064
    %v3486 = vunpack.c.l.b16 %v2074
    %v3487 = vunpack.c.l.b16 %v2089
    %v3488 = vunpack.c.l.b16 %v2099
    %v3489 = vunpack.c.l.b16 %v2114
    %v3490 = vunpack.c.l.b16 %v2124
    %v3491 = vunpack.c.l.b16 %v2139
    %v3492 = vunpack.c.l.b16 %v2149
    %v3493 = vunpack.c.l.b16 %v2164
    %v3494 = vunpack.c.l.b16 %v2174
    %v3495 = vunpack.c.l.b16 %v2189
    %v3496 = vunpack.c.l.b16 %v2199
    %v3497 = vunpack.c.l.b16 %v2214
    %v3498 = vunpack.c.l.b16 %v2224
    %v3499 = vunpack.c.l.b16 %v2239
    %v3500 = vunpack.c.l.b16 %v2249
    %v3501 = vunpack.c.l.b16 %v2264
    %v3502 = vunpack.c.l.b16 %v2274
    %v3503 = vunpack.c.l.b16 %v2289
    %v3504 = vunpack.c.l.b16 %v2299
    %v3505 = vunpack.c.l.b16 %v2314
    %v3506 = vunpack.c.l.b16 %v2324
    %v3507 = vpack.c.b16 %v3480, %v3479
    %v3508 = vpack.c.b16 %v3482, %v3481
    %v3509 = vpack.c.b16 %v3484, %v3483
    %v3510 = vpack.c.b16 %v3486, %v3485
    %v3511 = vpack.c.b16 %v3488, %v3487
    %v3512 = vpack.c.b16 %v3490, %v3489
    %v3513 = vpack.c.b16 %v3492, %v3491
    %v3514 = vpack.c.b16 %v3494, %v3493
    %v3515 = vpack.c.b16 %v3496, %v3495
    %v3516 = vpack.c.b16 %v3498, %v3497
    %v3517 = vpack.c.b16 %v3500, %v3499
    %v3518 = vpack.c.b16 %v3502, %v3501
    %v3519 = vpack.c.b16 %v3504, %v3503
    %v3520 = vpack.c.b16 %v3506, %v3505
    %3521 = vrot.lane.b32.xlu0 %v3507, 96
    %v3522 = vpop.permute.xlu0 %3521
    %3523 = vrot.lane.b32.xlu0 %v3508, 96
    %v3524 = vpop.permute.xlu0 %3523
    %3525 = vrot.lane.b32.xlu0 %v3509, 96
    %v3526 = vpop.permute.xlu0 %3525
    %3527 = vrot.lane.b32.xlu0 %v3510, 96
    %v3528 = vpop.permute.xlu0 %3527
    %3529 = vrot.lane.b32.xlu0 %v3511, 96
    %v3530 = vpop.permute.xlu0 %3529
    %3531 = vrot.lane.b32.xlu0 %v3512, 96
    %v3532 = vpop.permute.xlu0 %3531
    %3533 = vrot.lane.b32.xlu0 %v3513, 96
    %v3534 = vpop.permute.xlu0 %3533
    %3535 = vrot.lane.b32.xlu0 %v3514, 96
    %v3536 = vpop.permute.xlu0 %3535
    %3537 = vrot.lane.b32.xlu0 %v3515, 96
    %v3538 = vpop.permute.xlu0 %3537
    %3539 = vrot.lane.b32.xlu0 %v3516, 96
    %v3540 = vpop.permute.xlu0 %3539
    %3541 = vrot.lane.b32.xlu0 %v3517, 96
    %v3542 = vpop.permute.xlu0 %3541
    %3543 = vrot.lane.b32.xlu0 %v3518, 96
    %v3544 = vpop.permute.xlu0 %3543
    %3545 = vrot.lane.b32.xlu0 %v3519, 96
    %v3546 = vpop.permute.xlu0 %3545
    %3547 = vrot.lane.b32.xlu0 %v3520, 96
    %v3548 = vpop.permute.xlu0 %3547
    %v3577 = vunpack.c.l.b16 %v1345
    %v3578 = vunpack.c.l.b16 %v1346
    %v3579 = vunpack.c.l.b16 %v1355
    %v3580 = vunpack.c.l.b16 %v1356
    %v3581 = vunpack.c.l.b16 %v1365
    %v3582 = vunpack.c.l.b16 %v1366
    %v3583 = vunpack.c.l.b16 %v1375
    %v3584 = vunpack.c.l.b16 %v1376
    %v3585 = vunpack.c.l.b16 %v1385
    %v3586 = vunpack.c.l.b16 %v1386
    %v3587 = vunpack.c.l.b16 %v1395
    %v3588 = vunpack.c.l.b16 %v1396
    %v3589 = vunpack.c.l.b16 %v1405
    %v3590 = vunpack.c.l.b16 %v1406
    %v3591 = vunpack.c.l.b16 %v1415
    %v3592 = vunpack.c.l.b16 %v1416
    %v3593 = vunpack.c.l.b16 %v1425
    %v3594 = vunpack.c.l.b16 %v1426
    %v3595 = vunpack.c.l.b16 %v1435
    %v3596 = vunpack.c.l.b16 %v1436
    %v3597 = vunpack.c.l.b16 %v1445
    %v3598 = vunpack.c.l.b16 %v1446
    %v3599 = vunpack.c.l.b16 %v1455
    %v3600 = vunpack.c.l.b16 %v1456
    %v3601 = vunpack.c.l.b16 %v1465
    %v3602 = vunpack.c.l.b16 %v1466
    %v3603 = vunpack.c.l.b16 %v1475
    %v3604 = vunpack.c.l.b16 %v1476
    %v3605 = vpack.c.b16 %v3578, %v3577
    %v3606 = vpack.c.b16 %v3580, %v3579
    %v3607 = vpack.c.b16 %v3582, %v3581
    %v3608 = vpack.c.b16 %v3584, %v3583
    %v3609 = vpack.c.b16 %v3586, %v3585
    %v3610 = vpack.c.b16 %v3588, %v3587
    %v3611 = vpack.c.b16 %v3590, %v3589
    %v3612 = vpack.c.b16 %v3592, %v3591
    %v3613 = vpack.c.b16 %v3594, %v3593
    %v3614 = vpack.c.b16 %v3596, %v3595
    %v3615 = vpack.c.b16 %v3598, %v3597
    %v3616 = vpack.c.b16 %v3600, %v3599
    %v3617 = vpack.c.b16 %v3602, %v3601
    %v3618 = vpack.c.b16 %v3604, %v3603
    %v3619 = vunpack.c.l.b16 %v2370
    %v3620 = vunpack.c.l.b16 %v2373
    %v3621 = vunpack.c.l.b16 %v2377
    %v3622 = vunpack.c.l.b16 %v2380
    %v3623 = vunpack.c.l.b16 %v2384
    %v3624 = vunpack.c.l.b16 %v2387
    %v3625 = vunpack.c.l.b16 %v2391
    %v3626 = vunpack.c.l.b16 %v2394
    %v3627 = vunpack.c.l.b16 %v2398
    %v3628 = vunpack.c.l.b16 %v2401
    %v3629 = vunpack.c.l.b16 %v2405
    %v3630 = vunpack.c.l.b16 %v2408
    %v3631 = vunpack.c.l.b16 %v2412
    %v3632 = vunpack.c.l.b16 %v2415
    %v3633 = vunpack.c.l.b16 %v2419
    %v3634 = vunpack.c.l.b16 %v2422
    %v3635 = vunpack.c.l.b16 %v2426
    %v3636 = vunpack.c.l.b16 %v2429
    %v3637 = vunpack.c.l.b16 %v2433
    %v3638 = vunpack.c.l.b16 %v2436
    %v3639 = vunpack.c.l.b16 %v2440
    %v3640 = vunpack.c.l.b16 %v2443
    %v3641 = vunpack.c.l.b16 %v2447
    %v3642 = vunpack.c.l.b16 %v2450
    %v3643 = vunpack.c.l.b16 %v2454
    %v3644 = vunpack.c.l.b16 %v2457
    %v3645 = vunpack.c.l.b16 %v2461
    %v3646 = vunpack.c.l.b16 %v2464
    %v3647 = vpack.c.b16 %v3620, %v3619
    %v3648 = vpack.c.b16 %v3622, %v3621
    %v3649 = vpack.c.b16 %v3624, %v3623
    %v3650 = vpack.c.b16 %v3626, %v3625
    %v3651 = vpack.c.b16 %v3628, %v3627
    %v3652 = vpack.c.b16 %v3630, %v3629
    %v3653 = vpack.c.b16 %v3632, %v3631
    %v3654 = vpack.c.b16 %v3634, %v3633
    %v3655 = vpack.c.b16 %v3636, %v3635
    %v3656 = vpack.c.b16 %v3638, %v3637
    %v3657 = vpack.c.b16 %v3640, %v3639
    %v3658 = vpack.c.b16 %v3642, %v3641
    %v3659 = vpack.c.b16 %v3644, %v3643
    %v3660 = vpack.c.b16 %v3646, %v3645
    %3661 = vrot.lane.b32.xlu0 %v3647, 32
    %v3662 = vpop.permute.xlu0 %3661
    %3663 = vrot.lane.b32.xlu0 %v3648, 32
    %v3664 = vpop.permute.xlu0 %3663
    %3665 = vrot.lane.b32.xlu0 %v3649, 32
    %v3666 = vpop.permute.xlu0 %3665
    %3667 = vrot.lane.b32.xlu0 %v3650, 32
    %v3668 = vpop.permute.xlu0 %3667
    %3669 = vrot.lane.b32.xlu0 %v3651, 32
    %v3670 = vpop.permute.xlu0 %3669
    %3671 = vrot.lane.b32.xlu0 %v3652, 32
    %v3672 = vpop.permute.xlu0 %3671
    %3673 = vrot.lane.b32.xlu0 %v3653, 32
    %v3674 = vpop.permute.xlu0 %3673
    %3675 = vrot.lane.b32.xlu0 %v3654, 32
    %v3676 = vpop.permute.xlu0 %3675
    %3677 = vrot.lane.b32.xlu0 %v3655, 32
    %v3678 = vpop.permute.xlu0 %3677
    %3679 = vrot.lane.b32.xlu0 %v3656, 32
    %v3680 = vpop.permute.xlu0 %3679
    %3681 = vrot.lane.b32.xlu0 %v3657, 32
    %v3682 = vpop.permute.xlu0 %3681
    %3683 = vrot.lane.b32.xlu0 %v3658, 32
    %v3684 = vpop.permute.xlu0 %3683
    %3685 = vrot.lane.b32.xlu0 %v3659, 32
    %v3686 = vpop.permute.xlu0 %3685
    %3687 = vrot.lane.b32.xlu0 %v3660, 32
    %v3688 = vpop.permute.xlu0 %3687
    %v3689 = vunpack.c.l.b16 %v2478
    %v3690 = vunpack.c.l.b16 %v2488
    %v3691 = vunpack.c.l.b16 %v2502
    %v3692 = vunpack.c.l.b16 %v2512
    %v3693 = vunpack.c.l.b16 %v2526
    %v3694 = vunpack.c.l.b16 %v2536
    %v3695 = vunpack.c.l.b16 %v2550
    %v3696 = vunpack.c.l.b16 %v2560
    %v3697 = vunpack.c.l.b16 %v2574
    %v3698 = vunpack.c.l.b16 %v2584
    %v3699 = vunpack.c.l.b16 %v2598
    %v3700 = vunpack.c.l.b16 %v2608
    %v3701 = vunpack.c.l.b16 %v2622
    %v3702 = vunpack.c.l.b16 %v2632
    %v3703 = vunpack.c.l.b16 %v2646
    %v3704 = vunpack.c.l.b16 %v2656
    %v3705 = vunpack.c.l.b16 %v2670
    %v3706 = vunpack.c.l.b16 %v2680
    %v3707 = vunpack.c.l.b16 %v2694
    %v3708 = vunpack.c.l.b16 %v2704
    %v3709 = vunpack.c.l.b16 %v2718
    %v3710 = vunpack.c.l.b16 %v2728
    %v3711 = vunpack.c.l.b16 %v2742
    %v3712 = vunpack.c.l.b16 %v2752
    %v3713 = vunpack.c.l.b16 %v2766
    %v3714 = vunpack.c.l.b16 %v2776
    %v3715 = vunpack.c.l.b16 %v2790
    %v3716 = vunpack.c.l.b16 %v2800
    %v3717 = vpack.c.b16 %v3690, %v3689
    %v3718 = vpack.c.b16 %v3692, %v3691
    %v3719 = vpack.c.b16 %v3694, %v3693
    %v3720 = vpack.c.b16 %v3696, %v3695
    %v3721 = vpack.c.b16 %v3698, %v3697
    %v3722 = vpack.c.b16 %v3700, %v3699
    %v3723 = vpack.c.b16 %v3702, %v3701
    %v3724 = vpack.c.b16 %v3704, %v3703
    %v3725 = vpack.c.b16 %v3706, %v3705
    %v3726 = vpack.c.b16 %v3708, %v3707
    %v3727 = vpack.c.b16 %v3710, %v3709
    %v3728 = vpack.c.b16 %v3712, %v3711
    %v3729 = vpack.c.b16 %v3714, %v3713
    %v3730 = vpack.c.b16 %v3716, %v3715
    %3731 = vrot.lane.b32.xlu0 %v3717, 64
    %v3732 = vpop.permute.xlu0 %3731
    %3733 = vrot.lane.b32.xlu0 %v3718, 64
    %v3734 = vpop.permute.xlu0 %3733
    %3735 = vrot.lane.b32.xlu0 %v3719, 64
    %v3736 = vpop.permute.xlu0 %3735
    %3737 = vrot.lane.b32.xlu0 %v3720, 64
    %v3738 = vpop.permute.xlu0 %3737
    %3739 = vrot.lane.b32.xlu0 %v3721, 64
    %v3740 = vpop.permute.xlu0 %3739
    %3741 = vrot.lane.b32.xlu0 %v3722, 64
    %v3742 = vpop.permute.xlu0 %3741
    %3743 = vrot.lane.b32.xlu0 %v3723, 64
    %v3744 = vpop.permute.xlu0 %3743
    %3745 = vrot.lane.b32.xlu0 %v3724, 64
    %v3746 = vpop.permute.xlu0 %3745
    %3747 = vrot.lane.b32.xlu0 %v3725, 64
    %v3748 = vpop.permute.xlu0 %3747
    %3749 = vrot.lane.b32.xlu0 %v3726, 64
    %v3750 = vpop.permute.xlu0 %3749
    %3751 = vrot.lane.b32.xlu0 %v3727, 64
    %v3752 = vpop.permute.xlu0 %3751
    %3753 = vrot.lane.b32.xlu0 %v3728, 64
    %v3754 = vpop.permute.xlu0 %3753
    %3755 = vrot.lane.b32.xlu0 %v3729, 64
    %v3756 = vpop.permute.xlu0 %3755
    %3757 = vrot.lane.b32.xlu0 %v3730, 64
    %v3758 = vpop.permute.xlu0 %3757
    %v3759 = vunpack.c.l.b16 %v2815
    %v3760 = vunpack.c.l.b16 %v2825
    %v3761 = vunpack.c.l.b16 %v2840
    %v3762 = vunpack.c.l.b16 %v2850
    %v3763 = vunpack.c.l.b16 %v2865
    %v3764 = vunpack.c.l.b16 %v2875
    %v3765 = vunpack.c.l.b16 %v2890
    %v3766 = vunpack.c.l.b16 %v2900
    %v3767 = vunpack.c.l.b16 %v2915
    %v3768 = vunpack.c.l.b16 %v2925
    %v3769 = vunpack.c.l.b16 %v2940
    %v3770 = vunpack.c.l.b16 %v2950
    %v3771 = vunpack.c.l.b16 %v2965
    %v3772 = vunpack.c.l.b16 %v2975
    %v3773 = vunpack.c.l.b16 %v2990
    %v3774 = vunpack.c.l.b16 %v3000
    %v3775 = vunpack.c.l.b16 %v3015
    %v3776 = vunpack.c.l.b16 %v3025
    %v3777 = vunpack.c.l.b16 %v3040
    %v3778 = vunpack.c.l.b16 %v3050
    %v3779 = vunpack.c.l.b16 %v3065
    %v3780 = vunpack.c.l.b16 %v3075
    %v3781 = vunpack.c.l.b16 %v3090
    %v3782 = vunpack.c.l.b16 %v3100
    %v3783 = vunpack.c.l.b16 %v3115
    %v3784 = vunpack.c.l.b16 %v3125
    %v3785 = vunpack.c.l.b16 %v3140
    %v3786 = vunpack.c.l.b16 %v3150
    %v3787 = vpack.c.b16 %v3760, %v3759
    %v3788 = vpack.c.b16 %v3762, %v3761
    %v3789 = vpack.c.b16 %v3764, %v3763
    %v3790 = vpack.c.b16 %v3766, %v3765
    %v3791 = vpack.c.b16 %v3768, %v3767
    %v3792 = vpack.c.b16 %v3770, %v3769
    %v3793 = vpack.c.b16 %v3772, %v3771
    %v3794 = vpack.c.b16 %v3774, %v3773
    %v3795 = vpack.c.b16 %v3776, %v3775
    %v3796 = vpack.c.b16 %v3778, %v3777
    %v3797 = vpack.c.b16 %v3780, %v3779
    %v3798 = vpack.c.b16 %v3782, %v3781
    %v3799 = vpack.c.b16 %v3784, %v3783
    %v3800 = vpack.c.b16 %v3786, %v3785
    %3801 = vrot.lane.b32.xlu0 %v3787, 96
    %v3802 = vpop.permute.xlu0 %3801
    %3803 = vrot.lane.b32.xlu0 %v3788, 96
    %v3804 = vpop.permute.xlu0 %3803
    %3805 = vrot.lane.b32.xlu0 %v3789, 96
    %v3806 = vpop.permute.xlu0 %3805
    %3807 = vrot.lane.b32.xlu0 %v3790, 96
    %v3808 = vpop.permute.xlu0 %3807
    %3809 = vrot.lane.b32.xlu0 %v3791, 96
    %v3810 = vpop.permute.xlu0 %3809
    %3811 = vrot.lane.b32.xlu0 %v3792, 96
    %v3812 = vpop.permute.xlu0 %3811
    %3813 = vrot.lane.b32.xlu0 %v3793, 96
    %v3814 = vpop.permute.xlu0 %3813
    %3815 = vrot.lane.b32.xlu0 %v3794, 96
    %v3816 = vpop.permute.xlu0 %3815
    %3817 = vrot.lane.b32.xlu0 %v3795, 96
    %v3818 = vpop.permute.xlu0 %3817
    %3819 = vrot.lane.b32.xlu0 %v3796, 96
    %v3820 = vpop.permute.xlu0 %3819
    %3821 = vrot.lane.b32.xlu0 %v3797, 96
    %v3822 = vpop.permute.xlu0 %3821
    %3823 = vrot.lane.b32.xlu0 %v3798, 96
    %v3824 = vpop.permute.xlu0 %3823
    %3825 = vrot.lane.b32.xlu0 %v3799, 96
    %v3826 = vpop.permute.xlu0 %3825
    %3827 = vrot.lane.b32.xlu0 %v3800, 96
    %v3828 = vpop.permute.xlu0 %3827
    %v3831 = vunpack.c.l.b16 %v1480
    %v3832 = vunpack.c.l.b16 %v1481
    %v3833 = vpack.c.b16 %v3832, %v3831
    %v3834 = vunpack.c.l.b16 %v3157
    %v3835 = vunpack.c.l.b16 %v3160
    %v3836 = vpack.c.b16 %v3835, %v3834
    %3837 = vrot.lane.b32.xlu0 %v3836, 32
    %v3838 = vpop.permute.xlu0 %3837
    %v3839 = vunpack.c.l.b16 %v3174
    %v3840 = vunpack.c.l.b16 %v3184
    %v3841 = vpack.c.b16 %v3840, %v3839
    %3842 = vrot.lane.b32.xlu0 %v3841, 64
    %v3843 = vpop.permute.xlu0 %3842
    %v3844 = vunpack.c.l.b16 %v3199
    %v3845 = vunpack.c.l.b16 %v3209
    %v3846 = vpack.c.b16 %v3845, %v3844
    %3847 = vrot.lane.b32.xlu0 %v3846, 96
    %v3848 = vpop.permute.xlu0 %3847
    %v3851 = vunpack.c.l.b16 %v1485
    %v3852 = vunpack.c.l.b16 %v1486
    %v3853 = vpack.c.b16 %v3852, %v3851
    %v3854 = vunpack.c.l.b16 %v3216
    %v3855 = vunpack.c.l.b16 %v3219
    %v3856 = vpack.c.b16 %v3855, %v3854
    %3857 = vrot.lane.b32.xlu0 %v3856, 32
    %v3858 = vpop.permute.xlu0 %3857
    %v3859 = vunpack.c.l.b16 %v3233
    %v3860 = vunpack.c.l.b16 %v3243
    %v3861 = vpack.c.b16 %v3860, %v3859
    %3862 = vrot.lane.b32.xlu0 %v3861, 64
    %v3863 = vpop.permute.xlu0 %3862
    %v3864 = vunpack.c.l.b16 %v3258
    %v3865 = vunpack.c.l.b16 %v3268
    %v3866 = vpack.c.b16 %v3865, %v3864
    %3867 = vrot.lane.b32.xlu0 %v3866, 96
    %v3868 = vpop.permute.xlu0 %3867
    %vm3869 = vcmask 261120
    %v3872 = vsel %vm3869, %v3325, %v3382
    %v3875 = vsel %vm3869, %v3326, %v3384
    %v3878 = vsel %vm3869, %v3327, %v3386
    %v3881 = vsel %vm3869, %v3328, %v3388
    %v3884 = vsel %vm3869, %v3329, %v3390
    %v3887 = vsel %vm3869, %v3330, %v3392
    %v3890 = vsel %vm3869, %v3331, %v3394
    %v3893 = vsel %vm3869, %v3332, %v3396
    %v3896 = vsel %vm3869, %v3333, %v3398
    %v3899 = vsel %vm3869, %v3334, %v3400
    %v3902 = vsel %vm3869, %v3335, %v3402
    %v3905 = vsel %vm3869, %v3336, %v3404
    %v3908 = vsel %vm3869, %v3337, %v3406
    %v3911 = vsel %vm3869, %v3338, %v3408
    %vm3912 = vcmask 523264
    %v3914 = vsel %vm3912, %v3872, %v3452
    %v3916 = vsel %vm3912, %v3875, %v3454
    %v3918 = vsel %vm3912, %v3878, %v3456
    %v3920 = vsel %vm3912, %v3881, %v3458
    %v3922 = vsel %vm3912, %v3884, %v3460
    %v3924 = vsel %vm3912, %v3887, %v3462
    %v3926 = vsel %vm3912, %v3890, %v3464
    %v3928 = vsel %vm3912, %v3893, %v3466
    %v3930 = vsel %vm3912, %v3896, %v3468
    %v3932 = vsel %vm3912, %v3899, %v3470
    %v3934 = vsel %vm3912, %v3902, %v3472
    %v3936 = vsel %vm3912, %v3905, %v3474
    %v3938 = vsel %vm3912, %v3908, %v3476
    %v3940 = vsel %vm3912, %v3911, %v3478
    %vm3941 = vcmask 785408
    %v3943 = vsel %vm3941, %v3914, %v3522
    %v3946 = vsel %vm3941, %v3916, %v3524
    %v3949 = vsel %vm3941, %v3918, %v3526
    %v3952 = vsel %vm3941, %v3920, %v3528
    %v3955 = vsel %vm3941, %v3922, %v3530
    %v3958 = vsel %vm3941, %v3924, %v3532
    %v3961 = vsel %vm3941, %v3926, %v3534
    %v3964 = vsel %vm3941, %v3928, %v3536
    %v3967 = vsel %vm3941, %v3930, %v3538
    %v3970 = vsel %vm3941, %v3932, %v3540
    %v3973 = vsel %vm3941, %v3934, %v3542
    %v3976 = vsel %vm3941, %v3936, %v3544
    %v3979 = vsel %vm3941, %v3938, %v3546
    %v3982 = vsel %vm3941, %v3940, %v3548
    %v3986 = vsel %vm3869, %v3605, %v3662
    %v3989 = vsel %vm3869, %v3606, %v3664
    %v3992 = vsel %vm3869, %v3607, %v3666
    %v3995 = vsel %vm3869, %v3608, %v3668
    %v3998 = vsel %vm3869, %v3609, %v3670
    %v4001 = vsel %vm3869, %v3610, %v3672
    %v4004 = vsel %vm3869, %v3611, %v3674
    %v4007 = vsel %vm3869, %v3612, %v3676
    %v4010 = vsel %vm3869, %v3613, %v3678
    %v4013 = vsel %vm3869, %v3614, %v3680
    %v4016 = vsel %vm3869, %v3615, %v3682
    %v4019 = vsel %vm3869, %v3616, %v3684
    %v4022 = vsel %vm3869, %v3617, %v3686
    %v4025 = vsel %vm3869, %v3618, %v3688
    %v4027 = vsel %vm3912, %v3986, %v3732
    %v4029 = vsel %vm3912, %v3989, %v3734
    %v4031 = vsel %vm3912, %v3992, %v3736
    %v4033 = vsel %vm3912, %v3995, %v3738
    %v4035 = vsel %vm3912, %v3998, %v3740
    %v4037 = vsel %vm3912, %v4001, %v3742
    %v4039 = vsel %vm3912, %v4004, %v3744
    %v4041 = vsel %vm3912, %v4007, %v3746
    %v4043 = vsel %vm3912, %v4010, %v3748
    %v4045 = vsel %vm3912, %v4013, %v3750
    %v4047 = vsel %vm3912, %v4016, %v3752
    %v4049 = vsel %vm3912, %v4019, %v3754
    %v4051 = vsel %vm3912, %v4022, %v3756
    %v4053 = vsel %vm3912, %v4025, %v3758
    %v4055 = vsel %vm3941, %v4027, %v3802
    %v4058 = vsel %vm3941, %v4029, %v3804
    %v4061 = vsel %vm3941, %v4031, %v3806
    %v4064 = vsel %vm3941, %v4033, %v3808
    %v4067 = vsel %vm3941, %v4035, %v3810
    %v4070 = vsel %vm3941, %v4037, %v3812
    %v4073 = vsel %vm3941, %v4039, %v3814
    %v4076 = vsel %vm3941, %v4041, %v3816
    %v4079 = vsel %vm3941, %v4043, %v3818
    %v4082 = vsel %vm3941, %v4045, %v3820
    %v4085 = vsel %vm3941, %v4047, %v3822
    %v4088 = vsel %vm3941, %v4049, %v3824
    %v4091 = vsel %vm3941, %v4051, %v3826
    %v4094 = vsel %vm3941, %v4053, %v3828
    %v4098 = vsel %vm3869, %v3833, %v3838
    %v4100 = vsel %vm3912, %v4098, %v3843
    %v4102 = vsel %vm3941, %v4100, %v3848
    %v4106 = vsel %vm3869, %v3853, %v3858
    %v4108 = vsel %vm3912, %v4106, %v3863
    %v4110 = vsel %vm3941, %v4108, %v3868
    %v4112 = vld [vmem:[%s3] sm:$0xf]
    %v4113 = vld [vmem:[%s3 + $0x4] sm:$0xf]
    %v4114 = vld [vmem:[%s3 + $0x8] sm:$0xf]
    %v4115 = vld [vmem:[%s3 + $0xc] sm:$0xf]
    %v4116 = vld [vmem:[%s3 + $0x10] sm:$0xf]
    %v4117 = vld [vmem:[%s3 + $0x14] sm:$0xf]
    %v4118 = vld [vmem:[%s3 + $0x18] sm:$0xf]
    %v4119 = vld [vmem:[%s3 + $0x1c] sm:$0xf]
    %v4120 = vld [vmem:[%s3 + $0x20] sm:$0xf]
    %v4121 = vld [vmem:[%s3 + $0x24] sm:$0xf]
    %v4122 = vld [vmem:[%s3 + $0x28] sm:$0xf]
    %v4123 = vld [vmem:[%s3 + $0x2c] sm:$0xf]
    %v4124 = vld [vmem:[%s3 + $0x30] sm:$0xf]
    %v4125 = vld [vmem:[%s3 + $0x34] sm:$0xf]
    %v4126 = vld [vmem:[%s3 + $0x38] sm:$0xf]
    %v4127 = vld [vmem:[%s3 + $0x3c] sm:$0xf]
    %v4128 = vld [vmem:[%s3 + $0x40] sm:$0xf]
    %v4129 = vld [vmem:[%s3 + $0x44] sm:$0xf]
    %v4130 = vld [vmem:[%s3 + $0x48] sm:$0xf]
    %v4131 = vld [vmem:[%s3 + $0x4c] sm:$0xf]
    %v4132 = vld [vmem:[%s3 + $0x50] sm:$0xf]
    %v4133 = vld [vmem:[%s3 + $0x54] sm:$0xf]
    %v4134 = vld [vmem:[%s3 + $0x58] sm:$0xf]
    %v4135 = vld [vmem:[%s3 + $0x5c] sm:$0xf]
    %v4136 = vld [vmem:[%s3 + $0x60] sm:$0xf]
    %v4137 = vld [vmem:[%s3 + $0x64] sm:$0xf]
    %v4138 = vld [vmem:[%s3 + $0x68] sm:$0xf]
    %v4139 = vld [vmem:[%s3 + $0x6c] sm:$0xf]
    %v4140 = vld [vmem:[%s3 + $0x70] sm:$0xf]
    %v4141 = vld [vmem:[%s3 + $0x74] sm:$0xf]
    %v4142 = vld [vmem:[%s3 + $0x78] sm:$0xf]
    %v4143 = vld [vmem:[%s3 + $0x7c] sm:$0xf]
    %v4144 = vld [vmem:[%s3 + $0x80] sm:$0xf]
    %v4145 = vld [vmem:[%s3 + $0x84] sm:$0xf]
    %v4146 = vld [vmem:[%s3 + $0x88] sm:$0xf]
    %v4147 = vld [vmem:[%s3 + $0x8c] sm:$0xf]
    %v4148 = vld [vmem:[%s3 + $0x90] sm:$0xf]
    %v4149 = vld [vmem:[%s3 + $0x94] sm:$0xf]
    %v4150 = vld [vmem:[%s3 + $0x98] sm:$0xf]
    %v4151 = vld [vmem:[%s3 + $0x9c] sm:$0xf]
    %v4152 = vld [vmem:[%s3 + $0xa0] sm:$0xf]
    %v4153 = vld [vmem:[%s3 + $0xa4] sm:$0xf]
    %v4154 = vld [vmem:[%s3 + $0xa8] sm:$0xf]
    %v4155 = vld [vmem:[%s3 + $0xac] sm:$0xf]
    %v4156 = vld [vmem:[%s3 + $0xb0] sm:$0xf]
    %v4157 = vld [vmem:[%s3 + $0xb4] sm:$0xf]
    %v4158 = vld [vmem:[%s3 + $0xb8] sm:$0xf]
    %v4159 = vld [vmem:[%s3 + $0xbc] sm:$0xf]
    %v4160 = vld [vmem:[%s3 + $0xc0] sm:$0xf]
    %v4161 = vld [vmem:[%s3 + $0xc4] sm:$0xf]
    %v4162 = vld [vmem:[%s3 + $0xc8] sm:$0xf]
    %v4163 = vld [vmem:[%s3 + $0xcc] sm:$0xf]
    %v4164 = vld [vmem:[%s3 + $0xd0] sm:$0xf]
    %v4165 = vld [vmem:[%s3 + $0xd4] sm:$0xf]
    %v4166 = vld [vmem:[%s3 + $0xd8] sm:$0xf]
    %v4167 = vld [vmem:[%s3 + $0xdc] sm:$0xf]
    %v4168 = vld [vmem:[%s3 + $0xe0] sm:$0xf]
    %v4169 = vld [vmem:[%s3 + $0xe4] sm:$0xf]
    %v4170 = vld [vmem:[%s3 + $0xe8] sm:$0xf]
    %v4171 = vld [vmem:[%s3 + $0xec] sm:$0xf]
    %v4172 = vld [vmem:[%s3 + $0xf0] sm:$0xf]
    %v4173 = vld [vmem:[%s3 + $0xf4] sm:$0xf]
    %v4174 = vld [vmem:[%s3 + $0xf8] sm:$0xf]
    %v4175 = vld [vmem:[%s3 + $0xfc] sm:$0xf]
    %v4176 = vld [vmem:[%s4] sm:$0x1]
    %v4178 = vperm.slane %v4176, 0
    %v4244 = vunpack.c.l.b16 %v4112
    %v4245 = vunpack.c.l.b16 %v4113
    %v4246 = vunpack.c.l.b16 %v4114
    %v4247 = vunpack.c.l.b16 %v4115
    %v4248 = vunpack.c.l.b16 %v4116
    %v4249 = vunpack.c.l.b16 %v4117
    %v4250 = vunpack.c.l.b16 %v4118
    %v4251 = vunpack.c.l.b16 %v4119
    %v4252 = vunpack.c.l.b16 %v4120
    %v4253 = vunpack.c.l.b16 %v4121
    %v4254 = vunpack.c.l.b16 %v4122
    %v4255 = vunpack.c.l.b16 %v4123
    %v4256 = vunpack.c.l.b16 %v4124
    %v4257 = vunpack.c.l.b16 %v4125
    %v4258 = vunpack.c.l.b16 %v4126
    %v4259 = vunpack.c.l.b16 %v4127
    %v4260 = vunpack.c.l.b16 %v4128
    %v4261 = vunpack.c.l.b16 %v4129
    %v4262 = vunpack.c.l.b16 %v4130
    %v4263 = vunpack.c.l.b16 %v4131
    %v4264 = vunpack.c.l.b16 %v4132
    %v4265 = vunpack.c.l.b16 %v4133
    %v4266 = vunpack.c.l.b16 %v4134
    %v4267 = vunpack.c.l.b16 %v4135
    %v4268 = vunpack.c.l.b16 %v4136
    %v4269 = vunpack.c.l.b16 %v4137
    %v4270 = vunpack.c.l.b16 %v4138
    %v4271 = vunpack.c.l.b16 %v4139
    %v4272 = vunpack.c.l.b16 %v4140
    %v4273 = vunpack.c.l.b16 %v4141
    %v4274 = vunpack.c.l.b16 %v4142
    %v4275 = vunpack.c.l.b16 %v4143
    %v4276 = vunpack.c.l.b16 %v4144
    %v4277 = vunpack.c.l.b16 %v4145
    %v4278 = vunpack.c.l.b16 %v4146
    %v4279 = vunpack.c.l.b16 %v4147
    %v4280 = vunpack.c.l.b16 %v4148
    %v4281 = vunpack.c.l.b16 %v4149
    %v4282 = vunpack.c.l.b16 %v4150
    %v4283 = vunpack.c.l.b16 %v4151
    %v4284 = vunpack.c.l.b16 %v4152
    %v4285 = vunpack.c.l.b16 %v4153
    %v4286 = vunpack.c.l.b16 %v4154
    %v4287 = vunpack.c.l.b16 %v4155
    %v4288 = vunpack.c.l.b16 %v4156
    %v4289 = vunpack.c.l.b16 %v4157
    %v4290 = vunpack.c.l.b16 %v4158
    %v4291 = vunpack.c.l.b16 %v4159
    %v4292 = vunpack.c.l.b16 %v4160
    %v4293 = vunpack.c.l.b16 %v4161
    %v4294 = vunpack.c.l.b16 %v4162
    %v4295 = vunpack.c.l.b16 %v4163
    %v4296 = vunpack.c.l.b16 %v4164
    %v4297 = vunpack.c.l.b16 %v4165
    %v4298 = vunpack.c.l.b16 %v4166
    %v4299 = vunpack.c.l.b16 %v4167
    %v4300 = vunpack.c.l.b16 %v4168
    %v4301 = vunpack.c.l.b16 %v4169
    %v4302 = vunpack.c.l.b16 %v4170
    %v4303 = vunpack.c.l.b16 %v4171
    %v4304 = vunpack.c.l.b16 %v4172
    %v4305 = vunpack.c.l.b16 %v4173
    %v4306 = vunpack.c.l.b16 %v4174
    %v4307 = vunpack.c.l.b16 %v4175
    %v4308 = vpack.c.b16 %v4245, %v4244
    %v4309 = vpack.c.b16 %v4247, %v4246
    %v4310 = vpack.c.b16 %v4249, %v4248
    %v4311 = vpack.c.b16 %v4251, %v4250
    %v4312 = vpack.c.b16 %v4253, %v4252
    %v4313 = vpack.c.b16 %v4255, %v4254
    %v4314 = vpack.c.b16 %v4257, %v4256
    %v4315 = vpack.c.b16 %v4259, %v4258
    %v4316 = vpack.c.b16 %v4261, %v4260
    %v4317 = vpack.c.b16 %v4263, %v4262
    %v4318 = vpack.c.b16 %v4265, %v4264
    %v4319 = vpack.c.b16 %v4267, %v4266
    %v4320 = vpack.c.b16 %v4269, %v4268
    %v4321 = vpack.c.b16 %v4271, %v4270
    %v4322 = vpack.c.b16 %v4273, %v4272
    %v4323 = vpack.c.b16 %v4275, %v4274
    %v4324 = vpack.c.b16 %v4277, %v4276
    %v4325 = vpack.c.b16 %v4279, %v4278
    %v4326 = vpack.c.b16 %v4281, %v4280
    %v4327 = vpack.c.b16 %v4283, %v4282
    %v4328 = vpack.c.b16 %v4285, %v4284
    %v4329 = vpack.c.b16 %v4287, %v4286
    %v4330 = vpack.c.b16 %v4289, %v4288
    %v4331 = vpack.c.b16 %v4291, %v4290
    %v4332 = vpack.c.b16 %v4293, %v4292
    %v4333 = vpack.c.b16 %v4295, %v4294
    %v4334 = vpack.c.b16 %v4297, %v4296
    %v4335 = vpack.c.b16 %v4299, %v4298
    %v4336 = vpack.c.b16 %v4301, %v4300
    %v4337 = vpack.c.b16 %v4303, %v4302
    %v4338 = vpack.c.b16 %v4305, %v4304
    %v4339 = vpack.c.b16 %v4307, %v4306
    %4372 = vmatpush.bf16.msra.mxu0 %v4315
    %4373 = vmatpush.bf16.msra.mxu0 %v4314
    %4374 = vmatpush.bf16.msra.mxu0 %v4313
    %4375 = vmatpush.bf16.msra.mxu0 %v4312
    %4376 = vmatpush.bf16.msra.mxu0 %v4311
    %4377 = vmatpush.bf16.msra.mxu0 %v4310
    %4378 = vmatpush.bf16.msra.mxu0 %v4309
    %4379 = vmatpush.bf16.msra.mxu0 %v4308
    %4380 = vmatmul.bf16.gmra.mxu0 %v3943
    %v4381 = vpop.f32.mrf.mxu0
    %v4382 = vadd.f32 %v4178, %v4381
    %v4383 = vpop.f32.mrf.mxu0
    %v4384 = vadd.f32 %v4178, %v4383
    %4385 = vmatmul.bf16.gmra.mxu0 %v3946
    %v4386 = vpop.f32.mrf.mxu0
    %v4387 = vadd.f32 %v4178, %v4386
    %v4388 = vpop.f32.mrf.mxu0
    %v4389 = vadd.f32 %v4178, %v4388
    %4390 = vmatmul.bf16.gmra.mxu0 %v3949
    %v4391 = vpop.f32.mrf.mxu0
    %v4392 = vadd.f32 %v4178, %v4391
    %v4393 = vpop.f32.mrf.mxu0
    %v4394 = vadd.f32 %v4178, %v4393
    %4395 = vmatmul.bf16.gmra.mxu0 %v3952
    %v4396 = vpop.f32.mrf.mxu0
    %v4397 = vadd.f32 %v4178, %v4396
    %v4398 = vpop.f32.mrf.mxu0
    %v4399 = vadd.f32 %v4178, %v4398
    %4400 = vmatmul.bf16.gmra.mxu0 %v3955
    %v4401 = vpop.f32.mrf.mxu0
    %v4402 = vadd.f32 %v4178, %v4401
    %v4403 = vpop.f32.mrf.mxu0
    %v4404 = vadd.f32 %v4178, %v4403
    %4405 = vmatmul.bf16.gmra.mxu0 %v3958
    %v4406 = vpop.f32.mrf.mxu0
    %v4407 = vadd.f32 %v4178, %v4406
    %v4408 = vpop.f32.mrf.mxu0
    %v4409 = vadd.f32 %v4178, %v4408
    %4410 = vmatmul.bf16.gmra.mxu0 %v3961
    %v4411 = vpop.f32.mrf.mxu0
    %v4412 = vadd.f32 %v4178, %v4411
    %v4413 = vpop.f32.mrf.mxu0
    %v4414 = vadd.f32 %v4178, %v4413
    %4415 = vmatmul.bf16.gmra.mxu0 %v3964
    %v4416 = vpop.f32.mrf.mxu0
    %v4417 = vadd.f32 %v4178, %v4416
    %v4418 = vpop.f32.mrf.mxu0
    %v4419 = vadd.f32 %v4178, %v4418
    %4420 = vmatmul.bf16.gmra.mxu0 %v3967
    %v4421 = vpop.f32.mrf.mxu0
    %v4422 = vadd.f32 %v4178, %v4421
    %v4423 = vpop.f32.mrf.mxu0
    %v4424 = vadd.f32 %v4178, %v4423
    %4425 = vmatmul.bf16.gmra.mxu0 %v3970
    %v4426 = vpop.f32.mrf.mxu0
    %v4427 = vadd.f32 %v4178, %v4426
    %v4428 = vpop.f32.mrf.mxu0
    %v4429 = vadd.f32 %v4178, %v4428
    %4430 = vmatmul.bf16.gmra.mxu0 %v3973
    %v4431 = vpop.f32.mrf.mxu0
    %v4432 = vadd.f32 %v4178, %v4431
    %v4433 = vpop.f32.mrf.mxu0
    %v4434 = vadd.f32 %v4178, %v4433
    %4435 = vmatmul.bf16.gmra.mxu0 %v3976
    %v4436 = vpop.f32.mrf.mxu0
    %v4437 = vadd.f32 %v4178, %v4436
    %v4438 = vpop.f32.mrf.mxu0
    %v4439 = vadd.f32 %v4178, %v4438
    %4440 = vmatmul.bf16.gmra.mxu0 %v3979
    %v4441 = vpop.f32.mrf.mxu0
    %v4442 = vadd.f32 %v4178, %v4441
    %v4443 = vpop.f32.mrf.mxu0
    %v4444 = vadd.f32 %v4178, %v4443
    %4445 = vmatmul.bf16.gmra.mxu0 %v3982
    %v4446 = vpop.f32.mrf.mxu0
    %v4447 = vadd.f32 %v4178, %v4446
    %v4448 = vpop.f32.mrf.mxu0
    %v4449 = vadd.f32 %v4178, %v4448
    %4450 = vdwg.mxu0
    %4451 = vmatpush.bf16.msra.mxu0 %v4323
    %4452 = vmatpush.bf16.msra.mxu0 %v4322
    %4453 = vmatpush.bf16.msra.mxu0 %v4321
    %4454 = vmatpush.bf16.msra.mxu0 %v4320
    %4455 = vmatpush.bf16.msra.mxu0 %v4319
    %4456 = vmatpush.bf16.msra.mxu0 %v4318
    %4457 = vmatpush.bf16.msra.mxu0 %v4317
    %4458 = vmatpush.bf16.msra.mxu0 %v4316
    %4459 = vmatmul.bf16.gmra.mxu0 %v4055
    %v4460 = vpop.f32.mrf.mxu0
    %v4461 = vadd.f32 %v4382, %v4460
    %v4462 = vpop.f32.mrf.mxu0
    %v4463 = vadd.f32 %v4384, %v4462
    %4464 = vmatmul.bf16.gmra.mxu0 %v4058
    %v4465 = vpop.f32.mrf.mxu0
    %v4466 = vadd.f32 %v4387, %v4465
    %v4467 = vpop.f32.mrf.mxu0
    %v4468 = vadd.f32 %v4389, %v4467
    %4469 = vmatmul.bf16.gmra.mxu0 %v4061
    %v4470 = vpop.f32.mrf.mxu0
    %v4471 = vadd.f32 %v4392, %v4470
    %v4472 = vpop.f32.mrf.mxu0
    %v4473 = vadd.f32 %v4394, %v4472
    %4474 = vmatmul.bf16.gmra.mxu0 %v4064
    %v4475 = vpop.f32.mrf.mxu0
    %v4476 = vadd.f32 %v4397, %v4475
    %v4477 = vpop.f32.mrf.mxu0
    %v4478 = vadd.f32 %v4399, %v4477
    %4479 = vmatmul.bf16.gmra.mxu0 %v4067
    %v4480 = vpop.f32.mrf.mxu0
    %v4481 = vadd.f32 %v4402, %v4480
    %v4482 = vpop.f32.mrf.mxu0
    %v4483 = vadd.f32 %v4404, %v4482
    %4484 = vmatmul.bf16.gmra.mxu0 %v4070
    %v4485 = vpop.f32.mrf.mxu0
    %v4486 = vadd.f32 %v4407, %v4485
    %v4487 = vpop.f32.mrf.mxu0
    %v4488 = vadd.f32 %v4409, %v4487
    %4489 = vmatmul.bf16.gmra.mxu0 %v4073
    %v4490 = vpop.f32.mrf.mxu0
    %v4491 = vadd.f32 %v4412, %v4490
    %v4492 = vpop.f32.mrf.mxu0
    %v4493 = vadd.f32 %v4414, %v4492
    %4494 = vmatmul.bf16.gmra.mxu0 %v4076
    %v4495 = vpop.f32.mrf.mxu0
    %v4496 = vadd.f32 %v4417, %v4495
    %v4497 = vpop.f32.mrf.mxu0
    %v4498 = vadd.f32 %v4419, %v4497
    %4499 = vmatmul.bf16.gmra.mxu0 %v4079
    %v4500 = vpop.f32.mrf.mxu0
    %v4501 = vadd.f32 %v4422, %v4500
    %v4502 = vpop.f32.mrf.mxu0
    %v4503 = vadd.f32 %v4424, %v4502
    %4504 = vmatmul.bf16.gmra.mxu0 %v4082
    %v4505 = vpop.f32.mrf.mxu0
    %v4506 = vadd.f32 %v4427, %v4505
    %v4507 = vpop.f32.mrf.mxu0
    %v4508 = vadd.f32 %v4429, %v4507
    %4509 = vmatmul.bf16.gmra.mxu0 %v4085
    %v4510 = vpop.f32.mrf.mxu0
    %v4511 = vadd.f32 %v4432, %v4510
    %v4512 = vpop.f32.mrf.mxu0
    %v4513 = vadd.f32 %v4434, %v4512
    %4514 = vmatmul.bf16.gmra.mxu0 %v4088
    %v4515 = vpop.f32.mrf.mxu0
    %v4516 = vadd.f32 %v4437, %v4515
    %v4517 = vpop.f32.mrf.mxu0
    %v4518 = vadd.f32 %v4439, %v4517
    %4519 = vmatmul.bf16.gmra.mxu0 %v4091
    %v4520 = vpop.f32.mrf.mxu0
    %v4521 = vadd.f32 %v4442, %v4520
    %v4522 = vpop.f32.mrf.mxu0
    %v4523 = vadd.f32 %v4444, %v4522
    %4524 = vmatmul.bf16.gmra.mxu0 %v4094
    %v4525 = vpop.f32.mrf.mxu0
    %v4526 = vadd.f32 %v4447, %v4525
    %v4527 = vpop.f32.mrf.mxu0
    %v4528 = vadd.f32 %v4449, %v4527
    %4529 = vdwg.mxu0
    %4530 = vmatpush.bf16.msra.mxu0 %v4331
    %4531 = vmatpush.bf16.msra.mxu0 %v4330
    %4532 = vmatpush.bf16.msra.mxu0 %v4329
    %4533 = vmatpush.bf16.msra.mxu0 %v4328
    %4534 = vmatpush.bf16.msra.mxu0 %v4327
    %4535 = vmatpush.bf16.msra.mxu0 %v4326
    %4536 = vmatpush.bf16.msra.mxu0 %v4325
    %4537 = vmatpush.bf16.msra.mxu0 %v4324
    %4538 = vmatmul.bf16.gmra.mxu0 %v3946
    %v4539 = vpop.f32.mrf.mxu0
    %v4540 = vadd.f32 %v4461, %v4539
    %v4541 = vpop.f32.mrf.mxu0
    %v4542 = vadd.f32 %v4463, %v4541
    %4543 = vmatmul.bf16.gmra.mxu0 %v3949
    %v4544 = vpop.f32.mrf.mxu0
    %v4545 = vadd.f32 %v4466, %v4544
    %v4546 = vpop.f32.mrf.mxu0
    %v4547 = vadd.f32 %v4468, %v4546
    %4548 = vmatmul.bf16.gmra.mxu0 %v3952
    %v4549 = vpop.f32.mrf.mxu0
    %v4550 = vadd.f32 %v4471, %v4549
    %v4551 = vpop.f32.mrf.mxu0
    %v4552 = vadd.f32 %v4473, %v4551
    %4553 = vmatmul.bf16.gmra.mxu0 %v3955
    %v4554 = vpop.f32.mrf.mxu0
    %v4555 = vadd.f32 %v4476, %v4554
    %v4556 = vpop.f32.mrf.mxu0
    %v4557 = vadd.f32 %v4478, %v4556
    %4558 = vmatmul.bf16.gmra.mxu0 %v3958
    %v4559 = vpop.f32.mrf.mxu0
    %v4560 = vadd.f32 %v4481, %v4559
    %v4561 = vpop.f32.mrf.mxu0
    %v4562 = vadd.f32 %v4483, %v4561
    %4563 = vmatmul.bf16.gmra.mxu0 %v3961
    %v4564 = vpop.f32.mrf.mxu0
    %v4565 = vadd.f32 %v4486, %v4564
    %v4566 = vpop.f32.mrf.mxu0
    %v4567 = vadd.f32 %v4488, %v4566
    %4568 = vmatmul.bf16.gmra.mxu0 %v3964
    %v4569 = vpop.f32.mrf.mxu0
    %v4570 = vadd.f32 %v4491, %v4569
    %v4571 = vpop.f32.mrf.mxu0
    %v4572 = vadd.f32 %v4493, %v4571
    %4573 = vmatmul.bf16.gmra.mxu0 %v3967
    %v4574 = vpop.f32.mrf.mxu0
    %v4575 = vadd.f32 %v4496, %v4574
    %v4576 = vpop.f32.mrf.mxu0
    %v4577 = vadd.f32 %v4498, %v4576
    %4578 = vmatmul.bf16.gmra.mxu0 %v3970
    %v4579 = vpop.f32.mrf.mxu0
    %v4580 = vadd.f32 %v4501, %v4579
    %v4581 = vpop.f32.mrf.mxu0
    %v4582 = vadd.f32 %v4503, %v4581
    %4583 = vmatmul.bf16.gmra.mxu0 %v3973
    %v4584 = vpop.f32.mrf.mxu0
    %v4585 = vadd.f32 %v4506, %v4584
    %v4586 = vpop.f32.mrf.mxu0
    %v4587 = vadd.f32 %v4508, %v4586
    %4588 = vmatmul.bf16.gmra.mxu0 %v3976
    %v4589 = vpop.f32.mrf.mxu0
    %v4590 = vadd.f32 %v4511, %v4589
    %v4591 = vpop.f32.mrf.mxu0
    %v4592 = vadd.f32 %v4513, %v4591
    %4593 = vmatmul.bf16.gmra.mxu0 %v3979
    %v4594 = vpop.f32.mrf.mxu0
    %v4595 = vadd.f32 %v4516, %v4594
    %v4596 = vpop.f32.mrf.mxu0
    %v4597 = vadd.f32 %v4518, %v4596
    %4598 = vmatmul.bf16.gmra.mxu0 %v3982
    %v4599 = vpop.f32.mrf.mxu0
    %v4600 = vadd.f32 %v4521, %v4599
    %v4601 = vpop.f32.mrf.mxu0
    %v4602 = vadd.f32 %v4523, %v4601
    %4603 = vmatmul.bf16.gmra.mxu0 %v4102
    %v4604 = vpop.f32.mrf.mxu0
    %v4605 = vadd.f32 %v4526, %v4604
    %v4606 = vpop.f32.mrf.mxu0
    %v4607 = vadd.f32 %v4528, %v4606
    %4608 = vdwg.mxu0
    %4609 = vmatpush.bf16.msra.mxu0 %v4339
    %4610 = vmatpush.bf16.msra.mxu0 %v4338
    %4611 = vmatpush.bf16.msra.mxu0 %v4337
    %4612 = vmatpush.bf16.msra.mxu0 %v4336
    %4613 = vmatpush.bf16.msra.mxu0 %v4335
    %4614 = vmatpush.bf16.msra.mxu0 %v4334
    %4615 = vmatpush.bf16.msra.mxu0 %v4333
    %4616 = vmatpush.bf16.msra.mxu0 %v4332
    %4617 = vmatmul.bf16.gmra.mxu0 %v4058
    %v4618 = vpop.f32.mrf.mxu0
    %v4619 = vadd.f32 %v4540, %v4618
    %v4620 = vpop.f32.mrf.mxu0
    %v4621 = vadd.f32 %v4542, %v4620
    %4622 = vmatmul.bf16.gmra.mxu0 %v4061
    %v4623 = vpop.f32.mrf.mxu0
    %v4624 = vadd.f32 %v4545, %v4623
    %v4625 = vpop.f32.mrf.mxu0
    %v4626 = vadd.f32 %v4547, %v4625
    %4627 = vmatmul.bf16.gmra.mxu0 %v4064
    %v4628 = vpop.f32.mrf.mxu0
    %v4629 = vadd.f32 %v4550, %v4628
    %v4630 = vpop.f32.mrf.mxu0
    %v4631 = vadd.f32 %v4552, %v4630
    %4632 = vmatmul.bf16.gmra.mxu0 %v4067
    %v4633 = vpop.f32.mrf.mxu0
    %v4634 = vadd.f32 %v4555, %v4633
    %v4635 = vpop.f32.mrf.mxu0
    %v4636 = vadd.f32 %v4557, %v4635
    %4637 = vmatmul.bf16.gmra.mxu0 %v4070
    %v4638 = vpop.f32.mrf.mxu0
    %v4639 = vadd.f32 %v4560, %v4638
    %v4640 = vpop.f32.mrf.mxu0
    %v4641 = vadd.f32 %v4562, %v4640
    %4642 = vmatmul.bf16.gmra.mxu0 %v4073
    %v4643 = vpop.f32.mrf.mxu0
    %v4644 = vadd.f32 %v4565, %v4643
    %v4645 = vpop.f32.mrf.mxu0
    %v4646 = vadd.f32 %v4567, %v4645
    %4647 = vmatmul.bf16.gmra.mxu0 %v4076
    %v4648 = vpop.f32.mrf.mxu0
    %v4649 = vadd.f32 %v4570, %v4648
    %v4650 = vpop.f32.mrf.mxu0
    %v4651 = vadd.f32 %v4572, %v4650
    %4652 = vmatmul.bf16.gmra.mxu0 %v4079
    %v4653 = vpop.f32.mrf.mxu0
    %v4654 = vadd.f32 %v4575, %v4653
    %v4655 = vpop.f32.mrf.mxu0
    %v4656 = vadd.f32 %v4577, %v4655
    %4657 = vmatmul.bf16.gmra.mxu0 %v4082
    %v4658 = vpop.f32.mrf.mxu0
    %v4659 = vadd.f32 %v4580, %v4658
    %v4660 = vpop.f32.mrf.mxu0
    %v4661 = vadd.f32 %v4582, %v4660
    %4662 = vmatmul.bf16.gmra.mxu0 %v4085
    %v4663 = vpop.f32.mrf.mxu0
    %v4664 = vadd.f32 %v4585, %v4663
    %v4665 = vpop.f32.mrf.mxu0
    %v4666 = vadd.f32 %v4587, %v4665
    %4667 = vmatmul.bf16.gmra.mxu0 %v4088
    %v4668 = vpop.f32.mrf.mxu0
    %v4669 = vadd.f32 %v4590, %v4668
    %v4670 = vpop.f32.mrf.mxu0
    %v4671 = vadd.f32 %v4592, %v4670
    %4672 = vmatmul.bf16.gmra.mxu0 %v4091
    %v4673 = vpop.f32.mrf.mxu0
    %v4674 = vadd.f32 %v4595, %v4673
    %v4675 = vpop.f32.mrf.mxu0
    %v4676 = vadd.f32 %v4597, %v4675
    %4677 = vmatmul.bf16.gmra.mxu0 %v4094
    %v4678 = vpop.f32.mrf.mxu0
    %v4679 = vadd.f32 %v4600, %v4678
    %v4680 = vpop.f32.mrf.mxu0
    %v4681 = vadd.f32 %v4602, %v4680
    %4682 = vmatmul.bf16.gmra.mxu0 %v4110
    %v4683 = vpop.f32.mrf.mxu0
    %v4684 = vadd.f32 %v4605, %v4683
    %v4685 = vpop.f32.mrf.mxu0
    %v4686 = vadd.f32 %v4607, %v4685
    %4687 = vdwg.mxu0
    %v4688 = vmax.f32 %v4619, 0.0
    %v4689 = vmax.f32 %v4621, 0.0
    %v4690 = vmax.f32 %v4624, 0.0
    %v4691 = vmax.f32 %v4626, 0.0
    %v4692 = vmax.f32 %v4629, 0.0
    %v4693 = vmax.f32 %v4631, 0.0
    %v4694 = vmax.f32 %v4634, 0.0
    %v4695 = vmax.f32 %v4636, 0.0
    %v4696 = vmax.f32 %v4639, 0.0
    %v4697 = vmax.f32 %v4641, 0.0
    %v4698 = vmax.f32 %v4644, 0.0
    %v4699 = vmax.f32 %v4646, 0.0
    %v4700 = vmax.f32 %v4649, 0.0
    %v4701 = vmax.f32 %v4651, 0.0
    %v4702 = vmax.f32 %v4654, 0.0
    %v4703 = vmax.f32 %v4656, 0.0
    %v4704 = vmax.f32 %v4659, 0.0
    %v4705 = vmax.f32 %v4661, 0.0
    %v4706 = vmax.f32 %v4664, 0.0
    %v4707 = vmax.f32 %v4666, 0.0
    %v4708 = vmax.f32 %v4669, 0.0
    %v4709 = vmax.f32 %v4671, 0.0
    %v4710 = vmax.f32 %v4674, 0.0
    %v4711 = vmax.f32 %v4676, 0.0
    %v4712 = vmax.f32 %v4679, 0.0
    %v4713 = vmax.f32 %v4681, 0.0
    %v4714 = vmax.f32 %v4684, 0.0
    %v4715 = vmax.f32 %v4686, 0.0
    %v4716 = vpack.c.bf16 %v4689, %v4688
    %v4717 = vpack.c.bf16 %v4691, %v4690
    %v4718 = vpack.c.bf16 %v4693, %v4692
    %v4719 = vpack.c.bf16 %v4695, %v4694
    %v4720 = vpack.c.bf16 %v4697, %v4696
    %v4721 = vpack.c.bf16 %v4699, %v4698
    %v4722 = vpack.c.bf16 %v4701, %v4700
    %v4723 = vpack.c.bf16 %v4703, %v4702
    %v4724 = vpack.c.bf16 %v4705, %v4704
    %v4725 = vpack.c.bf16 %v4707, %v4706
    %v4726 = vpack.c.bf16 %v4709, %v4708
    %v4727 = vpack.c.bf16 %v4711, %v4710
    %v4728 = vpack.c.bf16 %v4713, %v4712
    %v4729 = vpack.c.bf16 %v4715, %v4714
    %v4730 = vld [vmem:[%s9] sm:$0xff]
    %v4731 = vld [vmem:[%s9 + $0x8] sm:$0xff]
    %v4732 = vld [vmem:[%s9 + $0x10] sm:$0xff]
    %v4733 = vld [vmem:[%s9 + $0x18] sm:$0xff]
    %v4734 = vld [vmem:[%s9 + $0x20] sm:$0xff]
    %v4735 = vld [vmem:[%s9 + $0x28] sm:$0xff]
    %v4736 = vld [vmem:[%s9 + $0x30] sm:$0xff]
    %v4737 = vld [vmem:[%s9 + $0x38] sm:$0xff]
    %v4738 = vld [vmem:[%s9 + $0x40] sm:$0xff]
    %v4739 = vld [vmem:[%s9 + $0x48] sm:$0xff]
    %v4740 = vld [vmem:[%s9 + $0x50] sm:$0xff]
    %v4741 = vld [vmem:[%s9 + $0x58] sm:$0xff]
    %v4742 = vld [vmem:[%s9 + $0x60] sm:$0xff]
    %v4743 = vld [vmem:[%s9 + $0x68] sm:$0xff]
    %v4744 = vld [vmem:[%s9 + $0x70] sm:$0xff]
    %v4745 = vld [vmem:[%s9 + $0x78] sm:$0xff]
    %v4746 = vld [vmem:[%s9 + $0x80] sm:$0xff]
    %v4747 = vld [vmem:[%s9 + $0x88] sm:$0xff]
    %v4748 = vld [vmem:[%s9 + $0x90] sm:$0xff]
    %v4749 = vld [vmem:[%s9 + $0x98] sm:$0xff]
    %v4750 = vld [vmem:[%s9 + $0xa0] sm:$0xff]
    %v4751 = vld [vmem:[%s9 + $0xa8] sm:$0xff]
    %v4752 = vld [vmem:[%s9 + $0xb0] sm:$0xff]
    %v4753 = vld [vmem:[%s9 + $0xb8] sm:$0xff]
    %v4754 = vld [vmem:[%s9 + $0xc0] sm:$0xff]
    %v4755 = vld [vmem:[%s9 + $0xc8] sm:$0xff]
    %v4756 = vld [vmem:[%s9 + $0xd0] sm:$0xff]
    %v4757 = vld [vmem:[%s9 + $0xd8] sm:$0xff]
    %v4758 = vld [vmem:[%s9 + $0xe0] sm:$0xff]
    %v4759 = vld [vmem:[%s9 + $0xe8] sm:$0xff]
    %v4760 = vld [vmem:[%s9 + $0xf0] sm:$0xff]
    %v4761 = vld [vmem:[%s9 + $0xf8] sm:$0xff]
    %v4762 = vld [vmem:[%s9 + $0x100] sm:$0xff]
    %v4763 = vld [vmem:[%s9 + $0x108] sm:$0xff]
    %v4764 = vld [vmem:[%s9 + $0x110] sm:$0xff]
    %v4765 = vld [vmem:[%s9 + $0x118] sm:$0xff]
    %v4766 = vld [vmem:[%s9 + $0x120] sm:$0xff]
    %v4767 = vld [vmem:[%s9 + $0x128] sm:$0xff]
    %v4768 = vld [vmem:[%s9 + $0x130] sm:$0xff]
    %v4769 = vld [vmem:[%s9 + $0x138] sm:$0xff]
    %v4770 = vld [vmem:[%s9 + $0x140] sm:$0xff]
    %v4771 = vld [vmem:[%s9 + $0x148] sm:$0xff]
    %v4814 = vunpack.c.l.b16 %v4730
    %v4815 = vunpack.c.h.b16 %v4730
    %v4816 = vunpack.c.l.b16 %v4731
    %v4817 = vunpack.c.h.b16 %v4731
    %v4818 = vunpack.c.l.b16 %v4732
    %v4819 = vunpack.c.h.b16 %v4732
    %v4820 = vunpack.c.l.b16 %v4733
    %v4821 = vunpack.c.h.b16 %v4733
    %v4822 = vunpack.c.l.b16 %v4734
    %v4823 = vunpack.c.h.b16 %v4734
    %v4824 = vunpack.c.l.b16 %v4735
    %v4825 = vunpack.c.h.b16 %v4735
    %v4826 = vunpack.c.l.b16 %v4736
    %v4827 = vunpack.c.h.b16 %v4736
    %v4828 = vunpack.c.l.b16 %v4737
    %v4829 = vunpack.c.h.b16 %v4737
    %v4830 = vunpack.c.l.b16 %v4738
    %v4831 = vunpack.c.h.b16 %v4738
    %v4832 = vunpack.c.l.b16 %v4739
    %v4833 = vunpack.c.h.b16 %v4739
    %v4834 = vunpack.c.l.b16 %v4740
    %v4835 = vunpack.c.h.b16 %v4740
    %v4836 = vunpack.c.l.b16 %v4741
    %v4837 = vunpack.c.h.b16 %v4741
    %v4838 = vunpack.c.l.b16 %v4742
    %v4839 = vunpack.c.h.b16 %v4742
    %v4840 = vunpack.c.l.b16 %v4743
    %v4841 = vunpack.c.h.b16 %v4743
    %v4842 = vunpack.c.l.b16 %v4744
    %v4843 = vunpack.c.h.b16 %v4744
    %v4844 = vunpack.c.l.b16 %v4745
    %v4845 = vunpack.c.h.b16 %v4745
    %v4846 = vunpack.c.l.b16 %v4746
    %v4847 = vunpack.c.h.b16 %v4746
    %v4848 = vunpack.c.l.b16 %v4747
    %v4849 = vunpack.c.h.b16 %v4747
    %v4850 = vunpack.c.l.b16 %v4748
    %v4851 = vunpack.c.h.b16 %v4748
    %v4852 = vunpack.c.l.b16 %v4749
    %v4853 = vunpack.c.h.b16 %v4749
    %v4854 = vunpack.c.l.b16 %v4750
    %v4855 = vunpack.c.h.b16 %v4750
    %v4856 = vunpack.c.l.b16 %v4751
    %v4857 = vunpack.c.h.b16 %v4751
    %v4858 = vunpack.c.l.b16 %v4752
    %v4859 = vunpack.c.h.b16 %v4752
    %v4860 = vunpack.c.l.b16 %v4753
    %v4861 = vunpack.c.h.b16 %v4753
    %v4862 = vunpack.c.l.b16 %v4754
    %v4863 = vunpack.c.h.b16 %v4754
    %v4864 = vunpack.c.l.b16 %v4755
    %v4865 = vunpack.c.h.b16 %v4755
    %v4866 = vunpack.c.l.b16 %v4756
    %v4867 = vunpack.c.h.b16 %v4756
    %v4868 = vunpack.c.l.b16 %v4757
    %v4869 = vunpack.c.h.b16 %v4757
    %v4870 = vunpack.c.l.b16 %v4758
    %v4871 = vunpack.c.h.b16 %v4758
    %v4872 = vunpack.c.l.b16 %v4759
    %v4873 = vunpack.c.h.b16 %v4759
    %v4874 = vunpack.c.l.b16 %v4760
    %v4875 = vunpack.c.h.b16 %v4760
    %v4876 = vunpack.c.l.b16 %v4761
    %v4877 = vunpack.c.h.b16 %v4761
    %v4878 = vunpack.c.l.b16 %v4762
    %v4879 = vunpack.c.h.b16 %v4762
    %v4880 = vunpack.c.l.b16 %v4763
    %v4881 = vunpack.c.h.b16 %v4763
    %v4882 = vunpack.c.l.b16 %v4764
    %v4883 = vunpack.c.h.b16 %v4764
    %v4884 = vunpack.c.l.b16 %v4765
    %v4885 = vunpack.c.h.b16 %v4765
    %v4886 = vunpack.c.l.b16 %v4766
    %v4887 = vunpack.c.h.b16 %v4766
    %v4888 = vunpack.c.l.b16 %v4767
    %v4889 = vunpack.c.h.b16 %v4767
    %v4890 = vunpack.c.l.b16 %v4768
    %v4891 = vunpack.c.h.b16 %v4768
    %v4892 = vunpack.c.l.b16 %v4769
    %v4893 = vunpack.c.h.b16 %v4769
    %v4894 = vunpack.c.l.b16 %v4770
    %v4895 = vunpack.c.h.b16 %v4770
    %v4896 = vunpack.c.l.b16 %v4771
    %v4897 = vunpack.c.h.b16 %v4771
    %v4898 = vpack.c.b16 %v4816, %v4814
    %v4899 = vpack.c.b16 %v4817, %v4815
    %v4900 = vpack.c.b16 %v4820, %v4818
    %v4901 = vpack.c.b16 %v4821, %v4819
    %v4902 = vpack.c.b16 %v4824, %v4822
    %v4903 = vpack.c.b16 %v4825, %v4823
    %v4904 = vpack.c.b16 %v4828, %v4826
    %v4905 = vpack.c.b16 %v4829, %v4827
    %v4906 = vpack.c.b16 %v4832, %v4830
    %v4907 = vpack.c.b16 %v4833, %v4831
    %v4908 = vpack.c.b16 %v4836, %v4834
    %v4909 = vpack.c.b16 %v4837, %v4835
    %v4910 = vpack.c.b16 %v4840, %v4838
    %v4911 = vpack.c.b16 %v4841, %v4839
    %v4912 = vpack.c.b16 %v4844, %v4842
    %v4913 = vpack.c.b16 %v4845, %v4843
    %v4914 = vpack.c.b16 %v4848, %v4846
    %v4915 = vpack.c.b16 %v4849, %v4847
    %v4916 = vpack.c.b16 %v4852, %v4850
    %v4917 = vpack.c.b16 %v4853, %v4851
    %v4918 = vpack.c.b16 %v4856, %v4854
    %v4919 = vpack.c.b16 %v4857, %v4855
    %v4920 = vpack.c.b16 %v4860, %v4858
    %v4921 = vpack.c.b16 %v4861, %v4859
    %v4922 = vpack.c.b16 %v4864, %v4862
    %v4923 = vpack.c.b16 %v4865, %v4863
    %v4924 = vpack.c.b16 %v4868, %v4866
    %v4925 = vpack.c.b16 %v4869, %v4867
    %v4926 = vpack.c.b16 %v4872, %v4870
    %v4927 = vpack.c.b16 %v4873, %v4871
    %v4928 = vpack.c.b16 %v4876, %v4874
    %v4929 = vpack.c.b16 %v4877, %v4875
    %v4930 = vpack.c.b16 %v4880, %v4878
    %v4931 = vpack.c.b16 %v4881, %v4879
    %v4932 = vpack.c.b16 %v4884, %v4882
    %v4933 = vpack.c.b16 %v4885, %v4883
    %v4934 = vpack.c.b16 %v4888, %v4886
    %v4935 = vpack.c.b16 %v4889, %v4887
    %v4936 = vpack.c.b16 %v4892, %v4890
    %v4937 = vpack.c.b16 %v4893, %v4891
    %v4938 = vpack.c.b16 %v4896, %v4894
    %v4939 = vpack.c.b16 %v4897, %v4895
    %v4962 = vsel %vm3941, %v4899, 0
    %v4965 = vsel %vm3941, %v4901, 0
    %v4968 = vsel %vm3941, %v4903, 0
    %v4971 = vsel %vm3941, %v4905, 0
    %v4974 = vsel %vm3941, %v4907, 0
    %v4977 = vsel %vm3941, %v4909, 0
    %v4980 = vsel %vm3941, %v4911, 0
    %v4983 = vsel %vm3941, %v4913, 0
    %v4986 = vsel %vm3941, %v4915, 0
    %v4989 = vsel %vm3941, %v4917, 0
    %v4992 = vsel %vm3941, %v4919, 0
    %v4995 = vsel %vm3941, %v4921, 0
    %v4998 = vsel %vm3941, %v4923, 0
    %v5001 = vsel %vm3941, %v4925, 0
    %v5004 = vsel %vm3941, %v4927, 0
    %v5007 = vsel %vm3941, %v4929, 0
    %v5010 = vsel %vm3941, %v4931, 0
    %v5013 = vsel %vm3941, %v4933, 0
    %v5016 = vsel %vm3941, %v4935, 0
    %v5019 = vsel %vm3941, %v4937, 0
    %v5022 = vsel %vm3941, %v4939, 0
    %5024 = vmatpush.bf16.msra.mxu0 %v4723
    %5025 = vmatpush.bf16.msra.mxu0 %v4722
    %5026 = vmatpush.bf16.msra.mxu0 %v4721
    %5027 = vmatpush.bf16.msra.mxu0 %v4720
    %5028 = vmatpush.bf16.msra.mxu0 %v4719
    %5029 = vmatpush.bf16.msra.mxu0 %v4718
    %5030 = vmatpush.bf16.msra.mxu0 %v4717
    %5031 = vmatpush.bf16.msra.mxu0 %v4716
    %5032 = vmatmul.bf16.gmra.mxu0 %v4898
    %v5033 = vpop.f32.mrf.mxu0
    %v5034 = vadd.f32 0.0, %v5033
    %v5035 = vpop.f32.mrf.mxu0
    %v5036 = vadd.f32 0.0, %v5035
    %5037 = vmatmul.bf16.gmra.mxu0 %v4900
    %v5038 = vpop.f32.mrf.mxu0
    %v5039 = vadd.f32 0.0, %v5038
    %v5040 = vpop.f32.mrf.mxu0
    %v5041 = vadd.f32 0.0, %v5040
    %5042 = vmatmul.bf16.gmra.mxu0 %v4902
    %v5043 = vpop.f32.mrf.mxu0
    %v5044 = vadd.f32 0.0, %v5043
    %v5045 = vpop.f32.mrf.mxu0
    %v5046 = vadd.f32 0.0, %v5045
    %5047 = vmatmul.bf16.gmra.mxu0 %v4904
    %v5048 = vpop.f32.mrf.mxu0
    %v5049 = vadd.f32 0.0, %v5048
    %v5050 = vpop.f32.mrf.mxu0
    %v5051 = vadd.f32 0.0, %v5050
    %5052 = vmatmul.bf16.gmra.mxu0 %v4906
    %v5053 = vpop.f32.mrf.mxu0
    %v5054 = vadd.f32 0.0, %v5053
    %v5055 = vpop.f32.mrf.mxu0
    %v5056 = vadd.f32 0.0, %v5055
    %5057 = vmatmul.bf16.gmra.mxu0 %v4908
    %v5058 = vpop.f32.mrf.mxu0
    %v5059 = vadd.f32 0.0, %v5058
    %v5060 = vpop.f32.mrf.mxu0
    %v5061 = vadd.f32 0.0, %v5060
    %5062 = vmatmul.bf16.gmra.mxu0 %v4910
    %v5063 = vpop.f32.mrf.mxu0
    %v5064 = vadd.f32 0.0, %v5063
    %v5065 = vpop.f32.mrf.mxu0
    %v5066 = vadd.f32 0.0, %v5065
    %5067 = vmatmul.bf16.gmra.mxu0 %v4912
    %v5068 = vpop.f32.mrf.mxu0
    %v5069 = vadd.f32 0.0, %v5068
    %v5070 = vpop.f32.mrf.mxu0
    %v5071 = vadd.f32 0.0, %v5070
    %5072 = vmatmul.bf16.gmra.mxu0 %v4914
    %v5073 = vpop.f32.mrf.mxu0
    %v5074 = vadd.f32 0.0, %v5073
    %v5075 = vpop.f32.mrf.mxu0
    %v5076 = vadd.f32 0.0, %v5075
    %5077 = vmatmul.bf16.gmra.mxu0 %v4916
    %v5078 = vpop.f32.mrf.mxu0
    %v5079 = vadd.f32 0.0, %v5078
    %v5080 = vpop.f32.mrf.mxu0
    %v5081 = vadd.f32 0.0, %v5080
    %5082 = vmatmul.bf16.gmra.mxu0 %v4918
    %v5083 = vpop.f32.mrf.mxu0
    %v5084 = vadd.f32 0.0, %v5083
    %v5085 = vpop.f32.mrf.mxu0
    %v5086 = vadd.f32 0.0, %v5085
    %5087 = vmatmul.bf16.gmra.mxu0 %v4920
    %v5088 = vpop.f32.mrf.mxu0
    %v5089 = vadd.f32 0.0, %v5088
    %v5090 = vpop.f32.mrf.mxu0
    %v5091 = vadd.f32 0.0, %v5090
    %5092 = vmatmul.bf16.gmra.mxu0 %v4922
    %v5093 = vpop.f32.mrf.mxu0
    %v5094 = vadd.f32 0.0, %v5093
    %v5095 = vpop.f32.mrf.mxu0
    %v5096 = vadd.f32 0.0, %v5095
    %5097 = vmatmul.bf16.gmra.mxu0 %v4924
    %v5098 = vpop.f32.mrf.mxu0
    %v5099 = vadd.f32 0.0, %v5098
    %v5100 = vpop.f32.mrf.mxu0
    %v5101 = vadd.f32 0.0, %v5100
    %5102 = vmatmul.bf16.gmra.mxu0 %v4926
    %v5103 = vpop.f32.mrf.mxu0
    %v5104 = vadd.f32 0.0, %v5103
    %v5105 = vpop.f32.mrf.mxu0
    %v5106 = vadd.f32 0.0, %v5105
    %5107 = vmatmul.bf16.gmra.mxu0 %v4928
    %v5108 = vpop.f32.mrf.mxu0
    %v5109 = vadd.f32 0.0, %v5108
    %v5110 = vpop.f32.mrf.mxu0
    %v5111 = vadd.f32 0.0, %v5110
    %5112 = vmatmul.bf16.gmra.mxu0 %v4930
    %v5113 = vpop.f32.mrf.mxu0
    %v5114 = vadd.f32 0.0, %v5113
    %v5115 = vpop.f32.mrf.mxu0
    %v5116 = vadd.f32 0.0, %v5115
    %5117 = vmatmul.bf16.gmra.mxu0 %v4932
    %v5118 = vpop.f32.mrf.mxu0
    %v5119 = vadd.f32 0.0, %v5118
    %v5120 = vpop.f32.mrf.mxu0
    %v5121 = vadd.f32 0.0, %v5120
    %5122 = vmatmul.bf16.gmra.mxu0 %v4934
    %v5123 = vpop.f32.mrf.mxu0
    %v5124 = vadd.f32 0.0, %v5123
    %v5125 = vpop.f32.mrf.mxu0
    %v5126 = vadd.f32 0.0, %v5125
    %5127 = vmatmul.bf16.gmra.mxu0 %v4936
    %v5128 = vpop.f32.mrf.mxu0
    %v5129 = vadd.f32 0.0, %v5128
    %v5130 = vpop.f32.mrf.mxu0
    %v5131 = vadd.f32 0.0, %v5130
    %5132 = vmatmul.bf16.gmra.mxu0 %v4938
    %v5133 = vpop.f32.mrf.mxu0
    %v5134 = vadd.f32 0.0, %v5133
    %v5135 = vpop.f32.mrf.mxu0
    %v5136 = vadd.f32 0.0, %v5135
    %5137 = vdwg.mxu0
    %5138 = vmatpush.bf16.msra.mxu0 0
    %5139 = vmatpush.bf16.msra.mxu0 0
    %5140 = vmatpush.bf16.msra.mxu0 %v4729
    %5141 = vmatpush.bf16.msra.mxu0 %v4728
    %5142 = vmatpush.bf16.msra.mxu0 %v4727
    %5143 = vmatpush.bf16.msra.mxu0 %v4726
    %5144 = vmatpush.bf16.msra.mxu0 %v4725
    %5145 = vmatpush.bf16.msra.mxu0 %v4724
    %5146 = vmatmul.bf16.gmra.mxu0 %v4962
    %v5147 = vpop.f32.mrf.mxu0
    %v5148 = vadd.f32 %v5034, %v5147
    %v5149 = vpop.f32.mrf.mxu0
    %v5150 = vadd.f32 %v5036, %v5149
    %5151 = vmatmul.bf16.gmra.mxu0 %v4965
    %v5152 = vpop.f32.mrf.mxu0
    %v5153 = vadd.f32 %v5039, %v5152
    %v5154 = vpop.f32.mrf.mxu0
    %v5155 = vadd.f32 %v5041, %v5154
    %5156 = vmatmul.bf16.gmra.mxu0 %v4968
    %v5157 = vpop.f32.mrf.mxu0
    %v5158 = vadd.f32 %v5044, %v5157
    %v5159 = vpop.f32.mrf.mxu0
    %v5160 = vadd.f32 %v5046, %v5159
    %5161 = vmatmul.bf16.gmra.mxu0 %v4971
    %v5162 = vpop.f32.mrf.mxu0
    %v5163 = vadd.f32 %v5049, %v5162
    %v5164 = vpop.f32.mrf.mxu0
    %v5165 = vadd.f32 %v5051, %v5164
    %5166 = vmatmul.bf16.gmra.mxu0 %v4974
    %v5167 = vpop.f32.mrf.mxu0
    %v5168 = vadd.f32 %v5054, %v5167
    %v5169 = vpop.f32.mrf.mxu0
    %v5170 = vadd.f32 %v5056, %v5169
    %5171 = vmatmul.bf16.gmra.mxu0 %v4977
    %v5172 = vpop.f32.mrf.mxu0
    %v5173 = vadd.f32 %v5059, %v5172
    %v5174 = vpop.f32.mrf.mxu0
    %v5175 = vadd.f32 %v5061, %v5174
    %5176 = vmatmul.bf16.gmra.mxu0 %v4980
    %v5177 = vpop.f32.mrf.mxu0
    %v5178 = vadd.f32 %v5064, %v5177
    %v5179 = vpop.f32.mrf.mxu0
    %v5180 = vadd.f32 %v5066, %v5179
    %5181 = vmatmul.bf16.gmra.mxu0 %v4983
    %v5182 = vpop.f32.mrf.mxu0
    %v5183 = vadd.f32 %v5069, %v5182
    %v5184 = vpop.f32.mrf.mxu0
    %v5185 = vadd.f32 %v5071, %v5184
    %5186 = vmatmul.bf16.gmra.mxu0 %v4986
    %v5187 = vpop.f32.mrf.mxu0
    %v5188 = vadd.f32 %v5074, %v5187
    %v5189 = vpop.f32.mrf.mxu0
    %v5190 = vadd.f32 %v5076, %v5189
    %5191 = vmatmul.bf16.gmra.mxu0 %v4989
    %v5192 = vpop.f32.mrf.mxu0
    %v5193 = vadd.f32 %v5079, %v5192
    %v5194 = vpop.f32.mrf.mxu0
    %v5195 = vadd.f32 %v5081, %v5194
    %5196 = vmatmul.bf16.gmra.mxu0 %v4992
    %v5197 = vpop.f32.mrf.mxu0
    %v5198 = vadd.f32 %v5084, %v5197
    %v5199 = vpop.f32.mrf.mxu0
    %v5200 = vadd.f32 %v5086, %v5199
    %5201 = vmatmul.bf16.gmra.mxu0 %v4995
    %v5202 = vpop.f32.mrf.mxu0
    %v5203 = vadd.f32 %v5089, %v5202
    %v5204 = vpop.f32.mrf.mxu0
    %v5205 = vadd.f32 %v5091, %v5204
    %5206 = vmatmul.bf16.gmra.mxu0 %v4998
    %v5207 = vpop.f32.mrf.mxu0
    %v5208 = vadd.f32 %v5094, %v5207
    %v5209 = vpop.f32.mrf.mxu0
    %v5210 = vadd.f32 %v5096, %v5209
    %5211 = vmatmul.bf16.gmra.mxu0 %v5001
    %v5212 = vpop.f32.mrf.mxu0
    %v5213 = vadd.f32 %v5099, %v5212
    %v5214 = vpop.f32.mrf.mxu0
    %v5215 = vadd.f32 %v5101, %v5214
    %5216 = vmatmul.bf16.gmra.mxu0 %v5004
    %v5217 = vpop.f32.mrf.mxu0
    %v5218 = vadd.f32 %v5104, %v5217
    %v5219 = vpop.f32.mrf.mxu0
    %v5220 = vadd.f32 %v5106, %v5219
    %5221 = vmatmul.bf16.gmra.mxu0 %v5007
    %v5222 = vpop.f32.mrf.mxu0
    %v5223 = vadd.f32 %v5109, %v5222
    %v5224 = vpop.f32.mrf.mxu0
    %v5225 = vadd.f32 %v5111, %v5224
    %5226 = vmatmul.bf16.gmra.mxu0 %v5010
    %v5227 = vpop.f32.mrf.mxu0
    %v5228 = vadd.f32 %v5114, %v5227
    %v5229 = vpop.f32.mrf.mxu0
    %v5230 = vadd.f32 %v5116, %v5229
    %5231 = vmatmul.bf16.gmra.mxu0 %v5013
    %v5232 = vpop.f32.mrf.mxu0
    %v5233 = vadd.f32 %v5119, %v5232
    %v5234 = vpop.f32.mrf.mxu0
    %v5235 = vadd.f32 %v5121, %v5234
    %5236 = vmatmul.bf16.gmra.mxu0 %v5016
    %v5237 = vpop.f32.mrf.mxu0
    %v5238 = vadd.f32 %v5124, %v5237
    %v5239 = vpop.f32.mrf.mxu0
    %v5240 = vadd.f32 %v5126, %v5239
    %5241 = vmatmul.bf16.gmra.mxu0 %v5019
    %v5242 = vpop.f32.mrf.mxu0
    %v5243 = vadd.f32 %v5129, %v5242
    %v5244 = vpop.f32.mrf.mxu0
    %v5245 = vadd.f32 %v5131, %v5244
    %5246 = vmatmul.bf16.gmra.mxu0 %v5022
    %v5247 = vpop.f32.mrf.mxu0
    %v5248 = vadd.f32 %v5134, %v5247
    %v5249 = vpop.f32.mrf.mxu0
    %v5250 = vadd.f32 %v5136, %v5249
    %5251 = vdwg.mxu0
    %v5252 = vpack.c.bf16 %v5148, %v5148
    %v5253 = vpack.c.bf16 %v5150, %v5150
    %v5254 = vpack.c.bf16 %v5153, %v5153
    %v5255 = vpack.c.bf16 %v5155, %v5155
    %v5256 = vpack.c.bf16 %v5158, %v5158
    %v5257 = vpack.c.bf16 %v5160, %v5160
    %v5258 = vpack.c.bf16 %v5163, %v5163
    %v5259 = vpack.c.bf16 %v5165, %v5165
    %v5260 = vpack.c.bf16 %v5168, %v5168
    %v5261 = vpack.c.bf16 %v5170, %v5170
    %v5262 = vpack.c.bf16 %v5173, %v5173
    %v5263 = vpack.c.bf16 %v5175, %v5175
    %v5264 = vpack.c.bf16 %v5178, %v5178
    %v5265 = vpack.c.bf16 %v5180, %v5180
    %v5266 = vpack.c.bf16 %v5183, %v5183
    %v5267 = vpack.c.bf16 %v5185, %v5185
    %v5268 = vpack.c.bf16 %v5188, %v5188
    %v5269 = vpack.c.bf16 %v5190, %v5190
    %v5270 = vpack.c.bf16 %v5193, %v5193
    %v5271 = vpack.c.bf16 %v5195, %v5195
    %v5272 = vpack.c.bf16 %v5198, %v5198
    %v5273 = vpack.c.bf16 %v5200, %v5200
    %v5274 = vpack.c.bf16 %v5203, %v5203
    %v5275 = vpack.c.bf16 %v5205, %v5205
    %v5276 = vpack.c.bf16 %v5208, %v5208
    %v5277 = vpack.c.bf16 %v5210, %v5210
    %v5278 = vpack.c.bf16 %v5213, %v5213
    %v5279 = vpack.c.bf16 %v5215, %v5215
    %v5280 = vpack.c.bf16 %v5218, %v5218
    %v5281 = vpack.c.bf16 %v5220, %v5220
    %v5282 = vpack.c.bf16 %v5223, %v5223
    %v5283 = vpack.c.bf16 %v5225, %v5225
    %v5284 = vpack.c.bf16 %v5228, %v5228
    %v5285 = vpack.c.bf16 %v5230, %v5230
    %v5286 = vpack.c.bf16 %v5233, %v5233
    %v5287 = vpack.c.bf16 %v5235, %v5235
    %v5288 = vpack.c.bf16 %v5238, %v5238
    %v5289 = vpack.c.bf16 %v5240, %v5240
    %v5290 = vpack.c.bf16 %v5243, %v5243
    %v5291 = vpack.c.bf16 %v5245, %v5245
    %v5292 = vpack.c.bf16 %v5248, %v5248
    %v5293 = vpack.c.bf16 %v5250, %v5250
    %v5306 = vrot.slane %v5253, 6
    %v5307 = vrot.slane %v5306, 4
    %v5308 = vrot.slane %v5254, 6
    %v5309 = vsel %vm1534, %v5307, %v5308
    %v5310 = vrot.slane %v5259, 6
    %v5311 = vrot.slane %v5310, 4
    %v5312 = vrot.slane %v5260, 6
    %v5313 = vsel %vm1534, %v5311, %v5312
    %v5314 = vrot.slane %v5265, 6
    %v5315 = vrot.slane %v5314, 4
    %v5316 = vrot.slane %v5266, 6
    %v5317 = vsel %vm1534, %v5315, %v5316
    %v5318 = vrot.slane %v5271, 6
    %v5319 = vrot.slane %v5318, 4
    %v5320 = vrot.slane %v5272, 6
    %v5321 = vsel %vm1534, %v5319, %v5320
    %v5322 = vrot.slane %v5277, 6
    %v5323 = vrot.slane %v5322, 4
    %v5324 = vrot.slane %v5278, 6
    %v5325 = vsel %vm1534, %v5323, %v5324
    %v5326 = vrot.slane %v5283, 6
    %v5327 = vrot.slane %v5326, 4
    %v5328 = vrot.slane %v5284, 6
    %v5329 = vsel %vm1534, %v5327, %v5328
    %v5331 = vshrl.u32 %v5252, 16
    %v5333 = vrot.slane %v5331, 4
    %v5334 = vshll.u32 %v5252, 16
    %v5336 = vrot.slane %v5334, 5
    %v5337 = vor.u32 %v5333, %v5336
    %v5338 = vrot.slane %v5337, 4
    %v5340 = vshll.u32 %v5253, 16
    %v5342 = vrot.slane %v5340, 5
    %v5343 = vsel %vm1635, %v5338, %v5342
    %v5345 = vshrl.u32 %v5258, 16
    %v5347 = vrot.slane %v5345, 4
    %v5348 = vshll.u32 %v5258, 16
    %v5350 = vrot.slane %v5348, 5
    %v5351 = vor.u32 %v5347, %v5350
    %v5352 = vrot.slane %v5351, 4
    %v5354 = vshll.u32 %v5259, 16
    %v5356 = vrot.slane %v5354, 5
    %v5357 = vsel %vm1635, %v5352, %v5356
    %v5359 = vshrl.u32 %v5264, 16
    %v5361 = vrot.slane %v5359, 4
    %v5362 = vshll.u32 %v5264, 16
    %v5364 = vrot.slane %v5362, 5
    %v5365 = vor.u32 %v5361, %v5364
    %v5366 = vrot.slane %v5365, 4
    %v5368 = vshll.u32 %v5265, 16
    %v5370 = vrot.slane %v5368, 5
    %v5371 = vsel %vm1635, %v5366, %v5370
    %v5373 = vshrl.u32 %v5270, 16
    %v5375 = vrot.slane %v5373, 4
    %v5376 = vshll.u32 %v5270, 16
    %v5378 = vrot.slane %v5376, 5
    %v5379 = vor.u32 %v5375, %v5378
    %v5380 = vrot.slane %v5379, 4
    %v5382 = vshll.u32 %v5271, 16
    %v5384 = vrot.slane %v5382, 5
    %v5385 = vsel %vm1635, %v5380, %v5384
    %v5387 = vshrl.u32 %v5276, 16
    %v5389 = vrot.slane %v5387, 4
    %v5390 = vshll.u32 %v5276, 16
    %v5392 = vrot.slane %v5390, 5
    %v5393 = vor.u32 %v5389, %v5392
    %v5394 = vrot.slane %v5393, 4
    %v5396 = vshll.u32 %v5277, 16
    %v5398 = vrot.slane %v5396, 5
    %v5399 = vsel %vm1635, %v5394, %v5398
    %v5401 = vshrl.u32 %v5282, 16
    %v5403 = vrot.slane %v5401, 4
    %v5404 = vshll.u32 %v5282, 16
    %v5406 = vrot.slane %v5404, 5
    %v5407 = vor.u32 %v5403, %v5406
    %v5408 = vrot.slane %v5407, 4
    %v5410 = vshll.u32 %v5283, 16
    %v5412 = vrot.slane %v5410, 5
    %v5413 = vsel %vm1635, %v5408, %v5412
    %v5414 = vshrl.u32 %v5253, 16
    %v5416 = vrot.slane %v5414, 6
    %v5417 = vrot.slane %v5340, 7
    %v5418 = vor.u32 %v5416, %v5417
    %v5419 = vrot.slane %v5418, 4
    %v5421 = vshrl.u32 %v5254, 16
    %v5423 = vrot.slane %v5421, 6
    %v5424 = vshll.u32 %v5254, 16
    %v5426 = vrot.slane %v5424, 7
    %v5427 = vor.u32 %v5423, %v5426
    %v5428 = vsel %vm1974, %v5419, %v5427
    %v5429 = vshrl.u32 %v5259, 16
    %v5431 = vrot.slane %v5429, 6
    %v5432 = vrot.slane %v5354, 7
    %v5433 = vor.u32 %v5431, %v5432
    %v5434 = vrot.slane %v5433, 4
    %v5436 = vshrl.u32 %v5260, 16
    %v5438 = vrot.slane %v5436, 6
    %v5439 = vshll.u32 %v5260, 16
    %v5441 = vrot.slane %v5439, 7
    %v5442 = vor.u32 %v5438, %v5441
    %v5443 = vsel %vm1974, %v5434, %v5442
    %v5444 = vshrl.u32 %v5265, 16
    %v5446 = vrot.slane %v5444, 6
    %v5447 = vrot.slane %v5368, 7
    %v5448 = vor.u32 %v5446, %v5447
    %v5449 = vrot.slane %v5448, 4
    %v5451 = vshrl.u32 %v5266, 16
    %v5453 = vrot.slane %v5451, 6
    %v5454 = vshll.u32 %v5266, 16
    %v5456 = vrot.slane %v5454, 7
    %v5457 = vor.u32 %v5453, %v5456
    %v5458 = vsel %vm1974, %v5449, %v5457
    %v5459 = vshrl.u32 %v5271, 16
    %v5461 = vrot.slane %v5459, 6
    %v5462 = vrot.slane %v5382, 7
    %v5463 = vor.u32 %v5461, %v5462
    %v5464 = vrot.slane %v5463, 4
    %v5466 = vshrl.u32 %v5272, 16
    %v5468 = vrot.slane %v5466, 6
    %v5469 = vshll.u32 %v5272, 16
    %v5471 = vrot.slane %v5469, 7
    %v5472 = vor.u32 %v5468, %v5471
    %v5473 = vsel %vm1974, %v5464, %v5472
    %v5474 = vshrl.u32 %v5277, 16
    %v5476 = vrot.slane %v5474, 6
    %v5477 = vrot.slane %v5396, 7
    %v5478 = vor.u32 %v5476, %v5477
    %v5479 = vrot.slane %v5478, 4
    %v5481 = vshrl.u32 %v5278, 16
    %v5483 = vrot.slane %v5481, 6
    %v5484 = vshll.u32 %v5278, 16
    %v5486 = vrot.slane %v5484, 7
    %v5487 = vor.u32 %v5483, %v5486
    %v5488 = vsel %vm1974, %v5479, %v5487
    %v5489 = vshrl.u32 %v5283, 16
    %v5491 = vrot.slane %v5489, 6
    %v5492 = vrot.slane %v5410, 7
    %v5493 = vor.u32 %v5491, %v5492
    %v5494 = vrot.slane %v5493, 4
    %v5496 = vshrl.u32 %v5284, 16
    %v5498 = vrot.slane %v5496, 6
    %v5499 = vshll.u32 %v5284, 16
    %v5501 = vrot.slane %v5499, 7
    %v5502 = vor.u32 %v5498, %v5501
    %v5503 = vsel %vm1974, %v5494, %v5502
    %v5516 = vrot.slane %v5256, 6
    %v5517 = vrot.slane %v5516, 4
    %v5518 = vrot.slane %v5257, 6
    %v5519 = vsel %vm1534, %v5517, %v5518
    %v5520 = vrot.slane %v5262, 6
    %v5521 = vrot.slane %v5520, 4
    %v5522 = vrot.slane %v5263, 6
    %v5523 = vsel %vm1534, %v5521, %v5522
    %v5524 = vrot.slane %v5268, 6
    %v5525 = vrot.slane %v5524, 4
    %v5526 = vrot.slane %v5269, 6
    %v5527 = vsel %vm1534, %v5525, %v5526
    %v5528 = vrot.slane %v5274, 6
    %v5529 = vrot.slane %v5528, 4
    %v5530 = vrot.slane %v5275, 6
    %v5531 = vsel %vm1534, %v5529, %v5530
    %v5532 = vrot.slane %v5280, 6
    %v5533 = vrot.slane %v5532, 4
    %v5534 = vrot.slane %v5281, 6
    %v5535 = vsel %vm1534, %v5533, %v5534
    %v5536 = vrot.slane %v5286, 6
    %v5537 = vrot.slane %v5536, 4
    %v5538 = vrot.slane %v5287, 6
    %v5539 = vsel %vm1534, %v5537, %v5538
    %v5541 = vshrl.u32 %v5255, 16
    %v5543 = vrot.slane %v5541, 4
    %v5544 = vshll.u32 %v5255, 16
    %v5546 = vrot.slane %v5544, 5
    %v5547 = vor.u32 %v5543, %v5546
    %v5548 = vrot.slane %v5547, 4
    %v5550 = vshll.u32 %v5256, 16
    %v5552 = vrot.slane %v5550, 5
    %v5553 = vsel %vm1635, %v5548, %v5552
    %v5555 = vshrl.u32 %v5261, 16
    %v5557 = vrot.slane %v5555, 4
    %v5558 = vshll.u32 %v5261, 16
    %v5560 = vrot.slane %v5558, 5
    %v5561 = vor.u32 %v5557, %v5560
    %v5562 = vrot.slane %v5561, 4
    %v5564 = vshll.u32 %v5262, 16
    %v5566 = vrot.slane %v5564, 5
    %v5567 = vsel %vm1635, %v5562, %v5566
    %v5569 = vshrl.u32 %v5267, 16
    %v5571 = vrot.slane %v5569, 4
    %v5572 = vshll.u32 %v5267, 16
    %v5574 = vrot.slane %v5572, 5
    %v5575 = vor.u32 %v5571, %v5574
    %v5576 = vrot.slane %v5575, 4
    %v5578 = vshll.u32 %v5268, 16
    %v5580 = vrot.slane %v5578, 5
    %v5581 = vsel %vm1635, %v5576, %v5580
    %v5583 = vshrl.u32 %v5273, 16
    %v5585 = vrot.slane %v5583, 4
    %v5586 = vshll.u32 %v5273, 16
    %v5588 = vrot.slane %v5586, 5
    %v5589 = vor.u32 %v5585, %v5588
    %v5590 = vrot.slane %v5589, 4
    %v5592 = vshll.u32 %v5274, 16
    %v5594 = vrot.slane %v5592, 5
    %v5595 = vsel %vm1635, %v5590, %v5594
    %v5597 = vshrl.u32 %v5279, 16
    %v5599 = vrot.slane %v5597, 4
    %v5600 = vshll.u32 %v5279, 16
    %v5602 = vrot.slane %v5600, 5
    %v5603 = vor.u32 %v5599, %v5602
    %v5604 = vrot.slane %v5603, 4
    %v5606 = vshll.u32 %v5280, 16
    %v5608 = vrot.slane %v5606, 5
    %v5609 = vsel %vm1635, %v5604, %v5608
    %v5611 = vshrl.u32 %v5285, 16
    %v5613 = vrot.slane %v5611, 4
    %v5614 = vshll.u32 %v5285, 16
    %v5616 = vrot.slane %v5614, 5
    %v5617 = vor.u32 %v5613, %v5616
    %v5618 = vrot.slane %v5617, 4
    %v5620 = vshll.u32 %v5286, 16
    %v5622 = vrot.slane %v5620, 5
    %v5623 = vsel %vm1635, %v5618, %v5622
    %v5624 = vshrl.u32 %v5256, 16
    %v5626 = vrot.slane %v5624, 6
    %v5627 = vrot.slane %v5550, 7
    %v5628 = vor.u32 %v5626, %v5627
    %v5629 = vrot.slane %v5628, 4
    %v5631 = vshrl.u32 %v5257, 16
    %v5633 = vrot.slane %v5631, 6
    %v5634 = vshll.u32 %v5257, 16
    %v5636 = vrot.slane %v5634, 7
    %v5637 = vor.u32 %v5633, %v5636
    %v5638 = vsel %vm1974, %v5629, %v5637
    %v5639 = vshrl.u32 %v5262, 16
    %v5641 = vrot.slane %v5639, 6
    %v5642 = vrot.slane %v5564, 7
    %v5643 = vor.u32 %v5641, %v5642
    %v5644 = vrot.slane %v5643, 4
    %v5646 = vshrl.u32 %v5263, 16
    %v5648 = vrot.slane %v5646, 6
    %v5649 = vshll.u32 %v5263, 16
    %v5651 = vrot.slane %v5649, 7
    %v5652 = vor.u32 %v5648, %v5651
    %v5653 = vsel %vm1974, %v5644, %v5652
    %v5654 = vshrl.u32 %v5268, 16
    %v5656 = vrot.slane %v5654, 6
    %v5657 = vrot.slane %v5578, 7
    %v5658 = vor.u32 %v5656, %v5657
    %v5659 = vrot.slane %v5658, 4
    %v5661 = vshrl.u32 %v5269, 16
    %v5663 = vrot.slane %v5661, 6
    %v5664 = vshll.u32 %v5269, 16
    %v5666 = vrot.slane %v5664, 7
    %v5667 = vor.u32 %v5663, %v5666
    %v5668 = vsel %vm1974, %v5659, %v5667
    %v5669 = vshrl.u32 %v5274, 16
    %v5671 = vrot.slane %v5669, 6
    %v5672 = vrot.slane %v5592, 7
    %v5673 = vor.u32 %v5671, %v5672
    %v5674 = vrot.slane %v5673, 4
    %v5676 = vshrl.u32 %v5275, 16
    %v5678 = vrot.slane %v5676, 6
    %v5679 = vshll.u32 %v5275, 16
    %v5681 = vrot.slane %v5679, 7
    %v5682 = vor.u32 %v5678, %v5681
    %v5683 = vsel %vm1974, %v5674, %v5682
    %v5684 = vshrl.u32 %v5280, 16
    %v5686 = vrot.slane %v5684, 6
    %v5687 = vrot.slane %v5606, 7
    %v5688 = vor.u32 %v5686, %v5687
    %v5689 = vrot.slane %v5688, 4
    %v5691 = vshrl.u32 %v5281, 16
    %v5693 = vrot.slane %v5691, 6
    %v5694 = vshll.u32 %v5281, 16
    %v5696 = vrot.slane %v5694, 7
    %v5697 = vor.u32 %v5693, %v5696
    %v5698 = vsel %vm1974, %v5689, %v5697
    %v5699 = vshrl.u32 %v5286, 16
    %v5701 = vrot.slane %v5699, 6
    %v5702 = vrot.slane %v5620, 7
    %v5703 = vor.u32 %v5701, %v5702
    %v5704 = vrot.slane %v5703, 4
    %v5706 = vshrl.u32 %v5287, 16
    %v5708 = vrot.slane %v5706, 6
    %v5709 = vshll.u32 %v5287, 16
    %v5711 = vrot.slane %v5709, 7
    %v5712 = vor.u32 %v5708, %v5711
    %v5713 = vsel %vm1974, %v5704, %v5712
    %v5716 = vrot.slane %v5289, 6
    %v5717 = vrot.slane %v5716, 4
    %v5718 = vrot.slane %v5290, 6
    %v5719 = vsel %vm1534, %v5717, %v5718
    %v5721 = vshrl.u32 %v5288, 16
    %v5723 = vrot.slane %v5721, 4
    %v5724 = vshll.u32 %v5288, 16
    %v5726 = vrot.slane %v5724, 5
    %v5727 = vor.u32 %v5723, %v5726
    %v5728 = vrot.slane %v5727, 4
    %v5730 = vshll.u32 %v5289, 16
    %v5732 = vrot.slane %v5730, 5
    %v5733 = vsel %vm1635, %v5728, %v5732
    %v5734 = vshrl.u32 %v5289, 16
    %v5736 = vrot.slane %v5734, 6
    %v5737 = vrot.slane %v5730, 7
    %v5738 = vor.u32 %v5736, %v5737
    %v5739 = vrot.slane %v5738, 4
    %v5741 = vshrl.u32 %v5290, 16
    %v5743 = vrot.slane %v5741, 6
    %v5744 = vshll.u32 %v5290, 16
    %v5746 = vrot.slane %v5744, 7
    %v5747 = vor.u32 %v5743, %v5746
    %v5748 = vsel %vm1974, %v5739, %v5747
    %v5751 = vrot.slane %v5292, 6
    %v5752 = vrot.slane %v5751, 4
    %v5753 = vrot.slane %v5293, 6
    %v5754 = vsel %vm1534, %v5752, %v5753
    %v5756 = vshrl.u32 %v5291, 16
    %v5758 = vrot.slane %v5756, 4
    %v5759 = vshll.u32 %v5291, 16
    %v5761 = vrot.slane %v5759, 5
    %v5762 = vor.u32 %v5758, %v5761
    %v5763 = vrot.slane %v5762, 4
    %v5765 = vshll.u32 %v5292, 16
    %v5767 = vrot.slane %v5765, 5
    %v5768 = vsel %vm1635, %v5763, %v5767
    %v5769 = vshrl.u32 %v5292, 16
    %v5771 = vrot.slane %v5769, 6
    %v5772 = vrot.slane %v5765, 7
    %v5773 = vor.u32 %v5771, %v5772
    %v5774 = vrot.slane %v5773, 4
    %v5776 = vshrl.u32 %v5293, 16
    %v5778 = vrot.slane %v5776, 6
    %v5779 = vshll.u32 %v5293, 16
    %v5781 = vrot.slane %v5779, 7
    %v5782 = vor.u32 %v5778, %v5781
    %v5783 = vsel %vm1974, %v5774, %v5782
    %v5790 = vunpack.c.l.b16 %v5252
    %v5791 = vunpack.c.l.b16 %v5258
    %v5792 = vunpack.c.l.b16 %v5264
    %v5793 = vunpack.c.l.b16 %v5270
    %v5794 = vunpack.c.l.b16 %v5276
    %v5795 = vunpack.c.l.b16 %v5282
    %v5796 = vpack.c.b16 %v5791, %v5790
    %v5797 = vpack.c.b16 %v5793, %v5792
    %v5798 = vpack.c.b16 %v5795, %v5794
    %v5799 = vunpack.c.l.b16 %v5309
    %v5800 = vunpack.c.l.b16 %v5313
    %v5801 = vunpack.c.l.b16 %v5317
    %v5802 = vunpack.c.l.b16 %v5321
    %v5803 = vunpack.c.l.b16 %v5325
    %v5804 = vunpack.c.l.b16 %v5329
    %v5805 = vpack.c.b16 %v5800, %v5799
    %v5806 = vpack.c.b16 %v5802, %v5801
    %v5807 = vpack.c.b16 %v5804, %v5803
    %5808 = vrot.lane.b32.xlu0 %v5805, 64
    %v5809 = vpop.permute.xlu0 %5808
    %5810 = vrot.lane.b32.xlu0 %v5806, 64
    %v5811 = vpop.permute.xlu0 %5810
    %5812 = vrot.lane.b32.xlu0 %v5807, 64
    %v5813 = vpop.permute.xlu0 %5812
    %v5814 = vunpack.c.l.b16 %v5343
    %v5815 = vunpack.c.l.b16 %v5357
    %v5816 = vunpack.c.l.b16 %v5371
    %v5817 = vunpack.c.l.b16 %v5385
    %v5818 = vunpack.c.l.b16 %v5399
    %v5819 = vunpack.c.l.b16 %v5413
    %v5820 = vpack.c.b16 %v5815, %v5814
    %v5821 = vpack.c.b16 %v5817, %v5816
    %v5822 = vpack.c.b16 %v5819, %v5818
    %v5823 = vunpack.c.l.b16 %v5428
    %v5824 = vunpack.c.l.b16 %v5443
    %v5825 = vunpack.c.l.b16 %v5458
    %v5826 = vunpack.c.l.b16 %v5473
    %v5827 = vunpack.c.l.b16 %v5488
    %v5828 = vunpack.c.l.b16 %v5503
    %v5829 = vpack.c.b16 %v5824, %v5823
    %v5830 = vpack.c.b16 %v5826, %v5825
    %v5831 = vpack.c.b16 %v5828, %v5827
    %5832 = vrot.lane.b32.xlu0 %v5829, 64
    %v5833 = vpop.permute.xlu0 %5832
    %5834 = vrot.lane.b32.xlu0 %v5830, 64
    %v5835 = vpop.permute.xlu0 %5834
    %5836 = vrot.lane.b32.xlu0 %v5831, 64
    %v5837 = vpop.permute.xlu0 %5836
    %v5844 = vunpack.c.l.b16 %v5255
    %v5845 = vunpack.c.l.b16 %v5261
    %v5846 = vunpack.c.l.b16 %v5267
    %v5847 = vunpack.c.l.b16 %v5273
    %v5848 = vunpack.c.l.b16 %v5279
    %v5849 = vunpack.c.l.b16 %v5285
    %v5850 = vpack.c.b16 %v5845, %v5844
    %v5851 = vpack.c.b16 %v5847, %v5846
    %v5852 = vpack.c.b16 %v5849, %v5848
    %v5853 = vunpack.c.l.b16 %v5519
    %v5854 = vunpack.c.l.b16 %v5523
    %v5855 = vunpack.c.l.b16 %v5527
    %v5856 = vunpack.c.l.b16 %v5531
    %v5857 = vunpack.c.l.b16 %v5535
    %v5858 = vunpack.c.l.b16 %v5539
    %v5859 = vpack.c.b16 %v5854, %v5853
    %v5860 = vpack.c.b16 %v5856, %v5855
    %v5861 = vpack.c.b16 %v5858, %v5857
    %5862 = vrot.lane.b32.xlu0 %v5859, 64
    %v5863 = vpop.permute.xlu0 %5862
    %5864 = vrot.lane.b32.xlu0 %v5860, 64
    %v5865 = vpop.permute.xlu0 %5864
    %5866 = vrot.lane.b32.xlu0 %v5861, 64
    %v5867 = vpop.permute.xlu0 %5866
    %v5868 = vunpack.c.l.b16 %v5553
    %v5869 = vunpack.c.l.b16 %v5567
    %v5870 = vunpack.c.l.b16 %v5581
    %v5871 = vunpack.c.l.b16 %v5595
    %v5872 = vunpack.c.l.b16 %v5609
    %v5873 = vunpack.c.l.b16 %v5623
    %v5874 = vpack.c.b16 %v5869, %v5868
    %v5875 = vpack.c.b16 %v5871, %v5870
    %v5876 = vpack.c.b16 %v5873, %v5872
    %v5877 = vunpack.c.l.b16 %v5638
    %v5878 = vunpack.c.l.b16 %v5653
    %v5879 = vunpack.c.l.b16 %v5668
    %v5880 = vunpack.c.l.b16 %v5683
    %v5881 = vunpack.c.l.b16 %v5698
    %v5882 = vunpack.c.l.b16 %v5713
    %v5883 = vpack.c.b16 %v5878, %v5877
    %v5884 = vpack.c.b16 %v5880, %v5879
    %v5885 = vpack.c.b16 %v5882, %v5881
    %5886 = vrot.lane.b32.xlu0 %v5883, 64
    %v5887 = vpop.permute.xlu0 %5886
    %5888 = vrot.lane.b32.xlu0 %v5884, 64
    %v5889 = vpop.permute.xlu0 %5888
    %5890 = vrot.lane.b32.xlu0 %v5885, 64
    %v5891 = vpop.permute.xlu0 %5890
    %v5893 = vunpack.c.l.b16 %v5288
    %v5894 = vpack.c.b16 %v5792, %v5791
    %v5895 = vpack.c.b16 %v5794, %v5793
    %v5896 = vpack.c.b16 %v5893, %v5795
    %v5897 = vunpack.c.l.b16 %v5719
    %v5898 = vpack.c.b16 %v5801, %v5800
    %v5899 = vpack.c.b16 %v5803, %v5802
    %v5900 = vpack.c.b16 %v5897, %v5804
    %5901 = vrot.lane.b32.xlu0 %v5898, 64
    %v5902 = vpop.permute.xlu0 %5901
    %5903 = vrot.lane.b32.xlu0 %v5899, 64
    %v5904 = vpop.permute.xlu0 %5903
    %5905 = vrot.lane.b32.xlu0 %v5900, 64
    %v5906 = vpop.permute.xlu0 %5905
    %v5907 = vunpack.c.l.b16 %v5733
    %v5908 = vpack.c.b16 %v5816, %v5815
    %v5909 = vpack.c.b16 %v5818, %v5817
    %v5910 = vpack.c.b16 %v5907, %v5819
    %v5911 = vunpack.c.l.b16 %v5748
    %v5912 = vpack.c.b16 %v5825, %v5824
    %v5913 = vpack.c.b16 %v5827, %v5826
    %v5914 = vpack.c.b16 %v5911, %v5828
    %5915 = vrot.lane.b32.xlu0 %v5912, 64
    %v5916 = vpop.permute.xlu0 %5915
    %5917 = vrot.lane.b32.xlu0 %v5913, 64
    %v5918 = vpop.permute.xlu0 %5917
    %5919 = vrot.lane.b32.xlu0 %v5914, 64
    %v5920 = vpop.permute.xlu0 %5919
    %v5922 = vunpack.c.l.b16 %v5291
    %v5923 = vpack.c.b16 %v5846, %v5845
    %v5924 = vpack.c.b16 %v5848, %v5847
    %v5925 = vpack.c.b16 %v5922, %v5849
    %v5926 = vunpack.c.l.b16 %v5754
    %v5927 = vpack.c.b16 %v5855, %v5854
    %v5928 = vpack.c.b16 %v5857, %v5856
    %v5929 = vpack.c.b16 %v5926, %v5858
    %5930 = vrot.lane.b32.xlu0 %v5927, 64
    %v5931 = vpop.permute.xlu0 %5930
    %5932 = vrot.lane.b32.xlu0 %v5928, 64
    %v5933 = vpop.permute.xlu0 %5932
    %5934 = vrot.lane.b32.xlu0 %v5929, 64
    %v5935 = vpop.permute.xlu0 %5934
    %v5936 = vunpack.c.l.b16 %v5768
    %v5937 = vpack.c.b16 %v5870, %v5869
    %v5938 = vpack.c.b16 %v5872, %v5871
    %v5939 = vpack.c.b16 %v5936, %v5873
    %v5940 = vunpack.c.l.b16 %v5783
    %v5941 = vpack.c.b16 %v5879, %v5878
    %v5942 = vpack.c.b16 %v5881, %v5880
    %v5943 = vpack.c.b16 %v5940, %v5882
    %5944 = vrot.lane.b32.xlu0 %v5941, 64
    %v5945 = vpop.permute.xlu0 %5944
    %5946 = vrot.lane.b32.xlu0 %v5942, 64
    %v5947 = vpop.permute.xlu0 %5946
    %5948 = vrot.lane.b32.xlu0 %v5943, 64
    %v5949 = vpop.permute.xlu0 %5948
    %v5952 = vsel %vm3912, %v5796, %v5809
    %v5956 = vsel %vm3912, %v5797, %v5811
    %v5960 = vsel %vm3912, %v5798, %v5813
    %v5964 = vsel %vm3912, %v5820, %v5833
    %v5968 = vsel %vm3912, %v5821, %v5835
    %v5972 = vsel %vm3912, %v5822, %v5837
    %v5976 = vsel %vm3912, %v5850, %v5863
    %v5980 = vsel %vm3912, %v5851, %v5865
    %v5984 = vsel %vm3912, %v5852, %v5867
    %v5988 = vsel %vm3912, %v5874, %v5887
    %v5992 = vsel %vm3912, %v5875, %v5889
    %v5996 = vsel %vm3912, %v5876, %v5891
    %v6000 = vsel %vm3912, %v5894, %v5902
    %v6004 = vsel %vm3912, %v5895, %v5904
    %v6008 = vsel %vm3912, %v5896, %v5906
    %v6012 = vsel %vm3912, %v5908, %v5916
    %v6016 = vsel %vm3912, %v5909, %v5918
    %v6020 = vsel %vm3912, %v5910, %v5920
    %v6024 = vsel %vm3912, %v5923, %v5931
    %v6028 = vsel %vm3912, %v5924, %v5933
    %v6032 = vsel %vm3912, %v5925, %v5935
    %v6036 = vsel %vm3912, %v5937, %v5945
    %v6040 = vsel %vm3912, %v5938, %v5947
    %v6044 = vsel %vm3912, %v5939, %v5949
    %v6046 = vld [vmem:[%s5] sm:$0xf]
    %v6047 = vld [vmem:[%s5 + $0x4] sm:$0xf]
    %v6048 = vld [vmem:[%s5 + $0x8] sm:$0xf]
    %v6049 = vld [vmem:[%s5 + $0xc] sm:$0xf]
    %v6050 = vld [vmem:[%s5 + $0x10] sm:$0xf]
    %v6051 = vld [vmem:[%s5 + $0x14] sm:$0xf]
    %v6052 = vld [vmem:[%s5 + $0x18] sm:$0xf]
    %v6053 = vld [vmem:[%s5 + $0x1c] sm:$0xf]
    %v6054 = vld [vmem:[%s5 + $0x20] sm:$0xf]
    %v6055 = vld [vmem:[%s5 + $0x24] sm:$0xf]
    %v6056 = vld [vmem:[%s5 + $0x28] sm:$0xf]
    %v6057 = vld [vmem:[%s5 + $0x2c] sm:$0xf]
    %v6058 = vld [vmem:[%s5 + $0x30] sm:$0xf]
    %v6059 = vld [vmem:[%s5 + $0x34] sm:$0xf]
    %v6060 = vld [vmem:[%s5 + $0x38] sm:$0xf]
    %v6061 = vld [vmem:[%s5 + $0x3c] sm:$0xf]
    %v6062 = vld [vmem:[%s5 + $0x40] sm:$0xf]
    %v6063 = vld [vmem:[%s5 + $0x44] sm:$0xf]
    %v6064 = vld [vmem:[%s5 + $0x48] sm:$0xf]
    %v6065 = vld [vmem:[%s5 + $0x4c] sm:$0xf]
    %v6066 = vld [vmem:[%s5 + $0x50] sm:$0xf]
    %v6067 = vld [vmem:[%s5 + $0x54] sm:$0xf]
    %v6068 = vld [vmem:[%s5 + $0x58] sm:$0xf]
    %v6069 = vld [vmem:[%s5 + $0x5c] sm:$0xf]
    %v6070 = vld [vmem:[%s5 + $0x60] sm:$0xf]
    %v6071 = vld [vmem:[%s5 + $0x64] sm:$0xf]
    %v6072 = vld [vmem:[%s5 + $0x68] sm:$0xf]
    %v6073 = vld [vmem:[%s5 + $0x6c] sm:$0xf]
    %v6074 = vld [vmem:[%s5 + $0x70] sm:$0xf]
    %v6075 = vld [vmem:[%s5 + $0x74] sm:$0xf]
    %v6076 = vld [vmem:[%s5 + $0x78] sm:$0xf]
    %v6077 = vld [vmem:[%s5 + $0x7c] sm:$0xf]
    %v6078 = vld [vmem:[%s5 + $0x80] sm:$0xf]
    %v6079 = vld [vmem:[%s5 + $0x84] sm:$0xf]
    %v6080 = vld [vmem:[%s5 + $0x88] sm:$0xf]
    %v6081 = vld [vmem:[%s5 + $0x8c] sm:$0xf]
    %v6082 = vld [vmem:[%s5 + $0x90] sm:$0xf]
    %v6083 = vld [vmem:[%s5 + $0x94] sm:$0xf]
    %v6084 = vld [vmem:[%s5 + $0x98] sm:$0xf]
    %v6085 = vld [vmem:[%s5 + $0x9c] sm:$0xf]
    %v6086 = vld [vmem:[%s5 + $0xa0] sm:$0xf]
    %v6087 = vld [vmem:[%s5 + $0xa4] sm:$0xf]
    %v6088 = vld [vmem:[%s5 + $0xa8] sm:$0xf]
    %v6089 = vld [vmem:[%s5 + $0xac] sm:$0xf]
    %v6090 = vld [vmem:[%s5 + $0xb0] sm:$0xf]
    %v6091 = vld [vmem:[%s5 + $0xb4] sm:$0xf]
    %v6092 = vld [vmem:[%s5 + $0xb8] sm:$0xf]
    %v6093 = vld [vmem:[%s5 + $0xbc] sm:$0xf]
    %v6094 = vld [vmem:[%s5 + $0xc0] sm:$0xf]
    %v6095 = vld [vmem:[%s5 + $0xc4] sm:$0xf]
    %v6096 = vld [vmem:[%s5 + $0xc8] sm:$0xf]
    %v6097 = vld [vmem:[%s5 + $0xcc] sm:$0xf]
    %v6098 = vld [vmem:[%s5 + $0xd0] sm:$0xf]
    %v6099 = vld [vmem:[%s5 + $0xd4] sm:$0xf]
    %v6100 = vld [vmem:[%s5 + $0xd8] sm:$0xf]
    %v6101 = vld [vmem:[%s5 + $0xdc] sm:$0xf]
    %v6102 = vld [vmem:[%s5 + $0xe0] sm:$0xf]
    %v6103 = vld [vmem:[%s5 + $0xe4] sm:$0xf]
    %v6104 = vld [vmem:[%s5 + $0xe8] sm:$0xf]
    %v6105 = vld [vmem:[%s5 + $0xec] sm:$0xf]
    %v6106 = vld [vmem:[%s5 + $0xf0] sm:$0xf]
    %v6107 = vld [vmem:[%s5 + $0xf4] sm:$0xf]
    %v6108 = vld [vmem:[%s5 + $0xf8] sm:$0xf]
    %v6109 = vld [vmem:[%s5 + $0xfc] sm:$0xf]
    %v6110 = vld [vmem:[%s5 + $0x100] sm:$0xf]
    %v6111 = vld [vmem:[%s5 + $0x104] sm:$0xf]
    %v6112 = vld [vmem:[%s5 + $0x108] sm:$0xf]
    %v6113 = vld [vmem:[%s5 + $0x10c] sm:$0xf]
    %v6114 = vld [vmem:[%s5 + $0x110] sm:$0xf]
    %v6115 = vld [vmem:[%s5 + $0x114] sm:$0xf]
    %v6116 = vld [vmem:[%s5 + $0x118] sm:$0xf]
    %v6117 = vld [vmem:[%s5 + $0x11c] sm:$0xf]
    %v6118 = vld [vmem:[%s5 + $0x120] sm:$0xf]
    %v6119 = vld [vmem:[%s5 + $0x124] sm:$0xf]
    %v6120 = vld [vmem:[%s5 + $0x128] sm:$0xf]
    %v6121 = vld [vmem:[%s5 + $0x12c] sm:$0xf]
    %v6122 = vld [vmem:[%s5 + $0x130] sm:$0xf]
    %v6123 = vld [vmem:[%s5 + $0x134] sm:$0xf]
    %v6124 = vld [vmem:[%s5 + $0x138] sm:$0xf]
    %v6125 = vld [vmem:[%s5 + $0x13c] sm:$0xf]
    %v6126 = vld [vmem:[%s5 + $0x140] sm:$0xf]
    %v6127 = vld [vmem:[%s5 + $0x144] sm:$0xf]
    %v6128 = vld [vmem:[%s5 + $0x148] sm:$0xf]
    %v6129 = vld [vmem:[%s5 + $0x14c] sm:$0xf]
    %v6130 = vld [vmem:[%s5 + $0x150] sm:$0xf]
    %v6131 = vld [vmem:[%s5 + $0x154] sm:$0xf]
    %v6132 = vld [vmem:[%s5 + $0x158] sm:$0xf]
    %v6133 = vld [vmem:[%s5 + $0x15c] sm:$0xf]
    %v6134 = vld [vmem:[%s5 + $0x160] sm:$0xf]
    %v6135 = vld [vmem:[%s5 + $0x164] sm:$0xf]
    %v6136 = vld [vmem:[%s5 + $0x168] sm:$0xf]
    %v6137 = vld [vmem:[%s5 + $0x16c] sm:$0xf]
    %v6138 = vld [vmem:[%s5 + $0x170] sm:$0xf]
    %v6139 = vld [vmem:[%s5 + $0x174] sm:$0xf]
    %v6140 = vld [vmem:[%s5 + $0x178] sm:$0xf]
    %v6141 = vld [vmem:[%s5 + $0x17c] sm:$0xf]
    %v6142 = vld [vmem:[%s5 + $0x180] sm:$0xf]
    %v6143 = vld [vmem:[%s5 + $0x184] sm:$0xf]
    %v6144 = vld [vmem:[%s5 + $0x188] sm:$0xf]
    %v6145 = vld [vmem:[%s5 + $0x18c] sm:$0xf]
    %v6146 = vld [vmem:[%s5 + $0x190] sm:$0xf]
    %v6147 = vld [vmem:[%s5 + $0x194] sm:$0xf]
    %v6148 = vld [vmem:[%s5 + $0x198] sm:$0xf]
    %v6149 = vld [vmem:[%s5 + $0x19c] sm:$0xf]
    %v6150 = vld [vmem:[%s5 + $0x1a0] sm:$0xf]
    %v6151 = vld [vmem:[%s5 + $0x1a4] sm:$0xf]
    %v6152 = vld [vmem:[%s5 + $0x1a8] sm:$0xf]
    %v6153 = vld [vmem:[%s5 + $0x1ac] sm:$0xf]
    %v6154 = vld [vmem:[%s5 + $0x1b0] sm:$0xf]
    %v6155 = vld [vmem:[%s5 + $0x1b4] sm:$0xf]
    %v6156 = vld [vmem:[%s5 + $0x1b8] sm:$0xf]
    %v6157 = vld [vmem:[%s5 + $0x1bc] sm:$0xf]
    %v6158 = vld [vmem:[%s5 + $0x1c0] sm:$0xf]
    %v6159 = vld [vmem:[%s5 + $0x1c4] sm:$0xf]
    %v6160 = vld [vmem:[%s5 + $0x1c8] sm:$0xf]
    %v6161 = vld [vmem:[%s5 + $0x1cc] sm:$0xf]
    %v6162 = vld [vmem:[%s5 + $0x1d0] sm:$0xf]
    %v6163 = vld [vmem:[%s5 + $0x1d4] sm:$0xf]
    %v6164 = vld [vmem:[%s5 + $0x1d8] sm:$0xf]
    %v6165 = vld [vmem:[%s5 + $0x1dc] sm:$0xf]
    %v6166 = vld [vmem:[%s5 + $0x1e0] sm:$0xf]
    %v6167 = vld [vmem:[%s5 + $0x1e4] sm:$0xf]
    %v6168 = vld [vmem:[%s5 + $0x1e8] sm:$0xf]
    %v6169 = vld [vmem:[%s5 + $0x1ec] sm:$0xf]
    %v6170 = vld [vmem:[%s5 + $0x1f0] sm:$0xf]
    %v6171 = vld [vmem:[%s5 + $0x1f4] sm:$0xf]
    %v6172 = vld [vmem:[%s5 + $0x1f8] sm:$0xf]
    %v6173 = vld [vmem:[%s5 + $0x1fc] sm:$0xf]
    %v6174 = vld [vmem:[%s6] sm:$0x1]
    %v6176 = vperm.slane %v6174, 0
    %v6306 = vunpack.c.l.b16 %v6046
    %v6307 = vunpack.c.l.b16 %v6047
    %v6308 = vunpack.c.l.b16 %v6048
    %v6309 = vunpack.c.l.b16 %v6049
    %v6310 = vunpack.c.l.b16 %v6050
    %v6311 = vunpack.c.l.b16 %v6051
    %v6312 = vunpack.c.l.b16 %v6052
    %v6313 = vunpack.c.l.b16 %v6053
    %v6314 = vunpack.c.l.b16 %v6054
    %v6315 = vunpack.c.l.b16 %v6055
    %v6316 = vunpack.c.l.b16 %v6056
    %v6317 = vunpack.c.l.b16 %v6057
    %v6318 = vunpack.c.l.b16 %v6058
    %v6319 = vunpack.c.l.b16 %v6059
    %v6320 = vunpack.c.l.b16 %v6060
    %v6321 = vunpack.c.l.b16 %v6061
    %v6322 = vunpack.c.l.b16 %v6062
    %v6323 = vunpack.c.l.b16 %v6063
    %v6324 = vunpack.c.l.b16 %v6064
    %v6325 = vunpack.c.l.b16 %v6065
    %v6326 = vunpack.c.l.b16 %v6066
    %v6327 = vunpack.c.l.b16 %v6067
    %v6328 = vunpack.c.l.b16 %v6068
    %v6329 = vunpack.c.l.b16 %v6069
    %v6330 = vunpack.c.l.b16 %v6070
    %v6331 = vunpack.c.l.b16 %v6071
    %v6332 = vunpack.c.l.b16 %v6072
    %v6333 = vunpack.c.l.b16 %v6073
    %v6334 = vunpack.c.l.b16 %v6074
    %v6335 = vunpack.c.l.b16 %v6075
    %v6336 = vunpack.c.l.b16 %v6076
    %v6337 = vunpack.c.l.b16 %v6077
    %v6338 = vunpack.c.l.b16 %v6078
    %v6339 = vunpack.c.l.b16 %v6079
    %v6340 = vunpack.c.l.b16 %v6080
    %v6341 = vunpack.c.l.b16 %v6081
    %v6342 = vunpack.c.l.b16 %v6082
    %v6343 = vunpack.c.l.b16 %v6083
    %v6344 = vunpack.c.l.b16 %v6084
    %v6345 = vunpack.c.l.b16 %v6085
    %v6346 = vunpack.c.l.b16 %v6086
    %v6347 = vunpack.c.l.b16 %v6087
    %v6348 = vunpack.c.l.b16 %v6088
    %v6349 = vunpack.c.l.b16 %v6089
    %v6350 = vunpack.c.l.b16 %v6090
    %v6351 = vunpack.c.l.b16 %v6091
    %v6352 = vunpack.c.l.b16 %v6092
    %v6353 = vunpack.c.l.b16 %v6093
    %v6354 = vunpack.c.l.b16 %v6094
    %v6355 = vunpack.c.l.b16 %v6095
    %v6356 = vunpack.c.l.b16 %v6096
    %v6357 = vunpack.c.l.b16 %v6097
    %v6358 = vunpack.c.l.b16 %v6098
    %v6359 = vunpack.c.l.b16 %v6099
    %v6360 = vunpack.c.l.b16 %v6100
    %v6361 = vunpack.c.l.b16 %v6101
    %v6362 = vunpack.c.l.b16 %v6102
    %v6363 = vunpack.c.l.b16 %v6103
    %v6364 = vunpack.c.l.b16 %v6104
    %v6365 = vunpack.c.l.b16 %v6105
    %v6366 = vunpack.c.l.b16 %v6106
    %v6367 = vunpack.c.l.b16 %v6107
    %v6368 = vunpack.c.l.b16 %v6108
    %v6369 = vunpack.c.l.b16 %v6109
    %v6370 = vunpack.c.l.b16 %v6110
    %v6371 = vunpack.c.l.b16 %v6111
    %v6372 = vunpack.c.l.b16 %v6112
    %v6373 = vunpack.c.l.b16 %v6113
    %v6374 = vunpack.c.l.b16 %v6114
    %v6375 = vunpack.c.l.b16 %v6115
    %v6376 = vunpack.c.l.b16 %v6116
    %v6377 = vunpack.c.l.b16 %v6117
    %v6378 = vunpack.c.l.b16 %v6118
    %v6379 = vunpack.c.l.b16 %v6119
    %v6380 = vunpack.c.l.b16 %v6120
    %v6381 = vunpack.c.l.b16 %v6121
    %v6382 = vunpack.c.l.b16 %v6122
    %v6383 = vunpack.c.l.b16 %v6123
    %v6384 = vunpack.c.l.b16 %v6124
    %v6385 = vunpack.c.l.b16 %v6125
    %v6386 = vunpack.c.l.b16 %v6126
    %v6387 = vunpack.c.l.b16 %v6127
    %v6388 = vunpack.c.l.b16 %v6128
    %v6389 = vunpack.c.l.b16 %v6129
    %v6390 = vunpack.c.l.b16 %v6130
    %v6391 = vunpack.c.l.b16 %v6131
    %v6392 = vunpack.c.l.b16 %v6132
    %v6393 = vunpack.c.l.b16 %v6133
    %v6394 = vunpack.c.l.b16 %v6134
    %v6395 = vunpack.c.l.b16 %v6135
    %v6396 = vunpack.c.l.b16 %v6136
    %v6397 = vunpack.c.l.b16 %v6137
    %v6398 = vunpack.c.l.b16 %v6138
    %v6399 = vunpack.c.l.b16 %v6139
    %v6400 = vunpack.c.l.b16 %v6140
    %v6401 = vunpack.c.l.b16 %v6141
    %v6402 = vunpack.c.l.b16 %v6142
    %v6403 = vunpack.c.l.b16 %v6143
    %v6404 = vunpack.c.l.b16 %v6144
    %v6405 = vunpack.c.l.b16 %v6145
    %v6406 = vunpack.c.l.b16 %v6146
    %v6407 = vunpack.c.l.b16 %v6147
    %v6408 = vunpack.c.l.b16 %v6148
    %v6409 = vunpack.c.l.b16 %v6149
    %v6410 = vunpack.c.l.b16 %v6150
    %v6411 = vunpack.c.l.b16 %v6151
    %v6412 = vunpack.c.l.b16 %v6152
    %v6413 = vunpack.c.l.b16 %v6153
    %v6414 = vunpack.c.l.b16 %v6154
    %v6415 = vunpack.c.l.b16 %v6155
    %v6416 = vunpack.c.l.b16 %v6156
    %v6417 = vunpack.c.l.b16 %v6157
    %v6418 = vunpack.c.l.b16 %v6158
    %v6419 = vunpack.c.l.b16 %v6159
    %v6420 = vunpack.c.l.b16 %v6160
    %v6421 = vunpack.c.l.b16 %v6161
    %v6422 = vunpack.c.l.b16 %v6162
    %v6423 = vunpack.c.l.b16 %v6163
    %v6424 = vunpack.c.l.b16 %v6164
    %v6425 = vunpack.c.l.b16 %v6165
    %v6426 = vunpack.c.l.b16 %v6166
    %v6427 = vunpack.c.l.b16 %v6167
    %v6428 = vunpack.c.l.b16 %v6168
    %v6429 = vunpack.c.l.b16 %v6169
    %v6430 = vunpack.c.l.b16 %v6170
    %v6431 = vunpack.c.l.b16 %v6171
    %v6432 = vunpack.c.l.b16 %v6172
    %v6433 = vunpack.c.l.b16 %v6173
    %v6434 = vpack.c.b16 %v6307, %v6306
    %v6435 = vpack.c.b16 %v6309, %v6308
    %v6436 = vpack.c.b16 %v6311, %v6310
    %v6437 = vpack.c.b16 %v6313, %v6312
    %v6438 = vpack.c.b16 %v6315, %v6314
    %v6439 = vpack.c.b16 %v6317, %v6316
    %v6440 = vpack.c.b16 %v6319, %v6318
    %v6441 = vpack.c.b16 %v6321, %v6320
    %v6442 = vpack.c.b16 %v6323, %v6322
    %v6443 = vpack.c.b16 %v6325, %v6324
    %v6444 = vpack.c.b16 %v6327, %v6326
    %v6445 = vpack.c.b16 %v6329, %v6328
    %v6446 = vpack.c.b16 %v6331, %v6330
    %v6447 = vpack.c.b16 %v6333, %v6332
    %v6448 = vpack.c.b16 %v6335, %v6334
    %v6449 = vpack.c.b16 %v6337, %v6336
    %v6450 = vpack.c.b16 %v6339, %v6338
    %v6451 = vpack.c.b16 %v6341, %v6340
    %v6452 = vpack.c.b16 %v6343, %v6342
    %v6453 = vpack.c.b16 %v6345, %v6344
    %v6454 = vpack.c.b16 %v6347, %v6346
    %v6455 = vpack.c.b16 %v6349, %v6348
    %v6456 = vpack.c.b16 %v6351, %v6350
    %v6457 = vpack.c.b16 %v6353, %v6352
    %v6458 = vpack.c.b16 %v6355, %v6354
    %v6459 = vpack.c.b16 %v6357, %v6356
    %v6460 = vpack.c.b16 %v6359, %v6358
    %v6461 = vpack.c.b16 %v6361, %v6360
    %v6462 = vpack.c.b16 %v6363, %v6362
    %v6463 = vpack.c.b16 %v6365, %v6364
    %v6464 = vpack.c.b16 %v6367, %v6366
    %v6465 = vpack.c.b16 %v6369, %v6368
    %v6466 = vpack.c.b16 %v6371, %v6370
    %v6467 = vpack.c.b16 %v6373, %v6372
    %v6468 = vpack.c.b16 %v6375, %v6374
    %v6469 = vpack.c.b16 %v6377, %v6376
    %v6470 = vpack.c.b16 %v6379, %v6378
    %v6471 = vpack.c.b16 %v6381, %v6380
    %v6472 = vpack.c.b16 %v6383, %v6382
    %v6473 = vpack.c.b16 %v6385, %v6384
    %v6474 = vpack.c.b16 %v6387, %v6386
    %v6475 = vpack.c.b16 %v6389, %v6388
    %v6476 = vpack.c.b16 %v6391, %v6390
    %v6477 = vpack.c.b16 %v6393, %v6392
    %v6478 = vpack.c.b16 %v6395, %v6394
    %v6479 = vpack.c.b16 %v6397, %v6396
    %v6480 = vpack.c.b16 %v6399, %v6398
    %v6481 = vpack.c.b16 %v6401, %v6400
    %v6482 = vpack.c.b16 %v6403, %v6402
    %v6483 = vpack.c.b16 %v6405, %v6404
    %v6484 = vpack.c.b16 %v6407, %v6406
    %v6485 = vpack.c.b16 %v6409, %v6408
    %v6486 = vpack.c.b16 %v6411, %v6410
    %v6487 = vpack.c.b16 %v6413, %v6412
    %v6488 = vpack.c.b16 %v6415, %v6414
    %v6489 = vpack.c.b16 %v6417, %v6416
    %v6490 = vpack.c.b16 %v6419, %v6418
    %v6491 = vpack.c.b16 %v6421, %v6420
    %v6492 = vpack.c.b16 %v6423, %v6422
    %v6493 = vpack.c.b16 %v6425, %v6424
    %v6494 = vpack.c.b16 %v6427, %v6426
    %v6495 = vpack.c.b16 %v6429, %v6428
    %v6496 = vpack.c.b16 %v6431, %v6430
    %v6497 = vpack.c.b16 %v6433, %v6432
    %6562 = vmatpush.bf16.msra.mxu0 %v6441
    %6563 = vmatpush.bf16.msra.mxu0 %v6440
    %6564 = vmatpush.bf16.msra.mxu0 %v6439
    %6565 = vmatpush.bf16.msra.mxu0 %v6438
    %6566 = vmatpush.bf16.msra.mxu0 %v6437
    %6567 = vmatpush.bf16.msra.mxu0 %v6436
    %6568 = vmatpush.bf16.msra.mxu0 %v6435
    %6569 = vmatpush.bf16.msra.mxu0 %v6434
    %6570 = vmatmul.bf16.gmra.mxu0 %v5952
    %v6571 = vpop.f32.mrf.mxu0
    %v6572 = vadd.f32 %v6176, %v6571
    %v6573 = vpop.f32.mrf.mxu0
    %v6574 = vadd.f32 %v6176, %v6573
    %6575 = vmatmul.bf16.gmra.mxu0 %v5956
    %v6576 = vpop.f32.mrf.mxu0
    %v6577 = vadd.f32 %v6176, %v6576
    %v6578 = vpop.f32.mrf.mxu0
    %v6579 = vadd.f32 %v6176, %v6578
    %6580 = vmatmul.bf16.gmra.mxu0 %v5960
    %v6581 = vpop.f32.mrf.mxu0
    %v6582 = vadd.f32 %v6176, %v6581
    %v6583 = vpop.f32.mrf.mxu0
    %v6584 = vadd.f32 %v6176, %v6583
    %6585 = vdwg.mxu0
    %6586 = vmatpush.bf16.msra.mxu0 %v6449
    %6587 = vmatpush.bf16.msra.mxu0 %v6448
    %6588 = vmatpush.bf16.msra.mxu0 %v6447
    %6589 = vmatpush.bf16.msra.mxu0 %v6446
    %6590 = vmatpush.bf16.msra.mxu0 %v6445
    %6591 = vmatpush.bf16.msra.mxu0 %v6444
    %6592 = vmatpush.bf16.msra.mxu0 %v6443
    %6593 = vmatpush.bf16.msra.mxu0 %v6442
    %6594 = vmatmul.bf16.gmra.mxu0 %v5964
    %v6595 = vpop.f32.mrf.mxu0
    %v6596 = vadd.f32 %v6572, %v6595
    %v6597 = vpop.f32.mrf.mxu0
    %v6598 = vadd.f32 %v6574, %v6597
    %6599 = vmatmul.bf16.gmra.mxu0 %v5968
    %v6600 = vpop.f32.mrf.mxu0
    %v6601 = vadd.f32 %v6577, %v6600
    %v6602 = vpop.f32.mrf.mxu0
    %v6603 = vadd.f32 %v6579, %v6602
    %6604 = vmatmul.bf16.gmra.mxu0 %v5972
    %v6605 = vpop.f32.mrf.mxu0
    %v6606 = vadd.f32 %v6582, %v6605
    %v6607 = vpop.f32.mrf.mxu0
    %v6608 = vadd.f32 %v6584, %v6607
    %6609 = vdwg.mxu0
    %6610 = vmatpush.bf16.msra.mxu0 %v6457
    %6611 = vmatpush.bf16.msra.mxu0 %v6456
    %6612 = vmatpush.bf16.msra.mxu0 %v6455
    %6613 = vmatpush.bf16.msra.mxu0 %v6454
    %6614 = vmatpush.bf16.msra.mxu0 %v6453
    %6615 = vmatpush.bf16.msra.mxu0 %v6452
    %6616 = vmatpush.bf16.msra.mxu0 %v6451
    %6617 = vmatpush.bf16.msra.mxu0 %v6450
    %6618 = vmatmul.bf16.gmra.mxu0 %v5976
    %v6619 = vpop.f32.mrf.mxu0
    %v6620 = vadd.f32 %v6596, %v6619
    %v6621 = vpop.f32.mrf.mxu0
    %v6622 = vadd.f32 %v6598, %v6621
    %6623 = vmatmul.bf16.gmra.mxu0 %v5980
    %v6624 = vpop.f32.mrf.mxu0
    %v6625 = vadd.f32 %v6601, %v6624
    %v6626 = vpop.f32.mrf.mxu0
    %v6627 = vadd.f32 %v6603, %v6626
    %6628 = vmatmul.bf16.gmra.mxu0 %v5984
    %v6629 = vpop.f32.mrf.mxu0
    %v6630 = vadd.f32 %v6606, %v6629
    %v6631 = vpop.f32.mrf.mxu0
    %v6632 = vadd.f32 %v6608, %v6631
    %6633 = vdwg.mxu0
    %6634 = vmatpush.bf16.msra.mxu0 %v6465
    %6635 = vmatpush.bf16.msra.mxu0 %v6464
    %6636 = vmatpush.bf16.msra.mxu0 %v6463
    %6637 = vmatpush.bf16.msra.mxu0 %v6462
    %6638 = vmatpush.bf16.msra.mxu0 %v6461
    %6639 = vmatpush.bf16.msra.mxu0 %v6460
    %6640 = vmatpush.bf16.msra.mxu0 %v6459
    %6641 = vmatpush.bf16.msra.mxu0 %v6458
    %6642 = vmatmul.bf16.gmra.mxu0 %v5988
    %v6643 = vpop.f32.mrf.mxu0
    %v6644 = vadd.f32 %v6620, %v6643
    %v6645 = vpop.f32.mrf.mxu0
    %v6646 = vadd.f32 %v6622, %v6645
    %6647 = vmatmul.bf16.gmra.mxu0 %v5992
    %v6648 = vpop.f32.mrf.mxu0
    %v6649 = vadd.f32 %v6625, %v6648
    %v6650 = vpop.f32.mrf.mxu0
    %v6651 = vadd.f32 %v6627, %v6650
    %6652 = vmatmul.bf16.gmra.mxu0 %v5996
    %v6653 = vpop.f32.mrf.mxu0
    %v6654 = vadd.f32 %v6630, %v6653
    %v6655 = vpop.f32.mrf.mxu0
    %v6656 = vadd.f32 %v6632, %v6655
    %6657 = vdwg.mxu0
    %6658 = vmatpush.bf16.msra.mxu0 %v6473
    %6659 = vmatpush.bf16.msra.mxu0 %v6472
    %6660 = vmatpush.bf16.msra.mxu0 %v6471
    %6661 = vmatpush.bf16.msra.mxu0 %v6470
    %6662 = vmatpush.bf16.msra.mxu0 %v6469
    %6663 = vmatpush.bf16.msra.mxu0 %v6468
    %6664 = vmatpush.bf16.msra.mxu0 %v6467
    %6665 = vmatpush.bf16.msra.mxu0 %v6466
    %6666 = vmatmul.bf16.gmra.mxu0 %v6000
    %v6667 = vpop.f32.mrf.mxu0
    %v6668 = vadd.f32 %v6644, %v6667
    %v6669 = vpop.f32.mrf.mxu0
    %v6670 = vadd.f32 %v6646, %v6669
    %6671 = vmatmul.bf16.gmra.mxu0 %v6004
    %v6672 = vpop.f32.mrf.mxu0
    %v6673 = vadd.f32 %v6649, %v6672
    %v6674 = vpop.f32.mrf.mxu0
    %v6675 = vadd.f32 %v6651, %v6674
    %6676 = vmatmul.bf16.gmra.mxu0 %v6008
    %v6677 = vpop.f32.mrf.mxu0
    %v6678 = vadd.f32 %v6654, %v6677
    %v6679 = vpop.f32.mrf.mxu0
    %v6680 = vadd.f32 %v6656, %v6679
    %6681 = vdwg.mxu0
    %6682 = vmatpush.bf16.msra.mxu0 %v6481
    %6683 = vmatpush.bf16.msra.mxu0 %v6480
    %6684 = vmatpush.bf16.msra.mxu0 %v6479
    %6685 = vmatpush.bf16.msra.mxu0 %v6478
    %6686 = vmatpush.bf16.msra.mxu0 %v6477
    %6687 = vmatpush.bf16.msra.mxu0 %v6476
    %6688 = vmatpush.bf16.msra.mxu0 %v6475
    %6689 = vmatpush.bf16.msra.mxu0 %v6474
    %6690 = vmatmul.bf16.gmra.mxu0 %v6012
    %v6691 = vpop.f32.mrf.mxu0
    %v6692 = vadd.f32 %v6668, %v6691
    %v6693 = vpop.f32.mrf.mxu0
    %v6694 = vadd.f32 %v6670, %v6693
    %6695 = vmatmul.bf16.gmra.mxu0 %v6016
    %v6696 = vpop.f32.mrf.mxu0
    %v6697 = vadd.f32 %v6673, %v6696
    %v6698 = vpop.f32.mrf.mxu0
    %v6699 = vadd.f32 %v6675, %v6698
    %6700 = vmatmul.bf16.gmra.mxu0 %v6020
    %v6701 = vpop.f32.mrf.mxu0
    %v6702 = vadd.f32 %v6678, %v6701
    %v6703 = vpop.f32.mrf.mxu0
    %v6704 = vadd.f32 %v6680, %v6703
    %6705 = vdwg.mxu0
    %6706 = vmatpush.bf16.msra.mxu0 %v6489
    %6707 = vmatpush.bf16.msra.mxu0 %v6488
    %6708 = vmatpush.bf16.msra.mxu0 %v6487
    %6709 = vmatpush.bf16.msra.mxu0 %v6486
    %6710 = vmatpush.bf16.msra.mxu0 %v6485
    %6711 = vmatpush.bf16.msra.mxu0 %v6484
    %6712 = vmatpush.bf16.msra.mxu0 %v6483
    %6713 = vmatpush.bf16.msra.mxu0 %v6482
    %6714 = vmatmul.bf16.gmra.mxu0 %v6024
    %v6715 = vpop.f32.mrf.mxu0
    %v6716 = vadd.f32 %v6692, %v6715
    %v6717 = vpop.f32.mrf.mxu0
    %v6718 = vadd.f32 %v6694, %v6717
    %6719 = vmatmul.bf16.gmra.mxu0 %v6028
    %v6720 = vpop.f32.mrf.mxu0
    %v6721 = vadd.f32 %v6697, %v6720
    %v6722 = vpop.f32.mrf.mxu0
    %v6723 = vadd.f32 %v6699, %v6722
    %6724 = vmatmul.bf16.gmra.mxu0 %v6032
    %v6725 = vpop.f32.mrf.mxu0
    %v6726 = vadd.f32 %v6702, %v6725
    %v6727 = vpop.f32.mrf.mxu0
    %v6728 = vadd.f32 %v6704, %v6727
    %6729 = vdwg.mxu0
    %6730 = vmatpush.bf16.msra.mxu0 %v6497
    %6731 = vmatpush.bf16.msra.mxu0 %v6496
    %6732 = vmatpush.bf16.msra.mxu0 %v6495
    %6733 = vmatpush.bf16.msra.mxu0 %v6494
    %6734 = vmatpush.bf16.msra.mxu0 %v6493
    %6735 = vmatpush.bf16.msra.mxu0 %v6492
    %6736 = vmatpush.bf16.msra.mxu0 %v6491
    %6737 = vmatpush.bf16.msra.mxu0 %v6490
    %6738 = vmatmul.bf16.gmra.mxu0 %v6036
    %v6739 = vpop.f32.mrf.mxu0
    %v6740 = vadd.f32 %v6716, %v6739
    %v6741 = vpop.f32.mrf.mxu0
    %v6742 = vadd.f32 %v6718, %v6741
    %6743 = vmatmul.bf16.gmra.mxu0 %v6040
    %v6744 = vpop.f32.mrf.mxu0
    %v6745 = vadd.f32 %v6721, %v6744
    %v6746 = vpop.f32.mrf.mxu0
    %v6747 = vadd.f32 %v6723, %v6746
    %6748 = vmatmul.bf16.gmra.mxu0 %v6044
    %v6749 = vpop.f32.mrf.mxu0
    %v6750 = vadd.f32 %v6726, %v6749
    %v6751 = vpop.f32.mrf.mxu0
    %v6752 = vadd.f32 %v6728, %v6751
    %6753 = vdwg.mxu0
    %v6754 = vmax.f32 %v6740, 0.0
    %v6755 = vmax.f32 %v6742, 0.0
    %v6756 = vmax.f32 %v6745, 0.0
    %v6757 = vmax.f32 %v6747, 0.0
    %v6758 = vmax.f32 %v6750, 0.0
    %v6759 = vmax.f32 %v6752, 0.0
    %v6760 = vpack.c.bf16 %v6755, %v6754
    %v6761 = vpack.c.bf16 %v6757, %v6756
    %v6762 = vpack.c.bf16 %v6759, %v6758
    %v6763 = vld [vmem:[%s10] sm:$0xf]
    %v6764 = vld [vmem:[%s10 + $0x4] sm:$0xf]
    %v6765 = vld [vmem:[%s10 + $0x8] sm:$0xf]
    %v6766 = vld [vmem:[%s10 + $0xc] sm:$0xf]
    %v6767 = vld [vmem:[%s10 + $0x10] sm:$0xf]
    %v6768 = vld [vmem:[%s10 + $0x14] sm:$0xf]
    %v6769 = vld [vmem:[%s10 + $0x18] sm:$0xf]
    %v6770 = vld [vmem:[%s10 + $0x1c] sm:$0xf]
    %v6771 = vld [vmem:[%s10 + $0x20] sm:$0xf]
    %v6772 = vld [vmem:[%s10 + $0x24] sm:$0xf]
    %v6773 = vld [vmem:[%s10 + $0x28] sm:$0xf]
    %v6774 = vld [vmem:[%s10 + $0x2c] sm:$0xf]
    %v6775 = vld [vmem:[%s10 + $0x30] sm:$0xf]
    %v6776 = vld [vmem:[%s10 + $0x34] sm:$0xf]
    %v6777 = vld [vmem:[%s10 + $0x38] sm:$0xf]
    %v6778 = vld [vmem:[%s10 + $0x3c] sm:$0xf]
    %v6779 = vld [vmem:[%s10 + $0x40] sm:$0xf]
    %v6780 = vld [vmem:[%s10 + $0x44] sm:$0xf]
    %v6799 = vunpack.c.l.b16 %v6763
    %v6800 = vunpack.c.l.b16 %v6764
    %v6801 = vunpack.c.l.b16 %v6765
    %v6802 = vunpack.c.l.b16 %v6766
    %v6803 = vunpack.c.l.b16 %v6767
    %v6804 = vunpack.c.l.b16 %v6768
    %v6805 = vunpack.c.l.b16 %v6769
    %v6806 = vunpack.c.l.b16 %v6770
    %v6807 = vunpack.c.l.b16 %v6771
    %v6808 = vunpack.c.l.b16 %v6772
    %v6809 = vunpack.c.l.b16 %v6773
    %v6810 = vunpack.c.l.b16 %v6774
    %v6811 = vunpack.c.l.b16 %v6775
    %v6812 = vunpack.c.l.b16 %v6776
    %v6813 = vunpack.c.l.b16 %v6777
    %v6814 = vunpack.c.l.b16 %v6778
    %v6815 = vunpack.c.l.b16 %v6779
    %v6816 = vunpack.c.l.b16 %v6780
    %v6817 = vpack.c.b16 %v6800, %v6799
    %v6818 = vpack.c.b16 %v6802, %v6801
    %v6819 = vpack.c.b16 %v6804, %v6803
    %v6820 = vpack.c.b16 %v6806, %v6805
    %v6821 = vpack.c.b16 %v6808, %v6807
    %v6822 = vpack.c.b16 %v6810, %v6809
    %v6823 = vpack.c.b16 %v6812, %v6811
    %v6824 = vpack.c.b16 %v6814, %v6813
    %v6825 = vpack.c.b16 %v6816, %v6815
    %vm6826 = vcmask 392192
    %v6828 = vsel %vm6826, %v6817, 0
    %v6831 = vsel %vm6826, %v6818, 0
    %v6834 = vsel %vm6826, %v6819, 0
    %v6837 = vsel %vm6826, %v6820, 0
    %v6840 = vsel %vm6826, %v6821, 0
    %v6843 = vsel %vm6826, %v6822, 0
    %v6846 = vsel %vm6826, %v6823, 0
    %v6849 = vsel %vm6826, %v6824, 0
    %v6852 = vsel %vm6826, %v6825, 0
    %6854 = vmatpush.bf16.msra.mxu0 0
    %6855 = vmatpush.bf16.msra.mxu0 0
    %6856 = vmatpush.bf16.msra.mxu0 0
    %6857 = vmatpush.bf16.msra.mxu0 0
    %6858 = vmatpush.bf16.msra.mxu0 0
    %6859 = vmatpush.bf16.msra.mxu0 %v6762
    %6860 = vmatpush.bf16.msra.mxu0 %v6761
    %6861 = vmatpush.bf16.msra.mxu0 %v6760
    %6862 = vmatmul.bf16.gmra.mxu0 %v6828
    %v6863 = vpop.f32.mrf.mxu0
    %v6864 = vadd.f32 0.0, %v6863
    %v6865 = vpop.f32.mrf.mxu0
    %v6866 = vadd.f32 0.0, %v6865
    %6867 = vmatmul.bf16.gmra.mxu0 %v6831
    %v6868 = vpop.f32.mrf.mxu0
    %v6869 = vadd.f32 0.0, %v6868
    %v6870 = vpop.f32.mrf.mxu0
    %v6871 = vadd.f32 0.0, %v6870
    %6872 = vmatmul.bf16.gmra.mxu0 %v6834
    %v6873 = vpop.f32.mrf.mxu0
    %v6874 = vadd.f32 0.0, %v6873
    %v6875 = vpop.f32.mrf.mxu0
    %v6876 = vadd.f32 0.0, %v6875
    %6877 = vmatmul.bf16.gmra.mxu0 %v6837
    %v6878 = vpop.f32.mrf.mxu0
    %v6879 = vadd.f32 0.0, %v6878
    %v6880 = vpop.f32.mrf.mxu0
    %v6881 = vadd.f32 0.0, %v6880
    %6882 = vmatmul.bf16.gmra.mxu0 %v6840
    %v6883 = vpop.f32.mrf.mxu0
    %v6884 = vadd.f32 0.0, %v6883
    %v6885 = vpop.f32.mrf.mxu0
    %v6886 = vadd.f32 0.0, %v6885
    %6887 = vmatmul.bf16.gmra.mxu0 %v6843
    %v6888 = vpop.f32.mrf.mxu0
    %v6889 = vadd.f32 0.0, %v6888
    %v6890 = vpop.f32.mrf.mxu0
    %v6891 = vadd.f32 0.0, %v6890
    %6892 = vmatmul.bf16.gmra.mxu0 %v6846
    %v6893 = vpop.f32.mrf.mxu0
    %v6894 = vadd.f32 0.0, %v6893
    %v6895 = vpop.f32.mrf.mxu0
    %v6896 = vadd.f32 0.0, %v6895
    %6897 = vmatmul.bf16.gmra.mxu0 %v6849
    %v6898 = vpop.f32.mrf.mxu0
    %v6899 = vadd.f32 0.0, %v6898
    %v6900 = vpop.f32.mrf.mxu0
    %v6901 = vadd.f32 0.0, %v6900
    %6902 = vmatmul.bf16.gmra.mxu0 %v6852
    %v6903 = vpop.f32.mrf.mxu0
    %v6904 = vadd.f32 0.0, %v6903
    %v6905 = vpop.f32.mrf.mxu0
    %v6906 = vadd.f32 0.0, %v6905
    %6907 = vdwg.mxu0
    %v6908 = vpack.c.bf16 %v6864, %v6864
    %v6909 = vpack.c.bf16 %v6866, %v6866
    %v6910 = vpack.c.bf16 %v6869, %v6869
    %v6911 = vpack.c.bf16 %v6871, %v6871
    %v6912 = vpack.c.bf16 %v6874, %v6874
    %v6913 = vpack.c.bf16 %v6876, %v6876
    %v6914 = vpack.c.bf16 %v6879, %v6879
    %v6915 = vpack.c.bf16 %v6881, %v6881
    %v6916 = vpack.c.bf16 %v6884, %v6884
    %v6917 = vpack.c.bf16 %v6886, %v6886
    %v6918 = vpack.c.bf16 %v6889, %v6889
    %v6919 = vpack.c.bf16 %v6891, %v6891
    %v6920 = vpack.c.bf16 %v6894, %v6894
    %v6921 = vpack.c.bf16 %v6896, %v6896
    %v6922 = vpack.c.bf16 %v6899, %v6899
    %v6923 = vpack.c.bf16 %v6901, %v6901
    %v6924 = vpack.c.bf16 %v6904, %v6904
    %v6925 = vpack.c.bf16 %v6906, %v6906
    %v6930 = vrot.slane %v6909, 6
    %v6931 = vrot.slane %v6930, 4
    %v6932 = vrot.slane %v6910, 6
    %v6933 = vsel %vm1534, %v6931, %v6932
    %v6934 = vrot.slane %v6915, 6
    %v6935 = vrot.slane %v6934, 4
    %v6936 = vrot.slane %v6916, 6
    %v6937 = vsel %vm1534, %v6935, %v6936
    %v6939 = vshrl.u32 %v6908, 16
    %v6941 = vrot.slane %v6939, 4
    %v6942 = vshll.u32 %v6908, 16
    %v6944 = vrot.slane %v6942, 5
    %v6945 = vor.u32 %v6941, %v6944
    %v6946 = vrot.slane %v6945, 4
    %v6948 = vshll.u32 %v6909, 16
    %v6950 = vrot.slane %v6948, 5
    %v6951 = vsel %vm1635, %v6946, %v6950
    %v6953 = vshrl.u32 %v6914, 16
    %v6955 = vrot.slane %v6953, 4
    %v6956 = vshll.u32 %v6914, 16
    %v6958 = vrot.slane %v6956, 5
    %v6959 = vor.u32 %v6955, %v6958
    %v6960 = vrot.slane %v6959, 4
    %v6962 = vshll.u32 %v6915, 16
    %v6964 = vrot.slane %v6962, 5
    %v6965 = vsel %vm1635, %v6960, %v6964
    %v6966 = vshrl.u32 %v6909, 16
    %v6968 = vrot.slane %v6966, 6
    %v6969 = vrot.slane %v6948, 7
    %v6970 = vor.u32 %v6968, %v6969
    %v6971 = vrot.slane %v6970, 4
    %v6973 = vshrl.u32 %v6910, 16
    %v6975 = vrot.slane %v6973, 6
    %v6976 = vshll.u32 %v6910, 16
    %v6978 = vrot.slane %v6976, 7
    %v6979 = vor.u32 %v6975, %v6978
    %v6980 = vsel %vm1974, %v6971, %v6979
    %v6981 = vshrl.u32 %v6915, 16
    %v6983 = vrot.slane %v6981, 6
    %v6984 = vrot.slane %v6962, 7
    %v6985 = vor.u32 %v6983, %v6984
    %v6986 = vrot.slane %v6985, 4
    %v6988 = vshrl.u32 %v6916, 16
    %v6990 = vrot.slane %v6988, 6
    %v6991 = vshll.u32 %v6916, 16
    %v6993 = vrot.slane %v6991, 7
    %v6994 = vor.u32 %v6990, %v6993
    %v6995 = vsel %vm1974, %v6986, %v6994
    %v7000 = vrot.slane %v6912, 6
    %v7001 = vrot.slane %v7000, 4
    %v7002 = vrot.slane %v6913, 6
    %v7003 = vsel %vm1534, %v7001, %v7002
    %v7004 = vrot.slane %v6918, 6
    %v7005 = vrot.slane %v7004, 4
    %v7006 = vrot.slane %v6919, 6
    %v7007 = vsel %vm1534, %v7005, %v7006
    %v7009 = vshrl.u32 %v6911, 16
    %v7011 = vrot.slane %v7009, 4
    %v7012 = vshll.u32 %v6911, 16
    %v7014 = vrot.slane %v7012, 5
    %v7015 = vor.u32 %v7011, %v7014
    %v7016 = vrot.slane %v7015, 4
    %v7018 = vshll.u32 %v6912, 16
    %v7020 = vrot.slane %v7018, 5
    %v7021 = vsel %vm1635, %v7016, %v7020
    %v7023 = vshrl.u32 %v6917, 16
    %v7025 = vrot.slane %v7023, 4
    %v7026 = vshll.u32 %v6917, 16
    %v7028 = vrot.slane %v7026, 5
    %v7029 = vor.u32 %v7025, %v7028
    %v7030 = vrot.slane %v7029, 4
    %v7032 = vshll.u32 %v6918, 16
    %v7034 = vrot.slane %v7032, 5
    %v7035 = vsel %vm1635, %v7030, %v7034
    %v7036 = vshrl.u32 %v6912, 16
    %v7038 = vrot.slane %v7036, 6
    %v7039 = vrot.slane %v7018, 7
    %v7040 = vor.u32 %v7038, %v7039
    %v7041 = vrot.slane %v7040, 4
    %v7043 = vshrl.u32 %v6913, 16
    %v7045 = vrot.slane %v7043, 6
    %v7046 = vshll.u32 %v6913, 16
    %v7048 = vrot.slane %v7046, 7
    %v7049 = vor.u32 %v7045, %v7048
    %v7050 = vsel %vm1974, %v7041, %v7049
    %v7051 = vshrl.u32 %v6918, 16
    %v7053 = vrot.slane %v7051, 6
    %v7054 = vrot.slane %v7032, 7
    %v7055 = vor.u32 %v7053, %v7054
    %v7056 = vrot.slane %v7055, 4
    %v7058 = vshrl.u32 %v6919, 16
    %v7060 = vrot.slane %v7058, 6
    %v7061 = vshll.u32 %v6919, 16
    %v7063 = vrot.slane %v7061, 7
    %v7064 = vor.u32 %v7060, %v7063
    %v7065 = vsel %vm1974, %v7056, %v7064
    %v7068 = vrot.slane %v6921, 6
    %v7069 = vrot.slane %v7068, 4
    %v7070 = vrot.slane %v6922, 6
    %v7071 = vsel %vm1534, %v7069, %v7070
    %v7073 = vshrl.u32 %v6920, 16
    %v7075 = vrot.slane %v7073, 4
    %v7076 = vshll.u32 %v6920, 16
    %v7078 = vrot.slane %v7076, 5
    %v7079 = vor.u32 %v7075, %v7078
    %v7080 = vrot.slane %v7079, 4
    %v7082 = vshll.u32 %v6921, 16
    %v7084 = vrot.slane %v7082, 5
    %v7085 = vsel %vm1635, %v7080, %v7084
    %v7086 = vshrl.u32 %v6921, 16
    %v7088 = vrot.slane %v7086, 6
    %v7089 = vrot.slane %v7082, 7
    %v7090 = vor.u32 %v7088, %v7089
    %v7091 = vrot.slane %v7090, 4
    %v7093 = vshrl.u32 %v6922, 16
    %v7095 = vrot.slane %v7093, 6
    %v7096 = vshll.u32 %v6922, 16
    %v7098 = vrot.slane %v7096, 7
    %v7099 = vor.u32 %v7095, %v7098
    %v7100 = vsel %vm1974, %v7091, %v7099
    %v7103 = vrot.slane %v6924, 6
    %v7104 = vrot.slane %v7103, 4
    %v7105 = vrot.slane %v6925, 6
    %v7106 = vsel %vm1534, %v7104, %v7105
    %v7108 = vshrl.u32 %v6923, 16
    %v7110 = vrot.slane %v7108, 4
    %v7111 = vshll.u32 %v6923, 16
    %v7113 = vrot.slane %v7111, 5
    %v7114 = vor.u32 %v7110, %v7113
    %v7115 = vrot.slane %v7114, 4
    %v7117 = vshll.u32 %v6924, 16
    %v7119 = vrot.slane %v7117, 5
    %v7120 = vsel %vm1635, %v7115, %v7119
    %v7121 = vshrl.u32 %v6924, 16
    %v7123 = vrot.slane %v7121, 6
    %v7124 = vrot.slane %v7117, 7
    %v7125 = vor.u32 %v7123, %v7124
    %v7126 = vrot.slane %v7125, 4
    %v7128 = vshrl.u32 %v6925, 16
    %v7130 = vrot.slane %v7128, 6
    %v7131 = vshll.u32 %v6925, 16
    %v7133 = vrot.slane %v7131, 7
    %v7134 = vor.u32 %v7130, %v7133
    %v7135 = vsel %vm1974, %v7126, %v7134
    %v7138 = vunpack.c.l.b16 %v6908
    %v7139 = vunpack.c.l.b16 %v6914
    %v7140 = vpack.c.b16 %v7139, %v7138
    %v7142 = vunpack.c.l.b16 %v6933
    %v7143 = vunpack.c.l.b16 %v6937
    %v7144 = vpack.c.b16 %v7143, %v7142
    %v7146 = vunpack.c.l.b16 %v6951
    %v7147 = vunpack.c.l.b16 %v6965
    %v7148 = vpack.c.b16 %v7147, %v7146
    %v7150 = vunpack.c.l.b16 %v6980
    %v7151 = vunpack.c.l.b16 %v6995
    %v7152 = vpack.c.b16 %v7151, %v7150
    %v7156 = vunpack.c.l.b16 %v6911
    %v7157 = vunpack.c.l.b16 %v6917
    %v7158 = vpack.c.b16 %v7157, %v7156
    %v7160 = vunpack.c.l.b16 %v7003
    %v7161 = vunpack.c.l.b16 %v7007
    %v7162 = vpack.c.b16 %v7161, %v7160
    %v7164 = vunpack.c.l.b16 %v7021
    %v7165 = vunpack.c.l.b16 %v7035
    %v7166 = vpack.c.b16 %v7165, %v7164
    %v7168 = vunpack.c.l.b16 %v7050
    %v7169 = vunpack.c.l.b16 %v7065
    %v7170 = vpack.c.b16 %v7169, %v7168
    %v7173 = vunpack.c.l.b16 %v6920
    %v7174 = vpack.c.b16 %v7173, %v7139
    %v7176 = vunpack.c.l.b16 %v7071
    %v7177 = vpack.c.b16 %v7176, %v7143
    %v7179 = vunpack.c.l.b16 %v7085
    %v7180 = vpack.c.b16 %v7179, %v7147
    %v7182 = vunpack.c.l.b16 %v7100
    %v7183 = vpack.c.b16 %v7182, %v7151
    %v7186 = vunpack.c.l.b16 %v6923
    %v7187 = vpack.c.b16 %v7186, %v7157
    %v7189 = vunpack.c.l.b16 %v7106
    %v7190 = vpack.c.b16 %v7189, %v7161
    %v7192 = vunpack.c.l.b16 %v7120
    %v7193 = vpack.c.b16 %v7192, %v7165
    %v7195 = vunpack.c.l.b16 %v7135
    %v7196 = vpack.c.b16 %v7195, %v7169
    %v7198 = vld [vmem:[%s7] sm:$0xff]
    %v7199 = vld [vmem:[%s7 + $0x8] sm:$0xff]
    %v7200 = vld [vmem:[%s7 + $0x10] sm:$0xff]
    %v7201 = vld [vmem:[%s7 + $0x18] sm:$0xff]
    %v7202 = vld [vmem:[%s7 + $0x20] sm:$0xff]
    %v7203 = vld [vmem:[%s7 + $0x28] sm:$0xff]
    %v7204 = vld [vmem:[%s7 + $0x30] sm:$0xff]
    %v7205 = vld [vmem:[%s7 + $0x38] sm:$0xff]
    %v7206 = vld [vmem:[%s7 + $0x40] sm:$0xff]
    %v7207 = vld [vmem:[%s7 + $0x48] sm:$0xff]
    %v7208 = vld [vmem:[%s7 + $0x50] sm:$0xff]
    %v7209 = vld [vmem:[%s7 + $0x58] sm:$0xff]
    %v7210 = vld [vmem:[%s7 + $0x60] sm:$0xff]
    %v7211 = vld [vmem:[%s7 + $0x68] sm:$0xff]
    %v7212 = vld [vmem:[%s7 + $0x70] sm:$0xff]
    %v7213 = vld [vmem:[%s7 + $0x78] sm:$0xff]
    %v7214 = vld [vmem:[%s7 + $0x80] sm:$0xff]
    %v7215 = vld [vmem:[%s7 + $0x88] sm:$0xff]
    %v7216 = vld [vmem:[%s7 + $0x90] sm:$0xff]
    %v7217 = vld [vmem:[%s7 + $0x98] sm:$0xff]
    %v7218 = vld [vmem:[%s7 + $0xa0] sm:$0xff]
    %v7219 = vld [vmem:[%s7 + $0xa8] sm:$0xff]
    %v7220 = vld [vmem:[%s7 + $0xb0] sm:$0xff]
    %v7221 = vld [vmem:[%s7 + $0xb8] sm:$0xff]
    %v7222 = vld [vmem:[%s7 + $0xc0] sm:$0xff]
    %v7223 = vld [vmem:[%s7 + $0xc8] sm:$0xff]
    %v7224 = vld [vmem:[%s7 + $0xd0] sm:$0xff]
    %v7225 = vld [vmem:[%s7 + $0xd8] sm:$0xff]
    %v7226 = vld [vmem:[%s7 + $0xe0] sm:$0xff]
    %v7227 = vld [vmem:[%s7 + $0xe8] sm:$0xff]
    %v7228 = vld [vmem:[%s7 + $0xf0] sm:$0xff]
    %v7229 = vld [vmem:[%s7 + $0xf8] sm:$0xff]
    %v7230 = vld [vmem:[%s7 + $0x100] sm:$0xff]
    %v7231 = vld [vmem:[%s7 + $0x108] sm:$0xff]
    %v7232 = vld [vmem:[%s7 + $0x110] sm:$0xff]
    %v7233 = vld [vmem:[%s7 + $0x118] sm:$0xff]
    %v7234 = vld [vmem:[%s7 + $0x120] sm:$0xff]
    %v7235 = vld [vmem:[%s7 + $0x128] sm:$0xff]
    %v7236 = vld [vmem:[%s7 + $0x130] sm:$0xff]
    %v7237 = vld [vmem:[%s7 + $0x138] sm:$0xff]
    %v7238 = vld [vmem:[%s7 + $0x140] sm:$0xff]
    %v7239 = vld [vmem:[%s7 + $0x148] sm:$0xff]
    %v7240 = vld [vmem:[%s7 + $0x150] sm:$0xff]
    %v7241 = vld [vmem:[%s7 + $0x158] sm:$0xff]
    %v7242 = vld [vmem:[%s7 + $0x160] sm:$0xff]
    %v7243 = vld [vmem:[%s7 + $0x168] sm:$0xff]
    %v7244 = vld [vmem:[%s7 + $0x170] sm:$0xff]
    %v7245 = vld [vmem:[%s7 + $0x178] sm:$0xff]
    %v7246 = vld [vmem:[%s7 + $0x180] sm:$0xff]
    %v7247 = vld [vmem:[%s7 + $0x188] sm:$0xff]
    %v7248 = vld [vmem:[%s7 + $0x190] sm:$0xff]
    %v7249 = vld [vmem:[%s7 + $0x198] sm:$0xff]
    %v7250 = vld [vmem:[%s7 + $0x1a0] sm:$0xff]
    %v7251 = vld [vmem:[%s7 + $0x1a8] sm:$0xff]
    %v7252 = vld [vmem:[%s7 + $0x1b0] sm:$0xff]
    %v7253 = vld [vmem:[%s7 + $0x1b8] sm:$0xff]
    %v7254 = vld [vmem:[%s7 + $0x1c0] sm:$0xff]
    %v7255 = vld [vmem:[%s7 + $0x1c8] sm:$0xff]
    %v7256 = vld [vmem:[%s7 + $0x1d0] sm:$0xff]
    %v7257 = vld [vmem:[%s7 + $0x1d8] sm:$0xff]
    %v7258 = vld [vmem:[%s7 + $0x1e0] sm:$0xff]
    %v7259 = vld [vmem:[%s7 + $0x1e8] sm:$0xff]
    %v7260 = vld [vmem:[%s7 + $0x1f0] sm:$0xff]
    %v7261 = vld [vmem:[%s7 + $0x1f8] sm:$0xff]
    %v7262 = vld [vmem:[%s7 + $0x200] sm:$0xff]
    %v7263 = vld [vmem:[%s7 + $0x208] sm:$0xff]
    %v7264 = vld [vmem:[%s7 + $0x210] sm:$0xff]
    %v7265 = vld [vmem:[%s7 + $0x218] sm:$0xff]
    %v7266 = vld [vmem:[%s7 + $0x220] sm:$0xff]
    %v7267 = vld [vmem:[%s7 + $0x228] sm:$0xff]
    %v7268 = vld [vmem:[%s7 + $0x230] sm:$0xff]
    %v7269 = vld [vmem:[%s7 + $0x238] sm:$0xff]
    %v7270 = vld [vmem:[%s7 + $0x240] sm:$0xff]
    %v7271 = vld [vmem:[%s7 + $0x248] sm:$0xff]
    %v7272 = vld [vmem:[%s7 + $0x250] sm:$0xff]
    %v7273 = vld [vmem:[%s7 + $0x258] sm:$0xff]
    %v7274 = vld [vmem:[%s7 + $0x260] sm:$0xff]
    %v7275 = vld [vmem:[%s7 + $0x268] sm:$0xff]
    %v7276 = vld [vmem:[%s7 + $0x270] sm:$0xff]
    %v7277 = vld [vmem:[%s7 + $0x278] sm:$0xff]
    %v7278 = vld [vmem:[%s7 + $0x280] sm:$0xff]
    %v7279 = vld [vmem:[%s7 + $0x288] sm:$0xff]
    %v7280 = vld [vmem:[%s7 + $0x290] sm:$0xff]
    %v7281 = vld [vmem:[%s7 + $0x298] sm:$0xff]
    %v7282 = vld [vmem:[%s7 + $0x2a0] sm:$0xff]
    %v7283 = vld [vmem:[%s7 + $0x2a8] sm:$0xff]
    %v7284 = vld [vmem:[%s7 + $0x2b0] sm:$0xff]
    %v7285 = vld [vmem:[%s7 + $0x2b8] sm:$0xff]
    %v7286 = vld [vmem:[%s7 + $0x2c0] sm:$0xff]
    %v7287 = vld [vmem:[%s7 + $0x2c8] sm:$0xff]
    %v7288 = vld [vmem:[%s7 + $0x2d0] sm:$0xff]
    %v7289 = vld [vmem:[%s7 + $0x2d8] sm:$0xff]
    %v7290 = vld [vmem:[%s7 + $0x2e0] sm:$0xff]
    %v7291 = vld [vmem:[%s7 + $0x2e8] sm:$0xff]
    %v7292 = vld [vmem:[%s7 + $0x2f0] sm:$0xff]
    %v7293 = vld [vmem:[%s7 + $0x2f8] sm:$0xff]
    %v7294 = vld [vmem:[%s7 + $0x300] sm:$0xff]
    %v7295 = vld [vmem:[%s7 + $0x308] sm:$0xff]
    %v7296 = vld [vmem:[%s7 + $0x310] sm:$0xff]
    %v7297 = vld [vmem:[%s7 + $0x318] sm:$0xff]
    %v7298 = vld [vmem:[%s7 + $0x320] sm:$0xff]
    %v7299 = vld [vmem:[%s7 + $0x328] sm:$0xff]
    %v7300 = vld [vmem:[%s7 + $0x330] sm:$0xff]
    %v7301 = vld [vmem:[%s7 + $0x338] sm:$0xff]
    %v7302 = vld [vmem:[%s7 + $0x340] sm:$0xff]
    %v7303 = vld [vmem:[%s7 + $0x348] sm:$0xff]
    %v7304 = vld [vmem:[%s7 + $0x350] sm:$0xff]
    %v7305 = vld [vmem:[%s7 + $0x358] sm:$0xff]
    %v7306 = vld [vmem:[%s7 + $0x360] sm:$0xff]
    %v7307 = vld [vmem:[%s7 + $0x368] sm:$0xff]
    %v7308 = vld [vmem:[%s7 + $0x370] sm:$0xff]
    %v7309 = vld [vmem:[%s7 + $0x378] sm:$0xff]
    %v7310 = vld [vmem:[%s7 + $0x380] sm:$0xff]
    %v7311 = vld [vmem:[%s7 + $0x388] sm:$0xff]
    %v7312 = vld [vmem:[%s7 + $0x390] sm:$0xff]
    %v7313 = vld [vmem:[%s7 + $0x398] sm:$0xff]
    %v7314 = vld [vmem:[%s7 + $0x3a0] sm:$0xff]
    %v7315 = vld [vmem:[%s7 + $0x3a8] sm:$0xff]
    %v7316 = vld [vmem:[%s7 + $0x3b0] sm:$0xff]
    %v7317 = vld [vmem:[%s7 + $0x3b8] sm:$0xff]
    %v7318 = vld [vmem:[%s7 + $0x3c0] sm:$0xff]
    %v7319 = vld [vmem:[%s7 + $0x3c8] sm:$0xff]
    %v7320 = vld [vmem:[%s7 + $0x3d0] sm:$0xff]
    %v7321 = vld [vmem:[%s7 + $0x3d8] sm:$0xff]
    %v7322 = vld [vmem:[%s7 + $0x3e0] sm:$0xff]
    %v7323 = vld [vmem:[%s7 + $0x3e8] sm:$0xff]
    %v7324 = vld [vmem:[%s7 + $0x3f0] sm:$0xff]
    %v7325 = vld [vmem:[%s7 + $0x3f8] sm:$0xff]
    %v7326 = vld [vmem:[%s7 + $0x400] sm:$0xff]
    %v7327 = vld [vmem:[%s7 + $0x408] sm:$0xff]
    %v7328 = vld [vmem:[%s7 + $0x410] sm:$0xff]
    %v7329 = vld [vmem:[%s7 + $0x418] sm:$0xff]
    %v7330 = vld [vmem:[%s7 + $0x420] sm:$0xff]
    %v7331 = vld [vmem:[%s7 + $0x428] sm:$0xff]
    %v7332 = vld [vmem:[%s7 + $0x430] sm:$0xff]
    %v7333 = vld [vmem:[%s7 + $0x438] sm:$0xff]
    %v7334 = vld [vmem:[%s7 + $0x440] sm:$0xff]
    %v7335 = vld [vmem:[%s7 + $0x448] sm:$0xff]
    %v7336 = vld [vmem:[%s7 + $0x450] sm:$0xff]
    %v7337 = vld [vmem:[%s7 + $0x458] sm:$0xff]
    %v7338 = vld [vmem:[%s7 + $0x460] sm:$0xff]
    %v7339 = vld [vmem:[%s7 + $0x468] sm:$0xff]
    %v7340 = vld [vmem:[%s7 + $0x470] sm:$0xff]
    %v7341 = vld [vmem:[%s7 + $0x478] sm:$0xff]
    %v7342 = vld [vmem:[%s7 + $0x480] sm:$0xff]
    %v7343 = vld [vmem:[%s7 + $0x488] sm:$0xff]
    %v7344 = vld [vmem:[%s7 + $0x490] sm:$0xff]
    %v7345 = vld [vmem:[%s7 + $0x498] sm:$0xff]
    %v7346 = vld [vmem:[%s7 + $0x4a0] sm:$0xff]
    %v7347 = vld [vmem:[%s7 + $0x4a8] sm:$0xff]
    %v7348 = vld [vmem:[%s7 + $0x4b0] sm:$0xff]
    %v7349 = vld [vmem:[%s7 + $0x4b8] sm:$0xff]
    %v7350 = vld [vmem:[%s7 + $0x4c0] sm:$0xff]
    %v7351 = vld [vmem:[%s7 + $0x4c8] sm:$0xff]
    %v7352 = vld [vmem:[%s7 + $0x4d0] sm:$0xff]
    %v7353 = vld [vmem:[%s7 + $0x4d8] sm:$0xff]
    %v7354 = vld [vmem:[%s7 + $0x4e0] sm:$0xff]
    %v7355 = vld [vmem:[%s7 + $0x4e8] sm:$0xff]
    %v7356 = vld [vmem:[%s7 + $0x4f0] sm:$0xff]
    %v7357 = vld [vmem:[%s7 + $0x4f8] sm:$0xff]
    %v7358 = vld [vmem:[%s7 + $0x500] sm:$0xff]
    %v7359 = vld [vmem:[%s7 + $0x508] sm:$0xff]
    %v7360 = vld [vmem:[%s7 + $0x510] sm:$0xff]
    %v7361 = vld [vmem:[%s7 + $0x518] sm:$0xff]
    %v7362 = vld [vmem:[%s7 + $0x520] sm:$0xff]
    %v7363 = vld [vmem:[%s7 + $0x528] sm:$0xff]
    %v7364 = vld [vmem:[%s7 + $0x530] sm:$0xff]
    %v7365 = vld [vmem:[%s7 + $0x538] sm:$0xff]
    %v7366 = vld [vmem:[%s7 + $0x540] sm:$0xff]
    %v7367 = vld [vmem:[%s7 + $0x548] sm:$0xff]
    %v7368 = vld [vmem:[%s7 + $0x550] sm:$0xff]
    %v7369 = vld [vmem:[%s7 + $0x558] sm:$0xff]
    %v7370 = vld [vmem:[%s7 + $0x560] sm:$0xff]
    %v7371 = vld [vmem:[%s7 + $0x568] sm:$0xff]
    %v7372 = vld [vmem:[%s7 + $0x570] sm:$0xff]
    %v7373 = vld [vmem:[%s7 + $0x578] sm:$0xff]
    %v7374 = vld [vmem:[%s7 + $0x580] sm:$0xff]
    %v7375 = vld [vmem:[%s7 + $0x588] sm:$0xff]
    %v7376 = vld [vmem:[%s7 + $0x590] sm:$0xff]
    %v7377 = vld [vmem:[%s7 + $0x598] sm:$0xff]
    %v7378 = vld [vmem:[%s7 + $0x5a0] sm:$0xff]
    %v7379 = vld [vmem:[%s7 + $0x5a8] sm:$0xff]
    %v7380 = vld [vmem:[%s7 + $0x5b0] sm:$0xff]
    %v7381 = vld [vmem:[%s7 + $0x5b8] sm:$0xff]
    %v7382 = vld [vmem:[%s7 + $0x5c0] sm:$0xff]
    %v7383 = vld [vmem:[%s7 + $0x5c8] sm:$0xff]
    %v7384 = vld [vmem:[%s7 + $0x5d0] sm:$0xff]
    %v7385 = vld [vmem:[%s7 + $0x5d8] sm:$0xff]
    %v7386 = vld [vmem:[%s7 + $0x5e0] sm:$0xff]
    %v7387 = vld [vmem:[%s7 + $0x5e8] sm:$0xff]
    %v7388 = vld [vmem:[%s7 + $0x5f0] sm:$0xff]
    %v7389 = vld [vmem:[%s7 + $0x5f8] sm:$0xff]
    %v7390 = vld [vmem:[%s7 + $0x600] sm:$0xff]
    %v7391 = vld [vmem:[%s7 + $0x608] sm:$0xff]
    %v7392 = vld [vmem:[%s7 + $0x610] sm:$0xff]
    %v7393 = vld [vmem:[%s7 + $0x618] sm:$0xff]
    %v7394 = vld [vmem:[%s7 + $0x620] sm:$0xff]
    %v7395 = vld [vmem:[%s7 + $0x628] sm:$0xff]
    %v7396 = vld [vmem:[%s7 + $0x630] sm:$0xff]
    %v7397 = vld [vmem:[%s7 + $0x638] sm:$0xff]
    %v7398 = vld [vmem:[%s7 + $0x640] sm:$0xff]
    %v7399 = vld [vmem:[%s7 + $0x648] sm:$0xff]
    %v7400 = vld [vmem:[%s7 + $0x650] sm:$0xff]
    %v7401 = vld [vmem:[%s7 + $0x658] sm:$0xff]
    %v7402 = vld [vmem:[%s7 + $0x660] sm:$0xff]
    %v7403 = vld [vmem:[%s7 + $0x668] sm:$0xff]
    %v7404 = vld [vmem:[%s7 + $0x670] sm:$0xff]
    %v7405 = vld [vmem:[%s7 + $0x678] sm:$0xff]
    %v7406 = vld [vmem:[%s7 + $0x680] sm:$0xff]
    %v7407 = vld [vmem:[%s7 + $0x688] sm:$0xff]
    %v7408 = vld [vmem:[%s7 + $0x690] sm:$0xff]
    %v7409 = vld [vmem:[%s7 + $0x698] sm:$0xff]
    %v7410 = vld [vmem:[%s7 + $0x6a0] sm:$0xff]
    %v7411 = vld [vmem:[%s7 + $0x6a8] sm:$0xff]
    %v7412 = vld [vmem:[%s7 + $0x6b0] sm:$0xff]
    %v7413 = vld [vmem:[%s7 + $0x6b8] sm:$0xff]
    %v7414 = vld [vmem:[%s7 + $0x6c0] sm:$0xff]
    %v7415 = vld [vmem:[%s7 + $0x6c8] sm:$0xff]
    %v7416 = vld [vmem:[%s7 + $0x6d0] sm:$0xff]
    %v7417 = vld [vmem:[%s7 + $0x6d8] sm:$0xff]
    %v7418 = vld [vmem:[%s7 + $0x6e0] sm:$0xff]
    %v7419 = vld [vmem:[%s7 + $0x6e8] sm:$0xff]
    %v7420 = vld [vmem:[%s7 + $0x6f0] sm:$0xff]
    %v7421 = vld [vmem:[%s7 + $0x6f8] sm:$0xff]
    %v7422 = vld [vmem:[%s7 + $0x700] sm:$0xff]
    %v7423 = vld [vmem:[%s7 + $0x708] sm:$0xff]
    %v7424 = vld [vmem:[%s7 + $0x710] sm:$0xff]
    %v7425 = vld [vmem:[%s7 + $0x718] sm:$0xff]
    %v7426 = vld [vmem:[%s7 + $0x720] sm:$0xff]
    %v7427 = vld [vmem:[%s7 + $0x728] sm:$0xff]
    %v7428 = vld [vmem:[%s7 + $0x730] sm:$0xff]
    %v7429 = vld [vmem:[%s7 + $0x738] sm:$0xff]
    %v7430 = vld [vmem:[%s7 + $0x740] sm:$0xff]
    %v7431 = vld [vmem:[%s7 + $0x748] sm:$0xff]
    %v7432 = vld [vmem:[%s7 + $0x750] sm:$0xff]
    %v7433 = vld [vmem:[%s7 + $0x758] sm:$0xff]
    %v7434 = vld [vmem:[%s7 + $0x760] sm:$0xff]
    %v7435 = vld [vmem:[%s7 + $0x768] sm:$0xff]
    %v7436 = vld [vmem:[%s7 + $0x770] sm:$0xff]
    %v7437 = vld [vmem:[%s7 + $0x778] sm:$0xff]
    %v7438 = vld [vmem:[%s7 + $0x780] sm:$0xff]
    %v7439 = vld [vmem:[%s7 + $0x788] sm:$0xff]
    %v7440 = vld [vmem:[%s7 + $0x790] sm:$0xff]
    %v7441 = vld [vmem:[%s7 + $0x798] sm:$0xff]
    %v7442 = vld [vmem:[%s7 + $0x7a0] sm:$0xff]
    %v7443 = vld [vmem:[%s7 + $0x7a8] sm:$0xff]
    %v7444 = vld [vmem:[%s7 + $0x7b0] sm:$0xff]
    %v7445 = vld [vmem:[%s7 + $0x7b8] sm:$0xff]
    %v7446 = vld [vmem:[%s7 + $0x7c0] sm:$0xff]
    %v7447 = vld [vmem:[%s7 + $0x7c8] sm:$0xff]
    %v7448 = vld [vmem:[%s7 + $0x7d0] sm:$0xff]
    %v7449 = vld [vmem:[%s7 + $0x7d8] sm:$0xff]
    %v7450 = vld [vmem:[%s7 + $0x7e0] sm:$0xff]
    %v7451 = vld [vmem:[%s7 + $0x7e8] sm:$0xff]
    %v7452 = vld [vmem:[%s7 + $0x7f0] sm:$0xff]
    %v7453 = vld [vmem:[%s7 + $0x7f8] sm:$0xff]
    %v7454 = vld [vmem:[%s8] sm:$0x3]
    %v7456 = vperm.slane %v7454, 0
    %v7457 = vperm.slane %v7454, 1
    %v7716 = vunpack.c.l.b16 %v7198
    %v7717 = vunpack.c.h.b16 %v7198
    %v7718 = vunpack.c.l.b16 %v7199
    %v7719 = vunpack.c.h.b16 %v7199
    %v7720 = vunpack.c.l.b16 %v7200
    %v7721 = vunpack.c.h.b16 %v7200
    %v7722 = vunpack.c.l.b16 %v7201
    %v7723 = vunpack.c.h.b16 %v7201
    %v7724 = vunpack.c.l.b16 %v7202
    %v7725 = vunpack.c.h.b16 %v7202
    %v7726 = vunpack.c.l.b16 %v7203
    %v7727 = vunpack.c.h.b16 %v7203
    %v7728 = vunpack.c.l.b16 %v7204
    %v7729 = vunpack.c.h.b16 %v7204
    %v7730 = vunpack.c.l.b16 %v7205
    %v7731 = vunpack.c.h.b16 %v7205
    %v7732 = vunpack.c.l.b16 %v7206
    %v7733 = vunpack.c.h.b16 %v7206
    %v7734 = vunpack.c.l.b16 %v7207
    %v7735 = vunpack.c.h.b16 %v7207
    %v7736 = vunpack.c.l.b16 %v7208
    %v7737 = vunpack.c.h.b16 %v7208
    %v7738 = vunpack.c.l.b16 %v7209
    %v7739 = vunpack.c.h.b16 %v7209
    %v7740 = vunpack.c.l.b16 %v7210
    %v7741 = vunpack.c.h.b16 %v7210
    %v7742 = vunpack.c.l.b16 %v7211
    %v7743 = vunpack.c.h.b16 %v7211
    %v7744 = vunpack.c.l.b16 %v7212
    %v7745 = vunpack.c.h.b16 %v7212
    %v7746 = vunpack.c.l.b16 %v7213
    %v7747 = vunpack.c.h.b16 %v7213
    %v7748 = vunpack.c.l.b16 %v7214
    %v7749 = vunpack.c.h.b16 %v7214
    %v7750 = vunpack.c.l.b16 %v7215
    %v7751 = vunpack.c.h.b16 %v7215
    %v7752 = vunpack.c.l.b16 %v7216
    %v7753 = vunpack.c.h.b16 %v7216
    %v7754 = vunpack.c.l.b16 %v7217
    %v7755 = vunpack.c.h.b16 %v7217
    %v7756 = vunpack.c.l.b16 %v7218
    %v7757 = vunpack.c.h.b16 %v7218
    %v7758 = vunpack.c.l.b16 %v7219
    %v7759 = vunpack.c.h.b16 %v7219
    %v7760 = vunpack.c.l.b16 %v7220
    %v7761 = vunpack.c.h.b16 %v7220
    %v7762 = vunpack.c.l.b16 %v7221
    %v7763 = vunpack.c.h.b16 %v7221
    %v7764 = vunpack.c.l.b16 %v7222
    %v7765 = vunpack.c.h.b16 %v7222
    %v7766 = vunpack.c.l.b16 %v7223
    %v7767 = vunpack.c.h.b16 %v7223
    %v7768 = vunpack.c.l.b16 %v7224
    %v7769 = vunpack.c.h.b16 %v7224
    %v7770 = vunpack.c.l.b16 %v7225
    %v7771 = vunpack.c.h.b16 %v7225
    %v7772 = vunpack.c.l.b16 %v7226
    %v7773 = vunpack.c.h.b16 %v7226
    %v7774 = vunpack.c.l.b16 %v7227
    %v7775 = vunpack.c.h.b16 %v7227
    %v7776 = vunpack.c.l.b16 %v7228
    %v7777 = vunpack.c.h.b16 %v7228
    %v7778 = vunpack.c.l.b16 %v7229
    %v7779 = vunpack.c.h.b16 %v7229
    %v7780 = vunpack.c.l.b16 %v7230
    %v7781 = vunpack.c.h.b16 %v7230
    %v7782 = vunpack.c.l.b16 %v7231
    %v7783 = vunpack.c.h.b16 %v7231
    %v7784 = vunpack.c.l.b16 %v7232
    %v7785 = vunpack.c.h.b16 %v7232
    %v7786 = vunpack.c.l.b16 %v7233
    %v7787 = vunpack.c.h.b16 %v7233
    %v7788 = vunpack.c.l.b16 %v7234
    %v7789 = vunpack.c.h.b16 %v7234
    %v7790 = vunpack.c.l.b16 %v7235
    %v7791 = vunpack.c.h.b16 %v7235
    %v7792 = vunpack.c.l.b16 %v7236
    %v7793 = vunpack.c.h.b16 %v7236
    %v7794 = vunpack.c.l.b16 %v7237
    %v7795 = vunpack.c.h.b16 %v7237
    %v7796 = vunpack.c.l.b16 %v7238
    %v7797 = vunpack.c.h.b16 %v7238
    %v7798 = vunpack.c.l.b16 %v7239
    %v7799 = vunpack.c.h.b16 %v7239
    %v7800 = vunpack.c.l.b16 %v7240
    %v7801 = vunpack.c.h.b16 %v7240
    %v7802 = vunpack.c.l.b16 %v7241
    %v7803 = vunpack.c.h.b16 %v7241
    %v7804 = vunpack.c.l.b16 %v7242
    %v7805 = vunpack.c.h.b16 %v7242
    %v7806 = vunpack.c.l.b16 %v7243
    %v7807 = vunpack.c.h.b16 %v7243
    %v7808 = vunpack.c.l.b16 %v7244
    %v7809 = vunpack.c.h.b16 %v7244
    %v7810 = vunpack.c.l.b16 %v7245
    %v7811 = vunpack.c.h.b16 %v7245
    %v7812 = vunpack.c.l.b16 %v7246
    %v7813 = vunpack.c.h.b16 %v7246
    %v7814 = vunpack.c.l.b16 %v7247
    %v7815 = vunpack.c.h.b16 %v7247
    %v7816 = vunpack.c.l.b16 %v7248
    %v7817 = vunpack.c.h.b16 %v7248
    %v7818 = vunpack.c.l.b16 %v7249
    %v7819 = vunpack.c.h.b16 %v7249
    %v7820 = vunpack.c.l.b16 %v7250
    %v7821 = vunpack.c.h.b16 %v7250
    %v7822 = vunpack.c.l.b16 %v7251
    %v7823 = vunpack.c.h.b16 %v7251
    %v7824 = vunpack.c.l.b16 %v7252
    %v7825 = vunpack.c.h.b16 %v7252
    %v7826 = vunpack.c.l.b16 %v7253
    %v7827 = vunpack.c.h.b16 %v7253
    %v7828 = vunpack.c.l.b16 %v7254
    %v7829 = vunpack.c.h.b16 %v7254
    %v7830 = vunpack.c.l.b16 %v7255
    %v7831 = vunpack.c.h.b16 %v7255
    %v7832 = vunpack.c.l.b16 %v7256
    %v7833 = vunpack.c.h.b16 %v7256
    %v7834 = vunpack.c.l.b16 %v7257
    %v7835 = vunpack.c.h.b16 %v7257
    %v7836 = vunpack.c.l.b16 %v7258
    %v7837 = vunpack.c.h.b16 %v7258
    %v7838 = vunpack.c.l.b16 %v7259
    %v7839 = vunpack.c.h.b16 %v7259
    %v7840 = vunpack.c.l.b16 %v7260
    %v7841 = vunpack.c.h.b16 %v7260
    %v7842 = vunpack.c.l.b16 %v7261
    %v7843 = vunpack.c.h.b16 %v7261
    %v7844 = vunpack.c.l.b16 %v7262
    %v7845 = vunpack.c.h.b16 %v7262
    %v7846 = vunpack.c.l.b16 %v7263
    %v7847 = vunpack.c.h.b16 %v7263
    %v7848 = vunpack.c.l.b16 %v7264
    %v7849 = vunpack.c.h.b16 %v7264
    %v7850 = vunpack.c.l.b16 %v7265
    %v7851 = vunpack.c.h.b16 %v7265
    %v7852 = vunpack.c.l.b16 %v7266
    %v7853 = vunpack.c.h.b16 %v7266
    %v7854 = vunpack.c.l.b16 %v7267
    %v7855 = vunpack.c.h.b16 %v7267
    %v7856 = vunpack.c.l.b16 %v7268
    %v7857 = vunpack.c.h.b16 %v7268
    %v7858 = vunpack.c.l.b16 %v7269
    %v7859 = vunpack.c.h.b16 %v7269
    %v7860 = vunpack.c.l.b16 %v7270
    %v7861 = vunpack.c.h.b16 %v7270
    %v7862 = vunpack.c.l.b16 %v7271
    %v7863 = vunpack.c.h.b16 %v7271
    %v7864 = vunpack.c.l.b16 %v7272
    %v7865 = vunpack.c.h.b16 %v7272
    %v7866 = vunpack.c.l.b16 %v7273
    %v7867 = vunpack.c.h.b16 %v7273
    %v7868 = vunpack.c.l.b16 %v7274
    %v7869 = vunpack.c.h.b16 %v7274
    %v7870 = vunpack.c.l.b16 %v7275
    %v7871 = vunpack.c.h.b16 %v7275
    %v7872 = vunpack.c.l.b16 %v7276
    %v7873 = vunpack.c.h.b16 %v7276
    %v7874 = vunpack.c.l.b16 %v7277
    %v7875 = vunpack.c.h.b16 %v7277
    %v7876 = vunpack.c.l.b16 %v7278
    %v7877 = vunpack.c.h.b16 %v7278
    %v7878 = vunpack.c.l.b16 %v7279
    %v7879 = vunpack.c.h.b16 %v7279
    %v7880 = vunpack.c.l.b16 %v7280
    %v7881 = vunpack.c.h.b16 %v7280
    %v7882 = vunpack.c.l.b16 %v7281
    %v7883 = vunpack.c.h.b16 %v7281
    %v7884 = vunpack.c.l.b16 %v7282
    %v7885 = vunpack.c.h.b16 %v7282
    %v7886 = vunpack.c.l.b16 %v7283
    %v7887 = vunpack.c.h.b16 %v7283
    %v7888 = vunpack.c.l.b16 %v7284
    %v7889 = vunpack.c.h.b16 %v7284
    %v7890 = vunpack.c.l.b16 %v7285
    %v7891 = vunpack.c.h.b16 %v7285
    %v7892 = vunpack.c.l.b16 %v7286
    %v7893 = vunpack.c.h.b16 %v7286
    %v7894 = vunpack.c.l.b16 %v7287
    %v7895 = vunpack.c.h.b16 %v7287
    %v7896 = vunpack.c.l.b16 %v7288
    %v7897 = vunpack.c.h.b16 %v7288
    %v7898 = vunpack.c.l.b16 %v7289
    %v7899 = vunpack.c.h.b16 %v7289
    %v7900 = vunpack.c.l.b16 %v7290
    %v7901 = vunpack.c.h.b16 %v7290
    %v7902 = vunpack.c.l.b16 %v7291
    %v7903 = vunpack.c.h.b16 %v7291
    %v7904 = vunpack.c.l.b16 %v7292
    %v7905 = vunpack.c.h.b16 %v7292
    %v7906 = vunpack.c.l.b16 %v7293
    %v7907 = vunpack.c.h.b16 %v7293
    %v7908 = vunpack.c.l.b16 %v7294
    %v7909 = vunpack.c.h.b16 %v7294
    %v7910 = vunpack.c.l.b16 %v7295
    %v7911 = vunpack.c.h.b16 %v7295
    %v7912 = vunpack.c.l.b16 %v7296
    %v7913 = vunpack.c.h.b16 %v7296
    %v7914 = vunpack.c.l.b16 %v7297
    %v7915 = vunpack.c.h.b16 %v7297
    %v7916 = vunpack.c.l.b16 %v7298
    %v7917 = vunpack.c.h.b16 %v7298
    %v7918 = vunpack.c.l.b16 %v7299
    %v7919 = vunpack.c.h.b16 %v7299
    %v7920 = vunpack.c.l.b16 %v7300
    %v7921 = vunpack.c.h.b16 %v7300
    %v7922 = vunpack.c.l.b16 %v7301
    %v7923 = vunpack.c.h.b16 %v7301
    %v7924 = vunpack.c.l.b16 %v7302
    %v7925 = vunpack.c.h.b16 %v7302
    %v7926 = vunpack.c.l.b16 %v7303
    %v7927 = vunpack.c.h.b16 %v7303
    %v7928 = vunpack.c.l.b16 %v7304
    %v7929 = vunpack.c.h.b16 %v7304
    %v7930 = vunpack.c.l.b16 %v7305
    %v7931 = vunpack.c.h.b16 %v7305
    %v7932 = vunpack.c.l.b16 %v7306
    %v7933 = vunpack.c.h.b16 %v7306
    %v7934 = vunpack.c.l.b16 %v7307
    %v7935 = vunpack.c.h.b16 %v7307
    %v7936 = vunpack.c.l.b16 %v7308
    %v7937 = vunpack.c.h.b16 %v7308
    %v7938 = vunpack.c.l.b16 %v7309
    %v7939 = vunpack.c.h.b16 %v7309
    %v7940 = vunpack.c.l.b16 %v7310
    %v7941 = vunpack.c.h.b16 %v7310
    %v7942 = vunpack.c.l.b16 %v7311
    %v7943 = vunpack.c.h.b16 %v7311
    %v7944 = vunpack.c.l.b16 %v7312
    %v7945 = vunpack.c.h.b16 %v7312
    %v7946 = vunpack.c.l.b16 %v7313
    %v7947 = vunpack.c.h.b16 %v7313
    %v7948 = vunpack.c.l.b16 %v7314
    %v7949 = vunpack.c.h.b16 %v7314
    %v7950 = vunpack.c.l.b16 %v7315
    %v7951 = vunpack.c.h.b16 %v7315
    %v7952 = vunpack.c.l.b16 %v7316
    %v7953 = vunpack.c.h.b16 %v7316
    %v7954 = vunpack.c.l.b16 %v7317
    %v7955 = vunpack.c.h.b16 %v7317
    %v7956 = vunpack.c.l.b16 %v7318
    %v7957 = vunpack.c.h.b16 %v7318
    %v7958 = vunpack.c.l.b16 %v7319
    %v7959 = vunpack.c.h.b16 %v7319
    %v7960 = vunpack.c.l.b16 %v7320
    %v7961 = vunpack.c.h.b16 %v7320
    %v7962 = vunpack.c.l.b16 %v7321
    %v7963 = vunpack.c.h.b16 %v7321
    %v7964 = vunpack.c.l.b16 %v7322
    %v7965 = vunpack.c.h.b16 %v7322
    %v7966 = vunpack.c.l.b16 %v7323
    %v7967 = vunpack.c.h.b16 %v7323
    %v7968 = vunpack.c.l.b16 %v7324
    %v7969 = vunpack.c.h.b16 %v7324
    %v7970 = vunpack.c.l.b16 %v7325
    %v7971 = vunpack.c.h.b16 %v7325
    %v7972 = vunpack.c.l.b16 %v7326
    %v7973 = vunpack.c.h.b16 %v7326
    %v7974 = vunpack.c.l.b16 %v7327
    %v7975 = vunpack.c.h.b16 %v7327
    %v7976 = vunpack.c.l.b16 %v7328
    %v7977 = vunpack.c.h.b16 %v7328
    %v7978 = vunpack.c.l.b16 %v7329
    %v7979 = vunpack.c.h.b16 %v7329
    %v7980 = vunpack.c.l.b16 %v7330
    %v7981 = vunpack.c.h.b16 %v7330
    %v7982 = vunpack.c.l.b16 %v7331
    %v7983 = vunpack.c.h.b16 %v7331
    %v7984 = vunpack.c.l.b16 %v7332
    %v7985 = vunpack.c.h.b16 %v7332
    %v7986 = vunpack.c.l.b16 %v7333
    %v7987 = vunpack.c.h.b16 %v7333
    %v7988 = vunpack.c.l.b16 %v7334
    %v7989 = vunpack.c.h.b16 %v7334
    %v7990 = vunpack.c.l.b16 %v7335
    %v7991 = vunpack.c.h.b16 %v7335
    %v7992 = vunpack.c.l.b16 %v7336
    %v7993 = vunpack.c.h.b16 %v7336
    %v7994 = vunpack.c.l.b16 %v7337
    %v7995 = vunpack.c.h.b16 %v7337
    %v7996 = vunpack.c.l.b16 %v7338
    %v7997 = vunpack.c.h.b16 %v7338
    %v7998 = vunpack.c.l.b16 %v7339
    %v7999 = vunpack.c.h.b16 %v7339
    %v8000 = vunpack.c.l.b16 %v7340
    %v8001 = vunpack.c.h.b16 %v7340
    %v8002 = vunpack.c.l.b16 %v7341
    %v8003 = vunpack.c.h.b16 %v7341
    %v8004 = vunpack.c.l.b16 %v7342
    %v8005 = vunpack.c.h.b16 %v7342
    %v8006 = vunpack.c.l.b16 %v7343
    %v8007 = vunpack.c.h.b16 %v7343
    %v8008 = vunpack.c.l.b16 %v7344
    %v8009 = vunpack.c.h.b16 %v7344
    %v8010 = vunpack.c.l.b16 %v7345
    %v8011 = vunpack.c.h.b16 %v7345
    %v8012 = vunpack.c.l.b16 %v7346
    %v8013 = vunpack.c.h.b16 %v7346
    %v8014 = vunpack.c.l.b16 %v7347
    %v8015 = vunpack.c.h.b16 %v7347
    %v8016 = vunpack.c.l.b16 %v7348
    %v8017 = vunpack.c.h.b16 %v7348
    %v8018 = vunpack.c.l.b16 %v7349
    %v8019 = vunpack.c.h.b16 %v7349
    %v8020 = vunpack.c.l.b16 %v7350
    %v8021 = vunpack.c.h.b16 %v7350
    %v8022 = vunpack.c.l.b16 %v7351
    %v8023 = vunpack.c.h.b16 %v7351
    %v8024 = vunpack.c.l.b16 %v7352
    %v8025 = vunpack.c.h.b16 %v7352
    %v8026 = vunpack.c.l.b16 %v7353
    %v8027 = vunpack.c.h.b16 %v7353
    %v8028 = vunpack.c.l.b16 %v7354
    %v8029 = vunpack.c.h.b16 %v7354
    %v8030 = vunpack.c.l.b16 %v7355
    %v8031 = vunpack.c.h.b16 %v7355
    %v8032 = vunpack.c.l.b16 %v7356
    %v8033 = vunpack.c.h.b16 %v7356
    %v8034 = vunpack.c.l.b16 %v7357
    %v8035 = vunpack.c.h.b16 %v7357
    %v8036 = vunpack.c.l.b16 %v7358
    %v8037 = vunpack.c.h.b16 %v7358
    %v8038 = vunpack.c.l.b16 %v7359
    %v8039 = vunpack.c.h.b16 %v7359
    %v8040 = vunpack.c.l.b16 %v7360
    %v8041 = vunpack.c.h.b16 %v7360
    %v8042 = vunpack.c.l.b16 %v7361
    %v8043 = vunpack.c.h.b16 %v7361
    %v8044 = vunpack.c.l.b16 %v7362
    %v8045 = vunpack.c.h.b16 %v7362
    %v8046 = vunpack.c.l.b16 %v7363
    %v8047 = vunpack.c.h.b16 %v7363
    %v8048 = vunpack.c.l.b16 %v7364
    %v8049 = vunpack.c.h.b16 %v7364
    %v8050 = vunpack.c.l.b16 %v7365
    %v8051 = vunpack.c.h.b16 %v7365
    %v8052 = vunpack.c.l.b16 %v7366
    %v8053 = vunpack.c.h.b16 %v7366
    %v8054 = vunpack.c.l.b16 %v7367
    %v8055 = vunpack.c.h.b16 %v7367
    %v8056 = vunpack.c.l.b16 %v7368
    %v8057 = vunpack.c.h.b16 %v7368
    %v8058 = vunpack.c.l.b16 %v7369
    %v8059 = vunpack.c.h.b16 %v7369
    %v8060 = vunpack.c.l.b16 %v7370
    %v8061 = vunpack.c.h.b16 %v7370
    %v8062 = vunpack.c.l.b16 %v7371
    %v8063 = vunpack.c.h.b16 %v7371
    %v8064 = vunpack.c.l.b16 %v7372
    %v8065 = vunpack.c.h.b16 %v7372
    %v8066 = vunpack.c.l.b16 %v7373
    %v8067 = vunpack.c.h.b16 %v7373
    %v8068 = vunpack.c.l.b16 %v7374
    %v8069 = vunpack.c.h.b16 %v7374
    %v8070 = vunpack.c.l.b16 %v7375
    %v8071 = vunpack.c.h.b16 %v7375
    %v8072 = vunpack.c.l.b16 %v7376
    %v8073 = vunpack.c.h.b16 %v7376
    %v8074 = vunpack.c.l.b16 %v7377
    %v8075 = vunpack.c.h.b16 %v7377
    %v8076 = vunpack.c.l.b16 %v7378
    %v8077 = vunpack.c.h.b16 %v7378
    %v8078 = vunpack.c.l.b16 %v7379
    %v8079 = vunpack.c.h.b16 %v7379
    %v8080 = vunpack.c.l.b16 %v7380
    %v8081 = vunpack.c.h.b16 %v7380
    %v8082 = vunpack.c.l.b16 %v7381
    %v8083 = vunpack.c.h.b16 %v7381
    %v8084 = vunpack.c.l.b16 %v7382
    %v8085 = vunpack.c.h.b16 %v7382
    %v8086 = vunpack.c.l.b16 %v7383
    %v8087 = vunpack.c.h.b16 %v7383
    %v8088 = vunpack.c.l.b16 %v7384
    %v8089 = vunpack.c.h.b16 %v7384
    %v8090 = vunpack.c.l.b16 %v7385
    %v8091 = vunpack.c.h.b16 %v7385
    %v8092 = vunpack.c.l.b16 %v7386
    %v8093 = vunpack.c.h.b16 %v7386
    %v8094 = vunpack.c.l.b16 %v7387
    %v8095 = vunpack.c.h.b16 %v7387
    %v8096 = vunpack.c.l.b16 %v7388
    %v8097 = vunpack.c.h.b16 %v7388
    %v8098 = vunpack.c.l.b16 %v7389
    %v8099 = vunpack.c.h.b16 %v7389
    %v8100 = vunpack.c.l.b16 %v7390
    %v8101 = vunpack.c.h.b16 %v7390
    %v8102 = vunpack.c.l.b16 %v7391
    %v8103 = vunpack.c.h.b16 %v7391
    %v8104 = vunpack.c.l.b16 %v7392
    %v8105 = vunpack.c.h.b16 %v7392
    %v8106 = vunpack.c.l.b16 %v7393
    %v8107 = vunpack.c.h.b16 %v7393
    %v8108 = vunpack.c.l.b16 %v7394
    %v8109 = vunpack.c.h.b16 %v7394
    %v8110 = vunpack.c.l.b16 %v7395
    %v8111 = vunpack.c.h.b16 %v7395
    %v8112 = vunpack.c.l.b16 %v7396
    %v8113 = vunpack.c.h.b16 %v7396
    %v8114 = vunpack.c.l.b16 %v7397
    %v8115 = vunpack.c.h.b16 %v7397
    %v8116 = vunpack.c.l.b16 %v7398
    %v8117 = vunpack.c.h.b16 %v7398
    %v8118 = vunpack.c.l.b16 %v7399
    %v8119 = vunpack.c.h.b16 %v7399
    %v8120 = vunpack.c.l.b16 %v7400
    %v8121 = vunpack.c.h.b16 %v7400
    %v8122 = vunpack.c.l.b16 %v7401
    %v8123 = vunpack.c.h.b16 %v7401
    %v8124 = vunpack.c.l.b16 %v7402
    %v8125 = vunpack.c.h.b16 %v7402
    %v8126 = vunpack.c.l.b16 %v7403
    %v8127 = vunpack.c.h.b16 %v7403
    %v8128 = vunpack.c.l.b16 %v7404
    %v8129 = vunpack.c.h.b16 %v7404
    %v8130 = vunpack.c.l.b16 %v7405
    %v8131 = vunpack.c.h.b16 %v7405
    %v8132 = vunpack.c.l.b16 %v7406
    %v8133 = vunpack.c.h.b16 %v7406
    %v8134 = vunpack.c.l.b16 %v7407
    %v8135 = vunpack.c.h.b16 %v7407
    %v8136 = vunpack.c.l.b16 %v7408
    %v8137 = vunpack.c.h.b16 %v7408
    %v8138 = vunpack.c.l.b16 %v7409
    %v8139 = vunpack.c.h.b16 %v7409
    %v8140 = vunpack.c.l.b16 %v7410
    %v8141 = vunpack.c.h.b16 %v7410
    %v8142 = vunpack.c.l.b16 %v7411
    %v8143 = vunpack.c.h.b16 %v7411
    %v8144 = vunpack.c.l.b16 %v7412
    %v8145 = vunpack.c.h.b16 %v7412
    %v8146 = vunpack.c.l.b16 %v7413
    %v8147 = vunpack.c.h.b16 %v7413
    %v8148 = vunpack.c.l.b16 %v7414
    %v8149 = vunpack.c.h.b16 %v7414
    %v8150 = vunpack.c.l.b16 %v7415
    %v8151 = vunpack.c.h.b16 %v7415
    %v8152 = vunpack.c.l.b16 %v7416
    %v8153 = vunpack.c.h.b16 %v7416
    %v8154 = vunpack.c.l.b16 %v7417
    %v8155 = vunpack.c.h.b16 %v7417
    %v8156 = vunpack.c.l.b16 %v7418
    %v8157 = vunpack.c.h.b16 %v7418
    %v8158 = vunpack.c.l.b16 %v7419
    %v8159 = vunpack.c.h.b16 %v7419
    %v8160 = vunpack.c.l.b16 %v7420
    %v8161 = vunpack.c.h.b16 %v7420
    %v8162 = vunpack.c.l.b16 %v7421
    %v8163 = vunpack.c.h.b16 %v7421
    %v8164 = vunpack.c.l.b16 %v7422
    %v8165 = vunpack.c.h.b16 %v7422
    %v8166 = vunpack.c.l.b16 %v7423
    %v8167 = vunpack.c.h.b16 %v7423
    %v8168 = vunpack.c.l.b16 %v7424
    %v8169 = vunpack.c.h.b16 %v7424
    %v8170 = vunpack.c.l.b16 %v7425
    %v8171 = vunpack.c.h.b16 %v7425
    %v8172 = vunpack.c.l.b16 %v7426
    %v8173 = vunpack.c.h.b16 %v7426
    %v8174 = vunpack.c.l.b16 %v7427
    %v8175 = vunpack.c.h.b16 %v7427
    %v8176 = vunpack.c.l.b16 %v7428
    %v8177 = vunpack.c.h.b16 %v7428
    %v8178 = vunpack.c.l.b16 %v7429
    %v8179 = vunpack.c.h.b16 %v7429
    %v8180 = vunpack.c.l.b16 %v7430
    %v8181 = vunpack.c.h.b16 %v7430
    %v8182 = vunpack.c.l.b16 %v7431
    %v8183 = vunpack.c.h.b16 %v7431
    %v8184 = vunpack.c.l.b16 %v7432
    %v8185 = vunpack.c.h.b16 %v7432
    %v8186 = vunpack.c.l.b16 %v7433
    %v8187 = vunpack.c.h.b16 %v7433
    %v8188 = vunpack.c.l.b16 %v7434
    %v8189 = vunpack.c.h.b16 %v7434
    %v8190 = vunpack.c.l.b16 %v7435
    %v8191 = vunpack.c.h.b16 %v7435
    %v8192 = vunpack.c.l.b16 %v7436
    %v8193 = vunpack.c.h.b16 %v7436
    %v8194 = vunpack.c.l.b16 %v7437
    %v8195 = vunpack.c.h.b16 %v7437
    %v8196 = vunpack.c.l.b16 %v7438
    %v8197 = vunpack.c.h.b16 %v7438
    %v8198 = vunpack.c.l.b16 %v7439
    %v8199 = vunpack.c.h.b16 %v7439
    %v8200 = vunpack.c.l.b16 %v7440
    %v8201 = vunpack.c.h.b16 %v7440
    %v8202 = vunpack.c.l.b16 %v7441
    %v8203 = vunpack.c.h.b16 %v7441
    %v8204 = vunpack.c.l.b16 %v7442
    %v8205 = vunpack.c.h.b16 %v7442
    %v8206 = vunpack.c.l.b16 %v7443
    %v8207 = vunpack.c.h.b16 %v7443
    %v8208 = vunpack.c.l.b16 %v7444
    %v8209 = vunpack.c.h.b16 %v7444
    %v8210 = vunpack.c.l.b16 %v7445
    %v8211 = vunpack.c.h.b16 %v7445
    %v8212 = vunpack.c.l.b16 %v7446
    %v8213 = vunpack.c.h.b16 %v7446
    %v8214 = vunpack.c.l.b16 %v7447
    %v8215 = vunpack.c.h.b16 %v7447
    %v8216 = vunpack.c.l.b16 %v7448
    %v8217 = vunpack.c.h.b16 %v7448
    %v8218 = vunpack.c.l.b16 %v7449
    %v8219 = vunpack.c.h.b16 %v7449
    %v8220 = vunpack.c.l.b16 %v7450
    %v8221 = vunpack.c.h.b16 %v7450
    %v8222 = vunpack.c.l.b16 %v7451
    %v8223 = vunpack.c.h.b16 %v7451
    %v8224 = vunpack.c.l.b16 %v7452
    %v8225 = vunpack.c.h.b16 %v7452
    %v8226 = vunpack.c.l.b16 %v7453
    %v8227 = vunpack.c.h.b16 %v7453
    %v8228 = vpack.c.b16 %v7718, %v7716
    %v8229 = vpack.c.b16 %v7719, %v7717
    %v8230 = vpack.c.b16 %v7722, %v7720
    %v8231 = vpack.c.b16 %v7723, %v7721
    %v8232 = vpack.c.b16 %v7726, %v7724
    %v8233 = vpack.c.b16 %v7727, %v7725
    %v8234 = vpack.c.b16 %v7730, %v7728
    %v8235 = vpack.c.b16 %v7731, %v7729
    %v8236 = vpack.c.b16 %v7734, %v7732
    %v8237 = vpack.c.b16 %v7735, %v7733
    %v8238 = vpack.c.b16 %v7738, %v7736
    %v8239 = vpack.c.b16 %v7739, %v7737
    %v8240 = vpack.c.b16 %v7742, %v7740
    %v8241 = vpack.c.b16 %v7743, %v7741
    %v8242 = vpack.c.b16 %v7746, %v7744
    %v8243 = vpack.c.b16 %v7747, %v7745
    %v8244 = vpack.c.b16 %v7750, %v7748
    %v8245 = vpack.c.b16 %v7751, %v7749
    %v8246 = vpack.c.b16 %v7754, %v7752
    %v8247 = vpack.c.b16 %v7755, %v7753
    %v8248 = vpack.c.b16 %v7758, %v7756
    %v8249 = vpack.c.b16 %v7759, %v7757
    %v8250 = vpack.c.b16 %v7762, %v7760
    %v8251 = vpack.c.b16 %v7763, %v7761
    %v8252 = vpack.c.b16 %v7766, %v7764
    %v8253 = vpack.c.b16 %v7767, %v7765
    %v8254 = vpack.c.b16 %v7770, %v7768
    %v8255 = vpack.c.b16 %v7771, %v7769
    %v8256 = vpack.c.b16 %v7774, %v7772
    %v8257 = vpack.c.b16 %v7775, %v7773
    %v8258 = vpack.c.b16 %v7778, %v7776
    %v8259 = vpack.c.b16 %v7779, %v7777
    %v8260 = vpack.c.b16 %v7782, %v7780
    %v8261 = vpack.c.b16 %v7783, %v7781
    %v8262 = vpack.c.b16 %v7786, %v7784
    %v8263 = vpack.c.b16 %v7787, %v7785
    %v8264 = vpack.c.b16 %v7790, %v7788
    %v8265 = vpack.c.b16 %v7791, %v7789
    %v8266 = vpack.c.b16 %v7794, %v7792
    %v8267 = vpack.c.b16 %v7795, %v7793
    %v8268 = vpack.c.b16 %v7798, %v7796
    %v8269 = vpack.c.b16 %v7799, %v7797
    %v8270 = vpack.c.b16 %v7802, %v7800
    %v8271 = vpack.c.b16 %v7803, %v7801
    %v8272 = vpack.c.b16 %v7806, %v7804
    %v8273 = vpack.c.b16 %v7807, %v7805
    %v8274 = vpack.c.b16 %v7810, %v7808
    %v8275 = vpack.c.b16 %v7811, %v7809
    %v8276 = vpack.c.b16 %v7814, %v7812
    %v8277 = vpack.c.b16 %v7815, %v7813
    %v8278 = vpack.c.b16 %v7818, %v7816
    %v8279 = vpack.c.b16 %v7819, %v7817
    %v8280 = vpack.c.b16 %v7822, %v7820
    %v8281 = vpack.c.b16 %v7823, %v7821
    %v8282 = vpack.c.b16 %v7826, %v7824
    %v8283 = vpack.c.b16 %v7827, %v7825
    %v8284 = vpack.c.b16 %v7830, %v7828
    %v8285 = vpack.c.b16 %v7831, %v7829
    %v8286 = vpack.c.b16 %v7834, %v7832
    %v8287 = vpack.c.b16 %v7835, %v7833
    %v8288 = vpack.c.b16 %v7838, %v7836
    %v8289 = vpack.c.b16 %v7839, %v7837
    %v8290 = vpack.c.b16 %v7842, %v7840
    %v8291 = vpack.c.b16 %v7843, %v7841
    %v8292 = vpack.c.b16 %v7846, %v7844
    %v8293 = vpack.c.b16 %v7847, %v7845
    %v8294 = vpack.c.b16 %v7850, %v7848
    %v8295 = vpack.c.b16 %v7851, %v7849
    %v8296 = vpack.c.b16 %v7854, %v7852
    %v8297 = vpack.c.b16 %v7855, %v7853
    %v8298 = vpack.c.b16 %v7858, %v7856
    %v8299 = vpack.c.b16 %v7859, %v7857
    %v8300 = vpack.c.b16 %v7862, %v7860
    %v8301 = vpack.c.b16 %v7863, %v7861
    %v8302 = vpack.c.b16 %v7866, %v7864
    %v8303 = vpack.c.b16 %v7867, %v7865
    %v8304 = vpack.c.b16 %v7870, %v7868
    %v8305 = vpack.c.b16 %v7871, %v7869
    %v8306 = vpack.c.b16 %v7874, %v7872
    %v8307 = vpack.c.b16 %v7875, %v7873
    %v8308 = vpack.c.b16 %v7878, %v7876
    %v8309 = vpack.c.b16 %v7879, %v7877
    %v8310 = vpack.c.b16 %v7882, %v7880
    %v8311 = vpack.c.b16 %v7883, %v7881
    %v8312 = vpack.c.b16 %v7886, %v7884
    %v8313 = vpack.c.b16 %v7887, %v7885
    %v8314 = vpack.c.b16 %v7890, %v7888
    %v8315 = vpack.c.b16 %v7891, %v7889
    %v8316 = vpack.c.b16 %v7894, %v7892
    %v8317 = vpack.c.b16 %v7895, %v7893
    %v8318 = vpack.c.b16 %v7898, %v7896
    %v8319 = vpack.c.b16 %v7899, %v7897
    %v8320 = vpack.c.b16 %v7902, %v7900
    %v8321 = vpack.c.b16 %v7903, %v7901
    %v8322 = vpack.c.b16 %v7906, %v7904
    %v8323 = vpack.c.b16 %v7907, %v7905
    %v8324 = vpack.c.b16 %v7910, %v7908
    %v8325 = vpack.c.b16 %v7911, %v7909
    %v8326 = vpack.c.b16 %v7914, %v7912
    %v8327 = vpack.c.b16 %v7915, %v7913
    %v8328 = vpack.c.b16 %v7918, %v7916
    %v8329 = vpack.c.b16 %v7919, %v7917
    %v8330 = vpack.c.b16 %v7922, %v7920
    %v8331 = vpack.c.b16 %v7923, %v7921
    %v8332 = vpack.c.b16 %v7926, %v7924
    %v8333 = vpack.c.b16 %v7927, %v7925
    %v8334 = vpack.c.b16 %v7930, %v7928
    %v8335 = vpack.c.b16 %v7931, %v7929
    %v8336 = vpack.c.b16 %v7934, %v7932
    %v8337 = vpack.c.b16 %v7935, %v7933
    %v8338 = vpack.c.b16 %v7938, %v7936
    %v8339 = vpack.c.b16 %v7939, %v7937
    %v8340 = vpack.c.b16 %v7942, %v7940
    %v8341 = vpack.c.b16 %v7943, %v7941
    %v8342 = vpack.c.b16 %v7946, %v7944
    %v8343 = vpack.c.b16 %v7947, %v7945
    %v8344 = vpack.c.b16 %v7950, %v7948
    %v8345 = vpack.c.b16 %v7951, %v7949
    %v8346 = vpack.c.b16 %v7954, %v7952
    %v8347 = vpack.c.b16 %v7955, %v7953
    %v8348 = vpack.c.b16 %v7958, %v7956
    %v8349 = vpack.c.b16 %v7959, %v7957
    %v8350 = vpack.c.b16 %v7962, %v7960
    %v8351 = vpack.c.b16 %v7963, %v7961
    %v8352 = vpack.c.b16 %v7966, %v7964
    %v8353 = vpack.c.b16 %v7967, %v7965
    %v8354 = vpack.c.b16 %v7970, %v7968
    %v8355 = vpack.c.b16 %v7971, %v7969
    %v8356 = vpack.c.b16 %v7974, %v7972
    %v8357 = vpack.c.b16 %v7975, %v7973
    %v8358 = vpack.c.b16 %v7978, %v7976
    %v8359 = vpack.c.b16 %v7979, %v7977
    %v8360 = vpack.c.b16 %v7982, %v7980
    %v8361 = vpack.c.b16 %v7983, %v7981
    %v8362 = vpack.c.b16 %v7986, %v7984
    %v8363 = vpack.c.b16 %v7987, %v7985
    %v8364 = vpack.c.b16 %v7990, %v7988
    %v8365 = vpack.c.b16 %v7991, %v7989
    %v8366 = vpack.c.b16 %v7994, %v7992
    %v8367 = vpack.c.b16 %v7995, %v7993
    %v8368 = vpack.c.b16 %v7998, %v7996
    %v8369 = vpack.c.b16 %v7999, %v7997
    %v8370 = vpack.c.b16 %v8002, %v8000
    %v8371 = vpack.c.b16 %v8003, %v8001
    %v8372 = vpack.c.b16 %v8006, %v8004
    %v8373 = vpack.c.b16 %v8007, %v8005
    %v8374 = vpack.c.b16 %v8010, %v8008
    %v8375 = vpack.c.b16 %v8011, %v8009
    %v8376 = vpack.c.b16 %v8014, %v8012
    %v8377 = vpack.c.b16 %v8015, %v8013
    %v8378 = vpack.c.b16 %v8018, %v8016
    %v8379 = vpack.c.b16 %v8019, %v8017
    %v8380 = vpack.c.b16 %v8022, %v8020
    %v8381 = vpack.c.b16 %v8023, %v8021
    %v8382 = vpack.c.b16 %v8026, %v8024
    %v8383 = vpack.c.b16 %v8027, %v8025
    %v8384 = vpack.c.b16 %v8030, %v8028
    %v8385 = vpack.c.b16 %v8031, %v8029
    %v8386 = vpack.c.b16 %v8034, %v8032
    %v8387 = vpack.c.b16 %v8035, %v8033
    %v8388 = vpack.c.b16 %v8038, %v8036
    %v8389 = vpack.c.b16 %v8039, %v8037
    %v8390 = vpack.c.b16 %v8042, %v8040
    %v8391 = vpack.c.b16 %v8043, %v8041
    %v8392 = vpack.c.b16 %v8046, %v8044
    %v8393 = vpack.c.b16 %v8047, %v8045
    %v8394 = vpack.c.b16 %v8050, %v8048
    %v8395 = vpack.c.b16 %v8051, %v8049
    %v8396 = vpack.c.b16 %v8054, %v8052
    %v8397 = vpack.c.b16 %v8055, %v8053
    %v8398 = vpack.c.b16 %v8058, %v8056
    %v8399 = vpack.c.b16 %v8059, %v8057
    %v8400 = vpack.c.b16 %v8062, %v8060
    %v8401 = vpack.c.b16 %v8063, %v8061
    %v8402 = vpack.c.b16 %v8066, %v8064
    %v8403 = vpack.c.b16 %v8067, %v8065
    %v8404 = vpack.c.b16 %v8070, %v8068
    %v8405 = vpack.c.b16 %v8071, %v8069
    %v8406 = vpack.c.b16 %v8074, %v8072
    %v8407 = vpack.c.b16 %v8075, %v8073
    %v8408 = vpack.c.b16 %v8078, %v8076
    %v8409 = vpack.c.b16 %v8079, %v8077
    %v8410 = vpack.c.b16 %v8082, %v8080
    %v8411 = vpack.c.b16 %v8083, %v8081
    %v8412 = vpack.c.b16 %v8086, %v8084
    %v8413 = vpack.c.b16 %v8087, %v8085
    %v8414 = vpack.c.b16 %v8090, %v8088
    %v8415 = vpack.c.b16 %v8091, %v8089
    %v8416 = vpack.c.b16 %v8094, %v8092
    %v8417 = vpack.c.b16 %v8095, %v8093
    %v8418 = vpack.c.b16 %v8098, %v8096
    %v8419 = vpack.c.b16 %v8099, %v8097
    %v8420 = vpack.c.b16 %v8102, %v8100
    %v8421 = vpack.c.b16 %v8103, %v8101
    %v8422 = vpack.c.b16 %v8106, %v8104
    %v8423 = vpack.c.b16 %v8107, %v8105
    %v8424 = vpack.c.b16 %v8110, %v8108
    %v8425 = vpack.c.b16 %v8111, %v8109
    %v8426 = vpack.c.b16 %v8114, %v8112
    %v8427 = vpack.c.b16 %v8115, %v8113
    %v8428 = vpack.c.b16 %v8118, %v8116
    %v8429 = vpack.c.b16 %v8119, %v8117
    %v8430 = vpack.c.b16 %v8122, %v8120
    %v8431 = vpack.c.b16 %v8123, %v8121
    %v8432 = vpack.c.b16 %v8126, %v8124
    %v8433 = vpack.c.b16 %v8127, %v8125
    %v8434 = vpack.c.b16 %v8130, %v8128
    %v8435 = vpack.c.b16 %v8131, %v8129
    %v8436 = vpack.c.b16 %v8134, %v8132
    %v8437 = vpack.c.b16 %v8135, %v8133
    %v8438 = vpack.c.b16 %v8138, %v8136
    %v8439 = vpack.c.b16 %v8139, %v8137
    %v8440 = vpack.c.b16 %v8142, %v8140
    %v8441 = vpack.c.b16 %v8143, %v8141
    %v8442 = vpack.c.b16 %v8146, %v8144
    %v8443 = vpack.c.b16 %v8147, %v8145
    %v8444 = vpack.c.b16 %v8150, %v8148
    %v8445 = vpack.c.b16 %v8151, %v8149
    %v8446 = vpack.c.b16 %v8154, %v8152
    %v8447 = vpack.c.b16 %v8155, %v8153
    %v8448 = vpack.c.b16 %v8158, %v8156
    %v8449 = vpack.c.b16 %v8159, %v8157
    %v8450 = vpack.c.b16 %v8162, %v8160
    %v8451 = vpack.c.b16 %v8163, %v8161
    %v8452 = vpack.c.b16 %v8166, %v8164
    %v8453 = vpack.c.b16 %v8167, %v8165
    %v8454 = vpack.c.b16 %v8170, %v8168
    %v8455 = vpack.c.b16 %v8171, %v8169
    %v8456 = vpack.c.b16 %v8174, %v8172
    %v8457 = vpack.c.b16 %v8175, %v8173
    %v8458 = vpack.c.b16 %v8178, %v8176
    %v8459 = vpack.c.b16 %v8179, %v8177
    %v8460 = vpack.c.b16 %v8182, %v8180
    %v8461 = vpack.c.b16 %v8183, %v8181
    %v8462 = vpack.c.b16 %v8186, %v8184
    %v8463 = vpack.c.b16 %v8187, %v8185
    %v8464 = vpack.c.b16 %v8190, %v8188
    %v8465 = vpack.c.b16 %v8191, %v8189
    %v8466 = vpack.c.b16 %v8194, %v8192
    %v8467 = vpack.c.b16 %v8195, %v8193
    %v8468 = vpack.c.b16 %v8198, %v8196
    %v8469 = vpack.c.b16 %v8199, %v8197
    %v8470 = vpack.c.b16 %v8202, %v8200
    %v8471 = vpack.c.b16 %v8203, %v8201
    %v8472 = vpack.c.b16 %v8206, %v8204
    %v8473 = vpack.c.b16 %v8207, %v8205
    %v8474 = vpack.c.b16 %v8210, %v8208
    %v8475 = vpack.c.b16 %v8211, %v8209
    %v8476 = vpack.c.b16 %v8214, %v8212
    %v8477 = vpack.c.b16 %v8215, %v8213
    %v8478 = vpack.c.b16 %v8218, %v8216
    %v8479 = vpack.c.b16 %v8219, %v8217
    %v8480 = vpack.c.b16 %v8222, %v8220
    %v8481 = vpack.c.b16 %v8223, %v8221
    %v8482 = vpack.c.b16 %v8226, %v8224
    %v8483 = vpack.c.b16 %v8227, %v8225
    %8740 = vmatpush.bf16.msra.mxu0 %v8242
    %8741 = vmatpush.bf16.msra.mxu0 %v8240
    %8742 = vmatpush.bf16.msra.mxu0 %v8238
    %8743 = vmatpush.bf16.msra.mxu0 %v8236
    %8744 = vmatpush.bf16.msra.mxu0 %v8234
    %8745 = vmatpush.bf16.msra.mxu0 %v8232
    %8746 = vmatpush.bf16.msra.mxu0 %v8230
    %8747 = vmatpush.bf16.msra.mxu0 %v8228
    %8748 = vmatmul.bf16.gmra.mxu0 %v7140
    %v8749 = vpop.f32.mrf.mxu0
    %v8750 = vadd.f32 %v7456, %v8749
    %v8751 = vpop.f32.mrf.mxu0
    %v8752 = vadd.f32 %v7456, %v8751
    %8753 = vdwg.mxu0
    %8754 = vmatpush.bf16.msra.mxu0 %v8258
    %8755 = vmatpush.bf16.msra.mxu0 %v8256
    %8756 = vmatpush.bf16.msra.mxu0 %v8254
    %8757 = vmatpush.bf16.msra.mxu0 %v8252
    %8758 = vmatpush.bf16.msra.mxu0 %v8250
    %8759 = vmatpush.bf16.msra.mxu0 %v8248
    %8760 = vmatpush.bf16.msra.mxu0 %v8246
    %8761 = vmatpush.bf16.msra.mxu0 %v8244
    %8762 = vmatmul.bf16.gmra.mxu0 %v7144
    %v8763 = vpop.f32.mrf.mxu0
    %v8764 = vadd.f32 %v8750, %v8763
    %v8765 = vpop.f32.mrf.mxu0
    %v8766 = vadd.f32 %v8752, %v8765
    %8767 = vdwg.mxu0
    %8768 = vmatpush.bf16.msra.mxu0 %v8274
    %8769 = vmatpush.bf16.msra.mxu0 %v8272
    %8770 = vmatpush.bf16.msra.mxu0 %v8270
    %8771 = vmatpush.bf16.msra.mxu0 %v8268
    %8772 = vmatpush.bf16.msra.mxu0 %v8266
    %8773 = vmatpush.bf16.msra.mxu0 %v8264
    %8774 = vmatpush.bf16.msra.mxu0 %v8262
    %8775 = vmatpush.bf16.msra.mxu0 %v8260
    %8776 = vmatmul.bf16.gmra.mxu0 %v7148
    %v8777 = vpop.f32.mrf.mxu0
    %v8778 = vadd.f32 %v8764, %v8777
    %v8779 = vpop.f32.mrf.mxu0
    %v8780 = vadd.f32 %v8766, %v8779
    %8781 = vdwg.mxu0
    %8782 = vmatpush.bf16.msra.mxu0 %v8290
    %8783 = vmatpush.bf16.msra.mxu0 %v8288
    %8784 = vmatpush.bf16.msra.mxu0 %v8286
    %8785 = vmatpush.bf16.msra.mxu0 %v8284
    %8786 = vmatpush.bf16.msra.mxu0 %v8282
    %8787 = vmatpush.bf16.msra.mxu0 %v8280
    %8788 = vmatpush.bf16.msra.mxu0 %v8278
    %8789 = vmatpush.bf16.msra.mxu0 %v8276
    %8790 = vmatmul.bf16.gmra.mxu0 %v7152
    %v8791 = vpop.f32.mrf.mxu0
    %v8792 = vadd.f32 %v8778, %v8791
    %v8793 = vpop.f32.mrf.mxu0
    %v8794 = vadd.f32 %v8780, %v8793
    %8795 = vdwg.mxu0
    %8796 = vmatpush.bf16.msra.mxu0 %v8306
    %8797 = vmatpush.bf16.msra.mxu0 %v8304
    %8798 = vmatpush.bf16.msra.mxu0 %v8302
    %8799 = vmatpush.bf16.msra.mxu0 %v8300
    %8800 = vmatpush.bf16.msra.mxu0 %v8298
    %8801 = vmatpush.bf16.msra.mxu0 %v8296
    %8802 = vmatpush.bf16.msra.mxu0 %v8294
    %8803 = vmatpush.bf16.msra.mxu0 %v8292
    %8804 = vmatmul.bf16.gmra.mxu0 %v7158
    %v8805 = vpop.f32.mrf.mxu0
    %v8806 = vadd.f32 %v8792, %v8805
    %v8807 = vpop.f32.mrf.mxu0
    %v8808 = vadd.f32 %v8794, %v8807
    %8809 = vdwg.mxu0
    %8810 = vmatpush.bf16.msra.mxu0 %v8322
    %8811 = vmatpush.bf16.msra.mxu0 %v8320
    %8812 = vmatpush.bf16.msra.mxu0 %v8318
    %8813 = vmatpush.bf16.msra.mxu0 %v8316
    %8814 = vmatpush.bf16.msra.mxu0 %v8314
    %8815 = vmatpush.bf16.msra.mxu0 %v8312
    %8816 = vmatpush.bf16.msra.mxu0 %v8310
    %8817 = vmatpush.bf16.msra.mxu0 %v8308
    %8818 = vmatmul.bf16.gmra.mxu0 %v7162
    %v8819 = vpop.f32.mrf.mxu0
    %v8820 = vadd.f32 %v8806, %v8819
    %v8821 = vpop.f32.mrf.mxu0
    %v8822 = vadd.f32 %v8808, %v8821
    %8823 = vdwg.mxu0
    %8824 = vmatpush.bf16.msra.mxu0 %v8338
    %8825 = vmatpush.bf16.msra.mxu0 %v8336
    %8826 = vmatpush.bf16.msra.mxu0 %v8334
    %8827 = vmatpush.bf16.msra.mxu0 %v8332
    %8828 = vmatpush.bf16.msra.mxu0 %v8330
    %8829 = vmatpush.bf16.msra.mxu0 %v8328
    %8830 = vmatpush.bf16.msra.mxu0 %v8326
    %8831 = vmatpush.bf16.msra.mxu0 %v8324
    %8832 = vmatmul.bf16.gmra.mxu0 %v7166
    %v8833 = vpop.f32.mrf.mxu0
    %v8834 = vadd.f32 %v8820, %v8833
    %v8835 = vpop.f32.mrf.mxu0
    %v8836 = vadd.f32 %v8822, %v8835
    %8837 = vdwg.mxu0
    %8838 = vmatpush.bf16.msra.mxu0 %v8354
    %8839 = vmatpush.bf16.msra.mxu0 %v8352
    %8840 = vmatpush.bf16.msra.mxu0 %v8350
    %8841 = vmatpush.bf16.msra.mxu0 %v8348
    %8842 = vmatpush.bf16.msra.mxu0 %v8346
    %8843 = vmatpush.bf16.msra.mxu0 %v8344
    %8844 = vmatpush.bf16.msra.mxu0 %v8342
    %8845 = vmatpush.bf16.msra.mxu0 %v8340
    %8846 = vmatmul.bf16.gmra.mxu0 %v7170
    %v8847 = vpop.f32.mrf.mxu0
    %v8848 = vadd.f32 %v8834, %v8847
    %v8849 = vpop.f32.mrf.mxu0
    %v8850 = vadd.f32 %v8836, %v8849
    %8851 = vdwg.mxu0
    %8852 = vmatpush.bf16.msra.mxu0 %v8370
    %8853 = vmatpush.bf16.msra.mxu0 %v8368
    %8854 = vmatpush.bf16.msra.mxu0 %v8366
    %8855 = vmatpush.bf16.msra.mxu0 %v8364
    %8856 = vmatpush.bf16.msra.mxu0 %v8362
    %8857 = vmatpush.bf16.msra.mxu0 %v8360
    %8858 = vmatpush.bf16.msra.mxu0 %v8358
    %8859 = vmatpush.bf16.msra.mxu0 %v8356
    %8860 = vmatmul.bf16.gmra.mxu0 %v7174
    %v8861 = vpop.f32.mrf.mxu0
    %v8862 = vadd.f32 %v8848, %v8861
    %v8863 = vpop.f32.mrf.mxu0
    %v8864 = vadd.f32 %v8850, %v8863
    %8865 = vdwg.mxu0
    %8866 = vmatpush.bf16.msra.mxu0 %v8386
    %8867 = vmatpush.bf16.msra.mxu0 %v8384
    %8868 = vmatpush.bf16.msra.mxu0 %v8382
    %8869 = vmatpush.bf16.msra.mxu0 %v8380
    %8870 = vmatpush.bf16.msra.mxu0 %v8378
    %8871 = vmatpush.bf16.msra.mxu0 %v8376
    %8872 = vmatpush.bf16.msra.mxu0 %v8374
    %8873 = vmatpush.bf16.msra.mxu0 %v8372
    %8874 = vmatmul.bf16.gmra.mxu0 %v7177
    %v8875 = vpop.f32.mrf.mxu0
    %v8876 = vadd.f32 %v8862, %v8875
    %v8877 = vpop.f32.mrf.mxu0
    %v8878 = vadd.f32 %v8864, %v8877
    %8879 = vdwg.mxu0
    %8880 = vmatpush.bf16.msra.mxu0 %v8402
    %8881 = vmatpush.bf16.msra.mxu0 %v8400
    %8882 = vmatpush.bf16.msra.mxu0 %v8398
    %8883 = vmatpush.bf16.msra.mxu0 %v8396
    %8884 = vmatpush.bf16.msra.mxu0 %v8394
    %8885 = vmatpush.bf16.msra.mxu0 %v8392
    %8886 = vmatpush.bf16.msra.mxu0 %v8390
    %8887 = vmatpush.bf16.msra.mxu0 %v8388
    %8888 = vmatmul.bf16.gmra.mxu0 %v7180
    %v8889 = vpop.f32.mrf.mxu0
    %v8890 = vadd.f32 %v8876, %v8889
    %v8891 = vpop.f32.mrf.mxu0
    %v8892 = vadd.f32 %v8878, %v8891
    %8893 = vdwg.mxu0
    %8894 = vmatpush.bf16.msra.mxu0 %v8418
    %8895 = vmatpush.bf16.msra.mxu0 %v8416
    %8896 = vmatpush.bf16.msra.mxu0 %v8414
    %8897 = vmatpush.bf16.msra.mxu0 %v8412
    %8898 = vmatpush.bf16.msra.mxu0 %v8410
    %8899 = vmatpush.bf16.msra.mxu0 %v8408
    %8900 = vmatpush.bf16.msra.mxu0 %v8406
    %8901 = vmatpush.bf16.msra.mxu0 %v8404
    %8902 = vmatmul.bf16.gmra.mxu0 %v7183
    %v8903 = vpop.f32.mrf.mxu0
    %v8904 = vadd.f32 %v8890, %v8903
    %v8905 = vpop.f32.mrf.mxu0
    %v8906 = vadd.f32 %v8892, %v8905
    %8907 = vdwg.mxu0
    %8908 = vmatpush.bf16.msra.mxu0 %v8434
    %8909 = vmatpush.bf16.msra.mxu0 %v8432
    %8910 = vmatpush.bf16.msra.mxu0 %v8430
    %8911 = vmatpush.bf16.msra.mxu0 %v8428
    %8912 = vmatpush.bf16.msra.mxu0 %v8426
    %8913 = vmatpush.bf16.msra.mxu0 %v8424
    %8914 = vmatpush.bf16.msra.mxu0 %v8422
    %8915 = vmatpush.bf16.msra.mxu0 %v8420
    %8916 = vmatmul.bf16.gmra.mxu0 %v7187
    %v8917 = vpop.f32.mrf.mxu0
    %v8918 = vadd.f32 %v8904, %v8917
    %v8919 = vpop.f32.mrf.mxu0
    %v8920 = vadd.f32 %v8906, %v8919
    %8921 = vdwg.mxu0
    %8922 = vmatpush.bf16.msra.mxu0 %v8450
    %8923 = vmatpush.bf16.msra.mxu0 %v8448
    %8924 = vmatpush.bf16.msra.mxu0 %v8446
    %8925 = vmatpush.bf16.msra.mxu0 %v8444
    %8926 = vmatpush.bf16.msra.mxu0 %v8442
    %8927 = vmatpush.bf16.msra.mxu0 %v8440
    %8928 = vmatpush.bf16.msra.mxu0 %v8438
    %8929 = vmatpush.bf16.msra.mxu0 %v8436
    %8930 = vmatmul.bf16.gmra.mxu0 %v7190
    %v8931 = vpop.f32.mrf.mxu0
    %v8932 = vadd.f32 %v8918, %v8931
    %v8933 = vpop.f32.mrf.mxu0
    %v8934 = vadd.f32 %v8920, %v8933
    %8935 = vdwg.mxu0
    %8936 = vmatpush.bf16.msra.mxu0 %v8466
    %8937 = vmatpush.bf16.msra.mxu0 %v8464
    %8938 = vmatpush.bf16.msra.mxu0 %v8462
    %8939 = vmatpush.bf16.msra.mxu0 %v8460
    %8940 = vmatpush.bf16.msra.mxu0 %v8458
    %8941 = vmatpush.bf16.msra.mxu0 %v8456
    %8942 = vmatpush.bf16.msra.mxu0 %v8454
    %8943 = vmatpush.bf16.msra.mxu0 %v8452
    %8944 = vmatmul.bf16.gmra.mxu0 %v7193
    %v8945 = vpop.f32.mrf.mxu0
    %v8946 = vadd.f32 %v8932, %v8945
    %v8947 = vpop.f32.mrf.mxu0
    %v8948 = vadd.f32 %v8934, %v8947
    %8949 = vdwg.mxu0
    %8950 = vmatpush.bf16.msra.mxu0 %v8482
    %8951 = vmatpush.bf16.msra.mxu0 %v8480
    %8952 = vmatpush.bf16.msra.mxu0 %v8478
    %8953 = vmatpush.bf16.msra.mxu0 %v8476
    %8954 = vmatpush.bf16.msra.mxu0 %v8474
    %8955 = vmatpush.bf16.msra.mxu0 %v8472
    %8956 = vmatpush.bf16.msra.mxu0 %v8470
    %8957 = vmatpush.bf16.msra.mxu0 %v8468
    %8958 = vmatmul.bf16.gmra.mxu0 %v7196
    %v8959 = vpop.f32.mrf.mxu0
    %v8960 = vadd.f32 %v8946, %v8959
    %v8961 = vpop.f32.mrf.mxu0
    %v8962 = vadd.f32 %v8948, %v8961
    %8963 = vdwg.mxu0
    %8964 = vmatpush.bf16.msra.mxu0 %v8243
    %8965 = vmatpush.bf16.msra.mxu0 %v8241
    %8966 = vmatpush.bf16.msra.mxu0 %v8239
    %8967 = vmatpush.bf16.msra.mxu0 %v8237
    %8968 = vmatpush.bf16.msra.mxu0 %v8235
    %8969 = vmatpush.bf16.msra.mxu0 %v8233
    %8970 = vmatpush.bf16.msra.mxu0 %v8231
    %8971 = vmatpush.bf16.msra.mxu0 %v8229
    %8972 = vmatmul.bf16.gmra.mxu0 %v7140
    %v8973 = vpop.f32.mrf.mxu0
    %v8974 = vadd.f32 %v7457, %v8973
    %v8975 = vpop.f32.mrf.mxu0
    %v8976 = vadd.f32 %v7457, %v8975
    %8977 = vdwg.mxu0
    %8978 = vmatpush.bf16.msra.mxu0 %v8259
    %8979 = vmatpush.bf16.msra.mxu0 %v8257
    %8980 = vmatpush.bf16.msra.mxu0 %v8255
    %8981 = vmatpush.bf16.msra.mxu0 %v8253
    %8982 = vmatpush.bf16.msra.mxu0 %v8251
    %8983 = vmatpush.bf16.msra.mxu0 %v8249
    %8984 = vmatpush.bf16.msra.mxu0 %v8247
    %8985 = vmatpush.bf16.msra.mxu0 %v8245
    %8986 = vmatmul.bf16.gmra.mxu0 %v7144
    %v8987 = vpop.f32.mrf.mxu0
    %v8988 = vadd.f32 %v8974, %v8987
    %v8989 = vpop.f32.mrf.mxu0
    %v8990 = vadd.f32 %v8976, %v8989
    %8991 = vdwg.mxu0
    %8992 = vmatpush.bf16.msra.mxu0 %v8275
    %8993 = vmatpush.bf16.msra.mxu0 %v8273
    %8994 = vmatpush.bf16.msra.mxu0 %v8271
    %8995 = vmatpush.bf16.msra.mxu0 %v8269
    %8996 = vmatpush.bf16.msra.mxu0 %v8267
    %8997 = vmatpush.bf16.msra.mxu0 %v8265
    %8998 = vmatpush.bf16.msra.mxu0 %v8263
    %8999 = vmatpush.bf16.msra.mxu0 %v8261
    %9000 = vmatmul.bf16.gmra.mxu0 %v7148
    %v9001 = vpop.f32.mrf.mxu0
    %v9002 = vadd.f32 %v8988, %v9001
    %v9003 = vpop.f32.mrf.mxu0
    %v9004 = vadd.f32 %v8990, %v9003
    %9005 = vdwg.mxu0
    %9006 = vmatpush.bf16.msra.mxu0 %v8291
    %9007 = vmatpush.bf16.msra.mxu0 %v8289
    %9008 = vmatpush.bf16.msra.mxu0 %v8287
    %9009 = vmatpush.bf16.msra.mxu0 %v8285
    %9010 = vmatpush.bf16.msra.mxu0 %v8283
    %9011 = vmatpush.bf16.msra.mxu0 %v8281
    %9012 = vmatpush.bf16.msra.mxu0 %v8279
    %9013 = vmatpush.bf16.msra.mxu0 %v8277
    %9014 = vmatmul.bf16.gmra.mxu0 %v7152
    %v9015 = vpop.f32.mrf.mxu0
    %v9016 = vadd.f32 %v9002, %v9015
    %v9017 = vpop.f32.mrf.mxu0
    %v9018 = vadd.f32 %v9004, %v9017
    %9019 = vdwg.mxu0
    %9020 = vmatpush.bf16.msra.mxu0 %v8307
    %9021 = vmatpush.bf16.msra.mxu0 %v8305
    %9022 = vmatpush.bf16.msra.mxu0 %v8303
    %9023 = vmatpush.bf16.msra.mxu0 %v8301
    %9024 = vmatpush.bf16.msra.mxu0 %v8299
    %9025 = vmatpush.bf16.msra.mxu0 %v8297
    %9026 = vmatpush.bf16.msra.mxu0 %v8295
    %9027 = vmatpush.bf16.msra.mxu0 %v8293
    %9028 = vmatmul.bf16.gmra.mxu0 %v7158
    %v9029 = vpop.f32.mrf.mxu0
    %v9030 = vadd.f32 %v9016, %v9029
    %v9031 = vpop.f32.mrf.mxu0
    %v9032 = vadd.f32 %v9018, %v9031
    %9033 = vdwg.mxu0
    %9034 = vmatpush.bf16.msra.mxu0 %v8323
    %9035 = vmatpush.bf16.msra.mxu0 %v8321
    %9036 = vmatpush.bf16.msra.mxu0 %v8319
    %9037 = vmatpush.bf16.msra.mxu0 %v8317
    %9038 = vmatpush.bf16.msra.mxu0 %v8315
    %9039 = vmatpush.bf16.msra.mxu0 %v8313
    %9040 = vmatpush.bf16.msra.mxu0 %v8311
    %9041 = vmatpush.bf16.msra.mxu0 %v8309
    %9042 = vmatmul.bf16.gmra.mxu0 %v7162
    %v9043 = vpop.f32.mrf.mxu0
    %v9044 = vadd.f32 %v9030, %v9043
    %v9045 = vpop.f32.mrf.mxu0
    %v9046 = vadd.f32 %v9032, %v9045
    %9047 = vdwg.mxu0
    %9048 = vmatpush.bf16.msra.mxu0 %v8339
    %9049 = vmatpush.bf16.msra.mxu0 %v8337
    %9050 = vmatpush.bf16.msra.mxu0 %v8335
    %9051 = vmatpush.bf16.msra.mxu0 %v8333
    %9052 = vmatpush.bf16.msra.mxu0 %v8331
    %9053 = vmatpush.bf16.msra.mxu0 %v8329
    %9054 = vmatpush.bf16.msra.mxu0 %v8327
    %9055 = vmatpush.bf16.msra.mxu0 %v8325
    %9056 = vmatmul.bf16.gmra.mxu0 %v7166
    %v9057 = vpop.f32.mrf.mxu0
    %v9058 = vadd.f32 %v9044, %v9057
    %v9059 = vpop.f32.mrf.mxu0
    %v9060 = vadd.f32 %v9046, %v9059
    %9061 = vdwg.mxu0
    %9062 = vmatpush.bf16.msra.mxu0 %v8355
    %9063 = vmatpush.bf16.msra.mxu0 %v8353
    %9064 = vmatpush.bf16.msra.mxu0 %v8351
    %9065 = vmatpush.bf16.msra.mxu0 %v8349
    %9066 = vmatpush.bf16.msra.mxu0 %v8347
    %9067 = vmatpush.bf16.msra.mxu0 %v8345
    %9068 = vmatpush.bf16.msra.mxu0 %v8343
    %9069 = vmatpush.bf16.msra.mxu0 %v8341
    %9070 = vmatmul.bf16.gmra.mxu0 %v7170
    %v9071 = vpop.f32.mrf.mxu0
    %v9072 = vadd.f32 %v9058, %v9071
    %v9073 = vpop.f32.mrf.mxu0
    %v9074 = vadd.f32 %v9060, %v9073
    %9075 = vdwg.mxu0
    %9076 = vmatpush.bf16.msra.mxu0 %v8371
    %9077 = vmatpush.bf16.msra.mxu0 %v8369
    %9078 = vmatpush.bf16.msra.mxu0 %v8367
    %9079 = vmatpush.bf16.msra.mxu0 %v8365
    %9080 = vmatpush.bf16.msra.mxu0 %v8363
    %9081 = vmatpush.bf16.msra.mxu0 %v8361
    %9082 = vmatpush.bf16.msra.mxu0 %v8359
    %9083 = vmatpush.bf16.msra.mxu0 %v8357
    %9084 = vmatmul.bf16.gmra.mxu0 %v7174
    %v9085 = vpop.f32.mrf.mxu0
    %v9086 = vadd.f32 %v9072, %v9085
    %v9087 = vpop.f32.mrf.mxu0
    %v9088 = vadd.f32 %v9074, %v9087
    %9089 = vdwg.mxu0
    %9090 = vmatpush.bf16.msra.mxu0 %v8387
    %9091 = vmatpush.bf16.msra.mxu0 %v8385
    %9092 = vmatpush.bf16.msra.mxu0 %v8383
    %9093 = vmatpush.bf16.msra.mxu0 %v8381
    %9094 = vmatpush.bf16.msra.mxu0 %v8379
    %9095 = vmatpush.bf16.msra.mxu0 %v8377
    %9096 = vmatpush.bf16.msra.mxu0 %v8375
    %9097 = vmatpush.bf16.msra.mxu0 %v8373
    %9098 = vmatmul.bf16.gmra.mxu0 %v7177
    %v9099 = vpop.f32.mrf.mxu0
    %v9100 = vadd.f32 %v9086, %v9099
    %v9101 = vpop.f32.mrf.mxu0
    %v9102 = vadd.f32 %v9088, %v9101
    %9103 = vdwg.mxu0
    %9104 = vmatpush.bf16.msra.mxu0 %v8403
    %9105 = vmatpush.bf16.msra.mxu0 %v8401
    %9106 = vmatpush.bf16.msra.mxu0 %v8399
    %9107 = vmatpush.bf16.msra.mxu0 %v8397
    %9108 = vmatpush.bf16.msra.mxu0 %v8395
    %9109 = vmatpush.bf16.msra.mxu0 %v8393
    %9110 = vmatpush.bf16.msra.mxu0 %v8391
    %9111 = vmatpush.bf16.msra.mxu0 %v8389
    %9112 = vmatmul.bf16.gmra.mxu0 %v7180
    %v9113 = vpop.f32.mrf.mxu0
    %v9114 = vadd.f32 %v9100, %v9113
    %v9115 = vpop.f32.mrf.mxu0
    %v9116 = vadd.f32 %v9102, %v9115
    %9117 = vdwg.mxu0
    %9118 = vmatpush.bf16.msra.mxu0 %v8419
    %9119 = vmatpush.bf16.msra.mxu0 %v8417
    %9120 = vmatpush.bf16.msra.mxu0 %v8415
    %9121 = vmatpush.bf16.msra.mxu0 %v8413
    %9122 = vmatpush.bf16.msra.mxu0 %v8411
    %9123 = vmatpush.bf16.msra.mxu0 %v8409
    %9124 = vmatpush.bf16.msra.mxu0 %v8407
    %9125 = vmatpush.bf16.msra.mxu0 %v8405
    %9126 = vmatmul.bf16.gmra.mxu0 %v7183
    %v9127 = vpop.f32.mrf.mxu0
    %v9128 = vadd.f32 %v9114, %v9127
    %v9129 = vpop.f32.mrf.mxu0
    %v9130 = vadd.f32 %v9116, %v9129
    %9131 = vdwg.mxu0
    %9132 = vmatpush.bf16.msra.mxu0 %v8435
    %9133 = vmatpush.bf16.msra.mxu0 %v8433
    %9134 = vmatpush.bf16.msra.mxu0 %v8431
    %9135 = vmatpush.bf16.msra.mxu0 %v8429
    %9136 = vmatpush.bf16.msra.mxu0 %v8427
    %9137 = vmatpush.bf16.msra.mxu0 %v8425
    %9138 = vmatpush.bf16.msra.mxu0 %v8423
    %9139 = vmatpush.bf16.msra.mxu0 %v8421
    %9140 = vmatmul.bf16.gmra.mxu0 %v7187
    %v9141 = vpop.f32.mrf.mxu0
    %v9142 = vadd.f32 %v9128, %v9141
    %v9143 = vpop.f32.mrf.mxu0
    %v9144 = vadd.f32 %v9130, %v9143
    %9145 = vdwg.mxu0
    %9146 = vmatpush.bf16.msra.mxu0 %v8451
    %9147 = vmatpush.bf16.msra.mxu0 %v8449
    %9148 = vmatpush.bf16.msra.mxu0 %v8447
    %9149 = vmatpush.bf16.msra.mxu0 %v8445
    %9150 = vmatpush.bf16.msra.mxu0 %v8443
    %9151 = vmatpush.bf16.msra.mxu0 %v8441
    %9152 = vmatpush.bf16.msra.mxu0 %v8439
    %9153 = vmatpush.bf16.msra.mxu0 %v8437
    %9154 = vmatmul.bf16.gmra.mxu0 %v7190
    %v9155 = vpop.f32.mrf.mxu0
    %v9156 = vadd.f32 %v9142, %v9155
    %v9157 = vpop.f32.mrf.mxu0
    %v9158 = vadd.f32 %v9144, %v9157
    %9159 = vdwg.mxu0
    %9160 = vmatpush.bf16.msra.mxu0 %v8467
    %9161 = vmatpush.bf16.msra.mxu0 %v8465
    %9162 = vmatpush.bf16.msra.mxu0 %v8463
    %9163 = vmatpush.bf16.msra.mxu0 %v8461
    %9164 = vmatpush.bf16.msra.mxu0 %v8459
    %9165 = vmatpush.bf16.msra.mxu0 %v8457
    %9166 = vmatpush.bf16.msra.mxu0 %v8455
    %9167 = vmatpush.bf16.msra.mxu0 %v8453
    %9168 = vmatmul.bf16.gmra.mxu0 %v7193
    %v9169 = vpop.f32.mrf.mxu0
    %v9170 = vadd.f32 %v9156, %v9169
    %v9171 = vpop.f32.mrf.mxu0
    %v9172 = vadd.f32 %v9158, %v9171
    %9173 = vdwg.mxu0
    %9174 = vmatpush.bf16.msra.mxu0 %v8483
    %9175 = vmatpush.bf16.msra.mxu0 %v8481
    %9176 = vmatpush.bf16.msra.mxu0 %v8479
    %9177 = vmatpush.bf16.msra.mxu0 %v8477
    %9178 = vmatpush.bf16.msra.mxu0 %v8475
    %9179 = vmatpush.bf16.msra.mxu0 %v8473
    %9180 = vmatpush.bf16.msra.mxu0 %v8471
    %9181 = vmatpush.bf16.msra.mxu0 %v8469
    %9182 = vmatmul.bf16.gmra.mxu0 %v7196
    %v9183 = vpop.f32.mrf.mxu0
    %v9184 = vadd.f32 %v9170, %v9183
    %v9185 = vpop.f32.mrf.mxu0
    %v9186 = vadd.f32 %v9172, %v9185
    %9187 = vdwg.mxu0
    %v9188 = vmax.f32 %v8960, 0.0
    %v9189 = vmax.f32 %v9184, 0.0
    %v9190 = vmax.f32 %v8962, 0.0
    %v9191 = vmax.f32 %v9186, 0.0
    %v9192 = vpack.c.bf16 %v9189, %v9188
    %v9193 = vpack.c.bf16 %v9191, %v9190
    %v9194 = vld [vmem:[%s12] sm:$0x1]
    %v9195 = vld [vmem:[%s11] sm:$0xf]
    %v9196 = vld [vmem:[%s11 + $0x4] sm:$0xf]
    %v9197 = vld [vmem:[%s11 + $0x8] sm:$0xf]
    %v9198 = vld [vmem:[%s11 + $0xc] sm:$0xf]
    %v9199 = vld [vmem:[%s11 + $0x10] sm:$0xf]
    %v9200 = vld [vmem:[%s11 + $0x14] sm:$0xf]
    %v9201 = vld [vmem:[%s11 + $0x18] sm:$0xf]
    %v9202 = vld [vmem:[%s11 + $0x1c] sm:$0xf]
    %v9203 = vld [vmem:[%s11 + $0x20] sm:$0xf]
    %v9204 = vld [vmem:[%s11 + $0x24] sm:$0xf]
    %v9205 = vld [vmem:[%s11 + $0x28] sm:$0xf]
    %v9206 = vld [vmem:[%s11 + $0x2c] sm:$0xf]
    %v9207 = vld [vmem:[%s11 + $0x30] sm:$0xf]
    %v9208 = vld [vmem:[%s11 + $0x34] sm:$0xf]
    %v9209 = vld [vmem:[%s11 + $0x38] sm:$0xf]
    %v9210 = vld [vmem:[%s11 + $0x3c] sm:$0xf]
    %v9211 = vld [vmem:[%s11 + $0x40] sm:$0xf]
    %v9212 = vld [vmem:[%s11 + $0x44] sm:$0xf]
    %v9213 = vld [vmem:[%s11 + $0x48] sm:$0xf]
    %v9214 = vld [vmem:[%s11 + $0x4c] sm:$0xf]
    %v9215 = vld [vmem:[%s11 + $0x50] sm:$0xf]
    %v9216 = vld [vmem:[%s11 + $0x54] sm:$0xf]
    %v9217 = vld [vmem:[%s11 + $0x58] sm:$0xf]
    %v9218 = vld [vmem:[%s11 + $0x5c] sm:$0xf]
    %v9219 = vld [vmem:[%s11 + $0x60] sm:$0xf]
    %v9220 = vld [vmem:[%s11 + $0x64] sm:$0xf]
    %v9221 = vld [vmem:[%s11 + $0x68] sm:$0xf]
    %v9222 = vld [vmem:[%s11 + $0x6c] sm:$0xf]
    %v9223 = vld [vmem:[%s11 + $0x70] sm:$0xf]
    %v9224 = vld [vmem:[%s11 + $0x74] sm:$0xf]
    %v9225 = vld [vmem:[%s11 + $0x78] sm:$0xf]
    %v9226 = vld [vmem:[%s11 + $0x7c] sm:$0xf]
    %v9228 = vunpack.c.l.b16 %v9192
    %v9229 = vunpack.c.h.b16 %v9192
    %v9230 = vpack.c.b16 %v9228, %v9228
    %v9231 = vpack.c.b16 %v9229, %v9229
    %v9266 = vunpack.c.l.b16 %v9195
    %v9267 = vunpack.c.l.b16 %v9196
    %v9268 = vunpack.c.l.b16 %v9197
    %v9269 = vunpack.c.l.b16 %v9198
    %v9270 = vunpack.c.l.b16 %v9199
    %v9271 = vunpack.c.l.b16 %v9200
    %v9272 = vunpack.c.l.b16 %v9201
    %v9273 = vunpack.c.l.b16 %v9202
    %v9274 = vunpack.c.l.b16 %v9203
    %v9275 = vunpack.c.l.b16 %v9204
    %v9276 = vunpack.c.l.b16 %v9205
    %v9277 = vunpack.c.l.b16 %v9206
    %v9278 = vunpack.c.l.b16 %v9207
    %v9279 = vunpack.c.l.b16 %v9208
    %v9280 = vunpack.c.l.b16 %v9209
    %v9281 = vunpack.c.l.b16 %v9210
    %v9282 = vunpack.c.l.b16 %v9211
    %v9283 = vunpack.c.l.b16 %v9212
    %v9284 = vunpack.c.l.b16 %v9213
    %v9285 = vunpack.c.l.b16 %v9214
    %v9286 = vunpack.c.l.b16 %v9215
    %v9287 = vunpack.c.l.b16 %v9216
    %v9288 = vunpack.c.l.b16 %v9217
    %v9289 = vunpack.c.l.b16 %v9218
    %v9290 = vunpack.c.l.b16 %v9219
    %v9291 = vunpack.c.l.b16 %v9220
    %v9292 = vunpack.c.l.b16 %v9221
    %v9293 = vunpack.c.l.b16 %v9222
    %v9294 = vunpack.c.l.b16 %v9223
    %v9295 = vunpack.c.l.b16 %v9224
    %v9296 = vunpack.c.l.b16 %v9225
    %v9297 = vunpack.c.l.b16 %v9226
    %v9298 = vpack.c.b16 %v9267, %v9266
    %v9299 = vpack.c.b16 %v9269, %v9268
    %v9300 = vpack.c.b16 %v9271, %v9270
    %v9301 = vpack.c.b16 %v9273, %v9272
    %v9302 = vpack.c.b16 %v9275, %v9274
    %v9303 = vpack.c.b16 %v9277, %v9276
    %v9304 = vpack.c.b16 %v9279, %v9278
    %v9305 = vpack.c.b16 %v9281, %v9280
    %v9306 = vpack.c.b16 %v9283, %v9282
    %v9307 = vpack.c.b16 %v9285, %v9284
    %v9308 = vpack.c.b16 %v9287, %v9286
    %v9309 = vpack.c.b16 %v9289, %v9288
    %v9310 = vpack.c.b16 %v9291, %v9290
    %v9311 = vpack.c.b16 %v9293, %v9292
    %v9312 = vpack.c.b16 %v9295, %v9294
    %v9313 = vpack.c.b16 %v9297, %v9296
    %9330 = vmatpush.bf16.msra.mxu0 %v9305
    %9331 = vmatpush.bf16.msra.mxu0 %v9304
    %9332 = vmatpush.bf16.msra.mxu0 %v9303
    %9333 = vmatpush.bf16.msra.mxu0 %v9302
    %9334 = vmatpush.bf16.msra.mxu0 %v9301
    %9335 = vmatpush.bf16.msra.mxu0 %v9300
    %9336 = vmatpush.bf16.msra.mxu0 %v9299
    %9337 = vmatpush.bf16.msra.mxu0 %v9298
    %9338 = vmatmul.bf16.gmra.mxu0 %v9230
    %v9339 = vpop.f32.mrf.mxu0
    %v9340 = vadd.f32 0.0, %v9339
    %v9341 = vpop.f32.mrf.mxu0
    %9342 = vdwg.mxu0
    %9343 = vmatpush.bf16.msra.mxu0 %v9313
    %9344 = vmatpush.bf16.msra.mxu0 %v9312
    %9345 = vmatpush.bf16.msra.mxu0 %v9311
    %9346 = vmatpush.bf16.msra.mxu0 %v9310
    %9347 = vmatpush.bf16.msra.mxu0 %v9309
    %9348 = vmatpush.bf16.msra.mxu0 %v9308
    %9349 = vmatpush.bf16.msra.mxu0 %v9307
    %9350 = vmatpush.bf16.msra.mxu0 %v9306
    %9351 = vmatmul.bf16.gmra.mxu0 %v9231
    %v9352 = vpop.f32.mrf.mxu0
    %v9353 = vadd.f32 %v9340, %v9352
    %v9354 = vpop.f32.mrf.mxu0
    %9355 = vdwg.mxu0
    %v9356 = vadd.f32 %v9194, %v9353
    %v9357 = vld [vmem:[%s11 + $0x80] sm:$0xf]
    %v9358 = vld [vmem:[%s11 + $0x84] sm:$0xf]
    %v9359 = vld [vmem:[%s11 + $0x88] sm:$0xf]
    %v9360 = vld [vmem:[%s11 + $0x8c] sm:$0xf]
    %v9361 = vld [vmem:[%s11 + $0x90] sm:$0xf]
    %v9362 = vld [vmem:[%s11 + $0x94] sm:$0xf]
    %v9363 = vld [vmem:[%s11 + $0x98] sm:$0xf]
    %v9364 = vld [vmem:[%s11 + $0x9c] sm:$0xf]
    %v9365 = vld [vmem:[%s11 + $0xa0] sm:$0xf]
    %v9366 = vld [vmem:[%s11 + $0xa4] sm:$0xf]
    %v9367 = vld [vmem:[%s11 + $0xa8] sm:$0xf]
    %v9368 = vld [vmem:[%s11 + $0xac] sm:$0xf]
    %v9369 = vld [vmem:[%s11 + $0xb0] sm:$0xf]
    %v9370 = vld [vmem:[%s11 + $0xb4] sm:$0xf]
    %v9371 = vld [vmem:[%s11 + $0xb8] sm:$0xf]
    %v9372 = vld [vmem:[%s11 + $0xbc] sm:$0xf]
    %v9373 = vld [vmem:[%s11 + $0xc0] sm:$0xf]
    %v9374 = vld [vmem:[%s11 + $0xc4] sm:$0xf]
    %v9375 = vld [vmem:[%s11 + $0xc8] sm:$0xf]
    %v9376 = vld [vmem:[%s11 + $0xcc] sm:$0xf]
    %v9377 = vld [vmem:[%s11 + $0xd0] sm:$0xf]
    %v9378 = vld [vmem:[%s11 + $0xd4] sm:$0xf]
    %v9379 = vld [vmem:[%s11 + $0xd8] sm:$0xf]
    %v9380 = vld [vmem:[%s11 + $0xdc] sm:$0xf]
    %v9381 = vld [vmem:[%s11 + $0xe0] sm:$0xf]
    %v9382 = vld [vmem:[%s11 + $0xe4] sm:$0xf]
    %v9383 = vld [vmem:[%s11 + $0xe8] sm:$0xf]
    %v9384 = vld [vmem:[%s11 + $0xec] sm:$0xf]
    %v9385 = vld [vmem:[%s11 + $0xf0] sm:$0xf]
    %v9386 = vld [vmem:[%s11 + $0xf4] sm:$0xf]
    %v9387 = vld [vmem:[%s11 + $0xf8] sm:$0xf]
    %v9388 = vld [vmem:[%s11 + $0xfc] sm:$0xf]
    %v9390 = vshrl.u32 %v9230, 16
    %v9393 = vshrl.u32 %v9231, 16
    %v9429 = vunpack.c.l.b16 %v9357
    %v9430 = vunpack.c.l.b16 %v9358
    %v9431 = vunpack.c.l.b16 %v9359
    %v9432 = vunpack.c.l.b16 %v9360
    %v9433 = vunpack.c.l.b16 %v9361
    %v9434 = vunpack.c.l.b16 %v9362
    %v9435 = vunpack.c.l.b16 %v9363
    %v9436 = vunpack.c.l.b16 %v9364
    %v9437 = vunpack.c.l.b16 %v9365
    %v9438 = vunpack.c.l.b16 %v9366
    %v9439 = vunpack.c.l.b16 %v9367
    %v9440 = vunpack.c.l.b16 %v9368
    %v9441 = vunpack.c.l.b16 %v9369
    %v9442 = vunpack.c.l.b16 %v9370
    %v9443 = vunpack.c.l.b16 %v9371
    %v9444 = vunpack.c.l.b16 %v9372
    %v9445 = vunpack.c.l.b16 %v9373
    %v9446 = vunpack.c.l.b16 %v9374
    %v9447 = vunpack.c.l.b16 %v9375
    %v9448 = vunpack.c.l.b16 %v9376
    %v9449 = vunpack.c.l.b16 %v9377
    %v9450 = vunpack.c.l.b16 %v9378
    %v9451 = vunpack.c.l.b16 %v9379
    %v9452 = vunpack.c.l.b16 %v9380
    %v9453 = vunpack.c.l.b16 %v9381
    %v9454 = vunpack.c.l.b16 %v9382
    %v9455 = vunpack.c.l.b16 %v9383
    %v9456 = vunpack.c.l.b16 %v9384
    %v9457 = vunpack.c.l.b16 %v9385
    %v9458 = vunpack.c.l.b16 %v9386
    %v9459 = vunpack.c.l.b16 %v9387
    %v9460 = vunpack.c.l.b16 %v9388
    %v9461 = vpack.c.b16 %v9430, %v9429
    %v9462 = vpack.c.b16 %v9432, %v9431
    %v9463 = vpack.c.b16 %v9434, %v9433
    %v9464 = vpack.c.b16 %v9436, %v9435
    %v9465 = vpack.c.b16 %v9438, %v9437
    %v9466 = vpack.c.b16 %v9440, %v9439
    %v9467 = vpack.c.b16 %v9442, %v9441
    %v9468 = vpack.c.b16 %v9444, %v9443
    %v9469 = vpack.c.b16 %v9446, %v9445
    %v9470 = vpack.c.b16 %v9448, %v9447
    %v9471 = vpack.c.b16 %v9450, %v9449
    %v9472 = vpack.c.b16 %v9452, %v9451
    %v9473 = vpack.c.b16 %v9454, %v9453
    %v9474 = vpack.c.b16 %v9456, %v9455
    %v9475 = vpack.c.b16 %v9458, %v9457
    %v9476 = vpack.c.b16 %v9460, %v9459
    %9493 = vmatpush.bf16.msra.mxu0 %v9468
    %9494 = vmatpush.bf16.msra.mxu0 %v9467
    %9495 = vmatpush.bf16.msra.mxu0 %v9466
    %9496 = vmatpush.bf16.msra.mxu0 %v9465
    %9497 = vmatpush.bf16.msra.mxu0 %v9464
    %9498 = vmatpush.bf16.msra.mxu0 %v9463
    %9499 = vmatpush.bf16.msra.mxu0 %v9462
    %9500 = vmatpush.bf16.msra.mxu0 %v9461
    %9501 = vmatmul.bf16.gmra.mxu0 %v9390
    %v9502 = vpop.f32.mrf.mxu0
    %v9503 = vadd.f32 0.0, %v9502
    %v9504 = vpop.f32.mrf.mxu0
    %9505 = vdwg.mxu0
    %9506 = vmatpush.bf16.msra.mxu0 %v9476
    %9507 = vmatpush.bf16.msra.mxu0 %v9475
    %9508 = vmatpush.bf16.msra.mxu0 %v9474
    %9509 = vmatpush.bf16.msra.mxu0 %v9473
    %9510 = vmatpush.bf16.msra.mxu0 %v9472
    %9511 = vmatpush.bf16.msra.mxu0 %v9471
    %9512 = vmatpush.bf16.msra.mxu0 %v9470
    %9513 = vmatpush.bf16.msra.mxu0 %v9469
    %9514 = vmatmul.bf16.gmra.mxu0 %v9393
    %v9515 = vpop.f32.mrf.mxu0
    %v9516 = vadd.f32 %v9503, %v9515
    %v9517 = vpop.f32.mrf.mxu0
    %9518 = vdwg.mxu0
    %v9519 = vadd.f32 %v9356, %v9516
    %v9520 = vld [vmem:[%s11 + $0x100] sm:$0xf]
    %v9521 = vld [vmem:[%s11 + $0x104] sm:$0xf]
    %v9522 = vld [vmem:[%s11 + $0x108] sm:$0xf]
    %v9523 = vld [vmem:[%s11 + $0x10c] sm:$0xf]
    %v9524 = vld [vmem:[%s11 + $0x110] sm:$0xf]
    %v9525 = vld [vmem:[%s11 + $0x114] sm:$0xf]
    %v9526 = vld [vmem:[%s11 + $0x118] sm:$0xf]
    %v9527 = vld [vmem:[%s11 + $0x11c] sm:$0xf]
    %v9528 = vld [vmem:[%s11 + $0x120] sm:$0xf]
    %v9529 = vld [vmem:[%s11 + $0x124] sm:$0xf]
    %v9530 = vld [vmem:[%s11 + $0x128] sm:$0xf]
    %v9531 = vld [vmem:[%s11 + $0x12c] sm:$0xf]
    %v9532 = vld [vmem:[%s11 + $0x130] sm:$0xf]
    %v9533 = vld [vmem:[%s11 + $0x134] sm:$0xf]
    %v9534 = vld [vmem:[%s11 + $0x138] sm:$0xf]
    %v9535 = vld [vmem:[%s11 + $0x13c] sm:$0xf]
    %v9536 = vld [vmem:[%s11 + $0x140] sm:$0xf]
    %v9537 = vld [vmem:[%s11 + $0x144] sm:$0xf]
    %v9538 = vld [vmem:[%s11 + $0x148] sm:$0xf]
    %v9539 = vld [vmem:[%s11 + $0x14c] sm:$0xf]
    %v9540 = vld [vmem:[%s11 + $0x150] sm:$0xf]
    %v9541 = vld [vmem:[%s11 + $0x154] sm:$0xf]
    %v9542 = vld [vmem:[%s11 + $0x158] sm:$0xf]
    %v9543 = vld [vmem:[%s11 + $0x15c] sm:$0xf]
    %v9544 = vld [vmem:[%s11 + $0x160] sm:$0xf]
    %v9545 = vld [vmem:[%s11 + $0x164] sm:$0xf]
    %v9546 = vld [vmem:[%s11 + $0x168] sm:$0xf]
    %v9547 = vld [vmem:[%s11 + $0x16c] sm:$0xf]
    %v9548 = vld [vmem:[%s11 + $0x170] sm:$0xf]
    %v9549 = vld [vmem:[%s11 + $0x174] sm:$0xf]
    %v9550 = vld [vmem:[%s11 + $0x178] sm:$0xf]
    %v9551 = vld [vmem:[%s11 + $0x17c] sm:$0xf]
    %v9553 = vunpack.c.l.b16 %v9193
    %v9554 = vunpack.c.h.b16 %v9193
    %v9555 = vpack.c.b16 %v9553, %v9553
    %v9556 = vpack.c.b16 %v9554, %v9554
    %v9591 = vunpack.c.l.b16 %v9520
    %v9592 = vunpack.c.l.b16 %v9521
    %v9593 = vunpack.c.l.b16 %v9522
    %v9594 = vunpack.c.l.b16 %v9523
    %v9595 = vunpack.c.l.b16 %v9524
    %v9596 = vunpack.c.l.b16 %v9525
    %v9597 = vunpack.c.l.b16 %v9526
    %v9598 = vunpack.c.l.b16 %v9527
    %v9599 = vunpack.c.l.b16 %v9528
    %v9600 = vunpack.c.l.b16 %v9529
    %v9601 = vunpack.c.l.b16 %v9530
    %v9602 = vunpack.c.l.b16 %v9531
    %v9603 = vunpack.c.l.b16 %v9532
    %v9604 = vunpack.c.l.b16 %v9533
    %v9605 = vunpack.c.l.b16 %v9534
    %v9606 = vunpack.c.l.b16 %v9535
    %v9607 = vunpack.c.l.b16 %v9536
    %v9608 = vunpack.c.l.b16 %v9537
    %v9609 = vunpack.c.l.b16 %v9538
    %v9610 = vunpack.c.l.b16 %v9539
    %v9611 = vunpack.c.l.b16 %v9540
    %v9612 = vunpack.c.l.b16 %v9541
    %v9613 = vunpack.c.l.b16 %v9542
    %v9614 = vunpack.c.l.b16 %v9543
    %v9615 = vunpack.c.l.b16 %v9544
    %v9616 = vunpack.c.l.b16 %v9545
    %v9617 = vunpack.c.l.b16 %v9546
    %v9618 = vunpack.c.l.b16 %v9547
    %v9619 = vunpack.c.l.b16 %v9548
    %v9620 = vunpack.c.l.b16 %v9549
    %v9621 = vunpack.c.l.b16 %v9550
    %v9622 = vunpack.c.l.b16 %v9551
    %v9623 = vpack.c.b16 %v9592, %v9591
    %v9624 = vpack.c.b16 %v9594, %v9593
    %v9625 = vpack.c.b16 %v9596, %v9595
    %v9626 = vpack.c.b16 %v9598, %v9597
    %v9627 = vpack.c.b16 %v9600, %v9599
    %v9628 = vpack.c.b16 %v9602, %v9601
    %v9629 = vpack.c.b16 %v9604, %v9603
    %v9630 = vpack.c.b16 %v9606, %v9605
    %v9631 = vpack.c.b16 %v9608, %v9607
    %v9632 = vpack.c.b16 %v9610, %v9609
    %v9633 = vpack.c.b16 %v9612, %v9611
    %v9634 = vpack.c.b16 %v9614, %v9613
    %v9635 = vpack.c.b16 %v9616, %v9615
    %v9636 = vpack.c.b16 %v9618, %v9617
    %v9637 = vpack.c.b16 %v9620, %v9619
    %v9638 = vpack.c.b16 %v9622, %v9621
    %9655 = vmatpush.bf16.msra.mxu0 %v9630
    %9656 = vmatpush.bf16.msra.mxu0 %v9629
    %9657 = vmatpush.bf16.msra.mxu0 %v9628
    %9658 = vmatpush.bf16.msra.mxu0 %v9627
    %9659 = vmatpush.bf16.msra.mxu0 %v9626
    %9660 = vmatpush.bf16.msra.mxu0 %v9625
    %9661 = vmatpush.bf16.msra.mxu0 %v9624
    %9662 = vmatpush.bf16.msra.mxu0 %v9623
    %9663 = vmatmul.bf16.gmra.mxu0 %v9555
    %v9664 = vpop.f32.mrf.mxu0
    %v9665 = vadd.f32 0.0, %v9664
    %v9666 = vpop.f32.mrf.mxu0
    %9667 = vdwg.mxu0
    %9668 = vmatpush.bf16.msra.mxu0 %v9638
    %9669 = vmatpush.bf16.msra.mxu0 %v9637
    %9670 = vmatpush.bf16.msra.mxu0 %v9636
    %9671 = vmatpush.bf16.msra.mxu0 %v9635
    %9672 = vmatpush.bf16.msra.mxu0 %v9634
    %9673 = vmatpush.bf16.msra.mxu0 %v9633
    %9674 = vmatpush.bf16.msra.mxu0 %v9632
    %9675 = vmatpush.bf16.msra.mxu0 %v9631
    %9676 = vmatmul.bf16.gmra.mxu0 %v9556
    %v9677 = vpop.f32.mrf.mxu0
    %v9678 = vadd.f32 %v9665, %v9677
    %v9679 = vpop.f32.mrf.mxu0
    %9680 = vdwg.mxu0
    %v9681 = vadd.f32 %v9519, %v9678
    %v9682 = vld [vmem:[%s11 + $0x180] sm:$0xf]
    %v9683 = vld [vmem:[%s11 + $0x184] sm:$0xf]
    %v9684 = vld [vmem:[%s11 + $0x188] sm:$0xf]
    %v9685 = vld [vmem:[%s11 + $0x18c] sm:$0xf]
    %v9686 = vld [vmem:[%s11 + $0x190] sm:$0xf]
    %v9687 = vld [vmem:[%s11 + $0x194] sm:$0xf]
    %v9688 = vld [vmem:[%s11 + $0x198] sm:$0xf]
    %v9689 = vld [vmem:[%s11 + $0x19c] sm:$0xf]
    %v9690 = vld [vmem:[%s11 + $0x1a0] sm:$0xf]
    %v9691 = vld [vmem:[%s11 + $0x1a4] sm:$0xf]
    %v9692 = vld [vmem:[%s11 + $0x1a8] sm:$0xf]
    %v9693 = vld [vmem:[%s11 + $0x1ac] sm:$0xf]
    %v9694 = vld [vmem:[%s11 + $0x1b0] sm:$0xf]
    %v9695 = vld [vmem:[%s11 + $0x1b4] sm:$0xf]
    %v9696 = vld [vmem:[%s11 + $0x1b8] sm:$0xf]
    %v9697 = vld [vmem:[%s11 + $0x1bc] sm:$0xf]
    %v9698 = vld [vmem:[%s11 + $0x1c0] sm:$0xf]
    %v9699 = vld [vmem:[%s11 + $0x1c4] sm:$0xf]
    %v9700 = vld [vmem:[%s11 + $0x1c8] sm:$0xf]
    %v9701 = vld [vmem:[%s11 + $0x1cc] sm:$0xf]
    %v9702 = vld [vmem:[%s11 + $0x1d0] sm:$0xf]
    %v9703 = vld [vmem:[%s11 + $0x1d4] sm:$0xf]
    %v9704 = vld [vmem:[%s11 + $0x1d8] sm:$0xf]
    %v9705 = vld [vmem:[%s11 + $0x1dc] sm:$0xf]
    %v9706 = vld [vmem:[%s11 + $0x1e0] sm:$0xf]
    %v9707 = vld [vmem:[%s11 + $0x1e4] sm:$0xf]
    %v9708 = vld [vmem:[%s11 + $0x1e8] sm:$0xf]
    %v9709 = vld [vmem:[%s11 + $0x1ec] sm:$0xf]
    %v9710 = vld [vmem:[%s11 + $0x1f0] sm:$0xf]
    %v9711 = vld [vmem:[%s11 + $0x1f4] sm:$0xf]
    %v9712 = vld [vmem:[%s11 + $0x1f8] sm:$0xf]
    %v9713 = vld [vmem:[%s11 + $0x1fc] sm:$0xf]
    %v9715 = vshrl.u32 %v9555, 16
    %v9718 = vshrl.u32 %v9556, 16
    %v9754 = vunpack.c.l.b16 %v9682
    %v9755 = vunpack.c.l.b16 %v9683
    %v9756 = vunpack.c.l.b16 %v9684
    %v9757 = vunpack.c.l.b16 %v9685
    %v9758 = vunpack.c.l.b16 %v9686
    %v9759 = vunpack.c.l.b16 %v9687
    %v9760 = vunpack.c.l.b16 %v9688
    %v9761 = vunpack.c.l.b16 %v9689
    %v9762 = vunpack.c.l.b16 %v9690
    %v9763 = vunpack.c.l.b16 %v9691
    %v9764 = vunpack.c.l.b16 %v9692
    %v9765 = vunpack.c.l.b16 %v9693
    %v9766 = vunpack.c.l.b16 %v9694
    %v9767 = vunpack.c.l.b16 %v9695
    %v9768 = vunpack.c.l.b16 %v9696
    %v9769 = vunpack.c.l.b16 %v9697
    %v9770 = vunpack.c.l.b16 %v9698
    %v9771 = vunpack.c.l.b16 %v9699
    %v9772 = vunpack.c.l.b16 %v9700
    %v9773 = vunpack.c.l.b16 %v9701
    %v9774 = vunpack.c.l.b16 %v9702
    %v9775 = vunpack.c.l.b16 %v9703
    %v9776 = vunpack.c.l.b16 %v9704
    %v9777 = vunpack.c.l.b16 %v9705
    %v9778 = vunpack.c.l.b16 %v9706
    %v9779 = vunpack.c.l.b16 %v9707
    %v9780 = vunpack.c.l.b16 %v9708
    %v9781 = vunpack.c.l.b16 %v9709
    %v9782 = vunpack.c.l.b16 %v9710
    %v9783 = vunpack.c.l.b16 %v9711
    %v9784 = vunpack.c.l.b16 %v9712
    %v9785 = vunpack.c.l.b16 %v9713
    %v9786 = vpack.c.b16 %v9755, %v9754
    %v9787 = vpack.c.b16 %v9757, %v9756
    %v9788 = vpack.c.b16 %v9759, %v9758
    %v9789 = vpack.c.b16 %v9761, %v9760
    %v9790 = vpack.c.b16 %v9763, %v9762
    %v9791 = vpack.c.b16 %v9765, %v9764
    %v9792 = vpack.c.b16 %v9767, %v9766
    %v9793 = vpack.c.b16 %v9769, %v9768
    %v9794 = vpack.c.b16 %v9771, %v9770
    %v9795 = vpack.c.b16 %v9773, %v9772
    %v9796 = vpack.c.b16 %v9775, %v9774
    %v9797 = vpack.c.b16 %v9777, %v9776
    %v9798 = vpack.c.b16 %v9779, %v9778
    %v9799 = vpack.c.b16 %v9781, %v9780
    %v9800 = vpack.c.b16 %v9783, %v9782
    %v9801 = vpack.c.b16 %v9785, %v9784
    %9818 = vmatpush.bf16.msra.mxu0 %v9793
    %9819 = vmatpush.bf16.msra.mxu0 %v9792
    %9820 = vmatpush.bf16.msra.mxu0 %v9791
    %9821 = vmatpush.bf16.msra.mxu0 %v9790
    %9822 = vmatpush.bf16.msra.mxu0 %v9789
    %9823 = vmatpush.bf16.msra.mxu0 %v9788
    %9824 = vmatpush.bf16.msra.mxu0 %v9787
    %9825 = vmatpush.bf16.msra.mxu0 %v9786
    %9826 = vmatmul.bf16.gmra.mxu0 %v9715
    %v9827 = vpop.f32.mrf.mxu0
    %v9828 = vadd.f32 0.0, %v9827
    %v9829 = vpop.f32.mrf.mxu0
    %9830 = vdwg.mxu0
    %9831 = vmatpush.bf16.msra.mxu0 %v9801
    %9832 = vmatpush.bf16.msra.mxu0 %v9800
    %9833 = vmatpush.bf16.msra.mxu0 %v9799
    %9834 = vmatpush.bf16.msra.mxu0 %v9798
    %9835 = vmatpush.bf16.msra.mxu0 %v9797
    %9836 = vmatpush.bf16.msra.mxu0 %v9796
    %9837 = vmatpush.bf16.msra.mxu0 %v9795
    %9838 = vmatpush.bf16.msra.mxu0 %v9794
    %9839 = vmatmul.bf16.gmra.mxu0 %v9718
    %v9840 = vpop.f32.mrf.mxu0
    %v9841 = vadd.f32 %v9828, %v9840
    %v9842 = vpop.f32.mrf.mxu0
    %9843 = vdwg.mxu0
    %v9844 = vadd.f32 %v9681, %v9841
    %v9845 = vmul.f32 %v9844, 0.5
    %v9846 = vmul.f32 %v9845, 1.442695
    %v9847 = vpow.pop %v9846
    %v9848 = vld [vmem:[%s20] sm:$0x1]
    %9850 = vrot.lane.b32.xlu0 %v9848, 32
    %v9851 = vpop.permute.xlu0 %9850
    %v9853 = vmul.f32 %v9847, %v9851
    %9855 = vrot.lane.b32.xlu0 %v9853, 96
    %v9856 = vpop.permute.xlu0 %9855
    %v9858 = vadd.f32 %v9844, %v9856
    %v9859 = vpack.c.bf16 %v9858, %v9858
    %v9860 = vld [vmem:[%s13] sm:$0xff]
    %v9861 = vld [vmem:[%s13 + $0x8] sm:$0xff]
    %v9862 = vld [vmem:[%s13 + $0x10] sm:$0xff]
    %v9863 = vld [vmem:[%s13 + $0x18] sm:$0xff]
    %v9864 = vld [vmem:[%s13 + $0x20] sm:$0xff]
    %v9865 = vld [vmem:[%s13 + $0x28] sm:$0xff]
    %v9866 = vld [vmem:[%s13 + $0x30] sm:$0xff]
    %v9867 = vld [vmem:[%s13 + $0x38] sm:$0xff]
    %v9868 = vld [vmem:[%s13 + $0x40] sm:$0xff]
    %v9869 = vld [vmem:[%s13 + $0x48] sm:$0xff]
    %v9870 = vld [vmem:[%s13 + $0x50] sm:$0xff]
    %v9871 = vld [vmem:[%s13 + $0x58] sm:$0xff]
    %v9872 = vld [vmem:[%s13 + $0x60] sm:$0xff]
    %v9873 = vld [vmem:[%s13 + $0x68] sm:$0xff]
    %v9874 = vld [vmem:[%s13 + $0x70] sm:$0xff]
    %v9875 = vld [vmem:[%s13 + $0x78] sm:$0xff]
    %v9876 = vld [vmem:[%s21] sm:$0x1]
    %v9877 = vld [vmem:[%s14] sm:$0xff]
    %v9878 = vld [vmem:[%s14 + $0x8] sm:$0xff]
    %v9879 = vld [vmem:[%s14 + $0x10] sm:$0xff]
    %v9880 = vld [vmem:[%s14 + $0x18] sm:$0xff]
    %v9885 = vunpack.c.l.b16 %v9877
    %v9886 = vunpack.c.h.b16 %v9877
    %v9887 = vunpack.c.l.b16 %v9878
    %v9888 = vunpack.c.h.b16 %v9878
    %v9889 = vunpack.c.l.b16 %v9879
    %v9890 = vunpack.c.h.b16 %v9879
    %v9891 = vunpack.c.l.b16 %v9880
    %v9892 = vunpack.c.h.b16 %v9880
    %v9893 = vpack.c.b16 %v9885, %v9885
    %v9894 = vpack.c.b16 %v9886, %v9886
    %v9895 = vpack.c.b16 %v9887, %v9887
    %v9896 = vpack.c.b16 %v9888, %v9888
    %v9897 = vpack.c.b16 %v9889, %v9889
    %v9898 = vpack.c.b16 %v9890, %v9890
    %v9899 = vpack.c.b16 %v9891, %v9891
    %v9900 = vpack.c.b16 %v9892, %v9892
    %vm9901 = vcmask 64512
    %v9903 = vsel %vm9901, %v9876, 0
    %vm9905 = vcmask 1043456
    %v9907 = vsel %vm9905, %v9893, 0
    %v9910 = vsel %vm9905, %v9894, 0
    %v9913 = vsel %vm9905, %v9895, 0
    %v9916 = vsel %vm9905, %v9896, 0
    %v9919 = vsel %vm9905, %v9897, 0
    %v9922 = vsel %vm9905, %v9898, 0
    %v9925 = vsel %vm9905, %v9899, 0
    %v9928 = vsel %vm9905, %v9900, 0
    %9930 = vmatpush.bf16.msra.mxu0 0
    %9931 = vmatpush.bf16.msra.mxu0 0
    %9932 = vmatpush.bf16.msra.mxu0 0
    %9933 = vmatpush.bf16.msra.mxu0 0
    %9934 = vmatpush.bf16.msra.mxu0 0
    %9935 = vmatpush.bf16.msra.mxu0 0
    %9936 = vmatpush.bf16.msra.mxu0 0
    %9937 = vmatpush.bf16.msra.mxu0 %v9907
    %9938 = vmatmul.bf16.gmra.mxu0 %v9903
    %v9939 = vpop.f32.mrf.mxu0
    %v9940 = vadd.f32 0.0, %v9939
    %v9941 = vpop.f32.mrf.mxu0
    %9942 = vdwg.mxu0
    %9943 = vmatpush.bf16.msra.mxu0 0
    %9944 = vmatpush.bf16.msra.mxu0 0
    %9945 = vmatpush.bf16.msra.mxu0 0
    %9946 = vmatpush.bf16.msra.mxu0 0
    %9947 = vmatpush.bf16.msra.mxu0 0
    %9948 = vmatpush.bf16.msra.mxu0 0
    %9949 = vmatpush.bf16.msra.mxu0 0
    %9950 = vmatpush.bf16.msra.mxu0 %v9910
    %9951 = vmatmul.bf16.gmra.mxu0 %v9903
    %v9952 = vpop.f32.mrf.mxu0
    %v9953 = vadd.f32 0.0, %v9952
    %v9954 = vpop.f32.mrf.mxu0
    %9955 = vdwg.mxu0
    %9956 = vmatpush.bf16.msra.mxu0 0
    %9957 = vmatpush.bf16.msra.mxu0 0
    %9958 = vmatpush.bf16.msra.mxu0 0
    %9959 = vmatpush.bf16.msra.mxu0 0
    %9960 = vmatpush.bf16.msra.mxu0 0
    %9961 = vmatpush.bf16.msra.mxu0 0
    %9962 = vmatpush.bf16.msra.mxu0 0
    %9963 = vmatpush.bf16.msra.mxu0 %v9913
    %9964 = vmatmul.bf16.gmra.mxu0 %v9903
    %v9965 = vpop.f32.mrf.mxu0
    %v9966 = vadd.f32 0.0, %v9965
    %v9967 = vpop.f32.mrf.mxu0
    %9968 = vdwg.mxu0
    %9969 = vmatpush.bf16.msra.mxu0 0
    %9970 = vmatpush.bf16.msra.mxu0 0
    %9971 = vmatpush.bf16.msra.mxu0 0
    %9972 = vmatpush.bf16.msra.mxu0 0
    %9973 = vmatpush.bf16.msra.mxu0 0
    %9974 = vmatpush.bf16.msra.mxu0 0
    %9975 = vmatpush.bf16.msra.mxu0 0
    %9976 = vmatpush.bf16.msra.mxu0 %v9916
    %9977 = vmatmul.bf16.gmra.mxu0 %v9903
    %v9978 = vpop.f32.mrf.mxu0
    %v9979 = vadd.f32 0.0, %v9978
    %v9980 = vpop.f32.mrf.mxu0
    %9981 = vdwg.mxu0
    %9982 = vmatpush.bf16.msra.mxu0 0
    %9983 = vmatpush.bf16.msra.mxu0 0
    %9984 = vmatpush.bf16.msra.mxu0 0
    %9985 = vmatpush.bf16.msra.mxu0 0
    %9986 = vmatpush.bf16.msra.mxu0 0
    %9987 = vmatpush.bf16.msra.mxu0 0
    %9988 = vmatpush.bf16.msra.mxu0 0
    %9989 = vmatpush.bf16.msra.mxu0 %v9919
    %9990 = vmatmul.bf16.gmra.mxu0 %v9903
    %v9991 = vpop.f32.mrf.mxu0
    %v9992 = vadd.f32 0.0, %v9991
    %v9993 = vpop.f32.mrf.mxu0
    %9994 = vdwg.mxu0
    %9995 = vmatpush.bf16.msra.mxu0 0
    %9996 = vmatpush.bf16.msra.mxu0 0
    %9997 = vmatpush.bf16.msra.mxu0 0
    %9998 = vmatpush.bf16.msra.mxu0 0
    %9999 = vmatpush.bf16.msra.mxu0 0
    %10000 = vmatpush.bf16.msra.mxu0 0
    %10001 = vmatpush.bf16.msra.mxu0 0
    %10002 = vmatpush.bf16.msra.mxu0 %v9922
    %10003 = vmatmul.bf16.gmra.mxu0 %v9903
    %v10004 = vpop.f32.mrf.mxu0
    %v10005 = vadd.f32 0.0, %v10004
    %v10006 = vpop.f32.mrf.mxu0
    %10007 = vdwg.mxu0
    %10008 = vmatpush.bf16.msra.mxu0 0
    %10009 = vmatpush.bf16.msra.mxu0 0
    %10010 = vmatpush.bf16.msra.mxu0 0
    %10011 = vmatpush.bf16.msra.mxu0 0
    %10012 = vmatpush.bf16.msra.mxu0 0
    %10013 = vmatpush.bf16.msra.mxu0 0
    %10014 = vmatpush.bf16.msra.mxu0 0
    %10015 = vmatpush.bf16.msra.mxu0 %v9925
    %10016 = vmatmul.bf16.gmra.mxu0 %v9903
    %v10017 = vpop.f32.mrf.mxu0
    %v10018 = vadd.f32 0.0, %v10017
    %v10019 = vpop.f32.mrf.mxu0
    %10020 = vdwg.mxu0
    %10021 = vmatpush.bf16.msra.mxu0 0
    %10022 = vmatpush.bf16.msra.mxu0 0
    %10023 = vmatpush.bf16.msra.mxu0 0
    %10024 = vmatpush.bf16.msra.mxu0 0
    %10025 = vmatpush.bf16.msra.mxu0 0
    %10026 = vmatpush.bf16.msra.mxu0 0
    %10027 = vmatpush.bf16.msra.mxu0 0
    %10028 = vmatpush.bf16.msra.mxu0 %v9928
    %10029 = vmatmul.bf16.gmra.mxu0 %v9903
    %v10030 = vpop.f32.mrf.mxu0
    %v10031 = vadd.f32 0.0, %v10030
    %v10032 = vpop.f32.mrf.mxu0
    %10033 = vdwg.mxu0
    %v10050 = vunpack.c.l.b16 %v9860
    %v10051 = vunpack.c.h.b16 %v9860
    %v10052 = vunpack.c.l.b16 %v9861
    %v10053 = vunpack.c.h.b16 %v9861
    %v10054 = vunpack.c.l.b16 %v9862
    %v10055 = vunpack.c.h.b16 %v9862
    %v10056 = vunpack.c.l.b16 %v9863
    %v10057 = vunpack.c.h.b16 %v9863
    %v10058 = vunpack.c.l.b16 %v9864
    %v10059 = vunpack.c.h.b16 %v9864
    %v10060 = vunpack.c.l.b16 %v9865
    %v10061 = vunpack.c.h.b16 %v9865
    %v10062 = vunpack.c.l.b16 %v9866
    %v10063 = vunpack.c.h.b16 %v9866
    %v10064 = vunpack.c.l.b16 %v9867
    %v10065 = vunpack.c.h.b16 %v9867
    %v10066 = vunpack.c.l.b16 %v9868
    %v10067 = vunpack.c.h.b16 %v9868
    %v10068 = vunpack.c.l.b16 %v9869
    %v10069 = vunpack.c.h.b16 %v9869
    %v10070 = vunpack.c.l.b16 %v9870
    %v10071 = vunpack.c.h.b16 %v9870
    %v10072 = vunpack.c.l.b16 %v9871
    %v10073 = vunpack.c.h.b16 %v9871
    %v10074 = vunpack.c.l.b16 %v9872
    %v10075 = vunpack.c.h.b16 %v9872
    %v10076 = vunpack.c.l.b16 %v9873
    %v10077 = vunpack.c.h.b16 %v9873
    %v10078 = vunpack.c.l.b16 %v9874
    %v10079 = vunpack.c.h.b16 %v9874
    %v10080 = vunpack.c.l.b16 %v9875
    %v10081 = vunpack.c.h.b16 %v9875
    %v10082 = vpack.c.b16 %v10058, %v10050
    %v10083 = vpack.c.b16 %v10059, %v10051
    %v10084 = vpack.c.b16 %v10060, %v10052
    %v10085 = vpack.c.b16 %v10061, %v10053
    %v10086 = vpack.c.b16 %v10062, %v10054
    %v10087 = vpack.c.b16 %v10063, %v10055
    %v10088 = vpack.c.b16 %v10064, %v10056
    %v10089 = vpack.c.b16 %v10065, %v10057
    %v10090 = vpack.c.b16 %v10074, %v10066
    %v10091 = vpack.c.b16 %v10075, %v10067
    %v10092 = vpack.c.b16 %v10076, %v10068
    %v10093 = vpack.c.b16 %v10077, %v10069
    %v10094 = vpack.c.b16 %v10078, %v10070
    %v10095 = vpack.c.b16 %v10079, %v10071
    %v10096 = vpack.c.b16 %v10080, %v10072
    %v10097 = vpack.c.b16 %v10081, %v10073
    %v10115 = vsel %vm3869, %v9859, 0
    %10117 = vmatpush.bf16.msra.mxu0 0
    %10118 = vmatpush.bf16.msra.mxu0 0
    %10119 = vmatpush.bf16.msra.mxu0 0
    %10120 = vmatpush.bf16.msra.mxu0 0
    %10121 = vmatpush.bf16.msra.mxu0 0
    %10122 = vmatpush.bf16.msra.mxu0 0
    %10123 = vmatpush.bf16.msra.mxu0 %v10090
    %10124 = vmatpush.bf16.msra.mxu0 %v10082
    %10125 = vmatmul.bf16.gmra.mxu0 %v10115
    %v10126 = vpop.f32.mrf.mxu0
    %v10127 = vadd.f32 %v9940, %v10126
    %v10128 = vpop.f32.mrf.mxu0
    %10129 = vdwg.mxu0
    %10130 = vmatpush.bf16.msra.mxu0 0
    %10131 = vmatpush.bf16.msra.mxu0 0
    %10132 = vmatpush.bf16.msra.mxu0 0
    %10133 = vmatpush.bf16.msra.mxu0 0
    %10134 = vmatpush.bf16.msra.mxu0 0
    %10135 = vmatpush.bf16.msra.mxu0 0
    %10136 = vmatpush.bf16.msra.mxu0 %v10091
    %10137 = vmatpush.bf16.msra.mxu0 %v10083
    %10138 = vmatmul.bf16.gmra.mxu0 %v10115
    %v10139 = vpop.f32.mrf.mxu0
    %v10140 = vadd.f32 %v9953, %v10139
    %v10141 = vpop.f32.mrf.mxu0
    %10142 = vdwg.mxu0
    %10143 = vmatpush.bf16.msra.mxu0 0
    %10144 = vmatpush.bf16.msra.mxu0 0
    %10145 = vmatpush.bf16.msra.mxu0 0
    %10146 = vmatpush.bf16.msra.mxu0 0
    %10147 = vmatpush.bf16.msra.mxu0 0
    %10148 = vmatpush.bf16.msra.mxu0 0
    %10149 = vmatpush.bf16.msra.mxu0 %v10092
    %10150 = vmatpush.bf16.msra.mxu0 %v10084
    %10151 = vmatmul.bf16.gmra.mxu0 %v10115
    %v10152 = vpop.f32.mrf.mxu0
    %v10153 = vadd.f32 %v9966, %v10152
    %v10154 = vpop.f32.mrf.mxu0
    %10155 = vdwg.mxu0
    %10156 = vmatpush.bf16.msra.mxu0 0
    %10157 = vmatpush.bf16.msra.mxu0 0
    %10158 = vmatpush.bf16.msra.mxu0 0
    %10159 = vmatpush.bf16.msra.mxu0 0
    %10160 = vmatpush.bf16.msra.mxu0 0
    %10161 = vmatpush.bf16.msra.mxu0 0
    %10162 = vmatpush.bf16.msra.mxu0 %v10093
    %10163 = vmatpush.bf16.msra.mxu0 %v10085
    %10164 = vmatmul.bf16.gmra.mxu0 %v10115
    %v10165 = vpop.f32.mrf.mxu0
    %v10166 = vadd.f32 %v9979, %v10165
    %v10167 = vpop.f32.mrf.mxu0
    %10168 = vdwg.mxu0
    %10169 = vmatpush.bf16.msra.mxu0 0
    %10170 = vmatpush.bf16.msra.mxu0 0
    %10171 = vmatpush.bf16.msra.mxu0 0
    %10172 = vmatpush.bf16.msra.mxu0 0
    %10173 = vmatpush.bf16.msra.mxu0 0
    %10174 = vmatpush.bf16.msra.mxu0 0
    %10175 = vmatpush.bf16.msra.mxu0 %v10094
    %10176 = vmatpush.bf16.msra.mxu0 %v10086
    %10177 = vmatmul.bf16.gmra.mxu0 %v10115
    %v10178 = vpop.f32.mrf.mxu0
    %v10179 = vadd.f32 %v9992, %v10178
    %v10180 = vpop.f32.mrf.mxu0
    %10181 = vdwg.mxu0
    %10182 = vmatpush.bf16.msra.mxu0 0
    %10183 = vmatpush.bf16.msra.mxu0 0
    %10184 = vmatpush.bf16.msra.mxu0 0
    %10185 = vmatpush.bf16.msra.mxu0 0
    %10186 = vmatpush.bf16.msra.mxu0 0
    %10187 = vmatpush.bf16.msra.mxu0 0
    %10188 = vmatpush.bf16.msra.mxu0 %v10095
    %10189 = vmatpush.bf16.msra.mxu0 %v10087
    %10190 = vmatmul.bf16.gmra.mxu0 %v10115
    %v10191 = vpop.f32.mrf.mxu0
    %v10192 = vadd.f32 %v10005, %v10191
    %v10193 = vpop.f32.mrf.mxu0
    %10194 = vdwg.mxu0
    %10195 = vmatpush.bf16.msra.mxu0 0
    %10196 = vmatpush.bf16.msra.mxu0 0
    %10197 = vmatpush.bf16.msra.mxu0 0
    %10198 = vmatpush.bf16.msra.mxu0 0
    %10199 = vmatpush.bf16.msra.mxu0 0
    %10200 = vmatpush.bf16.msra.mxu0 0
    %10201 = vmatpush.bf16.msra.mxu0 %v10096
    %10202 = vmatpush.bf16.msra.mxu0 %v10088
    %10203 = vmatmul.bf16.gmra.mxu0 %v10115
    %v10204 = vpop.f32.mrf.mxu0
    %v10205 = vadd.f32 %v10018, %v10204
    %v10206 = vpop.f32.mrf.mxu0
    %10207 = vdwg.mxu0
    %10208 = vmatpush.bf16.msra.mxu0 0
    %10209 = vmatpush.bf16.msra.mxu0 0
    %10210 = vmatpush.bf16.msra.mxu0 0
    %10211 = vmatpush.bf16.msra.mxu0 0
    %10212 = vmatpush.bf16.msra.mxu0 0
    %10213 = vmatpush.bf16.msra.mxu0 0
    %10214 = vmatpush.bf16.msra.mxu0 %v10097
    %10215 = vmatpush.bf16.msra.mxu0 %v10089
    %10216 = vmatmul.bf16.gmra.mxu0 %v10115
    %v10217 = vpop.f32.mrf.mxu0
    %v10218 = vadd.f32 %v10031, %v10217
    %v10219 = vpop.f32.mrf.mxu0
    %10220 = vdwg.mxu0
    %v10221 = vld [vmem:[%s22] sm:$0x3]
    %v10223 = vperm.slane %v10221, 0
    %v10224 = vperm.slane %v10221, 1
    %v10227 = vpack.c.bf16 %v10223, %v10223
    %v10228 = vpack.c.bf16 %v10224, %v10224
    %v10229 = vld [vmem:[%s15] sm:$0xff]
    %v10230 = vld [vmem:[%s15 + $0x8] sm:$0xff]
    %v10231 = vld [vmem:[%s15 + $0x10] sm:$0xff]
    %v10232 = vld [vmem:[%s15 + $0x18] sm:$0xff]
    %v10233 = vld [vmem:[%s15 + $0x20] sm:$0xff]
    %v10234 = vld [vmem:[%s15 + $0x28] sm:$0xff]
    %v10235 = vld [vmem:[%s15 + $0x30] sm:$0xff]
    %v10236 = vld [vmem:[%s15 + $0x38] sm:$0xff]
    %v10237 = vld [vmem:[%s15 + $0x40] sm:$0xff]
    %v10238 = vld [vmem:[%s15 + $0x48] sm:$0xff]
    %v10239 = vld [vmem:[%s15 + $0x50] sm:$0xff]
    %v10240 = vld [vmem:[%s15 + $0x58] sm:$0xff]
    %v10241 = vld [vmem:[%s15 + $0x60] sm:$0xff]
    %v10242 = vld [vmem:[%s15 + $0x68] sm:$0xff]
    %v10243 = vld [vmem:[%s15 + $0x70] sm:$0xff]
    %v10244 = vld [vmem:[%s15 + $0x78] sm:$0xff]
    %v10245 = vld [vmem:[%s15 + $0x80] sm:$0xff]
    %v10246 = vld [vmem:[%s15 + $0x88] sm:$0xff]
    %v10247 = vld [vmem:[%s15 + $0x90] sm:$0xff]
    %v10248 = vld [vmem:[%s15 + $0x98] sm:$0xff]
    %v10249 = vld [vmem:[%s15 + $0xa0] sm:$0xff]
    %v10250 = vld [vmem:[%s15 + $0xa8] sm:$0xff]
    %v10251 = vld [vmem:[%s15 + $0xb0] sm:$0xff]
    %v10252 = vld [vmem:[%s15 + $0xb8] sm:$0xff]
    %v10253 = vld [vmem:[%s15 + $0xc0] sm:$0xff]
    %v10254 = vld [vmem:[%s15 + $0xc8] sm:$0xff]
    %v10255 = vld [vmem:[%s15 + $0xd0] sm:$0xff]
    %v10256 = vld [vmem:[%s15 + $0xd8] sm:$0xff]
    %v10257 = vld [vmem:[%s15 + $0xe0] sm:$0xff]
    %v10258 = vld [vmem:[%s15 + $0xe8] sm:$0xff]
    %v10259 = vld [vmem:[%s15 + $0xf0] sm:$0xff]
    %v10260 = vld [vmem:[%s15 + $0xf8] sm:$0xff]
    %v10261 = vld [vmem:[%s15 + $0x100] sm:$0xff]
    %v10262 = vld [vmem:[%s15 + $0x108] sm:$0xff]
    %v10263 = vld [vmem:[%s15 + $0x110] sm:$0xff]
    %v10264 = vld [vmem:[%s15 + $0x118] sm:$0xff]
    %v10265 = vld [vmem:[%s15 + $0x120] sm:$0xff]
    %v10266 = vld [vmem:[%s15 + $0x128] sm:$0xff]
    %v10267 = vld [vmem:[%s15 + $0x130] sm:$0xff]
    %v10268 = vld [vmem:[%s15 + $0x138] sm:$0xff]
    %v10269 = vld [vmem:[%s15 + $0x140] sm:$0xff]
    %v10270 = vld [vmem:[%s15 + $0x148] sm:$0xff]
    %v10271 = vld [vmem:[%s15 + $0x150] sm:$0xff]
    %v10272 = vld [vmem:[%s15 + $0x158] sm:$0xff]
    %v10273 = vld [vmem:[%s15 + $0x160] sm:$0xff]
    %v10274 = vld [vmem:[%s15 + $0x168] sm:$0xff]
    %v10275 = vld [vmem:[%s15 + $0x170] sm:$0xff]
    %v10276 = vld [vmem:[%s15 + $0x178] sm:$0xff]
    %v10277 = vld [vmem:[%s15 + $0x180] sm:$0xff]
    %v10278 = vld [vmem:[%s15 + $0x188] sm:$0xff]
    %v10279 = vld [vmem:[%s15 + $0x190] sm:$0xff]
    %v10280 = vld [vmem:[%s15 + $0x198] sm:$0xff]
    %v10281 = vld [vmem:[%s15 + $0x1a0] sm:$0xff]
    %v10282 = vld [vmem:[%s15 + $0x1a8] sm:$0xff]
    %v10283 = vld [vmem:[%s15 + $0x1b0] sm:$0xff]
    %v10284 = vld [vmem:[%s15 + $0x1b8] sm:$0xff]
    %v10285 = vld [vmem:[%s15 + $0x1c0] sm:$0xff]
    %v10286 = vld [vmem:[%s15 + $0x1c8] sm:$0xff]
    %v10287 = vld [vmem:[%s15 + $0x1d0] sm:$0xff]
    %v10288 = vld [vmem:[%s15 + $0x1d8] sm:$0xff]
    %v10289 = vld [vmem:[%s15 + $0x1e0] sm:$0xff]
    %v10290 = vld [vmem:[%s15 + $0x1e8] sm:$0xff]
    %v10291 = vld [vmem:[%s15 + $0x1f0] sm:$0xff]
    %v10292 = vld [vmem:[%s15 + $0x1f8] sm:$0xff]
    %v10293 = vld [vmem:[%s15 + $0x200] sm:$0xff]
    %v10294 = vld [vmem:[%s15 + $0x208] sm:$0xff]
    %v10295 = vld [vmem:[%s15 + $0x210] sm:$0xff]
    %v10296 = vld [vmem:[%s15 + $0x218] sm:$0xff]
    %v10297 = vld [vmem:[%s15 + $0x220] sm:$0xff]
    %v10298 = vld [vmem:[%s15 + $0x228] sm:$0xff]
    %v10299 = vld [vmem:[%s15 + $0x230] sm:$0xff]
    %v10300 = vld [vmem:[%s15 + $0x238] sm:$0xff]
    %v10301 = vld [vmem:[%s15 + $0x240] sm:$0xff]
    %v10302 = vld [vmem:[%s15 + $0x248] sm:$0xff]
    %v10303 = vld [vmem:[%s15 + $0x250] sm:$0xff]
    %v10304 = vld [vmem:[%s15 + $0x258] sm:$0xff]
    %v10305 = vld [vmem:[%s15 + $0x260] sm:$0xff]
    %v10306 = vld [vmem:[%s15 + $0x268] sm:$0xff]
    %v10307 = vld [vmem:[%s15 + $0x270] sm:$0xff]
    %v10308 = vld [vmem:[%s15 + $0x278] sm:$0xff]
    %v10309 = vld [vmem:[%s15 + $0x280] sm:$0xff]
    %v10310 = vld [vmem:[%s15 + $0x288] sm:$0xff]
    %v10311 = vld [vmem:[%s15 + $0x290] sm:$0xff]
    %v10312 = vld [vmem:[%s15 + $0x298] sm:$0xff]
    %v10313 = vld [vmem:[%s15 + $0x2a0] sm:$0xff]
    %v10314 = vld [vmem:[%s15 + $0x2a8] sm:$0xff]
    %v10315 = vld [vmem:[%s15 + $0x2b0] sm:$0xff]
    %v10316 = vld [vmem:[%s15 + $0x2b8] sm:$0xff]
    %v10317 = vld [vmem:[%s15 + $0x2c0] sm:$0xff]
    %v10318 = vld [vmem:[%s15 + $0x2c8] sm:$0xff]
    %v10319 = vld [vmem:[%s15 + $0x2d0] sm:$0xff]
    %v10320 = vld [vmem:[%s15 + $0x2d8] sm:$0xff]
    %v10321 = vld [vmem:[%s15 + $0x2e0] sm:$0xff]
    %v10322 = vld [vmem:[%s15 + $0x2e8] sm:$0xff]
    %v10323 = vld [vmem:[%s15 + $0x2f0] sm:$0xff]
    %v10324 = vld [vmem:[%s15 + $0x2f8] sm:$0xff]
    %v10325 = vld [vmem:[%s15 + $0x300] sm:$0xff]
    %v10326 = vld [vmem:[%s15 + $0x308] sm:$0xff]
    %v10327 = vld [vmem:[%s15 + $0x310] sm:$0xff]
    %v10328 = vld [vmem:[%s15 + $0x318] sm:$0xff]
    %v10329 = vld [vmem:[%s15 + $0x320] sm:$0xff]
    %v10330 = vld [vmem:[%s15 + $0x328] sm:$0xff]
    %v10331 = vld [vmem:[%s15 + $0x330] sm:$0xff]
    %v10332 = vld [vmem:[%s15 + $0x338] sm:$0xff]
    %v10333 = vld [vmem:[%s15 + $0x340] sm:$0xff]
    %v10334 = vld [vmem:[%s15 + $0x348] sm:$0xff]
    %v10335 = vld [vmem:[%s15 + $0x350] sm:$0xff]
    %v10336 = vld [vmem:[%s15 + $0x358] sm:$0xff]
    %v10337 = vld [vmem:[%s15 + $0x360] sm:$0xff]
    %v10338 = vld [vmem:[%s15 + $0x368] sm:$0xff]
    %v10339 = vld [vmem:[%s15 + $0x370] sm:$0xff]
    %v10340 = vld [vmem:[%s15 + $0x378] sm:$0xff]
    %v10341 = vld [vmem:[%s15 + $0x380] sm:$0xff]
    %v10342 = vld [vmem:[%s15 + $0x388] sm:$0xff]
    %v10343 = vld [vmem:[%s15 + $0x390] sm:$0xff]
    %v10344 = vld [vmem:[%s15 + $0x398] sm:$0xff]
    %v10345 = vld [vmem:[%s15 + $0x3a0] sm:$0xff]
    %v10346 = vld [vmem:[%s15 + $0x3a8] sm:$0xff]
    %v10347 = vld [vmem:[%s15 + $0x3b0] sm:$0xff]
    %v10348 = vld [vmem:[%s15 + $0x3b8] sm:$0xff]
    %v10349 = vld [vmem:[%s15 + $0x3c0] sm:$0xff]
    %v10350 = vld [vmem:[%s15 + $0x3c8] sm:$0xff]
    %v10351 = vld [vmem:[%s15 + $0x3d0] sm:$0xff]
    %v10352 = vld [vmem:[%s15 + $0x3d8] sm:$0xff]
    %v10353 = vld [vmem:[%s15 + $0x3e0] sm:$0xff]
    %v10354 = vld [vmem:[%s15 + $0x3e8] sm:$0xff]
    %v10355 = vld [vmem:[%s15 + $0x3f0] sm:$0xff]
    %v10356 = vld [vmem:[%s15 + $0x3f8] sm:$0xff]
    %v10485 = vunpack.c.l.b16 %v10229
    %v10486 = vunpack.c.h.b16 %v10229
    %v10487 = vunpack.c.l.b16 %v10230
    %v10488 = vunpack.c.h.b16 %v10230
    %v10489 = vunpack.c.l.b16 %v10231
    %v10490 = vunpack.c.h.b16 %v10231
    %v10491 = vunpack.c.l.b16 %v10232
    %v10492 = vunpack.c.h.b16 %v10232
    %v10493 = vunpack.c.l.b16 %v10233
    %v10494 = vunpack.c.h.b16 %v10233
    %v10495 = vunpack.c.l.b16 %v10234
    %v10496 = vunpack.c.h.b16 %v10234
    %v10497 = vunpack.c.l.b16 %v10235
    %v10498 = vunpack.c.h.b16 %v10235
    %v10499 = vunpack.c.l.b16 %v10236
    %v10500 = vunpack.c.h.b16 %v10236
    %v10501 = vunpack.c.l.b16 %v10237
    %v10502 = vunpack.c.h.b16 %v10237
    %v10503 = vunpack.c.l.b16 %v10238
    %v10504 = vunpack.c.h.b16 %v10238
    %v10505 = vunpack.c.l.b16 %v10239
    %v10506 = vunpack.c.h.b16 %v10239
    %v10507 = vunpack.c.l.b16 %v10240
    %v10508 = vunpack.c.h.b16 %v10240
    %v10509 = vunpack.c.l.b16 %v10241
    %v10510 = vunpack.c.h.b16 %v10241
    %v10511 = vunpack.c.l.b16 %v10242
    %v10512 = vunpack.c.h.b16 %v10242
    %v10513 = vunpack.c.l.b16 %v10243
    %v10514 = vunpack.c.h.b16 %v10243
    %v10515 = vunpack.c.l.b16 %v10244
    %v10516 = vunpack.c.h.b16 %v10244
    %v10517 = vunpack.c.l.b16 %v10245
    %v10518 = vunpack.c.h.b16 %v10245
    %v10519 = vunpack.c.l.b16 %v10246
    %v10520 = vunpack.c.h.b16 %v10246
    %v10521 = vunpack.c.l.b16 %v10247
    %v10522 = vunpack.c.h.b16 %v10247
    %v10523 = vunpack.c.l.b16 %v10248
    %v10524 = vunpack.c.h.b16 %v10248
    %v10525 = vunpack.c.l.b16 %v10249
    %v10526 = vunpack.c.h.b16 %v10249
    %v10527 = vunpack.c.l.b16 %v10250
    %v10528 = vunpack.c.h.b16 %v10250
    %v10529 = vunpack.c.l.b16 %v10251
    %v10530 = vunpack.c.h.b16 %v10251
    %v10531 = vunpack.c.l.b16 %v10252
    %v10532 = vunpack.c.h.b16 %v10252
    %v10533 = vunpack.c.l.b16 %v10253
    %v10534 = vunpack.c.h.b16 %v10253
    %v10535 = vunpack.c.l.b16 %v10254
    %v10536 = vunpack.c.h.b16 %v10254
    %v10537 = vunpack.c.l.b16 %v10255
    %v10538 = vunpack.c.h.b16 %v10255
    %v10539 = vunpack.c.l.b16 %v10256
    %v10540 = vunpack.c.h.b16 %v10256
    %v10541 = vunpack.c.l.b16 %v10257
    %v10542 = vunpack.c.h.b16 %v10257
    %v10543 = vunpack.c.l.b16 %v10258
    %v10544 = vunpack.c.h.b16 %v10258
    %v10545 = vunpack.c.l.b16 %v10259
    %v10546 = vunpack.c.h.b16 %v10259
    %v10547 = vunpack.c.l.b16 %v10260
    %v10548 = vunpack.c.h.b16 %v10260
    %v10549 = vunpack.c.l.b16 %v10261
    %v10550 = vunpack.c.h.b16 %v10261
    %v10551 = vunpack.c.l.b16 %v10262
    %v10552 = vunpack.c.h.b16 %v10262
    %v10553 = vunpack.c.l.b16 %v10263
    %v10554 = vunpack.c.h.b16 %v10263
    %v10555 = vunpack.c.l.b16 %v10264
    %v10556 = vunpack.c.h.b16 %v10264
    %v10557 = vunpack.c.l.b16 %v10265
    %v10558 = vunpack.c.h.b16 %v10265
    %v10559 = vunpack.c.l.b16 %v10266
    %v10560 = vunpack.c.h.b16 %v10266
    %v10561 = vunpack.c.l.b16 %v10267
    %v10562 = vunpack.c.h.b16 %v10267
    %v10563 = vunpack.c.l.b16 %v10268
    %v10564 = vunpack.c.h.b16 %v10268
    %v10565 = vunpack.c.l.b16 %v10269
    %v10566 = vunpack.c.h.b16 %v10269
    %v10567 = vunpack.c.l.b16 %v10270
    %v10568 = vunpack.c.h.b16 %v10270
    %v10569 = vunpack.c.l.b16 %v10271
    %v10570 = vunpack.c.h.b16 %v10271
    %v10571 = vunpack.c.l.b16 %v10272
    %v10572 = vunpack.c.h.b16 %v10272
    %v10573 = vunpack.c.l.b16 %v10273
    %v10574 = vunpack.c.h.b16 %v10273
    %v10575 = vunpack.c.l.b16 %v10274
    %v10576 = vunpack.c.h.b16 %v10274
    %v10577 = vunpack.c.l.b16 %v10275
    %v10578 = vunpack.c.h.b16 %v10275
    %v10579 = vunpack.c.l.b16 %v10276
    %v10580 = vunpack.c.h.b16 %v10276
    %v10581 = vunpack.c.l.b16 %v10277
    %v10582 = vunpack.c.h.b16 %v10277
    %v10583 = vunpack.c.l.b16 %v10278
    %v10584 = vunpack.c.h.b16 %v10278
    %v10585 = vunpack.c.l.b16 %v10279
    %v10586 = vunpack.c.h.b16 %v10279
    %v10587 = vunpack.c.l.b16 %v10280
    %v10588 = vunpack.c.h.b16 %v10280
    %v10589 = vunpack.c.l.b16 %v10281
    %v10590 = vunpack.c.h.b16 %v10281
    %v10591 = vunpack.c.l.b16 %v10282
    %v10592 = vunpack.c.h.b16 %v10282
    %v10593 = vunpack.c.l.b16 %v10283
    %v10594 = vunpack.c.h.b16 %v10283
    %v10595 = vunpack.c.l.b16 %v10284
    %v10596 = vunpack.c.h.b16 %v10284
    %v10597 = vunpack.c.l.b16 %v10285
    %v10598 = vunpack.c.h.b16 %v10285
    %v10599 = vunpack.c.l.b16 %v10286
    %v10600 = vunpack.c.h.b16 %v10286
    %v10601 = vunpack.c.l.b16 %v10287
    %v10602 = vunpack.c.h.b16 %v10287
    %v10603 = vunpack.c.l.b16 %v10288
    %v10604 = vunpack.c.h.b16 %v10288
    %v10605 = vunpack.c.l.b16 %v10289
    %v10606 = vunpack.c.h.b16 %v10289
    %v10607 = vunpack.c.l.b16 %v10290
    %v10608 = vunpack.c.h.b16 %v10290
    %v10609 = vunpack.c.l.b16 %v10291
    %v10610 = vunpack.c.h.b16 %v10291
    %v10611 = vunpack.c.l.b16 %v10292
    %v10612 = vunpack.c.h.b16 %v10292
    %v10613 = vunpack.c.l.b16 %v10293
    %v10614 = vunpack.c.h.b16 %v10293
    %v10615 = vunpack.c.l.b16 %v10294
    %v10616 = vunpack.c.h.b16 %v10294
    %v10617 = vunpack.c.l.b16 %v10295
    %v10618 = vunpack.c.h.b16 %v10295
    %v10619 = vunpack.c.l.b16 %v10296
    %v10620 = vunpack.c.h.b16 %v10296
    %v10621 = vunpack.c.l.b16 %v10297
    %v10622 = vunpack.c.h.b16 %v10297
    %v10623 = vunpack.c.l.b16 %v10298
    %v10624 = vunpack.c.h.b16 %v10298
    %v10625 = vunpack.c.l.b16 %v10299
    %v10626 = vunpack.c.h.b16 %v10299
    %v10627 = vunpack.c.l.b16 %v10300
    %v10628 = vunpack.c.h.b16 %v10300
    %v10629 = vunpack.c.l.b16 %v10301
    %v10630 = vunpack.c.h.b16 %v10301
    %v10631 = vunpack.c.l.b16 %v10302
    %v10632 = vunpack.c.h.b16 %v10302
    %v10633 = vunpack.c.l.b16 %v10303
    %v10634 = vunpack.c.h.b16 %v10303
    %v10635 = vunpack.c.l.b16 %v10304
    %v10636 = vunpack.c.h.b16 %v10304
    %v10637 = vunpack.c.l.b16 %v10305
    %v10638 = vunpack.c.h.b16 %v10305
    %v10639 = vunpack.c.l.b16 %v10306
    %v10640 = vunpack.c.h.b16 %v10306
    %v10641 = vunpack.c.l.b16 %v10307
    %v10642 = vunpack.c.h.b16 %v10307
    %v10643 = vunpack.c.l.b16 %v10308
    %v10644 = vunpack.c.h.b16 %v10308
    %v10645 = vunpack.c.l.b16 %v10309
    %v10646 = vunpack.c.h.b16 %v10309
    %v10647 = vunpack.c.l.b16 %v10310
    %v10648 = vunpack.c.h.b16 %v10310
    %v10649 = vunpack.c.l.b16 %v10311
    %v10650 = vunpack.c.h.b16 %v10311
    %v10651 = vunpack.c.l.b16 %v10312
    %v10652 = vunpack.c.h.b16 %v10312
    %v10653 = vunpack.c.l.b16 %v10313
    %v10654 = vunpack.c.h.b16 %v10313
    %v10655 = vunpack.c.l.b16 %v10314
    %v10656 = vunpack.c.h.b16 %v10314
    %v10657 = vunpack.c.l.b16 %v10315
    %v10658 = vunpack.c.h.b16 %v10315
    %v10659 = vunpack.c.l.b16 %v10316
    %v10660 = vunpack.c.h.b16 %v10316
    %v10661 = vunpack.c.l.b16 %v10317
    %v10662 = vunpack.c.h.b16 %v10317
    %v10663 = vunpack.c.l.b16 %v10318
    %v10664 = vunpack.c.h.b16 %v10318
    %v10665 = vunpack.c.l.b16 %v10319
    %v10666 = vunpack.c.h.b16 %v10319
    %v10667 = vunpack.c.l.b16 %v10320
    %v10668 = vunpack.c.h.b16 %v10320
    %v10669 = vunpack.c.l.b16 %v10321
    %v10670 = vunpack.c.h.b16 %v10321
    %v10671 = vunpack.c.l.b16 %v10322
    %v10672 = vunpack.c.h.b16 %v10322
    %v10673 = vunpack.c.l.b16 %v10323
    %v10674 = vunpack.c.h.b16 %v10323
    %v10675 = vunpack.c.l.b16 %v10324
    %v10676 = vunpack.c.h.b16 %v10324
    %v10677 = vunpack.c.l.b16 %v10325
    %v10678 = vunpack.c.h.b16 %v10325
    %v10679 = vunpack.c.l.b16 %v10326
    %v10680 = vunpack.c.h.b16 %v10326
    %v10681 = vunpack.c.l.b16 %v10327
    %v10682 = vunpack.c.h.b16 %v10327
    %v10683 = vunpack.c.l.b16 %v10328
    %v10684 = vunpack.c.h.b16 %v10328
    %v10685 = vunpack.c.l.b16 %v10329
    %v10686 = vunpack.c.h.b16 %v10329
    %v10687 = vunpack.c.l.b16 %v10330
    %v10688 = vunpack.c.h.b16 %v10330
    %v10689 = vunpack.c.l.b16 %v10331
    %v10690 = vunpack.c.h.b16 %v10331
    %v10691 = vunpack.c.l.b16 %v10332
    %v10692 = vunpack.c.h.b16 %v10332
    %v10693 = vunpack.c.l.b16 %v10333
    %v10694 = vunpack.c.h.b16 %v10333
    %v10695 = vunpack.c.l.b16 %v10334
    %v10696 = vunpack.c.h.b16 %v10334
    %v10697 = vunpack.c.l.b16 %v10335
    %v10698 = vunpack.c.h.b16 %v10335
    %v10699 = vunpack.c.l.b16 %v10336
    %v10700 = vunpack.c.h.b16 %v10336
    %v10701 = vunpack.c.l.b16 %v10337
    %v10702 = vunpack.c.h.b16 %v10337
    %v10703 = vunpack.c.l.b16 %v10338
    %v10704 = vunpack.c.h.b16 %v10338
    %v10705 = vunpack.c.l.b16 %v10339
    %v10706 = vunpack.c.h.b16 %v10339
    %v10707 = vunpack.c.l.b16 %v10340
    %v10708 = vunpack.c.h.b16 %v10340
    %v10709 = vunpack.c.l.b16 %v10341
    %v10710 = vunpack.c.h.b16 %v10341
    %v10711 = vunpack.c.l.b16 %v10342
    %v10712 = vunpack.c.h.b16 %v10342
    %v10713 = vunpack.c.l.b16 %v10343
    %v10714 = vunpack.c.h.b16 %v10343
    %v10715 = vunpack.c.l.b16 %v10344
    %v10716 = vunpack.c.h.b16 %v10344
    %v10717 = vunpack.c.l.b16 %v10345
    %v10718 = vunpack.c.h.b16 %v10345
    %v10719 = vunpack.c.l.b16 %v10346
    %v10720 = vunpack.c.h.b16 %v10346
    %v10721 = vunpack.c.l.b16 %v10347
    %v10722 = vunpack.c.h.b16 %v10347
    %v10723 = vunpack.c.l.b16 %v10348
    %v10724 = vunpack.c.h.b16 %v10348
    %v10725 = vunpack.c.l.b16 %v10349
    %v10726 = vunpack.c.h.b16 %v10349
    %v10727 = vunpack.c.l.b16 %v10350
    %v10728 = vunpack.c.h.b16 %v10350
    %v10729 = vunpack.c.l.b16 %v10351
    %v10730 = vunpack.c.h.b16 %v10351
    %v10731 = vunpack.c.l.b16 %v10352
    %v10732 = vunpack.c.h.b16 %v10352
    %v10733 = vunpack.c.l.b16 %v10353
    %v10734 = vunpack.c.h.b16 %v10353
    %v10735 = vunpack.c.l.b16 %v10354
    %v10736 = vunpack.c.h.b16 %v10354
    %v10737 = vunpack.c.l.b16 %v10355
    %v10738 = vunpack.c.h.b16 %v10355
    %v10739 = vunpack.c.l.b16 %v10356
    %v10740 = vunpack.c.h.b16 %v10356
    %v10741 = vpack.c.b16 %v10493, %v10485
    %v10742 = vpack.c.b16 %v10494, %v10486
    %v10743 = vpack.c.b16 %v10495, %v10487
    %v10744 = vpack.c.b16 %v10496, %v10488
    %v10745 = vpack.c.b16 %v10497, %v10489
    %v10746 = vpack.c.b16 %v10498, %v10490
    %v10747 = vpack.c.b16 %v10499, %v10491
    %v10748 = vpack.c.b16 %v10500, %v10492
    %v10749 = vpack.c.b16 %v10509, %v10501
    %v10750 = vpack.c.b16 %v10510, %v10502
    %v10751 = vpack.c.b16 %v10511, %v10503
    %v10752 = vpack.c.b16 %v10512, %v10504
    %v10753 = vpack.c.b16 %v10513, %v10505
    %v10754 = vpack.c.b16 %v10514, %v10506
    %v10755 = vpack.c.b16 %v10515, %v10507
    %v10756 = vpack.c.b16 %v10516, %v10508
    %v10757 = vpack.c.b16 %v10525, %v10517
    %v10758 = vpack.c.b16 %v10526, %v10518
    %v10759 = vpack.c.b16 %v10527, %v10519
    %v10760 = vpack.c.b16 %v10528, %v10520
    %v10761 = vpack.c.b16 %v10529, %v10521
    %v10762 = vpack.c.b16 %v10530, %v10522
    %v10763 = vpack.c.b16 %v10531, %v10523
    %v10764 = vpack.c.b16 %v10532, %v10524
    %v10765 = vpack.c.b16 %v10541, %v10533
    %v10766 = vpack.c.b16 %v10542, %v10534
    %v10767 = vpack.c.b16 %v10543, %v10535
    %v10768 = vpack.c.b16 %v10544, %v10536
    %v10769 = vpack.c.b16 %v10545, %v10537
    %v10770 = vpack.c.b16 %v10546, %v10538
    %v10771 = vpack.c.b16 %v10547, %v10539
    %v10772 = vpack.c.b16 %v10548, %v10540
    %v10773 = vpack.c.b16 %v10557, %v10549
    %v10774 = vpack.c.b16 %v10558, %v10550
    %v10775 = vpack.c.b16 %v10559, %v10551
    %v10776 = vpack.c.b16 %v10560, %v10552
    %v10777 = vpack.c.b16 %v10561, %v10553
    %v10778 = vpack.c.b16 %v10562, %v10554
    %v10779 = vpack.c.b16 %v10563, %v10555
    %v10780 = vpack.c.b16 %v10564, %v10556
    %v10781 = vpack.c.b16 %v10573, %v10565
    %v10782 = vpack.c.b16 %v10574, %v10566
    %v10783 = vpack.c.b16 %v10575, %v10567
    %v10784 = vpack.c.b16 %v10576, %v10568
    %v10785 = vpack.c.b16 %v10577, %v10569
    %v10786 = vpack.c.b16 %v10578, %v10570
    %v10787 = vpack.c.b16 %v10579, %v10571
    %v10788 = vpack.c.b16 %v10580, %v10572
    %v10789 = vpack.c.b16 %v10589, %v10581
    %v10790 = vpack.c.b16 %v10590, %v10582
    %v10791 = vpack.c.b16 %v10591, %v10583
    %v10792 = vpack.c.b16 %v10592, %v10584
    %v10793 = vpack.c.b16 %v10593, %v10585
    %v10794 = vpack.c.b16 %v10594, %v10586
    %v10795 = vpack.c.b16 %v10595, %v10587
    %v10796 = vpack.c.b16 %v10596, %v10588
    %v10797 = vpack.c.b16 %v10605, %v10597
    %v10798 = vpack.c.b16 %v10606, %v10598
    %v10799 = vpack.c.b16 %v10607, %v10599
    %v10800 = vpack.c.b16 %v10608, %v10600
    %v10801 = vpack.c.b16 %v10609, %v10601
    %v10802 = vpack.c.b16 %v10610, %v10602
    %v10803 = vpack.c.b16 %v10611, %v10603
    %v10804 = vpack.c.b16 %v10612, %v10604
    %v10805 = vpack.c.b16 %v10621, %v10613
    %v10806 = vpack.c.b16 %v10622, %v10614
    %v10807 = vpack.c.b16 %v10623, %v10615
    %v10808 = vpack.c.b16 %v10624, %v10616
    %v10809 = vpack.c.b16 %v10625, %v10617
    %v10810 = vpack.c.b16 %v10626, %v10618
    %v10811 = vpack.c.b16 %v10627, %v10619
    %v10812 = vpack.c.b16 %v10628, %v10620
    %v10813 = vpack.c.b16 %v10637, %v10629
    %v10814 = vpack.c.b16 %v10638, %v10630
    %v10815 = vpack.c.b16 %v10639, %v10631
    %v10816 = vpack.c.b16 %v10640, %v10632
    %v10817 = vpack.c.b16 %v10641, %v10633
    %v10818 = vpack.c.b16 %v10642, %v10634
    %v10819 = vpack.c.b16 %v10643, %v10635
    %v10820 = vpack.c.b16 %v10644, %v10636
    %v10821 = vpack.c.b16 %v10653, %v10645
    %v10822 = vpack.c.b16 %v10654, %v10646
    %v10823 = vpack.c.b16 %v10655, %v10647
    %v10824 = vpack.c.b16 %v10656, %v10648
    %v10825 = vpack.c.b16 %v10657, %v10649
    %v10826 = vpack.c.b16 %v10658, %v10650
    %v10827 = vpack.c.b16 %v10659, %v10651
    %v10828 = vpack.c.b16 %v10660, %v10652
    %v10829 = vpack.c.b16 %v10669, %v10661
    %v10830 = vpack.c.b16 %v10670, %v10662
    %v10831 = vpack.c.b16 %v10671, %v10663
    %v10832 = vpack.c.b16 %v10672, %v10664
    %v10833 = vpack.c.b16 %v10673, %v10665
    %v10834 = vpack.c.b16 %v10674, %v10666
    %v10835 = vpack.c.b16 %v10675, %v10667
    %v10836 = vpack.c.b16 %v10676, %v10668
    %v10837 = vpack.c.b16 %v10685, %v10677
    %v10838 = vpack.c.b16 %v10686, %v10678
    %v10839 = vpack.c.b16 %v10687, %v10679
    %v10840 = vpack.c.b16 %v10688, %v10680
    %v10841 = vpack.c.b16 %v10689, %v10681
    %v10842 = vpack.c.b16 %v10690, %v10682
    %v10843 = vpack.c.b16 %v10691, %v10683
    %v10844 = vpack.c.b16 %v10692, %v10684
    %v10845 = vpack.c.b16 %v10701, %v10693
    %v10846 = vpack.c.b16 %v10702, %v10694
    %v10847 = vpack.c.b16 %v10703, %v10695
    %v10848 = vpack.c.b16 %v10704, %v10696
    %v10849 = vpack.c.b16 %v10705, %v10697
    %v10850 = vpack.c.b16 %v10706, %v10698
    %v10851 = vpack.c.b16 %v10707, %v10699
    %v10852 = vpack.c.b16 %v10708, %v10700
    %v10853 = vpack.c.b16 %v10717, %v10709
    %v10854 = vpack.c.b16 %v10718, %v10710
    %v10855 = vpack.c.b16 %v10719, %v10711
    %v10856 = vpack.c.b16 %v10720, %v10712
    %v10857 = vpack.c.b16 %v10721, %v10713
    %v10858 = vpack.c.b16 %v10722, %v10714
    %v10859 = vpack.c.b16 %v10723, %v10715
    %v10860 = vpack.c.b16 %v10724, %v10716
    %v10861 = vpack.c.b16 %v10733, %v10725
    %v10862 = vpack.c.b16 %v10734, %v10726
    %v10863 = vpack.c.b16 %v10735, %v10727
    %v10864 = vpack.c.b16 %v10736, %v10728
    %v10865 = vpack.c.b16 %v10737, %v10729
    %v10866 = vpack.c.b16 %v10738, %v10730
    %v10867 = vpack.c.b16 %v10739, %v10731
    %v10868 = vpack.c.b16 %v10740, %v10732
    %10997 = vmatpush.bf16.msra.mxu0 %v10797
    %10998 = vmatpush.bf16.msra.mxu0 %v10789
    %10999 = vmatpush.bf16.msra.mxu0 %v10781
    %11000 = vmatpush.bf16.msra.mxu0 %v10773
    %11001 = vmatpush.bf16.msra.mxu0 %v10765
    %11002 = vmatpush.bf16.msra.mxu0 %v10757
    %11003 = vmatpush.bf16.msra.mxu0 %v10749
    %11004 = vmatpush.bf16.msra.mxu0 %v10741
    %11005 = vmatmul.bf16.gmra.mxu0 %v10227
    %v11006 = vpop.f32.mrf.mxu0
    %v11007 = vadd.f32 0.0, %v11006
    %v11008 = vpop.f32.mrf.mxu0
    %11009 = vdwg.mxu0
    %11010 = vmatpush.bf16.msra.mxu0 %v10861
    %11011 = vmatpush.bf16.msra.mxu0 %v10853
    %11012 = vmatpush.bf16.msra.mxu0 %v10845
    %11013 = vmatpush.bf16.msra.mxu0 %v10837
    %11014 = vmatpush.bf16.msra.mxu0 %v10829
    %11015 = vmatpush.bf16.msra.mxu0 %v10821
    %11016 = vmatpush.bf16.msra.mxu0 %v10813
    %11017 = vmatpush.bf16.msra.mxu0 %v10805
    %11018 = vmatmul.bf16.gmra.mxu0 %v10228
    %v11019 = vpop.f32.mrf.mxu0
    %v11020 = vadd.f32 %v11007, %v11019
    %v11021 = vpop.f32.mrf.mxu0
    %11022 = vdwg.mxu0
    %11023 = vmatpush.bf16.msra.mxu0 %v10798
    %11024 = vmatpush.bf16.msra.mxu0 %v10790
    %11025 = vmatpush.bf16.msra.mxu0 %v10782
    %11026 = vmatpush.bf16.msra.mxu0 %v10774
    %11027 = vmatpush.bf16.msra.mxu0 %v10766
    %11028 = vmatpush.bf16.msra.mxu0 %v10758
    %11029 = vmatpush.bf16.msra.mxu0 %v10750
    %11030 = vmatpush.bf16.msra.mxu0 %v10742
    %11031 = vmatmul.bf16.gmra.mxu0 %v10227
    %v11032 = vpop.f32.mrf.mxu0
    %v11033 = vadd.f32 0.0, %v11032
    %v11034 = vpop.f32.mrf.mxu0
    %11035 = vdwg.mxu0
    %11036 = vmatpush.bf16.msra.mxu0 %v10862
    %11037 = vmatpush.bf16.msra.mxu0 %v10854
    %11038 = vmatpush.bf16.msra.mxu0 %v10846
    %11039 = vmatpush.bf16.msra.mxu0 %v10838
    %11040 = vmatpush.bf16.msra.mxu0 %v10830
    %11041 = vmatpush.bf16.msra.mxu0 %v10822
    %11042 = vmatpush.bf16.msra.mxu0 %v10814
    %11043 = vmatpush.bf16.msra.mxu0 %v10806
    %11044 = vmatmul.bf16.gmra.mxu0 %v10228
    %v11045 = vpop.f32.mrf.mxu0
    %v11046 = vadd.f32 %v11033, %v11045
    %v11047 = vpop.f32.mrf.mxu0
    %11048 = vdwg.mxu0
    %11049 = vmatpush.bf16.msra.mxu0 %v10799
    %11050 = vmatpush.bf16.msra.mxu0 %v10791
    %11051 = vmatpush.bf16.msra.mxu0 %v10783
    %11052 = vmatpush.bf16.msra.mxu0 %v10775
    %11053 = vmatpush.bf16.msra.mxu0 %v10767
    %11054 = vmatpush.bf16.msra.mxu0 %v10759
    %11055 = vmatpush.bf16.msra.mxu0 %v10751
    %11056 = vmatpush.bf16.msra.mxu0 %v10743
    %11057 = vmatmul.bf16.gmra.mxu0 %v10227
    %v11058 = vpop.f32.mrf.mxu0
    %v11059 = vadd.f32 0.0, %v11058
    %v11060 = vpop.f32.mrf.mxu0
    %11061 = vdwg.mxu0
    %11062 = vmatpush.bf16.msra.mxu0 %v10863
    %11063 = vmatpush.bf16.msra.mxu0 %v10855
    %11064 = vmatpush.bf16.msra.mxu0 %v10847
    %11065 = vmatpush.bf16.msra.mxu0 %v10839
    %11066 = vmatpush.bf16.msra.mxu0 %v10831
    %11067 = vmatpush.bf16.msra.mxu0 %v10823
    %11068 = vmatpush.bf16.msra.mxu0 %v10815
    %11069 = vmatpush.bf16.msra.mxu0 %v10807
    %11070 = vmatmul.bf16.gmra.mxu0 %v10228
    %v11071 = vpop.f32.mrf.mxu0
    %v11072 = vadd.f32 %v11059, %v11071
    %v11073 = vpop.f32.mrf.mxu0
    %11074 = vdwg.mxu0
    %11075 = vmatpush.bf16.msra.mxu0 %v10800
    %11076 = vmatpush.bf16.msra.mxu0 %v10792
    %11077 = vmatpush.bf16.msra.mxu0 %v10784
    %11078 = vmatpush.bf16.msra.mxu0 %v10776
    %11079 = vmatpush.bf16.msra.mxu0 %v10768
    %11080 = vmatpush.bf16.msra.mxu0 %v10760
    %11081 = vmatpush.bf16.msra.mxu0 %v10752
    %11082 = vmatpush.bf16.msra.mxu0 %v10744
    %11083 = vmatmul.bf16.gmra.mxu0 %v10227
    %v11084 = vpop.f32.mrf.mxu0
    %v11085 = vadd.f32 0.0, %v11084
    %v11086 = vpop.f32.mrf.mxu0
    %11087 = vdwg.mxu0
    %11088 = vmatpush.bf16.msra.mxu0 %v10864
    %11089 = vmatpush.bf16.msra.mxu0 %v10856
    %11090 = vmatpush.bf16.msra.mxu0 %v10848
    %11091 = vmatpush.bf16.msra.mxu0 %v10840
    %11092 = vmatpush.bf16.msra.mxu0 %v10832
    %11093 = vmatpush.bf16.msra.mxu0 %v10824
    %11094 = vmatpush.bf16.msra.mxu0 %v10816
    %11095 = vmatpush.bf16.msra.mxu0 %v10808
    %11096 = vmatmul.bf16.gmra.mxu0 %v10228
    %v11097 = vpop.f32.mrf.mxu0
    %v11098 = vadd.f32 %v11085, %v11097
    %v11099 = vpop.f32.mrf.mxu0
    %11100 = vdwg.mxu0
    %11101 = vmatpush.bf16.msra.mxu0 %v10801
    %11102 = vmatpush.bf16.msra.mxu0 %v10793
    %11103 = vmatpush.bf16.msra.mxu0 %v10785
    %11104 = vmatpush.bf16.msra.mxu0 %v10777
    %11105 = vmatpush.bf16.msra.mxu0 %v10769
    %11106 = vmatpush.bf16.msra.mxu0 %v10761
    %11107 = vmatpush.bf16.msra.mxu0 %v10753
    %11108 = vmatpush.bf16.msra.mxu0 %v10745
    %11109 = vmatmul.bf16.gmra.mxu0 %v10227
    %v11110 = vpop.f32.mrf.mxu0
    %v11111 = vadd.f32 0.0, %v11110
    %v11112 = vpop.f32.mrf.mxu0
    %11113 = vdwg.mxu0
    %11114 = vmatpush.bf16.msra.mxu0 %v10865
    %11115 = vmatpush.bf16.msra.mxu0 %v10857
    %11116 = vmatpush.bf16.msra.mxu0 %v10849
    %11117 = vmatpush.bf16.msra.mxu0 %v10841
    %11118 = vmatpush.bf16.msra.mxu0 %v10833
    %11119 = vmatpush.bf16.msra.mxu0 %v10825
    %11120 = vmatpush.bf16.msra.mxu0 %v10817
    %11121 = vmatpush.bf16.msra.mxu0 %v10809
    %11122 = vmatmul.bf16.gmra.mxu0 %v10228
    %v11123 = vpop.f32.mrf.mxu0
    %v11124 = vadd.f32 %v11111, %v11123
    %v11125 = vpop.f32.mrf.mxu0
    %11126 = vdwg.mxu0
    %11127 = vmatpush.bf16.msra.mxu0 %v10802
    %11128 = vmatpush.bf16.msra.mxu0 %v10794
    %11129 = vmatpush.bf16.msra.mxu0 %v10786
    %11130 = vmatpush.bf16.msra.mxu0 %v10778
    %11131 = vmatpush.bf16.msra.mxu0 %v10770
    %11132 = vmatpush.bf16.msra.mxu0 %v10762
    %11133 = vmatpush.bf16.msra.mxu0 %v10754
    %11134 = vmatpush.bf16.msra.mxu0 %v10746
    %11135 = vmatmul.bf16.gmra.mxu0 %v10227
    %v11136 = vpop.f32.mrf.mxu0
    %v11137 = vadd.f32 0.0, %v11136
    %v11138 = vpop.f32.mrf.mxu0
    %11139 = vdwg.mxu0
    %11140 = vmatpush.bf16.msra.mxu0 %v10866
    %11141 = vmatpush.bf16.msra.mxu0 %v10858
    %11142 = vmatpush.bf16.msra.mxu0 %v10850
    %11143 = vmatpush.bf16.msra.mxu0 %v10842
    %11144 = vmatpush.bf16.msra.mxu0 %v10834
    %11145 = vmatpush.bf16.msra.mxu0 %v10826
    %11146 = vmatpush.bf16.msra.mxu0 %v10818
    %11147 = vmatpush.bf16.msra.mxu0 %v10810
    %11148 = vmatmul.bf16.gmra.mxu0 %v10228
    %v11149 = vpop.f32.mrf.mxu0
    %v11150 = vadd.f32 %v11137, %v11149
    %v11151 = vpop.f32.mrf.mxu0
    %11152 = vdwg.mxu0
    %11153 = vmatpush.bf16.msra.mxu0 %v10803
    %11154 = vmatpush.bf16.msra.mxu0 %v10795
    %11155 = vmatpush.bf16.msra.mxu0 %v10787
    %11156 = vmatpush.bf16.msra.mxu0 %v10779
    %11157 = vmatpush.bf16.msra.mxu0 %v10771
    %11158 = vmatpush.bf16.msra.mxu0 %v10763
    %11159 = vmatpush.bf16.msra.mxu0 %v10755
    %11160 = vmatpush.bf16.msra.mxu0 %v10747
    %11161 = vmatmul.bf16.gmra.mxu0 %v10227
    %v11162 = vpop.f32.mrf.mxu0
    %v11163 = vadd.f32 0.0, %v11162
    %v11164 = vpop.f32.mrf.mxu0
    %11165 = vdwg.mxu0
    %11166 = vmatpush.bf16.msra.mxu0 %v10867
    %11167 = vmatpush.bf16.msra.mxu0 %v10859
    %11168 = vmatpush.bf16.msra.mxu0 %v10851
    %11169 = vmatpush.bf16.msra.mxu0 %v10843
    %11170 = vmatpush.bf16.msra.mxu0 %v10835
    %11171 = vmatpush.bf16.msra.mxu0 %v10827
    %11172 = vmatpush.bf16.msra.mxu0 %v10819
    %11173 = vmatpush.bf16.msra.mxu0 %v10811
    %11174 = vmatmul.bf16.gmra.mxu0 %v10228
    %v11175 = vpop.f32.mrf.mxu0
    %v11176 = vadd.f32 %v11163, %v11175
    %v11177 = vpop.f32.mrf.mxu0
    %11178 = vdwg.mxu0
    %11179 = vmatpush.bf16.msra.mxu0 %v10804
    %11180 = vmatpush.bf16.msra.mxu0 %v10796
    %11181 = vmatpush.bf16.msra.mxu0 %v10788
    %11182 = vmatpush.bf16.msra.mxu0 %v10780
    %11183 = vmatpush.bf16.msra.mxu0 %v10772
    %11184 = vmatpush.bf16.msra.mxu0 %v10764
    %11185 = vmatpush.bf16.msra.mxu0 %v10756
    %11186 = vmatpush.bf16.msra.mxu0 %v10748
    %11187 = vmatmul.bf16.gmra.mxu0 %v10227
    %v11188 = vpop.f32.mrf.mxu0
    %v11189 = vadd.f32 0.0, %v11188
    %v11190 = vpop.f32.mrf.mxu0
    %11191 = vdwg.mxu0
    %11192 = vmatpush.bf16.msra.mxu0 %v10868
    %11193 = vmatpush.bf16.msra.mxu0 %v10860
    %11194 = vmatpush.bf16.msra.mxu0 %v10852
    %11195 = vmatpush.bf16.msra.mxu0 %v10844
    %11196 = vmatpush.bf16.msra.mxu0 %v10836
    %11197 = vmatpush.bf16.msra.mxu0 %v10828
    %11198 = vmatpush.bf16.msra.mxu0 %v10820
    %11199 = vmatpush.bf16.msra.mxu0 %v10812
    %11200 = vmatmul.bf16.gmra.mxu0 %v10228
    %v11201 = vpop.f32.mrf.mxu0
    %v11202 = vadd.f32 %v11189, %v11201
    %v11203 = vpop.f32.mrf.mxu0
    %11204 = vdwg.mxu0
    %v11205 = vadd.f32 %v10127, %v11020
    %v11206 = vadd.f32 %v10140, %v11046
    %v11207 = vadd.f32 %v10153, %v11072
    %v11208 = vadd.f32 %v10166, %v11098
    %v11209 = vadd.f32 %v10179, %v11124
    %v11210 = vadd.f32 %v10192, %v11150
    %v11211 = vadd.f32 %v10205, %v11176
    %v11212 = vadd.f32 %v10218, %v11202
    %v11213 = vld [vmem:[%s16] sm:$0xff]
    %v11215 = vperm.slane %v11213, 0
    %v11216 = vperm.slane %v11213, 1
    %v11217 = vperm.slane %v11213, 2
    %v11218 = vperm.slane %v11213, 3
    %v11219 = vperm.slane %v11213, 4
    %v11220 = vperm.slane %v11213, 5
    %v11221 = vperm.slane %v11213, 6
    %v11222 = vperm.slane %v11213, 7
    %v11231 = vadd.f32 %v11205, %v11215
    %v11232 = vadd.f32 %v11206, %v11216
    %v11233 = vadd.f32 %v11207, %v11217
    %v11234 = vadd.f32 %v11208, %v11218
    %v11235 = vadd.f32 %v11209, %v11219
    %v11236 = vadd.f32 %v11210, %v11220
    %v11237 = vadd.f32 %v11211, %v11221
    %v11238 = vadd.f32 %v11212, %v11222
    %v11239 = vxor.u32 %v11231, 2147483648
    %v11240 = vxor.u32 %v11232, 2147483648
    %v11241 = vmul.f32 %v11239, 1.442695
    %v11242 = vpow.pop %v11241
    %v11243 = vmul.f32 %v11240, 1.442695
    %v11244 = vpow.pop %v11243
    %v11245 = vadd.f32 %v11242, 1.0
    %v11246 = vadd.f32 %v11244, 1.0
    %v11247 = vrcp.pop %v11245
    %v11248 = vmul.f32 %v11245, %v11247
    %v11249 = vsub.f32 1.0, %v11248
    %v11250 = vmul.f32 %v11247, %v11249
    %v11251 = vadd.f32 %v11247, %v11250
    %vm11252 = vweird.f32 %v11245
    %vm11253 = vweird.f32 %v11247
    %vm11254 = vmor %vm11252, %vm11253
    %v11255 = vsel %vm11254, %v11247, %v11251
    %v11256 = vand.u32 2147483647, %v11245
    %vm11257 = vcmp.eq.f32.partialorder %v11256, 8.507059e+37
    %v11258 = vand.u32 %v11245, 2147483648
    %v11259 = vor.u32 1.1754944e-38, %v11258
    %v11260 = vsel %vm11257, %v11259, %v11255
    %v11261 = vmul.f32 1.0, %v11260
    %v11262 = vrcp.pop %v11246
    %v11263 = vmul.f32 %v11246, %v11262
    %v11264 = vsub.f32 1.0, %v11263
    %v11265 = vmul.f32 %v11262, %v11264
    %v11266 = vadd.f32 %v11262, %v11265
    %vm11267 = vweird.f32 %v11246
    %vm11268 = vweird.f32 %v11262
    %vm11269 = vmor %vm11267, %vm11268
    %v11270 = vsel %vm11269, %v11262, %v11266
    %v11271 = vand.u32 2147483647, %v11246
    %vm11272 = vcmp.eq.f32.partialorder %v11271, 8.507059e+37
    %v11273 = vand.u32 %v11246, 2147483648
    %v11274 = vor.u32 1.1754944e-38, %v11273
    %v11275 = vsel %vm11272, %v11274, %v11270
    %v11276 = vmul.f32 1.0, %v11275
    %v11277 = vxor.u32 %v11233, 2147483648
    %v11278 = vxor.u32 %v11234, 2147483648
    %v11279 = vmul.f32 %v11277, 1.442695
    %v11280 = vpow.pop %v11279
    %v11281 = vmul.f32 %v11278, 1.442695
    %v11282 = vpow.pop %v11281
    %v11283 = vadd.f32 %v11280, 1.0
    %v11284 = vadd.f32 %v11282, 1.0
    %v11285 = vrcp.pop %v11283
    %v11286 = vmul.f32 %v11283, %v11285
    %v11287 = vsub.f32 1.0, %v11286
    %v11288 = vmul.f32 %v11285, %v11287
    %v11289 = vadd.f32 %v11285, %v11288
    %vm11290 = vweird.f32 %v11283
    %vm11291 = vweird.f32 %v11285
    %vm11292 = vmor %vm11290, %vm11291
    %v11293 = vsel %vm11292, %v11285, %v11289
    %v11294 = vand.u32 2147483647, %v11283
    %vm11295 = vcmp.eq.f32.partialorder %v11294, 8.507059e+37
    %v11296 = vand.u32 %v11283, 2147483648
    %v11297 = vor.u32 1.1754944e-38, %v11296
    %v11298 = vsel %vm11295, %v11297, %v11293
    %v11299 = vmul.f32 1.0, %v11298
    %v11300 = vrcp.pop %v11284
    %v11301 = vmul.f32 %v11284, %v11300
    %v11302 = vsub.f32 1.0, %v11301
    %v11303 = vmul.f32 %v11300, %v11302
    %v11304 = vadd.f32 %v11300, %v11303
    %vm11305 = vweird.f32 %v11284
    %vm11306 = vweird.f32 %v11300
    %vm11307 = vmor %vm11305, %vm11306
    %v11308 = vsel %vm11307, %v11300, %v11304
    %v11309 = vand.u32 2147483647, %v11284
    %vm11310 = vcmp.eq.f32.partialorder %v11309, 8.507059e+37
    %v11311 = vand.u32 %v11284, 2147483648
    %v11312 = vor.u32 1.1754944e-38, %v11311
    %v11313 = vsel %vm11310, %v11312, %v11308
    %v11314 = vmul.f32 1.0, %v11313
    %v11315 = vtanh.pop %v11235
    %v11316 = vtanh.pop %v11236
    %v11317 = vxor.u32 %v11237, 2147483648
    %v11318 = vxor.u32 %v11238, 2147483648
    %v11319 = vmul.f32 %v11317, 1.442695
    %v11320 = vpow.pop %v11319
    %v11321 = vmul.f32 %v11318, 1.442695
    %v11322 = vpow.pop %v11321
    %v11323 = vadd.f32 %v11320, 1.0
    %v11324 = vadd.f32 %v11322, 1.0
    %v11325 = vrcp.pop %v11323
    %v11326 = vmul.f32 %v11323, %v11325
    %v11327 = vsub.f32 1.0, %v11326
    %v11328 = vmul.f32 %v11325, %v11327
    %v11329 = vadd.f32 %v11325, %v11328
    %vm11330 = vweird.f32 %v11323
    %vm11331 = vweird.f32 %v11325
    %vm11332 = vmor %vm11330, %vm11331
    %v11333 = vsel %vm11332, %v11325, %v11329
    %v11334 = vand.u32 2147483647, %v11323
    %vm11335 = vcmp.eq.f32.partialorder %v11334, 8.507059e+37
    %v11336 = vand.u32 %v11323, 2147483648
    %v11337 = vor.u32 1.1754944e-38, %v11336
    %v11338 = vsel %vm11335, %v11337, %v11333
    %v11339 = vmul.f32 1.0, %v11338
    %v11340 = vrcp.pop %v11324
    %v11341 = vmul.f32 %v11324, %v11340
    %v11342 = vsub.f32 1.0, %v11341
    %v11343 = vmul.f32 %v11340, %v11342
    %v11344 = vadd.f32 %v11340, %v11343
    %vm11345 = vweird.f32 %v11324
    %vm11346 = vweird.f32 %v11340
    %vm11347 = vmor %vm11345, %vm11346
    %v11348 = vsel %vm11347, %v11340, %v11344
    %v11349 = vand.u32 2147483647, %v11324
    %vm11350 = vcmp.eq.f32.partialorder %v11349, 8.507059e+37
    %v11351 = vand.u32 %v11324, 2147483648
    %v11352 = vor.u32 1.1754944e-38, %v11351
    %v11353 = vsel %vm11350, %v11352, %v11348
    %v11354 = vmul.f32 1.0, %v11353
    %v11355 = vld [vmem:[%s23] sm:$0x3]
    %v11357 = vperm.slane %v11355, 0
    %v11358 = vperm.slane %v11355, 1
    %v11361 = vmul.f32 %v11299, %v11357
    %v11362 = vmul.f32 %v11314, %v11358
    %v11363 = vmul.f32 %v11261, %v11315
    %v11364 = vmul.f32 %v11276, %v11316
    %v11365 = vadd.f32 %v11361, %v11363
    %v11366 = vadd.f32 %v11362, %v11364
    %v11367 = vtanh.pop %v11365
    %v11368 = vtanh.pop %v11366
    %v11369 = vmul.f32 %v11339, %v11367
    %v11370 = vmul.f32 %v11354, %v11368
    %v11371 = vld [vmem:[%s17] sm:$0xf]
    %v11372 = vld [vmem:[%s17 + $0x4] sm:$0xf]
    %v11373 = vld [vmem:[%s17 + $0x8] sm:$0xf]
    %v11374 = vld [vmem:[%s17 + $0xc] sm:$0xf]
    %v11375 = vpack.c.bf16 %v11369, %v11369
    %v11376 = vpack.c.bf16 %v11370, %v11370
    %v11377 = vld [vmem:[%s18] sm:$0xf]
    %v11378 = vld [vmem:[%s18 + $0x4] sm:$0xf]
    %v11379 = vld [vmem:[%s18 + $0x8] sm:$0xf]
    %v11380 = vld [vmem:[%s18 + $0xc] sm:$0xf]
    %v11381 = vld [vmem:[%s18 + $0x10] sm:$0xf]
    %v11382 = vld [vmem:[%s18 + $0x14] sm:$0xf]
    %v11383 = vld [vmem:[%s18 + $0x18] sm:$0xf]
    %v11384 = vld [vmem:[%s18 + $0x1c] sm:$0xf]
    %v11385 = vld [vmem:[%s18 + $0x20] sm:$0xf]
    %v11386 = vld [vmem:[%s18 + $0x24] sm:$0xf]
    %v11387 = vld [vmem:[%s18 + $0x28] sm:$0xf]
    %v11388 = vld [vmem:[%s18 + $0x2c] sm:$0xf]
    %v11389 = vld [vmem:[%s18 + $0x30] sm:$0xf]
    %v11390 = vld [vmem:[%s18 + $0x34] sm:$0xf]
    %v11391 = vld [vmem:[%s18 + $0x38] sm:$0xf]
    %v11392 = vld [vmem:[%s18 + $0x3c] sm:$0xf]
    %v11393 = vld [vmem:[%s18 + $0x40] sm:$0xf]
    %v11394 = vld [vmem:[%s18 + $0x44] sm:$0xf]
    %v11395 = vld [vmem:[%s18 + $0x48] sm:$0xf]
    %v11396 = vld [vmem:[%s18 + $0x4c] sm:$0xf]
    %v11397 = vld [vmem:[%s18 + $0x50] sm:$0xf]
    %v11398 = vld [vmem:[%s18 + $0x54] sm:$0xf]
    %v11399 = vld [vmem:[%s18 + $0x58] sm:$0xf]
    %v11400 = vld [vmem:[%s18 + $0x5c] sm:$0xf]
    %v11401 = vld [vmem:[%s18 + $0x60] sm:$0xf]
    %v11402 = vld [vmem:[%s18 + $0x64] sm:$0xf]
    %v11403 = vld [vmem:[%s18 + $0x68] sm:$0xf]
    %v11404 = vld [vmem:[%s18 + $0x6c] sm:$0xf]
    %v11405 = vld [vmem:[%s18 + $0x70] sm:$0xf]
    %v11406 = vld [vmem:[%s18 + $0x74] sm:$0xf]
    %v11407 = vld [vmem:[%s18 + $0x78] sm:$0xf]
    %v11408 = vld [vmem:[%s18 + $0x7c] sm:$0xf]
    %v11441 = vunpack.c.l.b16 %v11377
    %v11442 = vunpack.c.l.b16 %v11378
    %v11443 = vunpack.c.l.b16 %v11379
    %v11444 = vunpack.c.l.b16 %v11380
    %v11445 = vunpack.c.l.b16 %v11381
    %v11446 = vunpack.c.l.b16 %v11382
    %v11447 = vunpack.c.l.b16 %v11383
    %v11448 = vunpack.c.l.b16 %v11384
    %v11449 = vunpack.c.l.b16 %v11385
    %v11450 = vunpack.c.l.b16 %v11386
    %v11451 = vunpack.c.l.b16 %v11387
    %v11452 = vunpack.c.l.b16 %v11388
    %v11453 = vunpack.c.l.b16 %v11389
    %v11454 = vunpack.c.l.b16 %v11390
    %v11455 = vunpack.c.l.b16 %v11391
    %v11456 = vunpack.c.l.b16 %v11392
    %v11457 = vunpack.c.l.b16 %v11393
    %v11458 = vunpack.c.l.b16 %v11394
    %v11459 = vunpack.c.l.b16 %v11395
    %v11460 = vunpack.c.l.b16 %v11396
    %v11461 = vunpack.c.l.b16 %v11397
    %v11462 = vunpack.c.l.b16 %v11398
    %v11463 = vunpack.c.l.b16 %v11399
    %v11464 = vunpack.c.l.b16 %v11400
    %v11465 = vunpack.c.l.b16 %v11401
    %v11466 = vunpack.c.l.b16 %v11402
    %v11467 = vunpack.c.l.b16 %v11403
    %v11468 = vunpack.c.l.b16 %v11404
    %v11469 = vunpack.c.l.b16 %v11405
    %v11470 = vunpack.c.l.b16 %v11406
    %v11471 = vunpack.c.l.b16 %v11407
    %v11472 = vunpack.c.l.b16 %v11408
    %v11473 = vpack.c.b16 %v11442, %v11441
    %v11474 = vpack.c.b16 %v11444, %v11443
    %v11475 = vpack.c.b16 %v11446, %v11445
    %v11476 = vpack.c.b16 %v11448, %v11447
    %v11477 = vpack.c.b16 %v11450, %v11449
    %v11478 = vpack.c.b16 %v11452, %v11451
    %v11479 = vpack.c.b16 %v11454, %v11453
    %v11480 = vpack.c.b16 %v11456, %v11455
    %v11481 = vpack.c.b16 %v11458, %v11457
    %v11482 = vpack.c.b16 %v11460, %v11459
    %v11483 = vpack.c.b16 %v11462, %v11461
    %v11484 = vpack.c.b16 %v11464, %v11463
    %v11485 = vpack.c.b16 %v11466, %v11465
    %v11486 = vpack.c.b16 %v11468, %v11467
    %v11487 = vpack.c.b16 %v11470, %v11469
    %v11488 = vpack.c.b16 %v11472, %v11471
    %11505 = vmatpush.bf16.msra.mxu0 %v11480
    %11506 = vmatpush.bf16.msra.mxu0 %v11479
    %11507 = vmatpush.bf16.msra.mxu0 %v11478
    %11508 = vmatpush.bf16.msra.mxu0 %v11477
    %11509 = vmatpush.bf16.msra.mxu0 %v11476
    %11510 = vmatpush.bf16.msra.mxu0 %v11475
    %11511 = vmatpush.bf16.msra.mxu0 %v11474
    %11512 = vmatpush.bf16.msra.mxu0 %v11473
    %11513 = vmatmul.bf16.gmra.mxu0 %v11375
    %v11514 = vpop.f32.mrf.mxu0
    %v11515 = vadd.f32 0.0, %v11514
    %v11516 = vpop.f32.mrf.mxu0
    %11517 = vdwg.mxu0
    %11518 = vmatpush.bf16.msra.mxu0 %v11488
    %11519 = vmatpush.bf16.msra.mxu0 %v11487
    %11520 = vmatpush.bf16.msra.mxu0 %v11486
    %11521 = vmatpush.bf16.msra.mxu0 %v11485
    %11522 = vmatpush.bf16.msra.mxu0 %v11484
    %11523 = vmatpush.bf16.msra.mxu0 %v11483
    %11524 = vmatpush.bf16.msra.mxu0 %v11482
    %11525 = vmatpush.bf16.msra.mxu0 %v11481
    %11526 = vmatmul.bf16.gmra.mxu0 %v11376
    %v11527 = vpop.f32.mrf.mxu0
    %v11528 = vadd.f32 %v11515, %v11527
    %v11529 = vpop.f32.mrf.mxu0
    %11530 = vdwg.mxu0
    %v11535 = vunpack.c.l.b16 %v11371
    %v11536 = vunpack.c.l.b16 %v11372
    %v11537 = vunpack.c.l.b16 %v11373
    %v11538 = vunpack.c.l.b16 %v11374
    %v11539 = vpack.c.b16 %v11536, %v11535
    %v11540 = vpack.c.b16 %v11538, %v11537
    %11543 = vmatpush.bf16.msra.mxu0 0
    %11544 = vmatpush.bf16.msra.mxu0 0
    %11545 = vmatpush.bf16.msra.mxu0 0
    %11546 = vmatpush.bf16.msra.mxu0 0
    %11547 = vmatpush.bf16.msra.mxu0 0
    %11548 = vmatpush.bf16.msra.mxu0 0
    %11549 = vmatpush.bf16.msra.mxu0 %v11540
    %11550 = vmatpush.bf16.msra.mxu0 %v11539
    %11551 = vmatmul.bf16.gmra.mxu0 %v10115
    %v11552 = vpop.f32.mrf.mxu0
    %v11553 = vadd.f32 %v11528, %v11552
    %v11554 = vpop.f32.mrf.mxu0
    %11555 = vdwg.mxu0
    %v11556 = vld [vmem:[%s19] sm:$0x1]
    %v11557 = vadd.f32 %v11553, %v11556
    %v11558 = vtanh.pop %v11557
    %vm11559 = vcmask 57344
    %11560 = vst.msk [vmem:[#allocation2] sm:$0x1] %vm11559, %v11558
    %v11563 = vrot.slane %v11370, 7
    %vm11564 = vcmask 1040384
    %v11565 = vsel %vm11564, %v11369, %v11563
    %v11567 = vlaneseq
    %vm11568 = vcmp.ge.s32.totalorder %v11567, 0
    %vm11569 = vcmp.lt.s32.totalorder %v11567, 256
    %vm11570 = vmand %vm11568, %vm11569
    %11571 = vst.msk [vmem:[#allocation4] sm:$0x3] %vm11570, %v11565
    %v11574 = vrot.slane %v11366, 7
    %v11575 = vsel %vm11564, %v11365, %v11574
    %11577 = vst.msk [vmem:[#allocation6] sm:$0x3] %vm11570, %v11575
    // Predicated region
    $region98: #{policy_forward.1} parent=1 // pred_check
      _
    $region99: #{policy_forward.1} parent=1 // pred_check_branch
      %11579 = sbr.rel (0) target = $region101
    $region100: #{policy_forward.1} parent=1 // pred_region
      %11581 = vsyncadd [#allocation3], 0
      %s11583 = sshll.u32 [#allocation2], 4
      %s11584 = int_to_ptr.vmem [resolvable:$true] %s11583
      %s11585 = sshll.u32 %s24, 4
      %s11586 = int_to_ptr.hbm [resolvable:$true] %s11585
      %11588 = dma.vmem_to_hbm [thread:$0]  %s11584, 16, %s11586, [#allocation3]
    $region101: #{policy_forward.1} parent=1 // pred_fallthru
      _
    // Predicated region
    $region102: #{policy_forward.1} parent=1 // pred_check
      _
    $region103: #{policy_forward.1} parent=1 // pred_check_branch
      %11590 = sbr.rel (0) target = $region105
    $region104: #{policy_forward.1} parent=1 // pred_region
      %11592 = vsyncadd [#allocation5], 0
      %s11594 = sshll.u32 [#allocation4], 4
      %s11595 = int_to_ptr.vmem [resolvable:$true] %s11594
      %s11596 = sshll.u32 %s25, 4
      %s11597 = int_to_ptr.hbm [resolvable:$true] %s11596
      %11599 = dma.vmem_to_hbm [thread:$0]  %s11595, 32, %s11597, [#allocation5]
    $region105: #{policy_forward.1} parent=1 // pred_fallthru
      _
    // Predicated region
    $region106: #{policy_forward.1} parent=1 // pred_check
      _
    $region107: #{policy_forward.1} parent=1 // pred_check_branch
      %11601 = sbr.rel (0) target = $region109
    $region108: #{policy_forward.1} parent=1 // pred_region
      %11603 = vsyncadd [#allocation5], 0
      %s11605 = sshll.u32 [#allocation6], 4
      %s11606 = int_to_ptr.vmem [resolvable:$true] %s11605
      %s11607 = sshll.u32 %s26, 4
      %s11608 = int_to_ptr.hbm [resolvable:$true] %s11607
      %11610 = dma.vmem_to_hbm [thread:$0]  %s11606, 32, %s11608, [#allocation5]
    $region109: #{policy_forward.1} parent=1 // pred_fallthru
      _
    // Predicated region
    $region110: #{policy_forward.1} parent=1 // pred_check
      _
    $region111: #{policy_forward.1} parent=1 // pred_check_branch
      %11612 = sbr.rel (0) target = $region113
    $region112: #{policy_forward.1} parent=1 // pred_region
      %11614 = dma.done [#allocation3], 16
    $region113: #{policy_forward.1} parent=1 // pred_fallthru
      _
    // Predicated region
    $region114: #{policy_forward.1} parent=1 // pred_check
      _
    $region115: #{policy_forward.1} parent=1 // pred_check_branch
      %11616 = sbr.rel (0) target = $region117
    $region116: #{policy_forward.1} parent=1 // pred_region
      %11618 = dma.done [#allocation5], 32
    $region117: #{policy_forward.1} parent=1 // pred_fallthru
      _
    // Predicated region
    $region118: #{policy_forward.1} parent=1 // pred_check
      _
    $region119: #{policy_forward.1} parent=1 // pred_check_branch
      %11620 = sbr.rel (0) target = $region121
    $region120: #{policy_forward.1} parent=1 // pred_region
      %11622 = dma.done [#allocation5], 32
    $region121: #{policy_forward.1} parent=1 // pred_fallthru
      _
    %11623 = vsyncpa [#allocation3], 1
    %11624 = vsyncpa [#allocation5], 1

</llo_original>
